<compile_context>
chip_gen: v7x
topology: tpu7x:2x2x1
jax: 0.10.0
libtpu: 0.0.40
codegen_flags: <defaults>
</compile_context>

<pallas_src>
import functools

import jax
import jax.numpy as jnp
from jax.experimental import pallas as pl
from jax.experimental.pallas import tpu as pltpu


N_CLASSES = 33
PAD_CLASSES = 128          # lane-dense classifier width (zero-padded, sliced back to 33)
VOCAB = 26
VOCAB_PAD = 32             # embedding table rows padded to 32 (one-hot matmul K dim)


def encoder_classifier_kernel(
    tok_ref,                     # (1, TB, S)  int32 token ids for this batch block
    emb_ref,                     # (VOCAB_PAD, D) f32 embedding table (zero-padded rows)
    wq_ref, bq_ref,              # (L, D, D) bf16, (L, D) f32   (scale pre-folded)
    wk_ref, bk_ref,
    wv_ref, bv_ref,
    wo_ref, bo_ref,
    ln1_g_ref, ln1_b_ref,        # (L, D) f32
    w1_ref, b1_ref,              # (L, D, F) bf16, (L, F) f32
    w2_ref, b2_ref,              # (L, F, D) bf16, (L, D) f32
    ln2_g_ref, ln2_b_ref,        # (L, D) f32
    wc_ref, bc_ref,              # (D, 128) bf16, (1, 128) f32
    out_ref,                     # (1, TB, 128) f32
    *, n_layers, n_heads,
):
    _, TB, S = tok_ref.shape
    VP, D = emb_ref.shape
    N = TB * S
    H = n_heads
    hd = D // H
    eps = 1e-5
    f32 = jnp.float32
    bf16 = jnp.bfloat16

    # ---- in-kernel embedding gather via exact one-hot matmul -----------------
    tok = tok_ref[0]                                                   # (TB, S) int32
    cls_iota = jax.lax.broadcasted_iota(jnp.int32, (TB, S, VP), 2)     # (TB, S, VP)
    onehot = (tok[:, :, None] == cls_iota).astype(f32).reshape(N, VP)  # exact 0/1 rows
    # residual stream in f32, lane-dense (N, D) slab
    x = jnp.dot(onehot, emb_ref[...], preferred_element_type=f32)      # (N, D)

    def layer_norm(v, g, b):
        mu = jnp.mean(v, axis=-1, keepdims=True)
        ms = jnp.mean(v * v, axis=-1, keepdims=True)       # E[x^2] - mu^2: independent reductions
        var = ms - mu * mu
        return (v - mu) * jax.lax.rsqrt(var + eps) * g + b

    for l in range(n_layers):
        xb = x.astype(bf16)

        # --- multi-head self attention ------------------------------------
        # projections: big-M 2-D matmuls, bf16 inputs, f32 accumulation
        q = jnp.dot(xb, wq_ref[l], preferred_element_type=f32) + bq_ref[l]   # scale folded in
        k = jnp.dot(xb, wk_ref[l], preferred_element_type=f32) + bk_ref[l]
        v = jnp.dot(xb, wv_ref[l], preferred_element_type=f32) + bv_ref[l]

        # gather heads onto a leading batch axis: (H*TB, S, hd)
        def split_heads(t):
            t3 = t.reshape(TB, S, D)
            return jnp.concatenate(
                [t3[:, :, h * hd:(h + 1) * hd] for h in range(H)], axis=0)

        qh = split_heads(q).astype(bf16)
        kh = split_heads(k).astype(bf16)
        vh = split_heads(v).astype(bf16)

        # one head-batched contraction for scores and one for PV
        s = jnp.einsum('bqd,bkd->bqk', qh, kh, preferred_element_type=f32)   # (H*TB, S, S)
        s = s - jnp.max(s, axis=-1, keepdims=True)
        p = jnp.exp(s)
        p = p * pl.reciprocal(jnp.sum(p, axis=-1, keepdims=True), approx=True)
        oh = jnp.einsum('bqk,bkd->bqd', p.astype(bf16), vh,
                        preferred_element_type=f32)                          # (H*TB, S, hd)

        # merge heads back onto lanes -> (TB, S, D) -> (N, D)
        attn = jnp.concatenate(
            [oh[h * TB:(h + 1) * TB] for h in range(H)], axis=-1).reshape(N, D)
        attn = jnp.dot(attn.astype(bf16), wo_ref[l],
                       preferred_element_type=f32) + bo_ref[l]

        x = layer_norm(x + attn, ln1_g_ref[l], ln1_b_ref[l])

        # --- feed-forward ---------------------------------------------------
        h1 = jnp.dot(x.astype(bf16), w1_ref[l], preferred_element_type=f32) + b1_ref[l]
        h1 = jnp.maximum(h1, 0.0)
        ff = jnp.dot(h1.astype(bf16), w2_ref[l], preferred_element_type=f32) + b2_ref[l]

        x = layer_norm(x + ff, ln2_g_ref[l], ln2_b_ref[l])

    # x.max(1).values over the sequence axis, then one lane-dense classifier matmul
    pooled = jnp.max(x.reshape(TB, S, D), axis=1)                            # (TB, D)
    logits = jnp.dot(pooled.astype(bf16), wc_ref[...],
                     preferred_element_type=f32) + bc_ref[...]               # (TB, 128)
    out_ref[0] = logits


def _pick_block_b(B, S, H, target_rows=1024, score_budget_bytes=16 * 2**20):
    """Batch fold TB: fill the MXU M dim (TB*S ~ target_rows) while keeping the
    f32 attention-score tensors (H*TB, S, S) within a VMEM budget."""
    tb = max(1, target_rows // max(S, 1))
    per_b_score = 2 * H * S * S * 4            # scores + probabilities, f32
    tb = min(tb, max(1, score_budget_bytes // max(per_b_score, 1)))
    tb = min(tb, B)
    nb = -(-B // tb)                           # ceil div; batch is padded to nb*tb
    return tb, nb


def protein_classifier2(tokens, params, *, n_layers, n_heads, block_b=None):
    """tokens: (B, S) int32 -> logits (B, 33) float32."""
    B, S = tokens.shape
    D = params["emb"].shape[1]
    F = params["w1"].shape[-1]
    hd = D // n_heads

    f32 = jnp.float32
    bf16 = jnp.bfloat16

    if block_b is not None:
        TB = min(block_b, B)
        nb = -(-B // TB)
    else:
        TB, nb = _pick_block_b(B, S, n_heads)
    B_pad = TB * nb
    N = TB * S

    # tokens: pad batch to nb*TB and reshape so every block dim equals a full array dim
    tok = tokens.astype(jnp.int32)
    if B_pad > B:
        tok = jnp.pad(tok, ((0, B_pad - B), (0, 0)))     # pad rows use token 0 (valid id)
    tok3 = tok.reshape(nb, TB, S)

    # embedding table padded to 32 rows (exact one-hot gather inside the kernel)
    emb_p = jnp.zeros((VOCAB_PAD, D), f32).at[:VOCAB].set(params["emb"].astype(f32))

    # fold 1/sqrt(hd) attention scale into the query projection (one-time prep)
    scale = 1.0 / float(hd) ** 0.5
    wq_s = (params["wq"].astype(f32) * scale).astype(bf16)
    bq_s = (params["bq"].astype(f32) * scale)

    # lane-dense, zero-padded classifier weights
    wc_p = jnp.zeros((D, PAD_CLASSES), f32).at[:, :N_CLASSES].set(params["wc"]).astype(bf16)
    bc_p = jnp.zeros((1, PAD_CLASSES), f32).at[:, :N_CLASSES].set(
        params["bc"].reshape(1, N_CLASSES))

    weights = [
        wq_s, bq_s,
        params["wk"].astype(bf16), params["bk"].astype(f32),
        params["wv"].astype(bf16), params["bv"].astype(f32),
        params["wo"].astype(bf16), params["bo"].astype(f32),
        params["ln1_g"].astype(f32), params["ln1_b"].astype(f32),
        params["w1"].astype(bf16), params["b1"].astype(f32),
        params["w2"].astype(bf16), params["b2"].astype(f32),
        params["ln2_g"].astype(f32), params["ln2_b"].astype(f32),
        wc_p, bc_p,
    ]

    def full_spec(w):
        n = w.ndim
        return pl.BlockSpec(w.shape, lambda b, _n=n: (0,) * _n)

    in_specs = [pl.BlockSpec((1, TB, S), lambda b: (b, 0, 0)),   # tokens block
                full_spec(emb_p)]
    in_specs += [full_spec(w) for w in weights]

    kernel = functools.partial(encoder_classifier_kernel,
                               n_layers=n_layers, n_heads=n_heads)

    # --- cost estimate (scheduling hint for XLA around the custom call) -------
    flops_layer = (8 * N * D * D) + (4 * N * S * D) + (4 * N * D * F) + (16 * N * D)
    flops_step = (2 * N * VOCAB_PAD * D) + n_layers * flops_layer + (2 * TB * D * PAD_CLASSES)
    cost = pl.CostEstimate(
        flops=int(nb * flops_step),
        transcendentals=int(nb * n_layers * (n_heads * TB * S * S + 4 * TB * S)),
        bytes_accessed=int(tok3.size * 4 + emb_p.size * 4
                           + sum(int(w.size) * w.dtype.itemsize for w in weights)
                           + nb * TB * PAD_CLASSES * 4),
    )

    # --- VMEM limit sized from actual per-step footprint (capped for v7x's 64 MiB) ---
    weight_bytes = emb_p.size * 4 + sum(int(w.size) * w.dtype.itemsize for w in weights)
    act_bytes = (6 * N * D * 4 + 3 * N * D * 2 + 2 * N * F * 4
                 + 2 * n_heads * TB * S * S * 4 + N * VOCAB_PAD * 4)
    vmem_limit = int(min(max(2 * weight_bytes + 4 * act_bytes + (1 << 20), 32 * 1024 * 1024),
                         64 * 1024 * 1024))

    out = pl.pallas_call(
        kernel,
        out_shape=jax.ShapeDtypeStruct((nb, TB, PAD_CLASSES), jnp.float32),
        grid=(nb,),
        in_specs=in_specs,
        out_specs=pl.BlockSpec((1, TB, PAD_CLASSES), lambda b: (b, 0, 0)),
        compiler_params=pltpu.CompilerParams(
            dimension_semantics=("parallel",),
            vmem_limit_bytes=vmem_limit),
        cost_estimate=cost,
    )(tok3, emb_p, *weights)

    return out.reshape(B_pad, PAD_CLASSES)[:B, :N_CLASSES]     # (B, 33)


def init_params(key, *, D, F, L):
    ks = jax.random.split(key, 12)

    def nrm(k, shape):
        return jax.random.normal(k, shape, jnp.float32) * 0.02

    params = {
        "emb": nrm(ks[0], (VOCAB, D)),
        "wq": nrm(ks[1], (L, D, D)), "bq": jnp.zeros((L, D), jnp.float32),
        "wk": nrm(ks[2], (L, D, D)), "bk": jnp.zeros((L, D), jnp.float32),
        "wv": nrm(ks[3], (L, D, D)), "bv": jnp.zeros((L, D), jnp.float32),
        "wo": nrm(ks[4], (L, D, D)), "bo": jnp.zeros((L, D), jnp.float32),
        "ln1_g": jnp.ones((L, D), jnp.float32), "ln1_b": jnp.zeros((L, D), jnp.float32),
        "w1": nrm(ks[5], (L, D, F)), "b1": jnp.zeros((L, F), jnp.float32),
        "w2": nrm(ks[6], (L, F, D)), "b2": jnp.zeros((L, D), jnp.float32),
        "ln2_g": jnp.ones((L, D), jnp.float32), "ln2_b": jnp.zeros((L, D), jnp.float32),
        "wc": nrm(ks[7], (D, N_CLASSES)),
        "bc": jnp.zeros((1, N_CLASSES), jnp.float32),
    }
    return params


if __name__ == "__main__":
    # Small shapes consistent with the module: dim must divide by n_heads.
    B, S = 2, 8
    D, F, L, H = 128, 256, 3, 8

    key = jax.random.PRNGKey(0)
    kp, kt = jax.random.split(key)
    params = init_params(kp, D=D, F=F, L=L)
    tokens = jax.random.randint(kt, (B, S), 0, VOCAB, dtype=jnp.int32)

    logits = protein_classifier2(tokens, params, n_layers=L, n_heads=H)
    logits = jax.block_until_ready(logits)
    assert logits.shape == (B, N_CLASSES) and logits.dtype == jnp.float32
    print("KERNEL_OK")
</pallas_src>

<mosaic_0001>
module attributes {stable_mosaic.version = 11 : i64} {
  func.func @encoder_classifier_kernel(%arg0: i32, %arg1: memref<1x2x8xi32, #tpu.memory_space<vmem>>, %arg2: memref<32x128xf32, #tpu.memory_space<vmem>>, %arg3: memref<3x128x128xbf16, #tpu.memory_space<vmem>>, %arg4: memref<3x128xf32, #tpu.memory_space<vmem>>, %arg5: memref<3x128x128xbf16, #tpu.memory_space<vmem>>, %arg6: memref<3x128xf32, #tpu.memory_space<vmem>>, %arg7: memref<3x128x128xbf16, #tpu.memory_space<vmem>>, %arg8: memref<3x128xf32, #tpu.memory_space<vmem>>, %arg9: memref<3x128x128xbf16, #tpu.memory_space<vmem>>, %arg10: memref<3x128xf32, #tpu.memory_space<vmem>>, %arg11: memref<3x128xf32, #tpu.memory_space<vmem>>, %arg12: memref<3x128xf32, #tpu.memory_space<vmem>>, %arg13: memref<3x128x256xbf16, #tpu.memory_space<vmem>>, %arg14: memref<3x256xf32, #tpu.memory_space<vmem>>, %arg15: memref<3x256x128xbf16, #tpu.memory_space<vmem>>, %arg16: memref<3x128xf32, #tpu.memory_space<vmem>>, %arg17: memref<3x128xf32, #tpu.memory_space<vmem>>, %arg18: memref<3x128xf32, #tpu.memory_space<vmem>>, %arg19: memref<128x128xbf16, #tpu.memory_space<vmem>>, %arg20: memref<1x128xf32, #tpu.memory_space<vmem>>, %arg21: memref<1x2x128xf32, #tpu.memory_space<vmem>>) attributes {dimension_semantics = [#tpu.dimension_semantics<parallel>], iteration_bounds = array<i64: 1>, scalar_prefetch = 0 : i64, scratch_operands = 0 : i64, tpu.core_type = #tpu.core_type<tc>, window_params = [{transform_indices = @transform_0, window_bounds = array<i64: 1, 2, 8>}, {pipeline_mode = #tpu.pipeline_mode<synchronous>, transform_indices = @transform_1, window_bounds = array<i64: 32, 128>}, {pipeline_mode = #tpu.pipeline_mode<synchronous>, transform_indices = @transform_2, window_bounds = array<i64: 3, 128, 128>}, {pipeline_mode = #tpu.pipeline_mode<synchronous>, transform_indices = @transform_3, window_bounds = array<i64: 3, 128>}, {pipeline_mode = #tpu.pipeline_mode<synchronous>, transform_indices = @transform_4, window_bounds = array<i64: 3, 128, 128>}, {pipeline_mode = #tpu.pipeline_mode<synchronous>, transform_indices = @transform_5, window_bounds = array<i64: 3, 128>}, {pipeline_mode = #tpu.pipeline_mode<synchronous>, transform_indices = @transform_6, window_bounds = array<i64: 3, 128, 128>}, {pipeline_mode = #tpu.pipeline_mode<synchronous>, transform_indices = @transform_7, window_bounds = array<i64: 3, 128>}, {pipeline_mode = #tpu.pipeline_mode<synchronous>, transform_indices = @transform_8, window_bounds = array<i64: 3, 128, 128>}, {pipeline_mode = #tpu.pipeline_mode<synchronous>, transform_indices = @transform_9, window_bounds = array<i64: 3, 128>}, {pipeline_mode = #tpu.pipeline_mode<synchronous>, transform_indices = @transform_10, window_bounds = array<i64: 3, 128>}, {pipeline_mode = #tpu.pipeline_mode<synchronous>, transform_indices = @transform_11, window_bounds = array<i64: 3, 128>}, {pipeline_mode = #tpu.pipeline_mode<synchronous>, transform_indices = @transform_12, window_bounds = array<i64: 3, 128, 256>}, {pipeline_mode = #tpu.pipeline_mode<synchronous>, transform_indices = @transform_13, window_bounds = array<i64: 3, 256>}, {pipeline_mode = #tpu.pipeline_mode<synchronous>, transform_indices = @transform_14, window_bounds = array<i64: 3, 256, 128>}, {pipeline_mode = #tpu.pipeline_mode<synchronous>, transform_indices = @transform_15, window_bounds = array<i64: 3, 128>}, {pipeline_mode = #tpu.pipeline_mode<synchronous>, transform_indices = @transform_16, window_bounds = array<i64: 3, 128>}, {pipeline_mode = #tpu.pipeline_mode<synchronous>, transform_indices = @transform_17, window_bounds = array<i64: 3, 128>}, {pipeline_mode = #tpu.pipeline_mode<synchronous>, transform_indices = @transform_18, window_bounds = array<i64: 128, 128>}, {pipeline_mode = #tpu.pipeline_mode<synchronous>, transform_indices = @transform_19, window_bounds = array<i64: 1, 128>}, {transform_indices = @transform_20, window_bounds = array<i64: 1, 2, 128>}]} {
    %c0 = arith.constant 0 : index
    %c0_0 = arith.constant 0 : index
    %c0_1 = arith.constant 0 : index
    %0 = vector.load %arg1[%c0, %c0_0, %c0_1] : memref<1x2x8xi32, #tpu.memory_space<vmem>>, vector<1x2x8xi32>
    %1 = vector.shape_cast %0 : vector<1x2x8xi32> to vector<2x8xi32>
    %2 = tpu.iota {dimensions = array<i32: 2>} : vector<2x8x32xi32>
    %3 = vector.shape_cast %1 : vector<2x8xi32> to vector<2x8x1xi32>
    %4 = vector.broadcast %3 : vector<2x8x1xi32> to vector<2x8x32xi32>
    %5 = arith.cmpi eq, %4, %2 : vector<2x8x32xi32>
    %6 = arith.extui %5 : vector<2x8x32xi1> to vector<2x8x32xi32>
    %7 = arith.sitofp %6 : vector<2x8x32xi32> to vector<2x8x32xf32>
    %8 = vector.shape_cast %7 : vector<2x8x32xf32> to vector<16x32xf32>
    %c0_2 = arith.constant 0 : index
    %c0_3 = arith.constant 0 : index
    %9 = vector.load %arg2[%c0_2, %c0_3] : memref<32x128xf32, #tpu.memory_space<vmem>>, vector<32x128xf32>
    %cst = arith.constant dense<0.000000e+00> : vector<16x128xf32>
    %10 = tpu.matmul %8, %9, %cst {dimension_numbers = #tpu.dot_dimension_numbers<[1], [0], [0], [1], [0, 0, 1, 1], [], []>} : vector<16x32xf32>, vector<32x128xf32>, vector<16x128xf32> -> vector<16x128xf32>
    %11 = arith.truncf %10 : vector<16x128xf32> to vector<16x128xbf16>
    %c0_4 = arith.constant 0 : index
    %c0_5 = arith.constant 0 : index
    %c0_6 = arith.constant 0 : index
    %12 = vector.load %arg3[%c0_4, %c0_5, %c0_6] : memref<3x128x128xbf16, #tpu.memory_space<vmem>>, vector<1x128x128xbf16>
    %13 = vector.shape_cast %12 : vector<1x128x128xbf16> to vector<128x128xbf16>
    %cst_7 = arith.constant dense<0.000000e+00> : vector<16x128xf32>
    %14 = tpu.matmul %11, %13, %cst_7 {dimension_numbers = #tpu.dot_dimension_numbers<[1], [0], [0], [1], [0, 0, 1, 1], [], []>} : vector<16x128xbf16>, vector<128x128xbf16>, vector<16x128xf32> -> vector<16x128xf32>
    %c0_8 = arith.constant 0 : index
    %c0_9 = arith.constant 0 : index
    %15 = vector.load %arg4[%c0_8, %c0_9] : memref<3x128xf32, #tpu.memory_space<vmem>>, vector<1x128xf32>
    %16 = vector.shape_cast %15 : vector<1x128xf32> to vector<128xf32>
    %17 = vector.shape_cast %16 : vector<128xf32> to vector<1x128xf32>
    %18 = vector.broadcast %17 : vector<1x128xf32> to vector<16x128xf32>
    %19 = arith.addf %14, %18 : vector<16x128xf32>
    %c0_10 = arith.constant 0 : index
    %c0_11 = arith.constant 0 : index
    %c0_12 = arith.constant 0 : index
    %20 = vector.load %arg5[%c0_10, %c0_11, %c0_12] : memref<3x128x128xbf16, #tpu.memory_space<vmem>>, vector<1x128x128xbf16>
    %21 = vector.shape_cast %20 : vector<1x128x128xbf16> to vector<128x128xbf16>
    %cst_13 = arith.constant dense<0.000000e+00> : vector<16x128xf32>
    %22 = tpu.matmul %11, %21, %cst_13 {dimension_numbers = #tpu.dot_dimension_numbers<[1], [0], [0], [1], [0, 0, 1, 1], [], []>} : vector<16x128xbf16>, vector<128x128xbf16>, vector<16x128xf32> -> vector<16x128xf32>
    %c0_14 = arith.constant 0 : index
    %c0_15 = arith.constant 0 : index
    %23 = vector.load %arg6[%c0_14, %c0_15] : memref<3x128xf32, #tpu.memory_space<vmem>>, vector<1x128xf32>
    %24 = vector.shape_cast %23 : vector<1x128xf32> to vector<128xf32>
    %25 = vector.shape_cast %24 : vector<128xf32> to vector<1x128xf32>
    %26 = vector.broadcast %25 : vector<1x128xf32> to vector<16x128xf32>
    %27 = arith.addf %22, %26 : vector<16x128xf32>
    %c0_16 = arith.constant 0 : index
    %c0_17 = arith.constant 0 : index
    %c0_18 = arith.constant 0 : index
    %28 = vector.load %arg7[%c0_16, %c0_17, %c0_18] : memref<3x128x128xbf16, #tpu.memory_space<vmem>>, vector<1x128x128xbf16>
    %29 = vector.shape_cast %28 : vector<1x128x128xbf16> to vector<128x128xbf16>
    %cst_19 = arith.constant dense<0.000000e+00> : vector<16x128xf32>
    %30 = tpu.matmul %11, %29, %cst_19 {dimension_numbers = #tpu.dot_dimension_numbers<[1], [0], [0], [1], [0, 0, 1, 1], [], []>} : vector<16x128xbf16>, vector<128x128xbf16>, vector<16x128xf32> -> vector<16x128xf32>
    %c0_20 = arith.constant 0 : index
    %c0_21 = arith.constant 0 : index
    %31 = vector.load %arg8[%c0_20, %c0_21] : memref<3x128xf32, #tpu.memory_space<vmem>>, vector<1x128xf32>
    %32 = vector.shape_cast %31 : vector<1x128xf32> to vector<128xf32>
    %33 = vector.shape_cast %32 : vector<128xf32> to vector<1x128xf32>
    %34 = vector.broadcast %33 : vector<1x128xf32> to vector<16x128xf32>
    %35 = arith.addf %30, %34 : vector<16x128xf32>
    %36 = vector.shape_cast %19 : vector<16x128xf32> to vector<2x8x128xf32>
    %37 = vector.extract_strided_slice %36 {offsets = [0, 0, 0], sizes = [2, 8, 16], strides = [1, 1, 1]} : vector<2x8x128xf32> to vector<2x8x16xf32>
    %38 = vector.extract_strided_slice %36 {offsets = [0, 0, 16], sizes = [2, 8, 16], strides = [1, 1, 1]} : vector<2x8x128xf32> to vector<2x8x16xf32>
    %39 = vector.extract_strided_slice %36 {offsets = [0, 0, 32], sizes = [2, 8, 16], strides = [1, 1, 1]} : vector<2x8x128xf32> to vector<2x8x16xf32>
    %40 = vector.extract_strided_slice %36 {offsets = [0, 0, 48], sizes = [2, 8, 16], strides = [1, 1, 1]} : vector<2x8x128xf32> to vector<2x8x16xf32>
    %41 = vector.extract_strided_slice %36 {offsets = [0, 0, 64], sizes = [2, 8, 16], strides = [1, 1, 1]} : vector<2x8x128xf32> to vector<2x8x16xf32>
    %42 = vector.extract_strided_slice %36 {offsets = [0, 0, 80], sizes = [2, 8, 16], strides = [1, 1, 1]} : vector<2x8x128xf32> to vector<2x8x16xf32>
    %43 = vector.extract_strided_slice %36 {offsets = [0, 0, 96], sizes = [2, 8, 16], strides = [1, 1, 1]} : vector<2x8x128xf32> to vector<2x8x16xf32>
    %44 = vector.extract_strided_slice %36 {offsets = [0, 0, 112], sizes = [2, 8, 16], strides = [1, 1, 1]} : vector<2x8x128xf32> to vector<2x8x16xf32>
    %45 = tpu.concatenate %37, %38, %39, %40, %41, %42, %43, %44 in 0 : vector<2x8x16xf32>, vector<2x8x16xf32>, vector<2x8x16xf32>, vector<2x8x16xf32>, vector<2x8x16xf32>, vector<2x8x16xf32>, vector<2x8x16xf32>, vector<2x8x16xf32> -> vector<16x8x16xf32>
    %46 = arith.truncf %45 : vector<16x8x16xf32> to vector<16x8x16xbf16>
    %47 = vector.shape_cast %27 : vector<16x128xf32> to vector<2x8x128xf32>
    %48 = vector.extract_strided_slice %47 {offsets = [0, 0, 0], sizes = [2, 8, 16], strides = [1, 1, 1]} : vector<2x8x128xf32> to vector<2x8x16xf32>
    %49 = vector.extract_strided_slice %47 {offsets = [0, 0, 16], sizes = [2, 8, 16], strides = [1, 1, 1]} : vector<2x8x128xf32> to vector<2x8x16xf32>
    %50 = vector.extract_strided_slice %47 {offsets = [0, 0, 32], sizes = [2, 8, 16], strides = [1, 1, 1]} : vector<2x8x128xf32> to vector<2x8x16xf32>
    %51 = vector.extract_strided_slice %47 {offsets = [0, 0, 48], sizes = [2, 8, 16], strides = [1, 1, 1]} : vector<2x8x128xf32> to vector<2x8x16xf32>
    %52 = vector.extract_strided_slice %47 {offsets = [0, 0, 64], sizes = [2, 8, 16], strides = [1, 1, 1]} : vector<2x8x128xf32> to vector<2x8x16xf32>
    %53 = vector.extract_strided_slice %47 {offsets = [0, 0, 80], sizes = [2, 8, 16], strides = [1, 1, 1]} : vector<2x8x128xf32> to vector<2x8x16xf32>
    %54 = vector.extract_strided_slice %47 {offsets = [0, 0, 96], sizes = [2, 8, 16], strides = [1, 1, 1]} : vector<2x8x128xf32> to vector<2x8x16xf32>
    %55 = vector.extract_strided_slice %47 {offsets = [0, 0, 112], sizes = [2, 8, 16], strides = [1, 1, 1]} : vector<2x8x128xf32> to vector<2x8x16xf32>
    %56 = tpu.concatenate %48, %49, %50, %51, %52, %53, %54, %55 in 0 : vector<2x8x16xf32>, vector<2x8x16xf32>, vector<2x8x16xf32>, vector<2x8x16xf32>, vector<2x8x16xf32>, vector<2x8x16xf32>, vector<2x8x16xf32>, vector<2x8x16xf32> -> vector<16x8x16xf32>
    %57 = arith.truncf %56 : vector<16x8x16xf32> to vector<16x8x16xbf16>
    %58 = vector.shape_cast %35 : vector<16x128xf32> to vector<2x8x128xf32>
    %59 = vector.extract_strided_slice %58 {offsets = [0, 0, 0], sizes = [2, 8, 16], strides = [1, 1, 1]} : vector<2x8x128xf32> to vector<2x8x16xf32>
    %60 = vector.extract_strided_slice %58 {offsets = [0, 0, 16], sizes = [2, 8, 16], strides = [1, 1, 1]} : vector<2x8x128xf32> to vector<2x8x16xf32>
    %61 = vector.extract_strided_slice %58 {offsets = [0, 0, 32], sizes = [2, 8, 16], strides = [1, 1, 1]} : vector<2x8x128xf32> to vector<2x8x16xf32>
    %62 = vector.extract_strided_slice %58 {offsets = [0, 0, 48], sizes = [2, 8, 16], strides = [1, 1, 1]} : vector<2x8x128xf32> to vector<2x8x16xf32>
    %63 = vector.extract_strided_slice %58 {offsets = [0, 0, 64], sizes = [2, 8, 16], strides = [1, 1, 1]} : vector<2x8x128xf32> to vector<2x8x16xf32>
    %64 = vector.extract_strided_slice %58 {offsets = [0, 0, 80], sizes = [2, 8, 16], strides = [1, 1, 1]} : vector<2x8x128xf32> to vector<2x8x16xf32>
    %65 = vector.extract_strided_slice %58 {offsets = [0, 0, 96], sizes = [2, 8, 16], strides = [1, 1, 1]} : vector<2x8x128xf32> to vector<2x8x16xf32>
    %66 = vector.extract_strided_slice %58 {offsets = [0, 0, 112], sizes = [2, 8, 16], strides = [1, 1, 1]} : vector<2x8x128xf32> to vector<2x8x16xf32>
    %67 = tpu.concatenate %59, %60, %61, %62, %63, %64, %65, %66 in 0 : vector<2x8x16xf32>, vector<2x8x16xf32>, vector<2x8x16xf32>, vector<2x8x16xf32>, vector<2x8x16xf32>, vector<2x8x16xf32>, vector<2x8x16xf32>, vector<2x8x16xf32> -> vector<16x8x16xf32>
    %68 = arith.truncf %67 : vector<16x8x16xf32> to vector<16x8x16xbf16>
    "tpu.trace_start"() <{level = 10 : i32, message = "bqd,bkd->bqk"}> : () -> ()
    %cst_22 = arith.constant dense<0.000000e+00> : vector<16x8x8xf32>
    %69 = tpu.matmul %46, %57, %cst_22 {dimension_numbers = #tpu.dot_dimension_numbers<[2], [2], [1], [1], [0, 0, 0, 1, 1, 1], [0], [0]>} : vector<16x8x16xbf16>, vector<16x8x16xbf16>, vector<16x8x8xf32> -> vector<16x8x8xf32>
    "tpu.trace_stop"() : () -> ()
    %cst_23 = arith.constant dense<0xFF800000> : vector<16x8xf32>
    %70 = vector.multi_reduction <maximumf>, %69, %cst_23 [2] : vector<16x8x8xf32> to vector<16x8xf32>
    %71 = vector.shape_cast %70 : vector<16x8xf32> to vector<16x8x1xf32>
    %72 = vector.broadcast %71 : vector<16x8x1xf32> to vector<16x8x8xf32>
    %73 = arith.subf %69, %72 : vector<16x8x8xf32>
    %74 = math.exp %73 : vector<16x8x8xf32>
    %cst_24 = arith.constant dense<0.000000e+00> : vector<16x8xf32>
    %75 = vector.multi_reduction <add>, %74, %cst_24 [2] : vector<16x8x8xf32> to vector<16x8xf32>
    %76 = vector.shape_cast %75 : vector<16x8xf32> to vector<16x8x1xf32>
    %77 = tpu.reciprocal %76 {approx = true} : vector<16x8x1xf32> -> vector<16x8x1xf32>
    %78 = vector.broadcast %77 : vector<16x8x1xf32> to vector<16x8x8xf32>
    %79 = arith.mulf %74, %78 : vector<16x8x8xf32>
    %80 = arith.truncf %79 : vector<16x8x8xf32> to vector<16x8x8xbf16>
    "tpu.trace_start"() <{level = 10 : i32, message = "bqk,bkd->bqd"}> : () -> ()
    %cst_25 = arith.constant dense<0.000000e+00> : vector<16x8x16xf32>
    %81 = tpu.matmul %80, %68, %cst_25 {dimension_numbers = #tpu.dot_dimension_numbers<[2], [1], [1], [2], [0, 0, 0, 1, 1, 2], [0], [0]>} : vector<16x8x8xbf16>, vector<16x8x16xbf16>, vector<16x8x16xf32> -> vector<16x8x16xf32>
    "tpu.trace_stop"() : () -> ()
    %82 = vector.extract_strided_slice %81 {offsets = [0, 0, 0], sizes = [2, 8, 16], strides = [1, 1, 1]} : vector<16x8x16xf32> to vector<2x8x16xf32>
    %83 = vector.extract_strided_slice %81 {offsets = [2, 0, 0], sizes = [2, 8, 16], strides = [1, 1, 1]} : vector<16x8x16xf32> to vector<2x8x16xf32>
    %84 = vector.extract_strided_slice %81 {offsets = [4, 0, 0], sizes = [2, 8, 16], strides = [1, 1, 1]} : vector<16x8x16xf32> to vector<2x8x16xf32>
    %85 = vector.extract_strided_slice %81 {offsets = [6, 0, 0], sizes = [2, 8, 16], strides = [1, 1, 1]} : vector<16x8x16xf32> to vector<2x8x16xf32>
    %86 = vector.extract_strided_slice %81 {offsets = [8, 0, 0], sizes = [2, 8, 16], strides = [1, 1, 1]} : vector<16x8x16xf32> to vector<2x8x16xf32>
    %87 = vector.extract_strided_slice %81 {offsets = [10, 0, 0], sizes = [2, 8, 16], strides = [1, 1, 1]} : vector<16x8x16xf32> to vector<2x8x16xf32>
    %88 = vector.extract_strided_slice %81 {offsets = [12, 0, 0], sizes = [2, 8, 16], strides = [1, 1, 1]} : vector<16x8x16xf32> to vector<2x8x16xf32>
    %89 = vector.extract_strided_slice %81 {offsets = [14, 0, 0], sizes = [2, 8, 16], strides = [1, 1, 1]} : vector<16x8x16xf32> to vector<2x8x16xf32>
    %90 = tpu.concatenate %82, %83, %84, %85, %86, %87, %88, %89 in 2 : vector<2x8x16xf32>, vector<2x8x16xf32>, vector<2x8x16xf32>, vector<2x8x16xf32>, vector<2x8x16xf32>, vector<2x8x16xf32>, vector<2x8x16xf32>, vector<2x8x16xf32> -> vector<2x8x128xf32>
    %91 = vector.shape_cast %90 : vector<2x8x128xf32> to vector<16x128xf32>
    %92 = arith.truncf %91 : vector<16x128xf32> to vector<16x128xbf16>
    %c0_26 = arith.constant 0 : index
    %c0_27 = arith.constant 0 : index
    %c0_28 = arith.constant 0 : index
    %93 = vector.load %arg9[%c0_26, %c0_27, %c0_28] : memref<3x128x128xbf16, #tpu.memory_space<vmem>>, vector<1x128x128xbf16>
    %94 = vector.shape_cast %93 : vector<1x128x128xbf16> to vector<128x128xbf16>
    %cst_29 = arith.constant dense<0.000000e+00> : vector<16x128xf32>
    %95 = tpu.matmul %92, %94, %cst_29 {dimension_numbers = #tpu.dot_dimension_numbers<[1], [0], [0], [1], [0, 0, 1, 1], [], []>} : vector<16x128xbf16>, vector<128x128xbf16>, vector<16x128xf32> -> vector<16x128xf32>
    %c0_30 = arith.constant 0 : index
    %c0_31 = arith.constant 0 : index
    %96 = vector.load %arg10[%c0_30, %c0_31] : memref<3x128xf32, #tpu.memory_space<vmem>>, vector<1x128xf32>
    %97 = vector.shape_cast %96 : vector<1x128xf32> to vector<128xf32>
    %98 = vector.shape_cast %97 : vector<128xf32> to vector<1x128xf32>
    %99 = vector.broadcast %98 : vector<1x128xf32> to vector<16x128xf32>
    %100 = arith.addf %95, %99 : vector<16x128xf32>
    %101 = arith.addf %10, %100 : vector<16x128xf32>
    %c0_32 = arith.constant 0 : index
    %c0_33 = arith.constant 0 : index
    %102 = vector.load %arg11[%c0_32, %c0_33] : memref<3x128xf32, #tpu.memory_space<vmem>>, vector<1x128xf32>
    %103 = vector.shape_cast %102 : vector<1x128xf32> to vector<128xf32>
    %c0_34 = arith.constant 0 : index
    %c0_35 = arith.constant 0 : index
    %104 = vector.load %arg12[%c0_34, %c0_35] : memref<3x128xf32, #tpu.memory_space<vmem>>, vector<1x128xf32>
    %105 = vector.shape_cast %104 : vector<1x128xf32> to vector<128xf32>
    %cst_36 = arith.constant dense<0.000000e+00> : vector<16xf32>
    %106 = vector.multi_reduction <add>, %101, %cst_36 [1] : vector<16x128xf32> to vector<16xf32>
    %107 = vector.shape_cast %106 : vector<16xf32> to vector<16x1xf32>
    %cst_37 = arith.constant 1.280000e+02 : f32
    %108 = vector.broadcast %cst_37 : f32 to vector<16x1xf32>
    %109 = arith.divf %107, %108 : vector<16x1xf32>
    %110 = arith.mulf %101, %101 : vector<16x128xf32>
    %cst_38 = arith.constant dense<0.000000e+00> : vector<16xf32>
    %111 = vector.multi_reduction <add>, %110, %cst_38 [1] : vector<16x128xf32> to vector<16xf32>
    %112 = vector.shape_cast %111 : vector<16xf32> to vector<16x1xf32>
    %cst_39 = arith.constant 1.280000e+02 : f32
    %113 = vector.broadcast %cst_39 : f32 to vector<16x1xf32>
    %114 = arith.divf %112, %113 : vector<16x1xf32>
    %115 = arith.mulf %109, %109 : vector<16x1xf32>
    %116 = arith.subf %114, %115 : vector<16x1xf32>
    %117 = vector.broadcast %109 : vector<16x1xf32> to vector<16x128xf32>
    %118 = arith.subf %101, %117 : vector<16x128xf32>
    %cst_40 = arith.constant 9.99999974E-6 : f32
    %119 = vector.broadcast %cst_40 : f32 to vector<16x1xf32>
    %120 = arith.addf %116, %119 : vector<16x1xf32>
    %121 = math.rsqrt %120 : vector<16x1xf32>
    %122 = vector.broadcast %121 : vector<16x1xf32> to vector<16x128xf32>
    %123 = arith.mulf %118, %122 : vector<16x128xf32>
    %124 = vector.shape_cast %103 : vector<128xf32> to vector<1x128xf32>
    %125 = vector.broadcast %124 : vector<1x128xf32> to vector<16x128xf32>
    %126 = arith.mulf %123, %125 : vector<16x128xf32>
    %127 = vector.shape_cast %105 : vector<128xf32> to vector<1x128xf32>
    %128 = vector.broadcast %127 : vector<1x128xf32> to vector<16x128xf32>
    %129 = arith.addf %126, %128 : vector<16x128xf32>
    %130 = arith.truncf %129 : vector<16x128xf32> to vector<16x128xbf16>
    %c0_41 = arith.constant 0 : index
    %c0_42 = arith.constant 0 : index
    %c0_43 = arith.constant 0 : index
    %131 = vector.load %arg13[%c0_41, %c0_42, %c0_43] : memref<3x128x256xbf16, #tpu.memory_space<vmem>>, vector<1x128x256xbf16>
    %132 = vector.shape_cast %131 : vector<1x128x256xbf16> to vector<128x256xbf16>
    %cst_44 = arith.constant dense<0.000000e+00> : vector<16x256xf32>
    %133 = tpu.matmul %130, %132, %cst_44 {dimension_numbers = #tpu.dot_dimension_numbers<[1], [0], [0], [1], [0, 0, 1, 1], [], []>} : vector<16x128xbf16>, vector<128x256xbf16>, vector<16x256xf32> -> vector<16x256xf32>
    %c0_45 = arith.constant 0 : index
    %c0_46 = arith.constant 0 : index
    %134 = vector.load %arg14[%c0_45, %c0_46] : memref<3x256xf32, #tpu.memory_space<vmem>>, vector<1x256xf32>
    %135 = vector.shape_cast %134 : vector<1x256xf32> to vector<256xf32>
    %136 = vector.shape_cast %135 : vector<256xf32> to vector<1x256xf32>
    %137 = vector.broadcast %136 : vector<1x256xf32> to vector<16x256xf32>
    %138 = arith.addf %133, %137 : vector<16x256xf32>
    %cst_47 = arith.constant 0.000000e+00 : f32
    %139 = vector.broadcast %cst_47 : f32 to vector<16x256xf32>
    %140 = arith.maximumf %138, %139 : vector<16x256xf32>
    %141 = arith.truncf %140 : vector<16x256xf32> to vector<16x256xbf16>
    %c0_48 = arith.constant 0 : index
    %c0_49 = arith.constant 0 : index
    %c0_50 = arith.constant 0 : index
    %142 = vector.load %arg15[%c0_48, %c0_49, %c0_50] : memref<3x256x128xbf16, #tpu.memory_space<vmem>>, vector<1x256x128xbf16>
    %143 = vector.shape_cast %142 : vector<1x256x128xbf16> to vector<256x128xbf16>
    %cst_51 = arith.constant dense<0.000000e+00> : vector<16x128xf32>
    %144 = tpu.matmul %141, %143, %cst_51 {dimension_numbers = #tpu.dot_dimension_numbers<[1], [0], [0], [1], [0, 0, 1, 1], [], []>} : vector<16x256xbf16>, vector<256x128xbf16>, vector<16x128xf32> -> vector<16x128xf32>
    %c0_52 = arith.constant 0 : index
    %c0_53 = arith.constant 0 : index
    %145 = vector.load %arg16[%c0_52, %c0_53] : memref<3x128xf32, #tpu.memory_space<vmem>>, vector<1x128xf32>
    %146 = vector.shape_cast %145 : vector<1x128xf32> to vector<128xf32>
    %147 = vector.shape_cast %146 : vector<128xf32> to vector<1x128xf32>
    %148 = vector.broadcast %147 : vector<1x128xf32> to vector<16x128xf32>
    %149 = arith.addf %144, %148 : vector<16x128xf32>
    %150 = arith.addf %129, %149 : vector<16x128xf32>
    %c0_54 = arith.constant 0 : index
    %c0_55 = arith.constant 0 : index
    %151 = vector.load %arg17[%c0_54, %c0_55] : memref<3x128xf32, #tpu.memory_space<vmem>>, vector<1x128xf32>
    %152 = vector.shape_cast %151 : vector<1x128xf32> to vector<128xf32>
    %c0_56 = arith.constant 0 : index
    %c0_57 = arith.constant 0 : index
    %153 = vector.load %arg18[%c0_56, %c0_57] : memref<3x128xf32, #tpu.memory_space<vmem>>, vector<1x128xf32>
    %154 = vector.shape_cast %153 : vector<1x128xf32> to vector<128xf32>
    %cst_58 = arith.constant dense<0.000000e+00> : vector<16xf32>
    %155 = vector.multi_reduction <add>, %150, %cst_58 [1] : vector<16x128xf32> to vector<16xf32>
    %156 = vector.shape_cast %155 : vector<16xf32> to vector<16x1xf32>
    %cst_59 = arith.constant 1.280000e+02 : f32
    %157 = vector.broadcast %cst_59 : f32 to vector<16x1xf32>
    %158 = arith.divf %156, %157 : vector<16x1xf32>
    %159 = arith.mulf %150, %150 : vector<16x128xf32>
    %cst_60 = arith.constant dense<0.000000e+00> : vector<16xf32>
    %160 = vector.multi_reduction <add>, %159, %cst_60 [1] : vector<16x128xf32> to vector<16xf32>
    %161 = vector.shape_cast %160 : vector<16xf32> to vector<16x1xf32>
    %cst_61 = arith.constant 1.280000e+02 : f32
    %162 = vector.broadcast %cst_61 : f32 to vector<16x1xf32>
    %163 = arith.divf %161, %162 : vector<16x1xf32>
    %164 = arith.mulf %158, %158 : vector<16x1xf32>
    %165 = arith.subf %163, %164 : vector<16x1xf32>
    %166 = vector.broadcast %158 : vector<16x1xf32> to vector<16x128xf32>
    %167 = arith.subf %150, %166 : vector<16x128xf32>
    %cst_62 = arith.constant 9.99999974E-6 : f32
    %168 = vector.broadcast %cst_62 : f32 to vector<16x1xf32>
    %169 = arith.addf %165, %168 : vector<16x1xf32>
    %170 = math.rsqrt %169 : vector<16x1xf32>
    %171 = vector.broadcast %170 : vector<16x1xf32> to vector<16x128xf32>
    %172 = arith.mulf %167, %171 : vector<16x128xf32>
    %173 = vector.shape_cast %152 : vector<128xf32> to vector<1x128xf32>
    %174 = vector.broadcast %173 : vector<1x128xf32> to vector<16x128xf32>
    %175 = arith.mulf %172, %174 : vector<16x128xf32>
    %176 = vector.shape_cast %154 : vector<128xf32> to vector<1x128xf32>
    %177 = vector.broadcast %176 : vector<1x128xf32> to vector<16x128xf32>
    %178 = arith.addf %175, %177 : vector<16x128xf32>
    %179 = arith.truncf %178 : vector<16x128xf32> to vector<16x128xbf16>
    %c1 = arith.constant 1 : index
    %c0_63 = arith.constant 0 : index
    %c0_64 = arith.constant 0 : index
    %180 = vector.load %arg3[%c1, %c0_63, %c0_64] : memref<3x128x128xbf16, #tpu.memory_space<vmem>>, vector<1x128x128xbf16>
    %181 = vector.shape_cast %180 : vector<1x128x128xbf16> to vector<128x128xbf16>
    %cst_65 = arith.constant dense<0.000000e+00> : vector<16x128xf32>
    %182 = tpu.matmul %179, %181, %cst_65 {dimension_numbers = #tpu.dot_dimension_numbers<[1], [0], [0], [1], [0, 0, 1, 1], [], []>} : vector<16x128xbf16>, vector<128x128xbf16>, vector<16x128xf32> -> vector<16x128xf32>
    %c1_66 = arith.constant 1 : index
    %c0_67 = arith.constant 0 : index
    %183 = vector.load %arg4[%c1_66, %c0_67] : memref<3x128xf32, #tpu.memory_space<vmem>>, vector<1x128xf32>
    %184 = vector.shape_cast %183 : vector<1x128xf32> to vector<128xf32>
    %185 = vector.shape_cast %184 : vector<128xf32> to vector<1x128xf32>
    %186 = vector.broadcast %185 : vector<1x128xf32> to vector<16x128xf32>
    %187 = arith.addf %182, %186 : vector<16x128xf32>
    %c1_68 = arith.constant 1 : index
    %c0_69 = arith.constant 0 : index
    %c0_70 = arith.constant 0 : index
    %188 = vector.load %arg5[%c1_68, %c0_69, %c0_70] : memref<3x128x128xbf16, #tpu.memory_space<vmem>>, vector<1x128x128xbf16>
    %189 = vector.shape_cast %188 : vector<1x128x128xbf16> to vector<128x128xbf16>
    %cst_71 = arith.constant dense<0.000000e+00> : vector<16x128xf32>
    %190 = tpu.matmul %179, %189, %cst_71 {dimension_numbers = #tpu.dot_dimension_numbers<[1], [0], [0], [1], [0, 0, 1, 1], [], []>} : vector<16x128xbf16>, vector<128x128xbf16>, vector<16x128xf32> -> vector<16x128xf32>
    %c1_72 = arith.constant 1 : index
    %c0_73 = arith.constant 0 : index
    %191 = vector.load %arg6[%c1_72, %c0_73] : memref<3x128xf32, #tpu.memory_space<vmem>>, vector<1x128xf32>
    %192 = vector.shape_cast %191 : vector<1x128xf32> to vector<128xf32>
    %193 = vector.shape_cast %192 : vector<128xf32> to vector<1x128xf32>
    %194 = vector.broadcast %193 : vector<1x128xf32> to vector<16x128xf32>
    %195 = arith.addf %190, %194 : vector<16x128xf32>
    %c1_74 = arith.constant 1 : index
    %c0_75 = arith.constant 0 : index
    %c0_76 = arith.constant 0 : index
    %196 = vector.load %arg7[%c1_74, %c0_75, %c0_76] : memref<3x128x128xbf16, #tpu.memory_space<vmem>>, vector<1x128x128xbf16>
    %197 = vector.shape_cast %196 : vector<1x128x128xbf16> to vector<128x128xbf16>
    %cst_77 = arith.constant dense<0.000000e+00> : vector<16x128xf32>
    %198 = tpu.matmul %179, %197, %cst_77 {dimension_numbers = #tpu.dot_dimension_numbers<[1], [0], [0], [1], [0, 0, 1, 1], [], []>} : vector<16x128xbf16>, vector<128x128xbf16>, vector<16x128xf32> -> vector<16x128xf32>
    %c1_78 = arith.constant 1 : index
    %c0_79 = arith.constant 0 : index
    %199 = vector.load %arg8[%c1_78, %c0_79] : memref<3x128xf32, #tpu.memory_space<vmem>>, vector<1x128xf32>
    %200 = vector.shape_cast %199 : vector<1x128xf32> to vector<128xf32>
    %201 = vector.shape_cast %200 : vector<128xf32> to vector<1x128xf32>
    %202 = vector.broadcast %201 : vector<1x128xf32> to vector<16x128xf32>
    %203 = arith.addf %198, %202 : vector<16x128xf32>
    %204 = vector.shape_cast %187 : vector<16x128xf32> to vector<2x8x128xf32>
    %205 = vector.extract_strided_slice %204 {offsets = [0, 0, 0], sizes = [2, 8, 16], strides = [1, 1, 1]} : vector<2x8x128xf32> to vector<2x8x16xf32>
    %206 = vector.extract_strided_slice %204 {offsets = [0, 0, 16], sizes = [2, 8, 16], strides = [1, 1, 1]} : vector<2x8x128xf32> to vector<2x8x16xf32>
    %207 = vector.extract_strided_slice %204 {offsets = [0, 0, 32], sizes = [2, 8, 16], strides = [1, 1, 1]} : vector<2x8x128xf32> to vector<2x8x16xf32>
    %208 = vector.extract_strided_slice %204 {offsets = [0, 0, 48], sizes = [2, 8, 16], strides = [1, 1, 1]} : vector<2x8x128xf32> to vector<2x8x16xf32>
    %209 = vector.extract_strided_slice %204 {offsets = [0, 0, 64], sizes = [2, 8, 16], strides = [1, 1, 1]} : vector<2x8x128xf32> to vector<2x8x16xf32>
    %210 = vector.extract_strided_slice %204 {offsets = [0, 0, 80], sizes = [2, 8, 16], strides = [1, 1, 1]} : vector<2x8x128xf32> to vector<2x8x16xf32>
    %211 = vector.extract_strided_slice %204 {offsets = [0, 0, 96], sizes = [2, 8, 16], strides = [1, 1, 1]} : vector<2x8x128xf32> to vector<2x8x16xf32>
    %212 = vector.extract_strided_slice %204 {offsets = [0, 0, 112], sizes = [2, 8, 16], strides = [1, 1, 1]} : vector<2x8x128xf32> to vector<2x8x16xf32>
    %213 = tpu.concatenate %205, %206, %207, %208, %209, %210, %211, %212 in 0 : vector<2x8x16xf32>, vector<2x8x16xf32>, vector<2x8x16xf32>, vector<2x8x16xf32>, vector<2x8x16xf32>, vector<2x8x16xf32>, vector<2x8x16xf32>, vector<2x8x16xf32> -> vector<16x8x16xf32>
    %214 = arith.truncf %213 : vector<16x8x16xf32> to vector<16x8x16xbf16>
    %215 = vector.shape_cast %195 : vector<16x128xf32> to vector<2x8x128xf32>
    %216 = vector.extract_strided_slice %215 {offsets = [0, 0, 0], sizes = [2, 8, 16], strides = [1, 1, 1]} : vector<2x8x128xf32> to vector<2x8x16xf32>
    %217 = vector.extract_strided_slice %215 {offsets = [0, 0, 16], sizes = [2, 8, 16], strides = [1, 1, 1]} : vector<2x8x128xf32> to vector<2x8x16xf32>
    %218 = vector.extract_strided_slice %215 {offsets = [0, 0, 32], sizes = [2, 8, 16], strides = [1, 1, 1]} : vector<2x8x128xf32> to vector<2x8x16xf32>
    %219 = vector.extract_strided_slice %215 {offsets = [0, 0, 48], sizes = [2, 8, 16], strides = [1, 1, 1]} : vector<2x8x128xf32> to vector<2x8x16xf32>
    %220 = vector.extract_strided_slice %215 {offsets = [0, 0, 64], sizes = [2, 8, 16], strides = [1, 1, 1]} : vector<2x8x128xf32> to vector<2x8x16xf32>
    %221 = vector.extract_strided_slice %215 {offsets = [0, 0, 80], sizes = [2, 8, 16], strides = [1, 1, 1]} : vector<2x8x128xf32> to vector<2x8x16xf32>
    %222 = vector.extract_strided_slice %215 {offsets = [0, 0, 96], sizes = [2, 8, 16], strides = [1, 1, 1]} : vector<2x8x128xf32> to vector<2x8x16xf32>
    %223 = vector.extract_strided_slice %215 {offsets = [0, 0, 112], sizes = [2, 8, 16], strides = [1, 1, 1]} : vector<2x8x128xf32> to vector<2x8x16xf32>
    %224 = tpu.concatenate %216, %217, %218, %219, %220, %221, %222, %223 in 0 : vector<2x8x16xf32>, vector<2x8x16xf32>, vector<2x8x16xf32>, vector<2x8x16xf32>, vector<2x8x16xf32>, vector<2x8x16xf32>, vector<2x8x16xf32>, vector<2x8x16xf32> -> vector<16x8x16xf32>
    %225 = arith.truncf %224 : vector<16x8x16xf32> to vector<16x8x16xbf16>
    %226 = vector.shape_cast %203 : vector<16x128xf32> to vector<2x8x128xf32>
    %227 = vector.extract_strided_slice %226 {offsets = [0, 0, 0], sizes = [2, 8, 16], strides = [1, 1, 1]} : vector<2x8x128xf32> to vector<2x8x16xf32>
    %228 = vector.extract_strided_slice %226 {offsets = [0, 0, 16], sizes = [2, 8, 16], strides = [1, 1, 1]} : vector<2x8x128xf32> to vector<2x8x16xf32>
    %229 = vector.extract_strided_slice %226 {offsets = [0, 0, 32], sizes = [2, 8, 16], strides = [1, 1, 1]} : vector<2x8x128xf32> to vector<2x8x16xf32>
    %230 = vector.extract_strided_slice %226 {offsets = [0, 0, 48], sizes = [2, 8, 16], strides = [1, 1, 1]} : vector<2x8x128xf32> to vector<2x8x16xf32>
    %231 = vector.extract_strided_slice %226 {offsets = [0, 0, 64], sizes = [2, 8, 16], strides = [1, 1, 1]} : vector<2x8x128xf32> to vector<2x8x16xf32>
    %232 = vector.extract_strided_slice %226 {offsets = [0, 0, 80], sizes = [2, 8, 16], strides = [1, 1, 1]} : vector<2x8x128xf32> to vector<2x8x16xf32>
    %233 = vector.extract_strided_slice %226 {offsets = [0, 0, 96], sizes = [2, 8, 16], strides = [1, 1, 1]} : vector<2x8x128xf32> to vector<2x8x16xf32>
    %234 = vector.extract_strided_slice %226 {offsets = [0, 0, 112], sizes = [2, 8, 16], strides = [1, 1, 1]} : vector<2x8x128xf32> to vector<2x8x16xf32>
    %235 = tpu.concatenate %227, %228, %229, %230, %231, %232, %233, %234 in 0 : vector<2x8x16xf32>, vector<2x8x16xf32>, vector<2x8x16xf32>, vector<2x8x16xf32>, vector<2x8x16xf32>, vector<2x8x16xf32>, vector<2x8x16xf32>, vector<2x8x16xf32> -> vector<16x8x16xf32>
    %236 = arith.truncf %235 : vector<16x8x16xf32> to vector<16x8x16xbf16>
    "tpu.trace_start"() <{level = 10 : i32, message = "bqd,bkd->bqk"}> : () -> ()
    %cst_80 = arith.constant dense<0.000000e+00> : vector<16x8x8xf32>
    %237 = tpu.matmul %214, %225, %cst_80 {dimension_numbers = #tpu.dot_dimension_numbers<[2], [2], [1], [1], [0, 0, 0, 1, 1, 1], [0], [0]>} : vector<16x8x16xbf16>, vector<16x8x16xbf16>, vector<16x8x8xf32> -> vector<16x8x8xf32>
    "tpu.trace_stop"() : () -> ()
    %cst_81 = arith.constant dense<0xFF800000> : vector<16x8xf32>
    %238 = vector.multi_reduction <maximumf>, %237, %cst_81 [2] : vector<16x8x8xf32> to vector<16x8xf32>
    %239 = vector.shape_cast %238 : vector<16x8xf32> to vector<16x8x1xf32>
    %240 = vector.broadcast %239 : vector<16x8x1xf32> to vector<16x8x8xf32>
    %241 = arith.subf %237, %240 : vector<16x8x8xf32>
    %242 = math.exp %241 : vector<16x8x8xf32>
    %cst_82 = arith.constant dense<0.000000e+00> : vector<16x8xf32>
    %243 = vector.multi_reduction <add>, %242, %cst_82 [2] : vector<16x8x8xf32> to vector<16x8xf32>
    %244 = vector.shape_cast %243 : vector<16x8xf32> to vector<16x8x1xf32>
    %245 = tpu.reciprocal %244 {approx = true} : vector<16x8x1xf32> -> vector<16x8x1xf32>
    %246 = vector.broadcast %245 : vector<16x8x1xf32> to vector<16x8x8xf32>
    %247 = arith.mulf %242, %246 : vector<16x8x8xf32>
    %248 = arith.truncf %247 : vector<16x8x8xf32> to vector<16x8x8xbf16>
    "tpu.trace_start"() <{level = 10 : i32, message = "bqk,bkd->bqd"}> : () -> ()
    %cst_83 = arith.constant dense<0.000000e+00> : vector<16x8x16xf32>
    %249 = tpu.matmul %248, %236, %cst_83 {dimension_numbers = #tpu.dot_dimension_numbers<[2], [1], [1], [2], [0, 0, 0, 1, 1, 2], [0], [0]>} : vector<16x8x8xbf16>, vector<16x8x16xbf16>, vector<16x8x16xf32> -> vector<16x8x16xf32>
    "tpu.trace_stop"() : () -> ()
    %250 = vector.extract_strided_slice %249 {offsets = [0, 0, 0], sizes = [2, 8, 16], strides = [1, 1, 1]} : vector<16x8x16xf32> to vector<2x8x16xf32>
    %251 = vector.extract_strided_slice %249 {offsets = [2, 0, 0], sizes = [2, 8, 16], strides = [1, 1, 1]} : vector<16x8x16xf32> to vector<2x8x16xf32>
    %252 = vector.extract_strided_slice %249 {offsets = [4, 0, 0], sizes = [2, 8, 16], strides = [1, 1, 1]} : vector<16x8x16xf32> to vector<2x8x16xf32>
    %253 = vector.extract_strided_slice %249 {offsets = [6, 0, 0], sizes = [2, 8, 16], strides = [1, 1, 1]} : vector<16x8x16xf32> to vector<2x8x16xf32>
    %254 = vector.extract_strided_slice %249 {offsets = [8, 0, 0], sizes = [2, 8, 16], strides = [1, 1, 1]} : vector<16x8x16xf32> to vector<2x8x16xf32>
    %255 = vector.extract_strided_slice %249 {offsets = [10, 0, 0], sizes = [2, 8, 16], strides = [1, 1, 1]} : vector<16x8x16xf32> to vector<2x8x16xf32>
    %256 = vector.extract_strided_slice %249 {offsets = [12, 0, 0], sizes = [2, 8, 16], strides = [1, 1, 1]} : vector<16x8x16xf32> to vector<2x8x16xf32>
    %257 = vector.extract_strided_slice %249 {offsets = [14, 0, 0], sizes = [2, 8, 16], strides = [1, 1, 1]} : vector<16x8x16xf32> to vector<2x8x16xf32>
    %258 = tpu.concatenate %250, %251, %252, %253, %254, %255, %256, %257 in 2 : vector<2x8x16xf32>, vector<2x8x16xf32>, vector<2x8x16xf32>, vector<2x8x16xf32>, vector<2x8x16xf32>, vector<2x8x16xf32>, vector<2x8x16xf32>, vector<2x8x16xf32> -> vector<2x8x128xf32>
    %259 = vector.shape_cast %258 : vector<2x8x128xf32> to vector<16x128xf32>
    %260 = arith.truncf %259 : vector<16x128xf32> to vector<16x128xbf16>
    %c1_84 = arith.constant 1 : index
    %c0_85 = arith.constant 0 : index
    %c0_86 = arith.constant 0 : index
    %261 = vector.load %arg9[%c1_84, %c0_85, %c0_86] : memref<3x128x128xbf16, #tpu.memory_space<vmem>>, vector<1x128x128xbf16>
    %262 = vector.shape_cast %261 : vector<1x128x128xbf16> to vector<128x128xbf16>
    %cst_87 = arith.constant dense<0.000000e+00> : vector<16x128xf32>
    %263 = tpu.matmul %260, %262, %cst_87 {dimension_numbers = #tpu.dot_dimension_numbers<[1], [0], [0], [1], [0, 0, 1, 1], [], []>} : vector<16x128xbf16>, vector<128x128xbf16>, vector<16x128xf32> -> vector<16x128xf32>
    %c1_88 = arith.constant 1 : index
    %c0_89 = arith.constant 0 : index
    %264 = vector.load %arg10[%c1_88, %c0_89] : memref<3x128xf32, #tpu.memory_space<vmem>>, vector<1x128xf32>
    %265 = vector.shape_cast %264 : vector<1x128xf32> to vector<128xf32>
    %266 = vector.shape_cast %265 : vector<128xf32> to vector<1x128xf32>
    %267 = vector.broadcast %266 : vector<1x128xf32> to vector<16x128xf32>
    %268 = arith.addf %263, %267 : vector<16x128xf32>
    %269 = arith.addf %178, %268 : vector<16x128xf32>
    %c1_90 = arith.constant 1 : index
    %c0_91 = arith.constant 0 : index
    %270 = vector.load %arg11[%c1_90, %c0_91] : memref<3x128xf32, #tpu.memory_space<vmem>>, vector<1x128xf32>
    %271 = vector.shape_cast %270 : vector<1x128xf32> to vector<128xf32>
    %c1_92 = arith.constant 1 : index
    %c0_93 = arith.constant 0 : index
    %272 = vector.load %arg12[%c1_92, %c0_93] : memref<3x128xf32, #tpu.memory_space<vmem>>, vector<1x128xf32>
    %273 = vector.shape_cast %272 : vector<1x128xf32> to vector<128xf32>
    %cst_94 = arith.constant dense<0.000000e+00> : vector<16xf32>
    %274 = vector.multi_reduction <add>, %269, %cst_94 [1] : vector<16x128xf32> to vector<16xf32>
    %275 = vector.shape_cast %274 : vector<16xf32> to vector<16x1xf32>
    %cst_95 = arith.constant 1.280000e+02 : f32
    %276 = vector.broadcast %cst_95 : f32 to vector<16x1xf32>
    %277 = arith.divf %275, %276 : vector<16x1xf32>
    %278 = arith.mulf %269, %269 : vector<16x128xf32>
    %cst_96 = arith.constant dense<0.000000e+00> : vector<16xf32>
    %279 = vector.multi_reduction <add>, %278, %cst_96 [1] : vector<16x128xf32> to vector<16xf32>
    %280 = vector.shape_cast %279 : vector<16xf32> to vector<16x1xf32>
    %cst_97 = arith.constant 1.280000e+02 : f32
    %281 = vector.broadcast %cst_97 : f32 to vector<16x1xf32>
    %282 = arith.divf %280, %281 : vector<16x1xf32>
    %283 = arith.mulf %277, %277 : vector<16x1xf32>
    %284 = arith.subf %282, %283 : vector<16x1xf32>
    %285 = vector.broadcast %277 : vector<16x1xf32> to vector<16x128xf32>
    %286 = arith.subf %269, %285 : vector<16x128xf32>
    %cst_98 = arith.constant 9.99999974E-6 : f32
    %287 = vector.broadcast %cst_98 : f32 to vector<16x1xf32>
    %288 = arith.addf %284, %287 : vector<16x1xf32>
    %289 = math.rsqrt %288 : vector<16x1xf32>
    %290 = vector.broadcast %289 : vector<16x1xf32> to vector<16x128xf32>
    %291 = arith.mulf %286, %290 : vector<16x128xf32>
    %292 = vector.shape_cast %271 : vector<128xf32> to vector<1x128xf32>
    %293 = vector.broadcast %292 : vector<1x128xf32> to vector<16x128xf32>
    %294 = arith.mulf %291, %293 : vector<16x128xf32>
    %295 = vector.shape_cast %273 : vector<128xf32> to vector<1x128xf32>
    %296 = vector.broadcast %295 : vector<1x128xf32> to vector<16x128xf32>
    %297 = arith.addf %294, %296 : vector<16x128xf32>
    %298 = arith.truncf %297 : vector<16x128xf32> to vector<16x128xbf16>
    %c1_99 = arith.constant 1 : index
    %c0_100 = arith.constant 0 : index
    %c0_101 = arith.constant 0 : index
    %299 = vector.load %arg13[%c1_99, %c0_100, %c0_101] : memref<3x128x256xbf16, #tpu.memory_space<vmem>>, vector<1x128x256xbf16>
    %300 = vector.shape_cast %299 : vector<1x128x256xbf16> to vector<128x256xbf16>
    %cst_102 = arith.constant dense<0.000000e+00> : vector<16x256xf32>
    %301 = tpu.matmul %298, %300, %cst_102 {dimension_numbers = #tpu.dot_dimension_numbers<[1], [0], [0], [1], [0, 0, 1, 1], [], []>} : vector<16x128xbf16>, vector<128x256xbf16>, vector<16x256xf32> -> vector<16x256xf32>
    %c1_103 = arith.constant 1 : index
    %c0_104 = arith.constant 0 : index
    %302 = vector.load %arg14[%c1_103, %c0_104] : memref<3x256xf32, #tpu.memory_space<vmem>>, vector<1x256xf32>
    %303 = vector.shape_cast %302 : vector<1x256xf32> to vector<256xf32>
    %304 = vector.shape_cast %303 : vector<256xf32> to vector<1x256xf32>
    %305 = vector.broadcast %304 : vector<1x256xf32> to vector<16x256xf32>
    %306 = arith.addf %301, %305 : vector<16x256xf32>
    %cst_105 = arith.constant 0.000000e+00 : f32
    %307 = vector.broadcast %cst_105 : f32 to vector<16x256xf32>
    %308 = arith.maximumf %306, %307 : vector<16x256xf32>
    %309 = arith.truncf %308 : vector<16x256xf32> to vector<16x256xbf16>
    %c1_106 = arith.constant 1 : index
    %c0_107 = arith.constant 0 : index
    %c0_108 = arith.constant 0 : index
    %310 = vector.load %arg15[%c1_106, %c0_107, %c0_108] : memref<3x256x128xbf16, #tpu.memory_space<vmem>>, vector<1x256x128xbf16>
    %311 = vector.shape_cast %310 : vector<1x256x128xbf16> to vector<256x128xbf16>
    %cst_109 = arith.constant dense<0.000000e+00> : vector<16x128xf32>
    %312 = tpu.matmul %309, %311, %cst_109 {dimension_numbers = #tpu.dot_dimension_numbers<[1], [0], [0], [1], [0, 0, 1, 1], [], []>} : vector<16x256xbf16>, vector<256x128xbf16>, vector<16x128xf32> -> vector<16x128xf32>
    %c1_110 = arith.constant 1 : index
    %c0_111 = arith.constant 0 : index
    %313 = vector.load %arg16[%c1_110, %c0_111] : memref<3x128xf32, #tpu.memory_space<vmem>>, vector<1x128xf32>
    %314 = vector.shape_cast %313 : vector<1x128xf32> to vector<128xf32>
    %315 = vector.shape_cast %314 : vector<128xf32> to vector<1x128xf32>
    %316 = vector.broadcast %315 : vector<1x128xf32> to vector<16x128xf32>
    %317 = arith.addf %312, %316 : vector<16x128xf32>
    %318 = arith.addf %297, %317 : vector<16x128xf32>
    %c1_112 = arith.constant 1 : index
    %c0_113 = arith.constant 0 : index
    %319 = vector.load %arg17[%c1_112, %c0_113] : memref<3x128xf32, #tpu.memory_space<vmem>>, vector<1x128xf32>
    %320 = vector.shape_cast %319 : vector<1x128xf32> to vector<128xf32>
    %c1_114 = arith.constant 1 : index
    %c0_115 = arith.constant 0 : index
    %321 = vector.load %arg18[%c1_114, %c0_115] : memref<3x128xf32, #tpu.memory_space<vmem>>, vector<1x128xf32>
    %322 = vector.shape_cast %321 : vector<1x128xf32> to vector<128xf32>
    %cst_116 = arith.constant dense<0.000000e+00> : vector<16xf32>
    %323 = vector.multi_reduction <add>, %318, %cst_116 [1] : vector<16x128xf32> to vector<16xf32>
    %324 = vector.shape_cast %323 : vector<16xf32> to vector<16x1xf32>
    %cst_117 = arith.constant 1.280000e+02 : f32
    %325 = vector.broadcast %cst_117 : f32 to vector<16x1xf32>
    %326 = arith.divf %324, %325 : vector<16x1xf32>
    %327 = arith.mulf %318, %318 : vector<16x128xf32>
    %cst_118 = arith.constant dense<0.000000e+00> : vector<16xf32>
    %328 = vector.multi_reduction <add>, %327, %cst_118 [1] : vector<16x128xf32> to vector<16xf32>
    %329 = vector.shape_cast %328 : vector<16xf32> to vector<16x1xf32>
    %cst_119 = arith.constant 1.280000e+02 : f32
    %330 = vector.broadcast %cst_119 : f32 to vector<16x1xf32>
    %331 = arith.divf %329, %330 : vector<16x1xf32>
    %332 = arith.mulf %326, %326 : vector<16x1xf32>
    %333 = arith.subf %331, %332 : vector<16x1xf32>
    %334 = vector.broadcast %326 : vector<16x1xf32> to vector<16x128xf32>
    %335 = arith.subf %318, %334 : vector<16x128xf32>
    %cst_120 = arith.constant 9.99999974E-6 : f32
    %336 = vector.broadcast %cst_120 : f32 to vector<16x1xf32>
    %337 = arith.addf %333, %336 : vector<16x1xf32>
    %338 = math.rsqrt %337 : vector<16x1xf32>
    %339 = vector.broadcast %338 : vector<16x1xf32> to vector<16x128xf32>
    %340 = arith.mulf %335, %339 : vector<16x128xf32>
    %341 = vector.shape_cast %320 : vector<128xf32> to vector<1x128xf32>
    %342 = vector.broadcast %341 : vector<1x128xf32> to vector<16x128xf32>
    %343 = arith.mulf %340, %342 : vector<16x128xf32>
    %344 = vector.shape_cast %322 : vector<128xf32> to vector<1x128xf32>
    %345 = vector.broadcast %344 : vector<1x128xf32> to vector<16x128xf32>
    %346 = arith.addf %343, %345 : vector<16x128xf32>
    %347 = arith.truncf %346 : vector<16x128xf32> to vector<16x128xbf16>
    %c2 = arith.constant 2 : index
    %c0_121 = arith.constant 0 : index
    %c0_122 = arith.constant 0 : index
    %348 = vector.load %arg3[%c2, %c0_121, %c0_122] : memref<3x128x128xbf16, #tpu.memory_space<vmem>>, vector<1x128x128xbf16>
    %349 = vector.shape_cast %348 : vector<1x128x128xbf16> to vector<128x128xbf16>
    %cst_123 = arith.constant dense<0.000000e+00> : vector<16x128xf32>
    %350 = tpu.matmul %347, %349, %cst_123 {dimension_numbers = #tpu.dot_dimension_numbers<[1], [0], [0], [1], [0, 0, 1, 1], [], []>} : vector<16x128xbf16>, vector<128x128xbf16>, vector<16x128xf32> -> vector<16x128xf32>
    %c2_124 = arith.constant 2 : index
    %c0_125 = arith.constant 0 : index
    %351 = vector.load %arg4[%c2_124, %c0_125] : memref<3x128xf32, #tpu.memory_space<vmem>>, vector<1x128xf32>
    %352 = vector.shape_cast %351 : vector<1x128xf32> to vector<128xf32>
    %353 = vector.shape_cast %352 : vector<128xf32> to vector<1x128xf32>
    %354 = vector.broadcast %353 : vector<1x128xf32> to vector<16x128xf32>
    %355 = arith.addf %350, %354 : vector<16x128xf32>
    %c2_126 = arith.constant 2 : index
    %c0_127 = arith.constant 0 : index
    %c0_128 = arith.constant 0 : index
    %356 = vector.load %arg5[%c2_126, %c0_127, %c0_128] : memref<3x128x128xbf16, #tpu.memory_space<vmem>>, vector<1x128x128xbf16>
    %357 = vector.shape_cast %356 : vector<1x128x128xbf16> to vector<128x128xbf16>
    %cst_129 = arith.constant dense<0.000000e+00> : vector<16x128xf32>
    %358 = tpu.matmul %347, %357, %cst_129 {dimension_numbers = #tpu.dot_dimension_numbers<[1], [0], [0], [1], [0, 0, 1, 1], [], []>} : vector<16x128xbf16>, vector<128x128xbf16>, vector<16x128xf32> -> vector<16x128xf32>
    %c2_130 = arith.constant 2 : index
    %c0_131 = arith.constant 0 : index
    %359 = vector.load %arg6[%c2_130, %c0_131] : memref<3x128xf32, #tpu.memory_space<vmem>>, vector<1x128xf32>
    %360 = vector.shape_cast %359 : vector<1x128xf32> to vector<128xf32>
    %361 = vector.shape_cast %360 : vector<128xf32> to vector<1x128xf32>
    %362 = vector.broadcast %361 : vector<1x128xf32> to vector<16x128xf32>
    %363 = arith.addf %358, %362 : vector<16x128xf32>
    %c2_132 = arith.constant 2 : index
    %c0_133 = arith.constant 0 : index
    %c0_134 = arith.constant 0 : index
    %364 = vector.load %arg7[%c2_132, %c0_133, %c0_134] : memref<3x128x128xbf16, #tpu.memory_space<vmem>>, vector<1x128x128xbf16>
    %365 = vector.shape_cast %364 : vector<1x128x128xbf16> to vector<128x128xbf16>
    %cst_135 = arith.constant dense<0.000000e+00> : vector<16x128xf32>
    %366 = tpu.matmul %347, %365, %cst_135 {dimension_numbers = #tpu.dot_dimension_numbers<[1], [0], [0], [1], [0, 0, 1, 1], [], []>} : vector<16x128xbf16>, vector<128x128xbf16>, vector<16x128xf32> -> vector<16x128xf32>
    %c2_136 = arith.constant 2 : index
    %c0_137 = arith.constant 0 : index
    %367 = vector.load %arg8[%c2_136, %c0_137] : memref<3x128xf32, #tpu.memory_space<vmem>>, vector<1x128xf32>
    %368 = vector.shape_cast %367 : vector<1x128xf32> to vector<128xf32>
    %369 = vector.shape_cast %368 : vector<128xf32> to vector<1x128xf32>
    %370 = vector.broadcast %369 : vector<1x128xf32> to vector<16x128xf32>
    %371 = arith.addf %366, %370 : vector<16x128xf32>
    %372 = vector.shape_cast %355 : vector<16x128xf32> to vector<2x8x128xf32>
    %373 = vector.extract_strided_slice %372 {offsets = [0, 0, 0], sizes = [2, 8, 16], strides = [1, 1, 1]} : vector<2x8x128xf32> to vector<2x8x16xf32>
    %374 = vector.extract_strided_slice %372 {offsets = [0, 0, 16], sizes = [2, 8, 16], strides = [1, 1, 1]} : vector<2x8x128xf32> to vector<2x8x16xf32>
    %375 = vector.extract_strided_slice %372 {offsets = [0, 0, 32], sizes = [2, 8, 16], strides = [1, 1, 1]} : vector<2x8x128xf32> to vector<2x8x16xf32>
    %376 = vector.extract_strided_slice %372 {offsets = [0, 0, 48], sizes = [2, 8, 16], strides = [1, 1, 1]} : vector<2x8x128xf32> to vector<2x8x16xf32>
    %377 = vector.extract_strided_slice %372 {offsets = [0, 0, 64], sizes = [2, 8, 16], strides = [1, 1, 1]} : vector<2x8x128xf32> to vector<2x8x16xf32>
    %378 = vector.extract_strided_slice %372 {offsets = [0, 0, 80], sizes = [2, 8, 16], strides = [1, 1, 1]} : vector<2x8x128xf32> to vector<2x8x16xf32>
    %379 = vector.extract_strided_slice %372 {offsets = [0, 0, 96], sizes = [2, 8, 16], strides = [1, 1, 1]} : vector<2x8x128xf32> to vector<2x8x16xf32>
    %380 = vector.extract_strided_slice %372 {offsets = [0, 0, 112], sizes = [2, 8, 16], strides = [1, 1, 1]} : vector<2x8x128xf32> to vector<2x8x16xf32>
    %381 = tpu.concatenate %373, %374, %375, %376, %377, %378, %379, %380 in 0 : vector<2x8x16xf32>, vector<2x8x16xf32>, vector<2x8x16xf32>, vector<2x8x16xf32>, vector<2x8x16xf32>, vector<2x8x16xf32>, vector<2x8x16xf32>, vector<2x8x16xf32> -> vector<16x8x16xf32>
    %382 = arith.truncf %381 : vector<16x8x16xf32> to vector<16x8x16xbf16>
    %383 = vector.shape_cast %363 : vector<16x128xf32> to vector<2x8x128xf32>
    %384 = vector.extract_strided_slice %383 {offsets = [0, 0, 0], sizes = [2, 8, 16], strides = [1, 1, 1]} : vector<2x8x128xf32> to vector<2x8x16xf32>
    %385 = vector.extract_strided_slice %383 {offsets = [0, 0, 16], sizes = [2, 8, 16], strides = [1, 1, 1]} : vector<2x8x128xf32> to vector<2x8x16xf32>
    %386 = vector.extract_strided_slice %383 {offsets = [0, 0, 32], sizes = [2, 8, 16], strides = [1, 1, 1]} : vector<2x8x128xf32> to vector<2x8x16xf32>
    %387 = vector.extract_strided_slice %383 {offsets = [0, 0, 48], sizes = [2, 8, 16], strides = [1, 1, 1]} : vector<2x8x128xf32> to vector<2x8x16xf32>
    %388 = vector.extract_strided_slice %383 {offsets = [0, 0, 64], sizes = [2, 8, 16], strides = [1, 1, 1]} : vector<2x8x128xf32> to vector<2x8x16xf32>
    %389 = vector.extract_strided_slice %383 {offsets = [0, 0, 80], sizes = [2, 8, 16], strides = [1, 1, 1]} : vector<2x8x128xf32> to vector<2x8x16xf32>
    %390 = vector.extract_strided_slice %383 {offsets = [0, 0, 96], sizes = [2, 8, 16], strides = [1, 1, 1]} : vector<2x8x128xf32> to vector<2x8x16xf32>
    %391 = vector.extract_strided_slice %383 {offsets = [0, 0, 112], sizes = [2, 8, 16], strides = [1, 1, 1]} : vector<2x8x128xf32> to vector<2x8x16xf32>
    %392 = tpu.concatenate %384, %385, %386, %387, %388, %389, %390, %391 in 0 : vector<2x8x16xf32>, vector<2x8x16xf32>, vector<2x8x16xf32>, vector<2x8x16xf32>, vector<2x8x16xf32>, vector<2x8x16xf32>, vector<2x8x16xf32>, vector<2x8x16xf32> -> vector<16x8x16xf32>
    %393 = arith.truncf %392 : vector<16x8x16xf32> to vector<16x8x16xbf16>
    %394 = vector.shape_cast %371 : vector<16x128xf32> to vector<2x8x128xf32>
    %395 = vector.extract_strided_slice %394 {offsets = [0, 0, 0], sizes = [2, 8, 16], strides = [1, 1, 1]} : vector<2x8x128xf32> to vector<2x8x16xf32>
    %396 = vector.extract_strided_slice %394 {offsets = [0, 0, 16], sizes = [2, 8, 16], strides = [1, 1, 1]} : vector<2x8x128xf32> to vector<2x8x16xf32>
    %397 = vector.extract_strided_slice %394 {offsets = [0, 0, 32], sizes = [2, 8, 16], strides = [1, 1, 1]} : vector<2x8x128xf32> to vector<2x8x16xf32>
    %398 = vector.extract_strided_slice %394 {offsets = [0, 0, 48], sizes = [2, 8, 16], strides = [1, 1, 1]} : vector<2x8x128xf32> to vector<2x8x16xf32>
    %399 = vector.extract_strided_slice %394 {offsets = [0, 0, 64], sizes = [2, 8, 16], strides = [1, 1, 1]} : vector<2x8x128xf32> to vector<2x8x16xf32>
    %400 = vector.extract_strided_slice %394 {offsets = [0, 0, 80], sizes = [2, 8, 16], strides = [1, 1, 1]} : vector<2x8x128xf32> to vector<2x8x16xf32>
    %401 = vector.extract_strided_slice %394 {offsets = [0, 0, 96], sizes = [2, 8, 16], strides = [1, 1, 1]} : vector<2x8x128xf32> to vector<2x8x16xf32>
    %402 = vector.extract_strided_slice %394 {offsets = [0, 0, 112], sizes = [2, 8, 16], strides = [1, 1, 1]} : vector<2x8x128xf32> to vector<2x8x16xf32>
    %403 = tpu.concatenate %395, %396, %397, %398, %399, %400, %401, %402 in 0 : vector<2x8x16xf32>, vector<2x8x16xf32>, vector<2x8x16xf32>, vector<2x8x16xf32>, vector<2x8x16xf32>, vector<2x8x16xf32>, vector<2x8x16xf32>, vector<2x8x16xf32> -> vector<16x8x16xf32>
    %404 = arith.truncf %403 : vector<16x8x16xf32> to vector<16x8x16xbf16>
    "tpu.trace_start"() <{level = 10 : i32, message = "bqd,bkd->bqk"}> : () -> ()
    %cst_138 = arith.constant dense<0.000000e+00> : vector<16x8x8xf32>
    %405 = tpu.matmul %382, %393, %cst_138 {dimension_numbers = #tpu.dot_dimension_numbers<[2], [2], [1], [1], [0, 0, 0, 1, 1, 1], [0], [0]>} : vector<16x8x16xbf16>, vector<16x8x16xbf16>, vector<16x8x8xf32> -> vector<16x8x8xf32>
    "tpu.trace_stop"() : () -> ()
    %cst_139 = arith.constant dense<0xFF800000> : vector<16x8xf32>
    %406 = vector.multi_reduction <maximumf>, %405, %cst_139 [2] : vector<16x8x8xf32> to vector<16x8xf32>
    %407 = vector.shape_cast %406 : vector<16x8xf32> to vector<16x8x1xf32>
    %408 = vector.broadcast %407 : vector<16x8x1xf32> to vector<16x8x8xf32>
    %409 = arith.subf %405, %408 : vector<16x8x8xf32>
    %410 = math.exp %409 : vector<16x8x8xf32>
    %cst_140 = arith.constant dense<0.000000e+00> : vector<16x8xf32>
    %411 = vector.multi_reduction <add>, %410, %cst_140 [2] : vector<16x8x8xf32> to vector<16x8xf32>
    %412 = vector.shape_cast %411 : vector<16x8xf32> to vector<16x8x1xf32>
    %413 = tpu.reciprocal %412 {approx = true} : vector<16x8x1xf32> -> vector<16x8x1xf32>
    %414 = vector.broadcast %413 : vector<16x8x1xf32> to vector<16x8x8xf32>
    %415 = arith.mulf %410, %414 : vector<16x8x8xf32>
    %416 = arith.truncf %415 : vector<16x8x8xf32> to vector<16x8x8xbf16>
    "tpu.trace_start"() <{level = 10 : i32, message = "bqk,bkd->bqd"}> : () -> ()
    %cst_141 = arith.constant dense<0.000000e+00> : vector<16x8x16xf32>
    %417 = tpu.matmul %416, %404, %cst_141 {dimension_numbers = #tpu.dot_dimension_numbers<[2], [1], [1], [2], [0, 0, 0, 1, 1, 2], [0], [0]>} : vector<16x8x8xbf16>, vector<16x8x16xbf16>, vector<16x8x16xf32> -> vector<16x8x16xf32>
    "tpu.trace_stop"() : () -> ()
    %418 = vector.extract_strided_slice %417 {offsets = [0, 0, 0], sizes = [2, 8, 16], strides = [1, 1, 1]} : vector<16x8x16xf32> to vector<2x8x16xf32>
    %419 = vector.extract_strided_slice %417 {offsets = [2, 0, 0], sizes = [2, 8, 16], strides = [1, 1, 1]} : vector<16x8x16xf32> to vector<2x8x16xf32>
    %420 = vector.extract_strided_slice %417 {offsets = [4, 0, 0], sizes = [2, 8, 16], strides = [1, 1, 1]} : vector<16x8x16xf32> to vector<2x8x16xf32>
    %421 = vector.extract_strided_slice %417 {offsets = [6, 0, 0], sizes = [2, 8, 16], strides = [1, 1, 1]} : vector<16x8x16xf32> to vector<2x8x16xf32>
    %422 = vector.extract_strided_slice %417 {offsets = [8, 0, 0], sizes = [2, 8, 16], strides = [1, 1, 1]} : vector<16x8x16xf32> to vector<2x8x16xf32>
    %423 = vector.extract_strided_slice %417 {offsets = [10, 0, 0], sizes = [2, 8, 16], strides = [1, 1, 1]} : vector<16x8x16xf32> to vector<2x8x16xf32>
    %424 = vector.extract_strided_slice %417 {offsets = [12, 0, 0], sizes = [2, 8, 16], strides = [1, 1, 1]} : vector<16x8x16xf32> to vector<2x8x16xf32>
    %425 = vector.extract_strided_slice %417 {offsets = [14, 0, 0], sizes = [2, 8, 16], strides = [1, 1, 1]} : vector<16x8x16xf32> to vector<2x8x16xf32>
    %426 = tpu.concatenate %418, %419, %420, %421, %422, %423, %424, %425 in 2 : vector<2x8x16xf32>, vector<2x8x16xf32>, vector<2x8x16xf32>, vector<2x8x16xf32>, vector<2x8x16xf32>, vector<2x8x16xf32>, vector<2x8x16xf32>, vector<2x8x16xf32> -> vector<2x8x128xf32>
    %427 = vector.shape_cast %426 : vector<2x8x128xf32> to vector<16x128xf32>
    %428 = arith.truncf %427 : vector<16x128xf32> to vector<16x128xbf16>
    %c2_142 = arith.constant 2 : index
    %c0_143 = arith.constant 0 : index
    %c0_144 = arith.constant 0 : index
    %429 = vector.load %arg9[%c2_142, %c0_143, %c0_144] : memref<3x128x128xbf16, #tpu.memory_space<vmem>>, vector<1x128x128xbf16>
    %430 = vector.shape_cast %429 : vector<1x128x128xbf16> to vector<128x128xbf16>
    %cst_145 = arith.constant dense<0.000000e+00> : vector<16x128xf32>
    %431 = tpu.matmul %428, %430, %cst_145 {dimension_numbers = #tpu.dot_dimension_numbers<[1], [0], [0], [1], [0, 0, 1, 1], [], []>} : vector<16x128xbf16>, vector<128x128xbf16>, vector<16x128xf32> -> vector<16x128xf32>
    %c2_146 = arith.constant 2 : index
    %c0_147 = arith.constant 0 : index
    %432 = vector.load %arg10[%c2_146, %c0_147] : memref<3x128xf32, #tpu.memory_space<vmem>>, vector<1x128xf32>
    %433 = vector.shape_cast %432 : vector<1x128xf32> to vector<128xf32>
    %434 = vector.shape_cast %433 : vector<128xf32> to vector<1x128xf32>
    %435 = vector.broadcast %434 : vector<1x128xf32> to vector<16x128xf32>
    %436 = arith.addf %431, %435 : vector<16x128xf32>
    %437 = arith.addf %346, %436 : vector<16x128xf32>
    %c2_148 = arith.constant 2 : index
    %c0_149 = arith.constant 0 : index
    %438 = vector.load %arg11[%c2_148, %c0_149] : memref<3x128xf32, #tpu.memory_space<vmem>>, vector<1x128xf32>
    %439 = vector.shape_cast %438 : vector<1x128xf32> to vector<128xf32>
    %c2_150 = arith.constant 2 : index
    %c0_151 = arith.constant 0 : index
    %440 = vector.load %arg12[%c2_150, %c0_151] : memref<3x128xf32, #tpu.memory_space<vmem>>, vector<1x128xf32>
    %441 = vector.shape_cast %440 : vector<1x128xf32> to vector<128xf32>
    %cst_152 = arith.constant dense<0.000000e+00> : vector<16xf32>
    %442 = vector.multi_reduction <add>, %437, %cst_152 [1] : vector<16x128xf32> to vector<16xf32>
    %443 = vector.shape_cast %442 : vector<16xf32> to vector<16x1xf32>
    %cst_153 = arith.constant 1.280000e+02 : f32
    %444 = vector.broadcast %cst_153 : f32 to vector<16x1xf32>
    %445 = arith.divf %443, %444 : vector<16x1xf32>
    %446 = arith.mulf %437, %437 : vector<16x128xf32>
    %cst_154 = arith.constant dense<0.000000e+00> : vector<16xf32>
    %447 = vector.multi_reduction <add>, %446, %cst_154 [1] : vector<16x128xf32> to vector<16xf32>
    %448 = vector.shape_cast %447 : vector<16xf32> to vector<16x1xf32>
    %cst_155 = arith.constant 1.280000e+02 : f32
    %449 = vector.broadcast %cst_155 : f32 to vector<16x1xf32>
    %450 = arith.divf %448, %449 : vector<16x1xf32>
    %451 = arith.mulf %445, %445 : vector<16x1xf32>
    %452 = arith.subf %450, %451 : vector<16x1xf32>
    %453 = vector.broadcast %445 : vector<16x1xf32> to vector<16x128xf32>
    %454 = arith.subf %437, %453 : vector<16x128xf32>
    %cst_156 = arith.constant 9.99999974E-6 : f32
    %455 = vector.broadcast %cst_156 : f32 to vector<16x1xf32>
    %456 = arith.addf %452, %455 : vector<16x1xf32>
    %457 = math.rsqrt %456 : vector<16x1xf32>
    %458 = vector.broadcast %457 : vector<16x1xf32> to vector<16x128xf32>
    %459 = arith.mulf %454, %458 : vector<16x128xf32>
    %460 = vector.shape_cast %439 : vector<128xf32> to vector<1x128xf32>
    %461 = vector.broadcast %460 : vector<1x128xf32> to vector<16x128xf32>
    %462 = arith.mulf %459, %461 : vector<16x128xf32>
    %463 = vector.shape_cast %441 : vector<128xf32> to vector<1x128xf32>
    %464 = vector.broadcast %463 : vector<1x128xf32> to vector<16x128xf32>
    %465 = arith.addf %462, %464 : vector<16x128xf32>
    %466 = arith.truncf %465 : vector<16x128xf32> to vector<16x128xbf16>
    %c2_157 = arith.constant 2 : index
    %c0_158 = arith.constant 0 : index
    %c0_159 = arith.constant 0 : index
    %467 = vector.load %arg13[%c2_157, %c0_158, %c0_159] : memref<3x128x256xbf16, #tpu.memory_space<vmem>>, vector<1x128x256xbf16>
    %468 = vector.shape_cast %467 : vector<1x128x256xbf16> to vector<128x256xbf16>
    %cst_160 = arith.constant dense<0.000000e+00> : vector<16x256xf32>
    %469 = tpu.matmul %466, %468, %cst_160 {dimension_numbers = #tpu.dot_dimension_numbers<[1], [0], [0], [1], [0, 0, 1, 1], [], []>} : vector<16x128xbf16>, vector<128x256xbf16>, vector<16x256xf32> -> vector<16x256xf32>
    %c2_161 = arith.constant 2 : index
    %c0_162 = arith.constant 0 : index
    %470 = vector.load %arg14[%c2_161, %c0_162] : memref<3x256xf32, #tpu.memory_space<vmem>>, vector<1x256xf32>
    %471 = vector.shape_cast %470 : vector<1x256xf32> to vector<256xf32>
    %472 = vector.shape_cast %471 : vector<256xf32> to vector<1x256xf32>
    %473 = vector.broadcast %472 : vector<1x256xf32> to vector<16x256xf32>
    %474 = arith.addf %469, %473 : vector<16x256xf32>
    %cst_163 = arith.constant 0.000000e+00 : f32
    %475 = vector.broadcast %cst_163 : f32 to vector<16x256xf32>
    %476 = arith.maximumf %474, %475 : vector<16x256xf32>
    %477 = arith.truncf %476 : vector<16x256xf32> to vector<16x256xbf16>
    %c2_164 = arith.constant 2 : index
    %c0_165 = arith.constant 0 : index
    %c0_166 = arith.constant 0 : index
    %478 = vector.load %arg15[%c2_164, %c0_165, %c0_166] : memref<3x256x128xbf16, #tpu.memory_space<vmem>>, vector<1x256x128xbf16>
    %479 = vector.shape_cast %478 : vector<1x256x128xbf16> to vector<256x128xbf16>
    %cst_167 = arith.constant dense<0.000000e+00> : vector<16x128xf32>
    %480 = tpu.matmul %477, %479, %cst_167 {dimension_numbers = #tpu.dot_dimension_numbers<[1], [0], [0], [1], [0, 0, 1, 1], [], []>} : vector<16x256xbf16>, vector<256x128xbf16>, vector<16x128xf32> -> vector<16x128xf32>
    %c2_168 = arith.constant 2 : index
    %c0_169 = arith.constant 0 : index
    %481 = vector.load %arg16[%c2_168, %c0_169] : memref<3x128xf32, #tpu.memory_space<vmem>>, vector<1x128xf32>
    %482 = vector.shape_cast %481 : vector<1x128xf32> to vector<128xf32>
    %483 = vector.shape_cast %482 : vector<128xf32> to vector<1x128xf32>
    %484 = vector.broadcast %483 : vector<1x128xf32> to vector<16x128xf32>
    %485 = arith.addf %480, %484 : vector<16x128xf32>
    %486 = arith.addf %465, %485 : vector<16x128xf32>
    %c2_170 = arith.constant 2 : index
    %c0_171 = arith.constant 0 : index
    %487 = vector.load %arg17[%c2_170, %c0_171] : memref<3x128xf32, #tpu.memory_space<vmem>>, vector<1x128xf32>
    %488 = vector.shape_cast %487 : vector<1x128xf32> to vector<128xf32>
    %c2_172 = arith.constant 2 : index
    %c0_173 = arith.constant 0 : index
    %489 = vector.load %arg18[%c2_172, %c0_173] : memref<3x128xf32, #tpu.memory_space<vmem>>, vector<1x128xf32>
    %490 = vector.shape_cast %489 : vector<1x128xf32> to vector<128xf32>
    %cst_174 = arith.constant dense<0.000000e+00> : vector<16xf32>
    %491 = vector.multi_reduction <add>, %486, %cst_174 [1] : vector<16x128xf32> to vector<16xf32>
    %492 = vector.shape_cast %491 : vector<16xf32> to vector<16x1xf32>
    %cst_175 = arith.constant 1.280000e+02 : f32
    %493 = vector.broadcast %cst_175 : f32 to vector<16x1xf32>
    %494 = arith.divf %492, %493 : vector<16x1xf32>
    %495 = arith.mulf %486, %486 : vector<16x128xf32>
    %cst_176 = arith.constant dense<0.000000e+00> : vector<16xf32>
    %496 = vector.multi_reduction <add>, %495, %cst_176 [1] : vector<16x128xf32> to vector<16xf32>
    %497 = vector.shape_cast %496 : vector<16xf32> to vector<16x1xf32>
    %cst_177 = arith.constant 1.280000e+02 : f32
    %498 = vector.broadcast %cst_177 : f32 to vector<16x1xf32>
    %499 = arith.divf %497, %498 : vector<16x1xf32>
    %500 = arith.mulf %494, %494 : vector<16x1xf32>
    %501 = arith.subf %499, %500 : vector<16x1xf32>
    %502 = vector.broadcast %494 : vector<16x1xf32> to vector<16x128xf32>
    %503 = arith.subf %486, %502 : vector<16x128xf32>
    %cst_178 = arith.constant 9.99999974E-6 : f32
    %504 = vector.broadcast %cst_178 : f32 to vector<16x1xf32>
    %505 = arith.addf %501, %504 : vector<16x1xf32>
    %506 = math.rsqrt %505 : vector<16x1xf32>
    %507 = vector.broadcast %506 : vector<16x1xf32> to vector<16x128xf32>
    %508 = arith.mulf %503, %507 : vector<16x128xf32>
    %509 = vector.shape_cast %488 : vector<128xf32> to vector<1x128xf32>
    %510 = vector.broadcast %509 : vector<1x128xf32> to vector<16x128xf32>
    %511 = arith.mulf %508, %510 : vector<16x128xf32>
    %512 = vector.shape_cast %490 : vector<128xf32> to vector<1x128xf32>
    %513 = vector.broadcast %512 : vector<1x128xf32> to vector<16x128xf32>
    %514 = arith.addf %511, %513 : vector<16x128xf32>
    %515 = vector.shape_cast %514 : vector<16x128xf32> to vector<2x8x128xf32>
    %cst_179 = arith.constant dense<0xFF800000> : vector<2x128xf32>
    %516 = vector.multi_reduction <maximumf>, %515, %cst_179 [1] : vector<2x8x128xf32> to vector<2x128xf32>
    %517 = arith.truncf %516 : vector<2x128xf32> to vector<2x128xbf16>
    %c0_180 = arith.constant 0 : index
    %c0_181 = arith.constant 0 : index
    %518 = vector.load %arg19[%c0_180, %c0_181] : memref<128x128xbf16, #tpu.memory_space<vmem>>, vector<128x128xbf16>
    %cst_182 = arith.constant dense<0.000000e+00> : vector<2x128xf32>
    %519 = tpu.matmul %517, %518, %cst_182 {dimension_numbers = #tpu.dot_dimension_numbers<[1], [0], [0], [1], [0, 0, 1, 1], [], []>} : vector<2x128xbf16>, vector<128x128xbf16>, vector<2x128xf32> -> vector<2x128xf32>
    %c0_183 = arith.constant 0 : index
    %c0_184 = arith.constant 0 : index
    %520 = vector.load %arg20[%c0_183, %c0_184] : memref<1x128xf32, #tpu.memory_space<vmem>>, vector<1x128xf32>
    %521 = vector.broadcast %520 : vector<1x128xf32> to vector<2x128xf32>
    %522 = arith.addf %519, %521 : vector<2x128xf32>
    %c0_185 = arith.constant 0 : index
    %c0_186 = arith.constant 0 : index
    %c0_187 = arith.constant 0 : index
    %523 = vector.load %arg21[%c0_185, %c0_186, %c0_187] : memref<1x2x128xf32, #tpu.memory_space<vmem>>, vector<1x2x128xf32>
    %524 = vector.shape_cast %523 : vector<1x2x128xf32> to vector<2x128xf32>
    %525 = vector.shape_cast %522 : vector<2x128xf32> to vector<1x2x128xf32>
    tpu.vector_store %arg21[%c0_185, %c0_186, %c0_187], %525 {strides = array<i32>} : memref<1x2x128xf32, #tpu.memory_space<vmem>>, vector<1x2x128xf32>,
    return
  }
  func.func @transform_0(%arg0: i32) -> (i32, i32, i32) {
    %c0_i32 = arith.constant 0 : i32
    %c0_i32_0 = arith.constant 0 : i32
    %c0_i32_1 = arith.constant 0 : i32
    return %arg0, %c0_i32, %c0_i32_0 : i32, i32, i32
  }
  func.func @transform_1(%arg0: i32) -> (i32, i32) {
    %c0_i32 = arith.constant 0 : i32
    %c0_i32_0 = arith.constant 0 : i32
    %c0_i32_1 = arith.constant 0 : i32
    return %c0_i32, %c0_i32_0 : i32, i32
  }
  func.func @transform_2(%arg0: i32) -> (i32, i32, i32) {
    %c0_i32 = arith.constant 0 : i32
    %c0_i32_0 = arith.constant 0 : i32
    %c0_i32_1 = arith.constant 0 : i32
    %c0_i32_2 = arith.constant 0 : i32
    return %c0_i32, %c0_i32_0, %c0_i32_1 : i32, i32, i32
  }
  func.func @transform_3(%arg0: i32) -> (i32, i32) {
    %c0_i32 = arith.constant 0 : i32
    %c0_i32_0 = arith.constant 0 : i32
    %c0_i32_1 = arith.constant 0 : i32
    return %c0_i32, %c0_i32_0 : i32, i32
  }
  func.func @transform_4(%arg0: i32) -> (i32, i32, i32) {
    %c0_i32 = arith.constant 0 : i32
    %c0_i32_0 = arith.constant 0 : i32
    %c0_i32_1 = arith.constant 0 : i32
    %c0_i32_2 = arith.constant 0 : i32
    return %c0_i32, %c0_i32_0, %c0_i32_1 : i32, i32, i32
  }
  func.func @transform_5(%arg0: i32) -> (i32, i32) {
    %c0_i32 = arith.constant 0 : i32
    %c0_i32_0 = arith.constant 0 : i32
    %c0_i32_1 = arith.constant 0 : i32
    return %c0_i32, %c0_i32_0 : i32, i32
  }
  func.func @transform_6(%arg0: i32) -> (i32, i32, i32) {
    %c0_i32 = arith.constant 0 : i32
    %c0_i32_0 = arith.constant 0 : i32
    %c0_i32_1 = arith.constant 0 : i32
    %c0_i32_2 = arith.constant 0 : i32
    return %c0_i32, %c0_i32_0, %c0_i32_1 : i32, i32, i32
  }
  func.func @transform_7(%arg0: i32) -> (i32, i32) {
    %c0_i32 = arith.constant 0 : i32
    %c0_i32_0 = arith.constant 0 : i32
    %c0_i32_1 = arith.constant 0 : i32
    return %c0_i32, %c0_i32_0 : i32, i32
  }
  func.func @transform_8(%arg0: i32) -> (i32, i32, i32) {
    %c0_i32 = arith.constant 0 : i32
    %c0_i32_0 = arith.constant 0 : i32
    %c0_i32_1 = arith.constant 0 : i32
    %c0_i32_2 = arith.constant 0 : i32
    return %c0_i32, %c0_i32_0, %c0_i32_1 : i32, i32, i32
  }
  func.func @transform_9(%arg0: i32) -> (i32, i32) {
    %c0_i32 = arith.constant 0 : i32
    %c0_i32_0 = arith.constant 0 : i32
    %c0_i32_1 = arith.constant 0 : i32
    return %c0_i32, %c0_i32_0 : i32, i32
  }
  func.func @transform_10(%arg0: i32) -> (i32, i32) {
    %c0_i32 = arith.constant 0 : i32
    %c0_i32_0 = arith.constant 0 : i32
    %c0_i32_1 = arith.constant 0 : i32
    return %c0_i32, %c0_i32_0 : i32, i32
  }
  func.func @transform_11(%arg0: i32) -> (i32, i32) {
    %c0_i32 = arith.constant 0 : i32
    %c0_i32_0 = arith.constant 0 : i32
    %c0_i32_1 = arith.constant 0 : i32
    return %c0_i32, %c0_i32_0 : i32, i32
  }
  func.func @transform_12(%arg0: i32) -> (i32, i32, i32) {
    %c0_i32 = arith.constant 0 : i32
    %c0_i32_0 = arith.constant 0 : i32
    %c0_i32_1 = arith.constant 0 : i32
    %c0_i32_2 = arith.constant 0 : i32
    return %c0_i32, %c0_i32_0, %c0_i32_1 : i32, i32, i32
  }
  func.func @transform_13(%arg0: i32) -> (i32, i32) {
    %c0_i32 = arith.constant 0 : i32
    %c0_i32_0 = arith.constant 0 : i32
    %c0_i32_1 = arith.constant 0 : i32
    return %c0_i32, %c0_i32_0 : i32, i32
  }
  func.func @transform_14(%arg0: i32) -> (i32, i32, i32) {
    %c0_i32 = arith.constant 0 : i32
    %c0_i32_0 = arith.constant 0 : i32
    %c0_i32_1 = arith.constant 0 : i32
    %c0_i32_2 = arith.constant 0 : i32
    return %c0_i32, %c0_i32_0, %c0_i32_1 : i32, i32, i32
  }
  func.func @transform_15(%arg0: i32) -> (i32, i32) {
    %c0_i32 = arith.constant 0 : i32
    %c0_i32_0 = arith.constant 0 : i32
    %c0_i32_1 = arith.constant 0 : i32
    return %c0_i32, %c0_i32_0 : i32, i32
  }
  func.func @transform_16(%arg0: i32) -> (i32, i32) {
    %c0_i32 = arith.constant 0 : i32
    %c0_i32_0 = arith.constant 0 : i32
    %c0_i32_1 = arith.constant 0 : i32
    return %c0_i32, %c0_i32_0 : i32, i32
  }
  func.func @transform_17(%arg0: i32) -> (i32, i32) {
    %c0_i32 = arith.constant 0 : i32
    %c0_i32_0 = arith.constant 0 : i32
    %c0_i32_1 = arith.constant 0 : i32
    return %c0_i32, %c0_i32_0 : i32, i32
  }
  func.func @transform_18(%arg0: i32) -> (i32, i32) {
    %c0_i32 = arith.constant 0 : i32
    %c0_i32_0 = arith.constant 0 : i32
    %c0_i32_1 = arith.constant 0 : i32
    return %c0_i32, %c0_i32_0 : i32, i32
  }
  func.func @transform_19(%arg0: i32) -> (i32, i32) {
    %c0_i32 = arith.constant 0 : i32
    %c0_i32_0 = arith.constant 0 : i32
    %c0_i32_1 = arith.constant 0 : i32
    return %c0_i32, %c0_i32_0 : i32, i32
  }
  func.func @transform_20(%arg0: i32) -> (i32, i32, i32) {
    %c0_i32 = arith.constant 0 : i32
    %c0_i32_0 = arith.constant 0 : i32
    %c0_i32_1 = arith.constant 0 : i32
    return %arg0, %c0_i32, %c0_i32_0 : i32, i32, i32
  }
}

</mosaic_0001>

<llo_original>
// kernel: tpu_custom_call.1
$region0: #{tpu_custom_call.1}
  #allocation0 [shape = 'u32[]', space=smem, size = 0x4, offset = 0x4, fixed_abs, tag = 'smem constant byte address 0x4 - core index']
  #allocation1 [shape = 'u32[144,128]{1,0:T(1,128)}', space=vmem, size = 0x12000, scoped, tag = 'internal scratch']
  %s0 = inlined_call_operand.hbm [shape: s32[1,2,8], index: 0, kind: input, shape index: {}]
  %s1 = inlined_call_operand.hbm [shape: f32[32,128], index: 1, kind: input, shape index: {}]
  %s2 = inlined_call_operand.hbm [shape: bf16[3,128,128], index: 2, kind: input, shape index: {}]
  %s3 = inlined_call_operand.vmem [shape: f32[3,128], index: 3, kind: input, shape index: {}]
  %s4 = inlined_call_operand.hbm [shape: bf16[3,128,128], index: 4, kind: input, shape index: {}]
  %s5 = inlined_call_operand.hbm [shape: f32[3,128], index: 5, kind: input, shape index: {}]
  %s6 = inlined_call_operand.hbm [shape: bf16[3,128,128], index: 6, kind: input, shape index: {}]
  %s7 = inlined_call_operand.hbm [shape: f32[3,128], index: 7, kind: input, shape index: {}]
  %s8 = inlined_call_operand.hbm [shape: bf16[3,128,128], index: 8, kind: input, shape index: {}]
  %s9 = inlined_call_operand.hbm [shape: f32[3,128], index: 9, kind: input, shape index: {}]
  %s10 = inlined_call_operand.hbm [shape: f32[3,128], index: 10, kind: input, shape index: {}]
  %s11 = inlined_call_operand.hbm [shape: f32[3,128], index: 11, kind: input, shape index: {}]
  %s12 = inlined_call_operand.hbm [shape: bf16[3,128,256], index: 12, kind: input, shape index: {}]
  %s13 = inlined_call_operand.hbm [shape: f32[3,256], index: 13, kind: input, shape index: {}]
  %s14 = inlined_call_operand.hbm [shape: bf16[3,256,128], index: 14, kind: input, shape index: {}]
  %s15 = inlined_call_operand.hbm [shape: f32[3,128], index: 15, kind: input, shape index: {}]
  %s16 = inlined_call_operand.hbm [shape: f32[3,128], index: 16, kind: input, shape index: {}]
  %s17 = inlined_call_operand.hbm [shape: f32[3,128], index: 17, kind: input, shape index: {}]
  %s18 = inlined_call_operand.vmem [shape: bf16[128,128], index: 18, kind: input, shape index: {}]
  %s19 = inlined_call_operand.vmem [shape: f32[1,128], index: 19, kind: input, shape index: {}]
  %s20 = inlined_call_operand.hbm [shape: f32[1,2,128], index: 20, kind: output, shape index: {}]
  %s21 = sld [smem:[#allocation0]]
  $region158: #{tpu_custom_call.1} parent=0
    _
  %s23 = ssub.s32 1, %s21
  %s24 = scalar_select 0, %s23, %s21
  $region1: #{tpu_custom_call.1} parent=0
    #allocation2 [shape = 'u8[1024]{0}', space=vmem, size = 0x400, scoped, tag = 'input window, operand 0, single buffered']
    #allocation3 [shape = 's32[1]{0}', space=sflag, size = 0x4, scoped, tag = 'scoped memory for tpu_custom_call.1']
    #allocation4 [shape = 's32[1]{0}', space=sflag, size = 0x4, scoped, tag = 'scoped memory for tpu_custom_call.1']
    #allocation5 [shape = 'u8[16384]{0}', space=vmem, size = 0x4000, scoped, tag = 'input window, operand 1, single buffered']
    #allocation6 [shape = 's32[1]{0}', space=sflag, size = 0x4, scoped, tag = 'scoped memory for tpu_custom_call.1']
    #allocation7 [shape = 'u8[98304]{0}', space=vmem, size = 0x18000, scoped, tag = 'input window, operand 2, single buffered']
    #allocation8 [shape = 'u8[98304]{0}', space=vmem, size = 0x18000, scoped, tag = 'input window, operand 4, single buffered']
    #allocation9 [shape = 's32[1]{0}', space=sflag, size = 0x4, scoped, tag = 'scoped memory for tpu_custom_call.1']
    #allocation10 [shape = 'u8[2048]{0}', space=vmem, size = 0x800, scoped, tag = 'input window, operand 5, single buffered']
    #allocation11 [shape = 'u8[98304]{0}', space=vmem, size = 0x18000, scoped, tag = 'input window, operand 6, single buffered']
    #allocation12 [shape = 's32[1]{0}', space=sflag, size = 0x4, scoped, tag = 'scoped memory for tpu_custom_call.1']
    #allocation13 [shape = 'u8[2048]{0}', space=vmem, size = 0x800, scoped, tag = 'input window, operand 7, single buffered']
    #allocation14 [shape = 'u8[98304]{0}', space=vmem, size = 0x18000, scoped, tag = 'input window, operand 8, single buffered']
    #allocation15 [shape = 's32[1]{0}', space=sflag, size = 0x4, scoped, tag = 'scoped memory for tpu_custom_call.1']
    #allocation16 [shape = 'u8[2048]{0}', space=vmem, size = 0x800, scoped, tag = 'input window, operand 9, single buffered']
    #allocation17 [shape = 'u8[2048]{0}', space=vmem, size = 0x800, scoped, tag = 'input window, operand 10, single buffered']
    #allocation18 [shape = 's32[1]{0}', space=sflag, size = 0x4, scoped, tag = 'scoped memory for tpu_custom_call.1']
    #allocation19 [shape = 'u8[2048]{0}', space=vmem, size = 0x800, scoped, tag = 'input window, operand 11, single buffered']
    #allocation20 [shape = 'u8[196608]{0}', space=vmem, size = 0x30000, scoped, tag = 'input window, operand 12, single buffered']
    #allocation21 [shape = 's32[1]{0}', space=sflag, size = 0x4, scoped, tag = 'scoped memory for tpu_custom_call.1']
    #allocation22 [shape = 'u8[4096]{0}', space=vmem, size = 0x1000, scoped, tag = 'input window, operand 13, single buffered']
    #allocation23 [shape = 'u8[196608]{0}', space=vmem, size = 0x30000, scoped, tag = 'input window, operand 14, single buffered']
    #allocation24 [shape = 's32[1]{0}', space=sflag, size = 0x4, scoped, tag = 'scoped memory for tpu_custom_call.1']
    #allocation25 [shape = 'u8[2048]{0}', space=vmem, size = 0x800, scoped, tag = 'input window, operand 15, single buffered']
    #allocation26 [shape = 'u8[2048]{0}', space=vmem, size = 0x800, scoped, tag = 'input window, operand 16, single buffered']
    #allocation27 [shape = 's32[1]{0}', space=sflag, size = 0x4, scoped, tag = 'scoped memory for tpu_custom_call.1']
    #allocation28 [shape = 'u8[2048]{0}', space=vmem, size = 0x800, scoped, tag = 'input window, operand 17, single buffered']
    #allocation29 [shape = 'u8[1024]{0}', space=vmem, size = 0x400, scoped, tag = 'output window, operand 0, single buffered']
    %25 = vsyncpa [#allocation3], 0
    %26 = vsyncpa [#allocation6], 0
    %27 = vsyncpa [#allocation9], 0
    %28 = vsyncpa [#allocation12], 0
    %29 = vsyncpa [#allocation15], 0
    %30 = vsyncpa [#allocation18], 0
    %31 = vsyncpa [#allocation21], 0
    %32 = vsyncpa [#allocation24], 0
    %33 = vsyncpa [#allocation27], 0
    %34 = vsyncpa [#allocation4], 0
    // Predicated region
    $region2: #{tpu_custom_call.1} parent=1 // pred_check
      _
    $region3: #{tpu_custom_call.1} parent=1 // pred_check_branch
      %36 = sbr.rel (0) target = $region5
    $region4: #{tpu_custom_call.1} parent=1 // pred_region
      %s38 = ssub.s32 32, 32
      %39 = vsyncadd [#allocation3], %s38
      %s41 = sshll.u32 [#allocation2], 4
      %s42 = int_to_ptr.vmem [resolvable:$true] %s41
      %44 = dma.hbm_to_vmem [thread:$0]  %s0, 32, %s42, [#allocation3]
    $region5: #{tpu_custom_call.1} parent=1 // pred_fallthru
      _
    // Predicated region
    $region6: #{tpu_custom_call.1} parent=1 // pred_check
      _
    $region7: #{tpu_custom_call.1} parent=1 // pred_check_branch
      %46 = sbr.rel (0) target = $region9
    $region8: #{tpu_custom_call.1} parent=1 // pred_region
      %s48 = ssub.s32 512, 512
      %49 = vsyncadd [#allocation6], %s48
      %s50 = sshll.u32 [#allocation5], 4
      %s51 = int_to_ptr.vmem [resolvable:$true] %s50
      %56 = dma.hbm_to_vmem [thread:$0]  %s1, 512, %s51, [#allocation6], 128, 128, 8
    $region9: #{tpu_custom_call.1} parent=1 // pred_fallthru
      _
    // Predicated region
    $region10: #{tpu_custom_call.1} parent=1 // pred_check
      _
    $region11: #{tpu_custom_call.1} parent=1 // pred_check_branch
      %58 = sbr.rel (0) target = $region13
    $region12: #{tpu_custom_call.1} parent=1 // pred_region
      %s60 = ssub.s32 3072, 3072
      %61 = vsyncadd [#allocation6], %s60
      %s62 = sshll.u32 [#allocation7], 4
      %s63 = int_to_ptr.vmem [resolvable:$true] %s62
      %68 = dma.hbm_to_vmem [thread:$0]  %s2, 3072, %s63, [#allocation6], 64, 64, 4
    $region13: #{tpu_custom_call.1} parent=1 // pred_fallthru
      _
    // Predicated region
    $region14: #{tpu_custom_call.1} parent=1 // pred_check
      _
    $region15: #{tpu_custom_call.1} parent=1 // pred_check_branch
      %70 = sbr.rel (0) target = $region17
    $region16: #{tpu_custom_call.1} parent=1 // pred_region
      _
    $region17: #{tpu_custom_call.1} parent=1 // pred_fallthru
      _
    // Predicated region
    $region18: #{tpu_custom_call.1} parent=1 // pred_check
      _
    $region19: #{tpu_custom_call.1} parent=1 // pred_check_branch
      %72 = sbr.rel (0) target = $region21
    $region20: #{tpu_custom_call.1} parent=1 // pred_region
      %s74 = ssub.s32 3072, 3072
      %75 = vsyncadd [#allocation9], %s74
      %s76 = sshll.u32 [#allocation8], 4
      %s77 = int_to_ptr.vmem [resolvable:$true] %s76
      %82 = dma.hbm_to_vmem [thread:$0]  %s4, 3072, %s77, [#allocation9], 64, 64, 4
    $region21: #{tpu_custom_call.1} parent=1 // pred_fallthru
      _
    // Predicated region
    $region22: #{tpu_custom_call.1} parent=1 // pred_check
      _
    $region23: #{tpu_custom_call.1} parent=1 // pred_check_branch
      %84 = sbr.rel (0) target = $region25
    $region24: #{tpu_custom_call.1} parent=1 // pred_region
      %s86 = ssub.s32 64, 64
      %87 = vsyncadd [#allocation9], %s86
      %s89 = sshll.u32 [#allocation10], 4
      %s90 = int_to_ptr.vmem [resolvable:$true] %s89
      %92 = dma.hbm_to_vmem [thread:$0]  %s5, 64, %s90, [#allocation9]
    $region25: #{tpu_custom_call.1} parent=1 // pred_fallthru
      _
    // Predicated region
    $region26: #{tpu_custom_call.1} parent=1 // pred_check
      _
    $region27: #{tpu_custom_call.1} parent=1 // pred_check_branch
      %94 = sbr.rel (0) target = $region29
    $region28: #{tpu_custom_call.1} parent=1 // pred_region
      %s96 = ssub.s32 3072, 3072
      %97 = vsyncadd [#allocation12], %s96
      %s98 = sshll.u32 [#allocation11], 4
      %s99 = int_to_ptr.vmem [resolvable:$true] %s98
      %104 = dma.hbm_to_vmem [thread:$0]  %s6, 3072, %s99, [#allocation12], 64, 64, 4
    $region29: #{tpu_custom_call.1} parent=1 // pred_fallthru
      _
    // Predicated region
    $region30: #{tpu_custom_call.1} parent=1 // pred_check
      _
    $region31: #{tpu_custom_call.1} parent=1 // pred_check_branch
      %106 = sbr.rel (0) target = $region33
    $region32: #{tpu_custom_call.1} parent=1 // pred_region
      %s108 = ssub.s32 64, 64
      %109 = vsyncadd [#allocation12], %s108
      %s111 = sshll.u32 [#allocation13], 4
      %s112 = int_to_ptr.vmem [resolvable:$true] %s111
      %114 = dma.hbm_to_vmem [thread:$0]  %s7, 64, %s112, [#allocation12]
    $region33: #{tpu_custom_call.1} parent=1 // pred_fallthru
      _
    // Predicated region
    $region34: #{tpu_custom_call.1} parent=1 // pred_check
      _
    $region35: #{tpu_custom_call.1} parent=1 // pred_check_branch
      %116 = sbr.rel (0) target = $region37
    $region36: #{tpu_custom_call.1} parent=1 // pred_region
      %s118 = ssub.s32 3072, 3072
      %119 = vsyncadd [#allocation15], %s118
      %s120 = sshll.u32 [#allocation14], 4
      %s121 = int_to_ptr.vmem [resolvable:$true] %s120
      %126 = dma.hbm_to_vmem [thread:$0]  %s8, 3072, %s121, [#allocation15], 64, 64, 4
    $region37: #{tpu_custom_call.1} parent=1 // pred_fallthru
      _
    // Predicated region
    $region38: #{tpu_custom_call.1} parent=1 // pred_check
      _
    $region39: #{tpu_custom_call.1} parent=1 // pred_check_branch
      %128 = sbr.rel (0) target = $region41
    $region40: #{tpu_custom_call.1} parent=1 // pred_region
      %s130 = ssub.s32 64, 64
      %131 = vsyncadd [#allocation15], %s130
      %s133 = sshll.u32 [#allocation16], 4
      %s134 = int_to_ptr.vmem [resolvable:$true] %s133
      %136 = dma.hbm_to_vmem [thread:$0]  %s9, 64, %s134, [#allocation15]
    $region41: #{tpu_custom_call.1} parent=1 // pred_fallthru
      _
    // Predicated region
    $region42: #{tpu_custom_call.1} parent=1 // pred_check
      _
    $region43: #{tpu_custom_call.1} parent=1 // pred_check_branch
      %138 = sbr.rel (0) target = $region45
    $region44: #{tpu_custom_call.1} parent=1 // pred_region
      %s140 = ssub.s32 64, 64
      %141 = vsyncadd [#allocation18], %s140
      %s143 = sshll.u32 [#allocation17], 4
      %s144 = int_to_ptr.vmem [resolvable:$true] %s143
      %146 = dma.hbm_to_vmem [thread:$0]  %s10, 64, %s144, [#allocation18]
    $region45: #{tpu_custom_call.1} parent=1 // pred_fallthru
      _
    // Predicated region
    $region46: #{tpu_custom_call.1} parent=1 // pred_check
      _
    $region47: #{tpu_custom_call.1} parent=1 // pred_check_branch
      %148 = sbr.rel (0) target = $region49
    $region48: #{tpu_custom_call.1} parent=1 // pred_region
      %s150 = ssub.s32 64, 64
      %151 = vsyncadd [#allocation18], %s150
      %s153 = sshll.u32 [#allocation19], 4
      %s154 = int_to_ptr.vmem [resolvable:$true] %s153
      %156 = dma.hbm_to_vmem [thread:$0]  %s11, 64, %s154, [#allocation18]
    $region49: #{tpu_custom_call.1} parent=1 // pred_fallthru
      _
    // Predicated region
    $region50: #{tpu_custom_call.1} parent=1 // pred_check
      _
    $region51: #{tpu_custom_call.1} parent=1 // pred_check_branch
      %158 = sbr.rel (0) target = $region53
    $region52: #{tpu_custom_call.1} parent=1 // pred_region
      %s160 = ssub.s32 6144, 6144
      %161 = vsyncadd [#allocation21], %s160
      %s162 = sshll.u32 [#allocation20], 4
      %s163 = int_to_ptr.vmem [resolvable:$true] %s162
      %168 = dma.hbm_to_vmem [thread:$0]  %s12, 6144, %s163, [#allocation21], 128, 128, 8
    $region53: #{tpu_custom_call.1} parent=1 // pred_fallthru
      _
    // Predicated region
    $region54: #{tpu_custom_call.1} parent=1 // pred_check
      _
    $region55: #{tpu_custom_call.1} parent=1 // pred_check_branch
      %170 = sbr.rel (0) target = $region57
    $region56: #{tpu_custom_call.1} parent=1 // pred_region
      %s172 = ssub.s32 128, 128
      %173 = vsyncadd [#allocation21], %s172
      %s175 = sshll.u32 [#allocation22], 4
      %s176 = int_to_ptr.vmem [resolvable:$true] %s175
      %178 = dma.hbm_to_vmem [thread:$0]  %s13, 128, %s176, [#allocation21]
    $region57: #{tpu_custom_call.1} parent=1 // pred_fallthru
      _
    // Predicated region
    $region58: #{tpu_custom_call.1} parent=1 // pred_check
      _
    $region59: #{tpu_custom_call.1} parent=1 // pred_check_branch
      %180 = sbr.rel (0) target = $region61
    $region60: #{tpu_custom_call.1} parent=1 // pred_region
      %s182 = ssub.s32 6144, 6144
      %183 = vsyncadd [#allocation24], %s182
      %s184 = sshll.u32 [#allocation23], 4
      %s185 = int_to_ptr.vmem [resolvable:$true] %s184
      %190 = dma.hbm_to_vmem [thread:$0]  %s14, 6144, %s185, [#allocation24], 64, 64, 4
    $region61: #{tpu_custom_call.1} parent=1 // pred_fallthru
      _
    // Predicated region
    $region62: #{tpu_custom_call.1} parent=1 // pred_check
      _
    $region63: #{tpu_custom_call.1} parent=1 // pred_check_branch
      %192 = sbr.rel (0) target = $region65
    $region64: #{tpu_custom_call.1} parent=1 // pred_region
      %s194 = ssub.s32 64, 64
      %195 = vsyncadd [#allocation24], %s194
      %s197 = sshll.u32 [#allocation25], 4
      %s198 = int_to_ptr.vmem [resolvable:$true] %s197
      %200 = dma.hbm_to_vmem [thread:$0]  %s15, 64, %s198, [#allocation24]
    $region65: #{tpu_custom_call.1} parent=1 // pred_fallthru
      _
    // Predicated region
    $region66: #{tpu_custom_call.1} parent=1 // pred_check
      _
    $region67: #{tpu_custom_call.1} parent=1 // pred_check_branch
      %202 = sbr.rel (0) target = $region69
    $region68: #{tpu_custom_call.1} parent=1 // pred_region
      %s204 = ssub.s32 64, 64
      %205 = vsyncadd [#allocation27], %s204
      %s207 = sshll.u32 [#allocation26], 4
      %s208 = int_to_ptr.vmem [resolvable:$true] %s207
      %210 = dma.hbm_to_vmem [thread:$0]  %s16, 64, %s208, [#allocation27]
    $region69: #{tpu_custom_call.1} parent=1 // pred_fallthru
      _
    // Predicated region
    $region70: #{tpu_custom_call.1} parent=1 // pred_check
      _
    $region71: #{tpu_custom_call.1} parent=1 // pred_check_branch
      %212 = sbr.rel (0) target = $region73
    $region72: #{tpu_custom_call.1} parent=1 // pred_region
      %s214 = ssub.s32 64, 64
      %215 = vsyncadd [#allocation27], %s214
      %s217 = sshll.u32 [#allocation28], 4
      %s218 = int_to_ptr.vmem [resolvable:$true] %s217
      %220 = dma.hbm_to_vmem [thread:$0]  %s17, 64, %s218, [#allocation27]
    $region73: #{tpu_custom_call.1} parent=1 // pred_fallthru
      _
    // Predicated region
    $region74: #{tpu_custom_call.1} parent=1 // pred_check
      _
    $region75: #{tpu_custom_call.1} parent=1 // pred_check_branch
      %222 = sbr.rel (0) target = $region77
    $region76: #{tpu_custom_call.1} parent=1 // pred_region
      _
    $region77: #{tpu_custom_call.1} parent=1 // pred_fallthru
      _
    // Predicated region
    $region78: #{tpu_custom_call.1} parent=1 // pred_check
      _
    $region79: #{tpu_custom_call.1} parent=1 // pred_check_branch
      %224 = sbr.rel (0) target = $region81
    $region80: #{tpu_custom_call.1} parent=1 // pred_region
      _
    $region81: #{tpu_custom_call.1} parent=1 // pred_fallthru
      _
    // Predicated region
    $region82: #{tpu_custom_call.1} parent=1 // pred_check
      _
    $region83: #{tpu_custom_call.1} parent=1 // pred_check_branch
      %226 = sbr.rel (0) target = $region85
    $region84: #{tpu_custom_call.1} parent=1 // pred_region
      %227 = dma.done [#allocation3], 32
    $region85: #{tpu_custom_call.1} parent=1 // pred_fallthru
      _
    // Predicated region
    $region86: #{tpu_custom_call.1} parent=1 // pred_check
      _
    $region87: #{tpu_custom_call.1} parent=1 // pred_check_branch
      %229 = sbr.rel (0) target = $region89
    $region88: #{tpu_custom_call.1} parent=1 // pred_region
      %230 = dma.done [#allocation6], 512
    $region89: #{tpu_custom_call.1} parent=1 // pred_fallthru
      _
    // Predicated region
    $region90: #{tpu_custom_call.1} parent=1 // pred_check
      _
    $region91: #{tpu_custom_call.1} parent=1 // pred_check_branch
      %232 = sbr.rel (0) target = $region93
    $region92: #{tpu_custom_call.1} parent=1 // pred_region
      %233 = dma.done [#allocation6], 3072
    $region93: #{tpu_custom_call.1} parent=1 // pred_fallthru
      _
    // Predicated region
    $region94: #{tpu_custom_call.1} parent=1 // pred_check
      _
    $region95: #{tpu_custom_call.1} parent=1 // pred_check_branch
      %235 = sbr.rel (0) target = $region97
    $region96: #{tpu_custom_call.1} parent=1 // pred_region
      %236 = dma.done [#allocation9], 3072
    $region97: #{tpu_custom_call.1} parent=1 // pred_fallthru
      _
    // Predicated region
    $region98: #{tpu_custom_call.1} parent=1 // pred_check
      _
    $region99: #{tpu_custom_call.1} parent=1 // pred_check_branch
      %238 = sbr.rel (0) target = $region101
    $region100: #{tpu_custom_call.1} parent=1 // pred_region
      %239 = dma.done [#allocation9], 64
    $region101: #{tpu_custom_call.1} parent=1 // pred_fallthru
      _
    // Predicated region
    $region102: #{tpu_custom_call.1} parent=1 // pred_check
      _
    $region103: #{tpu_custom_call.1} parent=1 // pred_check_branch
      %241 = sbr.rel (0) target = $region105
    $region104: #{tpu_custom_call.1} parent=1 // pred_region
      %242 = dma.done [#allocation12], 3072
    $region105: #{tpu_custom_call.1} parent=1 // pred_fallthru
      _
    // Predicated region
    $region106: #{tpu_custom_call.1} parent=1 // pred_check
      _
    $region107: #{tpu_custom_call.1} parent=1 // pred_check_branch
      %244 = sbr.rel (0) target = $region109
    $region108: #{tpu_custom_call.1} parent=1 // pred_region
      %245 = dma.done [#allocation12], 64
    $region109: #{tpu_custom_call.1} parent=1 // pred_fallthru
      _
    // Predicated region
    $region110: #{tpu_custom_call.1} parent=1 // pred_check
      _
    $region111: #{tpu_custom_call.1} parent=1 // pred_check_branch
      %247 = sbr.rel (0) target = $region113
    $region112: #{tpu_custom_call.1} parent=1 // pred_region
      %248 = dma.done [#allocation15], 3072
    $region113: #{tpu_custom_call.1} parent=1 // pred_fallthru
      _
    // Predicated region
    $region114: #{tpu_custom_call.1} parent=1 // pred_check
      _
    $region115: #{tpu_custom_call.1} parent=1 // pred_check_branch
      %250 = sbr.rel (0) target = $region117
    $region116: #{tpu_custom_call.1} parent=1 // pred_region
      %251 = dma.done [#allocation15], 64
    $region117: #{tpu_custom_call.1} parent=1 // pred_fallthru
      _
    // Predicated region
    $region118: #{tpu_custom_call.1} parent=1 // pred_check
      _
    $region119: #{tpu_custom_call.1} parent=1 // pred_check_branch
      %253 = sbr.rel (0) target = $region121
    $region120: #{tpu_custom_call.1} parent=1 // pred_region
      %254 = dma.done [#allocation18], 64
    $region121: #{tpu_custom_call.1} parent=1 // pred_fallthru
      _
    // Predicated region
    $region122: #{tpu_custom_call.1} parent=1 // pred_check
      _
    $region123: #{tpu_custom_call.1} parent=1 // pred_check_branch
      %256 = sbr.rel (0) target = $region125
    $region124: #{tpu_custom_call.1} parent=1 // pred_region
      %257 = dma.done [#allocation18], 64
    $region125: #{tpu_custom_call.1} parent=1 // pred_fallthru
      _
    // Predicated region
    $region126: #{tpu_custom_call.1} parent=1 // pred_check
      _
    $region127: #{tpu_custom_call.1} parent=1 // pred_check_branch
      %259 = sbr.rel (0) target = $region129
    $region128: #{tpu_custom_call.1} parent=1 // pred_region
      %260 = dma.done [#allocation21], 6144
    $region129: #{tpu_custom_call.1} parent=1 // pred_fallthru
      _
    // Predicated region
    $region130: #{tpu_custom_call.1} parent=1 // pred_check
      _
    $region131: #{tpu_custom_call.1} parent=1 // pred_check_branch
      %262 = sbr.rel (0) target = $region133
    $region132: #{tpu_custom_call.1} parent=1 // pred_region
      %263 = dma.done [#allocation21], 128
    $region133: #{tpu_custom_call.1} parent=1 // pred_fallthru
      _
    // Predicated region
    $region134: #{tpu_custom_call.1} parent=1 // pred_check
      _
    $region135: #{tpu_custom_call.1} parent=1 // pred_check_branch
      %265 = sbr.rel (0) target = $region137
    $region136: #{tpu_custom_call.1} parent=1 // pred_region
      %266 = dma.done [#allocation24], 6144
    $region137: #{tpu_custom_call.1} parent=1 // pred_fallthru
      _
    // Predicated region
    $region138: #{tpu_custom_call.1} parent=1 // pred_check
      _
    $region139: #{tpu_custom_call.1} parent=1 // pred_check_branch
      %268 = sbr.rel (0) target = $region141
    $region140: #{tpu_custom_call.1} parent=1 // pred_region
      %269 = dma.done [#allocation24], 64
    $region141: #{tpu_custom_call.1} parent=1 // pred_fallthru
      _
    // Predicated region
    $region142: #{tpu_custom_call.1} parent=1 // pred_check
      _
    $region143: #{tpu_custom_call.1} parent=1 // pred_check_branch
      %271 = sbr.rel (0) target = $region145
    $region144: #{tpu_custom_call.1} parent=1 // pred_region
      %272 = dma.done [#allocation27], 64
    $region145: #{tpu_custom_call.1} parent=1 // pred_fallthru
      _
    // Predicated region
    $region146: #{tpu_custom_call.1} parent=1 // pred_check
      _
    $region147: #{tpu_custom_call.1} parent=1 // pred_check_branch
      %274 = sbr.rel (0) target = $region149
    $region148: #{tpu_custom_call.1} parent=1 // pred_region
      %275 = dma.done [#allocation27], 64
    $region149: #{tpu_custom_call.1} parent=1 // pred_fallthru
      _
    %v277 = vld [vmem:[#allocation2] sm:$0x3]
    %v278 = vlaneseq
    %v279 = vand.u32 %v278, 127
    %v280 = vlaneseq
    %v281 = vshrl.u32 %v280, 7
    %v282 = vsub.s32 0, %v281
    %v283 = vrot.slane %v277, %v282
    %285 = vbcast.lane.b32.xlu0 %v283, 256
    %v286 = vpop.permute.xlu0 %285
    %v287 = vlaneseq
    %v288 = vshrl.u32 %v287, 7
    %v289 = vsub.s32 1, %v288
    %v290 = vrot.slane %v277, %v289
    %292 = vbcast.lane.b32.xlu0 %v290, 256
    %v293 = vpop.permute.xlu0 %292
    %vm294 = vcmp.eq.s32.totalorder %v286, %v279
    %vm295 = vcmp.eq.s32.totalorder %v293, %v279
    %v296 = vsel %vm294, 1, 0
    %v297 = vsel %vm295, 1, 0
    %v298 = vcvt.s32.f32 %v296
    %v299 = vcvt.s32.f32 %v297
    %v300 = vld [vmem:[#allocation5] sm:$0xff]
    %v301 = vld [vmem:[#allocation5 + $0x8] sm:$0xff]
    %v302 = vld [vmem:[#allocation5 + $0x10] sm:$0xff]
    %v303 = vld [vmem:[#allocation5 + $0x18] sm:$0xff]
    %vm304 = vcmask 261120
    %v306 = vsel %vm304, %v298, 0
    %v309 = vsel %vm304, %v299, 0
    %311 = vmatprep.subr.mxu0 0.0
    %312 = vmatpush1.msra.mxu0 %v300
    %313 = vmatprep.subr.mxu0 0.0
    %314 = vmatpush1.msra.mxu0 %v301
    %315 = vmatprep.subr.mxu0 0.0
    %316 = vmatpush1.msra.mxu0 %v302
    %317 = vmatprep.subr.mxu0 0.0
    %318 = vmatpush1.msra.mxu0 %v303
    %319 = vmatprep.subr.mxu0 0.0
    %320 = vmatpush1.msra.mxu0 0.0
    %321 = vmatprep.subr.mxu0 0.0
    %322 = vmatpush1.msra.mxu0 0.0
    %323 = vmatprep.subr.mxu0 0.0
    %324 = vmatpush1.msra.mxu0 0.0
    %325 = vmatprep.subr.mxu0 0.0
    %326 = vmatpush1.msra.mxu0 0.0
    %327 = vmatprep.subr.mxu0 0.0
    %328 = vmatpush1.msra.mxu0 0.0
    %329 = vmatprep.subr.mxu0 0.0
    %330 = vmatpush1.msra.mxu0 0.0
    %331 = vmatprep.subr.mxu0 0.0
    %332 = vmatpush1.msra.mxu0 0.0
    %333 = vmatprep.subr.mxu0 0.0
    %334 = vmatpush1.msra.mxu0 0.0
    %335 = vmatprep.subr.mxu0 0.0
    %336 = vmatpush1.msra.mxu0 0.0
    %337 = vmatprep.subr.mxu0 0.0
    %338 = vmatpush1.msra.mxu0 0.0
    %339 = vmatprep.subr.mxu0 0.0
    %340 = vmatpush1.msra.mxu0 0.0
    %341 = vmatprep.subr.mxu0 0.0
    %342 = vmatpush1.msra.mxu0 0.0
    %343 = vmatprep.subr.mxu0 0.0
    %344 = vmatpush1.msra.mxu0 0.0
    %345 = vmatprep.subr.mxu0 0.0
    %346 = vmatpush1.msra.mxu0 0.0
    %347 = vmatprep.subr.mxu0 0.0
    %348 = vmatpush1.msra.mxu0 0.0
    %349 = vmatprep.subr.mxu0 0.0
    %350 = vmatpush1.msra.mxu0 0.0
    %351 = vmatprep.subr.mxu0 0.0
    %352 = vmatpush1.msra.mxu0 0.0
    %353 = vmatprep.subr.mxu0 0.0
    %354 = vmatpush1.msra.mxu0 0.0
    %355 = vmatprep.subr.mxu0 0.0
    %356 = vmatpush1.msra.mxu0 0.0
    %357 = vmatprep.subr.mxu0 0.0
    %358 = vmatpush1.msra.mxu0 0.0
    %359 = vmatprep.subr.mxu0 0.0
    %360 = vmatpush1.msra.mxu0 0.0
    %361 = vmatprep.subr.mxu0 0.0
    %362 = vmatpush1.msra.mxu0 0.0
    %363 = vmatprep.subr.mxu0 0.0
    %364 = vmatpush1.msra.mxu0 0.0
    %365 = vmatprep.subr.mxu0 0.0
    %366 = vmatpush1.msra.mxu0 0.0
    %367 = vmatprep.subr.mxu0 0.0
    %368 = vmatpush1.msra.mxu0 0.0
    %369 = vmatprep.subr.mxu0 0.0
    %370 = vmatpush1.msra.mxu0 0.0
    %371 = vmatprep.subr.mxu0 0.0
    %372 = vmatpush1.msra.mxu0 0.0
    %373 = vmatprep.subr.mxu0 0.0
    %374 = vmatpush1.msra.mxu0 0.0
    %375 = vmatprep.mubr.f32.mxu0 0.0
    %376 = vmatmul.mubr.f32.gmra.mrb[0].mxu0 %v306
    %v377 = vpop.f32.mrb[0].mxu0
    %v378 = vadd.f32 0.0, %v377
    %v379 = vpop.f32.mrb[0].mxu0
    %380 = vmatprep.mubr.f32.mxu0 0.0
    %381 = vmatmul.mubr.f32.gmra.mrb[0].mxu0 %v309
    %v382 = vpop.f32.mrb[0].mxu0
    %v383 = vadd.f32 0.0, %v382
    %v384 = vpop.f32.mrb[0].mxu0
    %385 = vdwg.mxu0
    %v386 = vpack.c.bf16 %v383, %v378
    %v387 = vld [vmem:[#allocation7] sm:$0xf]
    %v388 = vld [vmem:[#allocation7 + $0x4] sm:$0xf]
    %v389 = vld [vmem:[#allocation7 + $0x8] sm:$0xf]
    %v390 = vld [vmem:[#allocation7 + $0xc] sm:$0xf]
    %v391 = vld [vmem:[#allocation7 + $0x10] sm:$0xf]
    %v392 = vld [vmem:[#allocation7 + $0x14] sm:$0xf]
    %v393 = vld [vmem:[#allocation7 + $0x18] sm:$0xf]
    %v394 = vld [vmem:[#allocation7 + $0x1c] sm:$0xf]
    %v395 = vld [vmem:[#allocation7 + $0x20] sm:$0xf]
    %v396 = vld [vmem:[#allocation7 + $0x24] sm:$0xf]
    %v397 = vld [vmem:[#allocation7 + $0x28] sm:$0xf]
    %v398 = vld [vmem:[#allocation7 + $0x2c] sm:$0xf]
    %v399 = vld [vmem:[#allocation7 + $0x30] sm:$0xf]
    %v400 = vld [vmem:[#allocation7 + $0x34] sm:$0xf]
    %v401 = vld [vmem:[#allocation7 + $0x38] sm:$0xf]
    %v402 = vld [vmem:[#allocation7 + $0x3c] sm:$0xf]
    %v403 = vld [vmem:[%s3] sm:$0x1]
    %v404 = vlaneseq
    %v405 = vshrl.u32 %v404, 7
    %v406 = vsub.s32 0, %v405
    %v407 = vrot.slane %v403, %v406
    %v424 = vunpack.c.l.b16 %v387
    %v425 = vunpack.c.l.b16 %v388
    %v426 = vunpack.c.l.b16 %v389
    %v427 = vunpack.c.l.b16 %v390
    %v428 = vunpack.c.l.b16 %v391
    %v429 = vunpack.c.l.b16 %v392
    %v430 = vunpack.c.l.b16 %v393
    %v431 = vunpack.c.l.b16 %v394
    %v432 = vunpack.c.l.b16 %v395
    %v433 = vunpack.c.l.b16 %v396
    %v434 = vunpack.c.l.b16 %v397
    %v435 = vunpack.c.l.b16 %v398
    %v436 = vunpack.c.l.b16 %v399
    %v437 = vunpack.c.l.b16 %v400
    %v438 = vunpack.c.l.b16 %v401
    %v439 = vunpack.c.l.b16 %v402
    %v440 = vpack.c.b16 %v425, %v424
    %v441 = vpack.c.b16 %v427, %v426
    %v442 = vpack.c.b16 %v429, %v428
    %v443 = vpack.c.b16 %v431, %v430
    %v444 = vpack.c.b16 %v433, %v432
    %v445 = vpack.c.b16 %v435, %v434
    %v446 = vpack.c.b16 %v437, %v436
    %v447 = vpack.c.b16 %v439, %v438
    %456 = vmatprep.subr.bf16.mxu0 0
    %457 = vmatpush1.bf16.msra.mxu0 %v440
    %458 = vmatprep.subr.bf16.mxu0 0
    %459 = vmatpush1.bf16.msra.mxu0 %v441
    %460 = vmatprep.subr.bf16.mxu0 0
    %461 = vmatpush1.bf16.msra.mxu0 %v442
    %462 = vmatprep.subr.bf16.mxu0 0
    %463 = vmatpush1.bf16.msra.mxu0 %v443
    %464 = vmatprep.subr.bf16.mxu0 0
    %465 = vmatpush1.bf16.msra.mxu0 %v444
    %466 = vmatprep.subr.bf16.mxu0 0
    %467 = vmatpush1.bf16.msra.mxu0 %v445
    %468 = vmatprep.subr.bf16.mxu0 0
    %469 = vmatpush1.bf16.msra.mxu0 %v446
    %470 = vmatprep.subr.bf16.mxu0 0
    %471 = vmatpush1.bf16.msra.mxu0 %v447
    %472 = vmatprep.subr.bf16.mxu0 0
    %473 = vmatpush1.bf16.msra.mxu0 0
    %474 = vmatprep.subr.bf16.mxu0 0
    %475 = vmatpush1.bf16.msra.mxu0 0
    %476 = vmatprep.subr.bf16.mxu0 0
    %477 = vmatpush1.bf16.msra.mxu0 0
    %478 = vmatprep.subr.bf16.mxu0 0
    %479 = vmatpush1.bf16.msra.mxu0 0
    %480 = vmatprep.subr.bf16.mxu0 0
    %481 = vmatpush1.bf16.msra.mxu0 0
    %482 = vmatprep.subr.bf16.mxu0 0
    %483 = vmatpush1.bf16.msra.mxu0 0
    %484 = vmatprep.subr.bf16.mxu0 0
    %485 = vmatpush1.bf16.msra.mxu0 0
    %486 = vmatprep.subr.bf16.mxu0 0
    %487 = vmatpush1.bf16.msra.mxu0 0
    %488 = vmatprep.mubr.bf16.mxu0 0
    %489 = vmatmul.mubr.bf16.gmra.mrb[0].mxu0 %v386
    %v490 = vpop.f32.mrb[0].mxu0
    %v491 = vadd.f32 %v407, %v490
    %v492 = vpop.f32.mrb[0].mxu0
    %v493 = vpop.f32.mrb[0].mxu0
    %v494 = vadd.f32 %v407, %v493
    %v495 = vpop.f32.mrb[0].mxu0
    %496 = vdwg.mxu0
    %v497 = vld [vmem:[#allocation8] sm:$0xf]
    %v498 = vld [vmem:[#allocation8 + $0x4] sm:$0xf]
    %v499 = vld [vmem:[#allocation8 + $0x8] sm:$0xf]
    %v500 = vld [vmem:[#allocation8 + $0xc] sm:$0xf]
    %v501 = vld [vmem:[#allocation8 + $0x10] sm:$0xf]
    %v502 = vld [vmem:[#allocation8 + $0x14] sm:$0xf]
    %v503 = vld [vmem:[#allocation8 + $0x18] sm:$0xf]
    %v504 = vld [vmem:[#allocation8 + $0x1c] sm:$0xf]
    %v505 = vld [vmem:[#allocation8 + $0x20] sm:$0xf]
    %v506 = vld [vmem:[#allocation8 + $0x24] sm:$0xf]
    %v507 = vld [vmem:[#allocation8 + $0x28] sm:$0xf]
    %v508 = vld [vmem:[#allocation8 + $0x2c] sm:$0xf]
    %v509 = vld [vmem:[#allocation8 + $0x30] sm:$0xf]
    %v510 = vld [vmem:[#allocation8 + $0x34] sm:$0xf]
    %v511 = vld [vmem:[#allocation8 + $0x38] sm:$0xf]
    %v512 = vld [vmem:[#allocation8 + $0x3c] sm:$0xf]
    %v513 = vld [vmem:[#allocation10] sm:$0x1]
    %v514 = vlaneseq
    %v515 = vshrl.u32 %v514, 7
    %v516 = vsub.s32 0, %v515
    %v517 = vrot.slane %v513, %v516
    %v534 = vunpack.c.l.b16 %v497
    %v535 = vunpack.c.l.b16 %v498
    %v536 = vunpack.c.l.b16 %v499
    %v537 = vunpack.c.l.b16 %v500
    %v538 = vunpack.c.l.b16 %v501
    %v539 = vunpack.c.l.b16 %v502
    %v540 = vunpack.c.l.b16 %v503
    %v541 = vunpack.c.l.b16 %v504
    %v542 = vunpack.c.l.b16 %v505
    %v543 = vunpack.c.l.b16 %v506
    %v544 = vunpack.c.l.b16 %v507
    %v545 = vunpack.c.l.b16 %v508
    %v546 = vunpack.c.l.b16 %v509
    %v547 = vunpack.c.l.b16 %v510
    %v548 = vunpack.c.l.b16 %v511
    %v549 = vunpack.c.l.b16 %v512
    %v550 = vpack.c.b16 %v535, %v534
    %v551 = vpack.c.b16 %v537, %v536
    %v552 = vpack.c.b16 %v539, %v538
    %v553 = vpack.c.b16 %v541, %v540
    %v554 = vpack.c.b16 %v543, %v542
    %v555 = vpack.c.b16 %v545, %v544
    %v556 = vpack.c.b16 %v547, %v546
    %v557 = vpack.c.b16 %v549, %v548
    %566 = vmatprep.subr.bf16.mxu0 0
    %567 = vmatpush1.bf16.msra.mxu0 %v550
    %568 = vmatprep.subr.bf16.mxu0 0
    %569 = vmatpush1.bf16.msra.mxu0 %v551
    %570 = vmatprep.subr.bf16.mxu0 0
    %571 = vmatpush1.bf16.msra.mxu0 %v552
    %572 = vmatprep.subr.bf16.mxu0 0
    %573 = vmatpush1.bf16.msra.mxu0 %v553
    %574 = vmatprep.subr.bf16.mxu0 0
    %575 = vmatpush1.bf16.msra.mxu0 %v554
    %576 = vmatprep.subr.bf16.mxu0 0
    %577 = vmatpush1.bf16.msra.mxu0 %v555
    %578 = vmatprep.subr.bf16.mxu0 0
    %579 = vmatpush1.bf16.msra.mxu0 %v556
    %580 = vmatprep.subr.bf16.mxu0 0
    %581 = vmatpush1.bf16.msra.mxu0 %v557
    %582 = vmatprep.subr.bf16.mxu0 0
    %583 = vmatpush1.bf16.msra.mxu0 0
    %584 = vmatprep.subr.bf16.mxu0 0
    %585 = vmatpush1.bf16.msra.mxu0 0
    %586 = vmatprep.subr.bf16.mxu0 0
    %587 = vmatpush1.bf16.msra.mxu0 0
    %588 = vmatprep.subr.bf16.mxu0 0
    %589 = vmatpush1.bf16.msra.mxu0 0
    %590 = vmatprep.subr.bf16.mxu0 0
    %591 = vmatpush1.bf16.msra.mxu0 0
    %592 = vmatprep.subr.bf16.mxu0 0
    %593 = vmatpush1.bf16.msra.mxu0 0
    %594 = vmatprep.subr.bf16.mxu0 0
    %595 = vmatpush1.bf16.msra.mxu0 0
    %596 = vmatprep.subr.bf16.mxu0 0
    %597 = vmatpush1.bf16.msra.mxu0 0
    %598 = vmatprep.mubr.bf16.mxu0 0
    %599 = vmatmul.mubr.bf16.gmra.mrb[0].mxu0 %v386
    %v600 = vpop.f32.mrb[0].mxu0
    %v601 = vadd.f32 %v517, %v600
    %v602 = vpop.f32.mrb[0].mxu0
    %v603 = vpop.f32.mrb[0].mxu0
    %v604 = vadd.f32 %v517, %v603
    %v605 = vpop.f32.mrb[0].mxu0
    %606 = vdwg.mxu0
    %v607 = vld [vmem:[#allocation11] sm:$0xf]
    %v608 = vld [vmem:[#allocation11 + $0x4] sm:$0xf]
    %v609 = vld [vmem:[#allocation11 + $0x8] sm:$0xf]
    %v610 = vld [vmem:[#allocation11 + $0xc] sm:$0xf]
    %v611 = vld [vmem:[#allocation11 + $0x10] sm:$0xf]
    %v612 = vld [vmem:[#allocation11 + $0x14] sm:$0xf]
    %v613 = vld [vmem:[#allocation11 + $0x18] sm:$0xf]
    %v614 = vld [vmem:[#allocation11 + $0x1c] sm:$0xf]
    %v615 = vld [vmem:[#allocation11 + $0x20] sm:$0xf]
    %v616 = vld [vmem:[#allocation11 + $0x24] sm:$0xf]
    %v617 = vld [vmem:[#allocation11 + $0x28] sm:$0xf]
    %v618 = vld [vmem:[#allocation11 + $0x2c] sm:$0xf]
    %v619 = vld [vmem:[#allocation11 + $0x30] sm:$0xf]
    %v620 = vld [vmem:[#allocation11 + $0x34] sm:$0xf]
    %v621 = vld [vmem:[#allocation11 + $0x38] sm:$0xf]
    %v622 = vld [vmem:[#allocation11 + $0x3c] sm:$0xf]
    %v623 = vld [vmem:[#allocation13] sm:$0x1]
    %v624 = vlaneseq
    %v625 = vshrl.u32 %v624, 7
    %v626 = vsub.s32 0, %v625
    %v627 = vrot.slane %v623, %v626
    %v644 = vunpack.c.l.b16 %v607
    %v645 = vunpack.c.l.b16 %v608
    %v646 = vunpack.c.l.b16 %v609
    %v647 = vunpack.c.l.b16 %v610
    %v648 = vunpack.c.l.b16 %v611
    %v649 = vunpack.c.l.b16 %v612
    %v650 = vunpack.c.l.b16 %v613
    %v651 = vunpack.c.l.b16 %v614
    %v652 = vunpack.c.l.b16 %v615
    %v653 = vunpack.c.l.b16 %v616
    %v654 = vunpack.c.l.b16 %v617
    %v655 = vunpack.c.l.b16 %v618
    %v656 = vunpack.c.l.b16 %v619
    %v657 = vunpack.c.l.b16 %v620
    %v658 = vunpack.c.l.b16 %v621
    %v659 = vunpack.c.l.b16 %v622
    %v660 = vpack.c.b16 %v645, %v644
    %v661 = vpack.c.b16 %v647, %v646
    %v662 = vpack.c.b16 %v649, %v648
    %v663 = vpack.c.b16 %v651, %v650
    %v664 = vpack.c.b16 %v653, %v652
    %v665 = vpack.c.b16 %v655, %v654
    %v666 = vpack.c.b16 %v657, %v656
    %v667 = vpack.c.b16 %v659, %v658
    %676 = vmatprep.subr.bf16.mxu0 0
    %677 = vmatpush1.bf16.msra.mxu0 %v660
    %678 = vmatprep.subr.bf16.mxu0 0
    %679 = vmatpush1.bf16.msra.mxu0 %v661
    %680 = vmatprep.subr.bf16.mxu0 0
    %681 = vmatpush1.bf16.msra.mxu0 %v662
    %682 = vmatprep.subr.bf16.mxu0 0
    %683 = vmatpush1.bf16.msra.mxu0 %v663
    %684 = vmatprep.subr.bf16.mxu0 0
    %685 = vmatpush1.bf16.msra.mxu0 %v664
    %686 = vmatprep.subr.bf16.mxu0 0
    %687 = vmatpush1.bf16.msra.mxu0 %v665
    %688 = vmatprep.subr.bf16.mxu0 0
    %689 = vmatpush1.bf16.msra.mxu0 %v666
    %690 = vmatprep.subr.bf16.mxu0 0
    %691 = vmatpush1.bf16.msra.mxu0 %v667
    %692 = vmatprep.subr.bf16.mxu0 0
    %693 = vmatpush1.bf16.msra.mxu0 0
    %694 = vmatprep.subr.bf16.mxu0 0
    %695 = vmatpush1.bf16.msra.mxu0 0
    %696 = vmatprep.subr.bf16.mxu0 0
    %697 = vmatpush1.bf16.msra.mxu0 0
    %698 = vmatprep.subr.bf16.mxu0 0
    %699 = vmatpush1.bf16.msra.mxu0 0
    %700 = vmatprep.subr.bf16.mxu0 0
    %701 = vmatpush1.bf16.msra.mxu0 0
    %702 = vmatprep.subr.bf16.mxu0 0
    %703 = vmatpush1.bf16.msra.mxu0 0
    %704 = vmatprep.subr.bf16.mxu0 0
    %705 = vmatpush1.bf16.msra.mxu0 0
    %706 = vmatprep.subr.bf16.mxu0 0
    %707 = vmatpush1.bf16.msra.mxu0 0
    %708 = vmatprep.mubr.bf16.mxu0 0
    %709 = vmatmul.mubr.bf16.gmra.mrb[0].mxu0 %v386
    %v710 = vpop.f32.mrb[0].mxu0
    %v711 = vadd.f32 %v627, %v710
    %v712 = vpop.f32.mrb[0].mxu0
    %v713 = vpop.f32.mrb[0].mxu0
    %v714 = vadd.f32 %v627, %v713
    %v715 = vpop.f32.mrb[0].mxu0
    %716 = vdwg.mxu0
    %719 = vrot.lane.b32.xlu0 %v491, 112
    %v720 = vpop.permute.xlu0 %719
    %721 = vrot.lane.b32.xlu0 %v494, 112
    %v722 = vpop.permute.xlu0 %721
    %725 = vrot.lane.b32.xlu0 %v491, 96
    %v726 = vpop.permute.xlu0 %725
    %727 = vrot.lane.b32.xlu0 %v494, 96
    %v728 = vpop.permute.xlu0 %727
    %731 = vrot.lane.b32.xlu0 %v491, 80
    %v732 = vpop.permute.xlu0 %731
    %733 = vrot.lane.b32.xlu0 %v494, 80
    %v734 = vpop.permute.xlu0 %733
    %737 = vrot.lane.b32.xlu0 %v491, 64
    %v738 = vpop.permute.xlu0 %737
    %739 = vrot.lane.b32.xlu0 %v494, 64
    %v740 = vpop.permute.xlu0 %739
    %743 = vrot.lane.b32.xlu0 %v491, 48
    %v744 = vpop.permute.xlu0 %743
    %745 = vrot.lane.b32.xlu0 %v494, 48
    %v746 = vpop.permute.xlu0 %745
    %749 = vrot.lane.b32.xlu0 %v491, 32
    %v750 = vpop.permute.xlu0 %749
    %751 = vrot.lane.b32.xlu0 %v494, 32
    %v752 = vpop.permute.xlu0 %751
    %755 = vrot.lane.b32.xlu0 %v491, 16
    %v756 = vpop.permute.xlu0 %755
    %757 = vrot.lane.b32.xlu0 %v494, 16
    %v758 = vpop.permute.xlu0 %757
    %v761 = vpack.c.bf16 %v491, %v491
    %v762 = vpack.c.bf16 %v494, %v494
    %v763 = vpack.c.bf16 %v720, %v720
    %v764 = vpack.c.bf16 %v722, %v722
    %v765 = vpack.c.bf16 %v726, %v726
    %v766 = vpack.c.bf16 %v728, %v728
    %v767 = vpack.c.bf16 %v732, %v732
    %v768 = vpack.c.bf16 %v734, %v734
    %v769 = vpack.c.bf16 %v738, %v738
    %v770 = vpack.c.bf16 %v740, %v740
    %v771 = vpack.c.bf16 %v744, %v744
    %v772 = vpack.c.bf16 %v746, %v746
    %v773 = vpack.c.bf16 %v750, %v750
    %v774 = vpack.c.bf16 %v752, %v752
    %v775 = vpack.c.bf16 %v756, %v756
    %v776 = vpack.c.bf16 %v758, %v758
    %779 = vrot.lane.b32.xlu0 %v601, 112
    %v780 = vpop.permute.xlu0 %779
    %781 = vrot.lane.b32.xlu0 %v604, 112
    %v782 = vpop.permute.xlu0 %781
    %785 = vrot.lane.b32.xlu0 %v601, 96
    %v786 = vpop.permute.xlu0 %785
    %787 = vrot.lane.b32.xlu0 %v604, 96
    %v788 = vpop.permute.xlu0 %787
    %791 = vrot.lane.b32.xlu0 %v601, 80
    %v792 = vpop.permute.xlu0 %791
    %793 = vrot.lane.b32.xlu0 %v604, 80
    %v794 = vpop.permute.xlu0 %793
    %797 = vrot.lane.b32.xlu0 %v601, 64
    %v798 = vpop.permute.xlu0 %797
    %799 = vrot.lane.b32.xlu0 %v604, 64
    %v800 = vpop.permute.xlu0 %799
    %803 = vrot.lane.b32.xlu0 %v601, 48
    %v804 = vpop.permute.xlu0 %803
    %805 = vrot.lane.b32.xlu0 %v604, 48
    %v806 = vpop.permute.xlu0 %805
    %809 = vrot.lane.b32.xlu0 %v601, 32
    %v810 = vpop.permute.xlu0 %809
    %811 = vrot.lane.b32.xlu0 %v604, 32
    %v812 = vpop.permute.xlu0 %811
    %815 = vrot.lane.b32.xlu0 %v601, 16
    %v816 = vpop.permute.xlu0 %815
    %817 = vrot.lane.b32.xlu0 %v604, 16
    %v818 = vpop.permute.xlu0 %817
    %v821 = vpack.c.bf16 %v601, %v601
    %v822 = vpack.c.bf16 %v604, %v604
    %v823 = vpack.c.bf16 %v780, %v780
    %v824 = vpack.c.bf16 %v782, %v782
    %v825 = vpack.c.bf16 %v786, %v786
    %v826 = vpack.c.bf16 %v788, %v788
    %v827 = vpack.c.bf16 %v792, %v792
    %v828 = vpack.c.bf16 %v794, %v794
    %v829 = vpack.c.bf16 %v798, %v798
    %v830 = vpack.c.bf16 %v800, %v800
    %v831 = vpack.c.bf16 %v804, %v804
    %v832 = vpack.c.bf16 %v806, %v806
    %v833 = vpack.c.bf16 %v810, %v810
    %v834 = vpack.c.bf16 %v812, %v812
    %v835 = vpack.c.bf16 %v816, %v816
    %v836 = vpack.c.bf16 %v818, %v818
    %839 = vrot.lane.b32.xlu0 %v711, 112
    %v840 = vpop.permute.xlu0 %839
    %841 = vrot.lane.b32.xlu0 %v714, 112
    %v842 = vpop.permute.xlu0 %841
    %845 = vrot.lane.b32.xlu0 %v711, 96
    %v846 = vpop.permute.xlu0 %845
    %847 = vrot.lane.b32.xlu0 %v714, 96
    %v848 = vpop.permute.xlu0 %847
    %851 = vrot.lane.b32.xlu0 %v711, 80
    %v852 = vpop.permute.xlu0 %851
    %853 = vrot.lane.b32.xlu0 %v714, 80
    %v854 = vpop.permute.xlu0 %853
    %857 = vrot.lane.b32.xlu0 %v711, 64
    %v858 = vpop.permute.xlu0 %857
    %859 = vrot.lane.b32.xlu0 %v714, 64
    %v860 = vpop.permute.xlu0 %859
    %863 = vrot.lane.b32.xlu0 %v711, 48
    %v864 = vpop.permute.xlu0 %863
    %865 = vrot.lane.b32.xlu0 %v714, 48
    %v866 = vpop.permute.xlu0 %865
    %869 = vrot.lane.b32.xlu0 %v711, 32
    %v870 = vpop.permute.xlu0 %869
    %871 = vrot.lane.b32.xlu0 %v714, 32
    %v872 = vpop.permute.xlu0 %871
    %875 = vrot.lane.b32.xlu0 %v711, 16
    %v876 = vpop.permute.xlu0 %875
    %877 = vrot.lane.b32.xlu0 %v714, 16
    %v878 = vpop.permute.xlu0 %877
    %v881 = vpack.c.bf16 %v711, %v711
    %v882 = vpack.c.bf16 %v714, %v714
    %v883 = vpack.c.bf16 %v840, %v840
    %v884 = vpack.c.bf16 %v842, %v842
    %v885 = vpack.c.bf16 %v846, %v846
    %v886 = vpack.c.bf16 %v848, %v848
    %v887 = vpack.c.bf16 %v852, %v852
    %v888 = vpack.c.bf16 %v854, %v854
    %v889 = vpack.c.bf16 %v858, %v858
    %v890 = vpack.c.bf16 %v860, %v860
    %v891 = vpack.c.bf16 %v864, %v864
    %v892 = vpack.c.bf16 %v866, %v866
    %v893 = vpack.c.bf16 %v870, %v870
    %v894 = vpack.c.bf16 %v872, %v872
    %v895 = vpack.c.bf16 %v876, %v876
    %v896 = vpack.c.bf16 %v878, %v878
    %vm897 = vcmask 130048
    %v899 = vsel %vm897, %v761, 0
    %v902 = vsel %vm897, %v821, 0
    %904 = vmatprep.subr.bf16.mxu0 0
    %905 = vmatpush1.bf16.xpose.msra.mxu0 %v902
    %906 = vmatprep.subr.bf16.mxu0 0
    %907 = vmatpush1.bf16.xpose.msra.mxu0 0
    %908 = vmatprep.subr.bf16.mxu0 0
    %909 = vmatpush1.bf16.xpose.msra.mxu0 0
    %910 = vmatprep.subr.bf16.mxu0 0
    %911 = vmatpush1.bf16.xpose.msra.mxu0 0
    %912 = vmatprep.subr.bf16.mxu0 0
    %913 = vmatpush1.bf16.xpose.msra.mxu0 0
    %914 = vmatprep.subr.bf16.mxu0 0
    %915 = vmatpush1.bf16.xpose.msra.mxu0 0
    %916 = vmatprep.subr.bf16.mxu0 0
    %917 = vmatpush1.bf16.xpose.msra.mxu0 0
    %918 = vmatprep.subr.bf16.mxu0 0
    %919 = vmatpush1.bf16.xpose.msra.mxu0 0
    %920 = vmatprep.subr.bf16.mxu0 0
    %921 = vmatpush1.bf16.xpose.msra.mxu0 0
    %922 = vmatprep.subr.bf16.mxu0 0
    %923 = vmatpush1.bf16.xpose.msra.mxu0 0
    %924 = vmatprep.subr.bf16.mxu0 0
    %925 = vmatpush1.bf16.xpose.msra.mxu0 0
    %926 = vmatprep.subr.bf16.mxu0 0
    %927 = vmatpush1.bf16.xpose.msra.mxu0 0
    %928 = vmatprep.subr.bf16.mxu0 0
    %929 = vmatpush1.bf16.xpose.msra.mxu0 0
    %930 = vmatprep.subr.bf16.mxu0 0
    %931 = vmatpush1.bf16.xpose.msra.mxu0 0
    %932 = vmatprep.subr.bf16.mxu0 0
    %933 = vmatpush1.bf16.xpose.msra.mxu0 0
    %934 = vmatprep.subr.bf16.mxu0 0
    %935 = vmatpush1.bf16.xpose.msra.mxu0 0
    %936 = vmatprep.mubr.bf16.mxu0 0
    %937 = vmatmul.mubr.bf16.gmra.mrb[0].mxu0 %v899
    %v938 = vpop.f32.mrb[0].mxu0
    %v939 = vadd.f32 0.0, %v938
    %v940 = vpop.f32.mrb[0].mxu0
    %v941 = vpop.f32.mrb[0].mxu0
    %v942 = vpop.f32.mrb[0].mxu0
    %943 = vdwg.mxu0
    %v945 = vsel %vm897, %v762, 0
    %v948 = vsel %vm897, %v822, 0
    %950 = vmatprep.subr.bf16.mxu0 0
    %951 = vmatpush1.bf16.xpose.msra.mxu0 %v948
    %952 = vmatprep.subr.bf16.mxu0 0
    %953 = vmatpush1.bf16.xpose.msra.mxu0 0
    %954 = vmatprep.subr.bf16.mxu0 0
    %955 = vmatpush1.bf16.xpose.msra.mxu0 0
    %956 = vmatprep.subr.bf16.mxu0 0
    %957 = vmatpush1.bf16.xpose.msra.mxu0 0
    %958 = vmatprep.subr.bf16.mxu0 0
    %959 = vmatpush1.bf16.xpose.msra.mxu0 0
    %960 = vmatprep.subr.bf16.mxu0 0
    %961 = vmatpush1.bf16.xpose.msra.mxu0 0
    %962 = vmatprep.subr.bf16.mxu0 0
    %963 = vmatpush1.bf16.xpose.msra.mxu0 0
    %964 = vmatprep.subr.bf16.mxu0 0
    %965 = vmatpush1.bf16.xpose.msra.mxu0 0
    %966 = vmatprep.subr.bf16.mxu0 0
    %967 = vmatpush1.bf16.xpose.msra.mxu0 0
    %968 = vmatprep.subr.bf16.mxu0 0
    %969 = vmatpush1.bf16.xpose.msra.mxu0 0
    %970 = vmatprep.subr.bf16.mxu0 0
    %971 = vmatpush1.bf16.xpose.msra.mxu0 0
    %972 = vmatprep.subr.bf16.mxu0 0
    %973 = vmatpush1.bf16.xpose.msra.mxu0 0
    %974 = vmatprep.subr.bf16.mxu0 0
    %975 = vmatpush1.bf16.xpose.msra.mxu0 0
    %976 = vmatprep.subr.bf16.mxu0 0
    %977 = vmatpush1.bf16.xpose.msra.mxu0 0
    %978 = vmatprep.subr.bf16.mxu0 0
    %979 = vmatpush1.bf16.xpose.msra.mxu0 0
    %980 = vmatprep.subr.bf16.mxu0 0
    %981 = vmatpush1.bf16.xpose.msra.mxu0 0
    %982 = vmatprep.mubr.bf16.mxu0 0
    %983 = vmatmul.mubr.bf16.gmra.mrb[0].mxu0 %v945
    %v984 = vpop.f32.mrb[0].mxu0
    %v985 = vadd.f32 0.0, %v984
    %v986 = vpop.f32.mrb[0].mxu0
    %v987 = vpop.f32.mrb[0].mxu0
    %v988 = vpop.f32.mrb[0].mxu0
    %989 = vdwg.mxu0
    %v991 = vsel %vm897, %v763, 0
    %v994 = vsel %vm897, %v823, 0
    %996 = vmatprep.subr.bf16.mxu0 0
    %997 = vmatpush1.bf16.xpose.msra.mxu0 %v994
    %998 = vmatprep.subr.bf16.mxu0 0
    %999 = vmatpush1.bf16.xpose.msra.mxu0 0
    %1000 = vmatprep.subr.bf16.mxu0 0
    %1001 = vmatpush1.bf16.xpose.msra.mxu0 0
    %1002 = vmatprep.subr.bf16.mxu0 0
    %1003 = vmatpush1.bf16.xpose.msra.mxu0 0
    %1004 = vmatprep.subr.bf16.mxu0 0
    %1005 = vmatpush1.bf16.xpose.msra.mxu0 0
    %1006 = vmatprep.subr.bf16.mxu0 0
    %1007 = vmatpush1.bf16.xpose.msra.mxu0 0
    %1008 = vmatprep.subr.bf16.mxu0 0
    %1009 = vmatpush1.bf16.xpose.msra.mxu0 0
    %1010 = vmatprep.subr.bf16.mxu0 0
    %1011 = vmatpush1.bf16.xpose.msra.mxu0 0
    %1012 = vmatprep.subr.bf16.mxu0 0
    %1013 = vmatpush1.bf16.xpose.msra.mxu0 0
    %1014 = vmatprep.subr.bf16.mxu0 0
    %1015 = vmatpush1.bf16.xpose.msra.mxu0 0
    %1016 = vmatprep.subr.bf16.mxu0 0
    %1017 = vmatpush1.bf16.xpose.msra.mxu0 0
    %1018 = vmatprep.subr.bf16.mxu0 0
    %1019 = vmatpush1.bf16.xpose.msra.mxu0 0
    %1020 = vmatprep.subr.bf16.mxu0 0
    %1021 = vmatpush1.bf16.xpose.msra.mxu0 0
    %1022 = vmatprep.subr.bf16.mxu0 0
    %1023 = vmatpush1.bf16.xpose.msra.mxu0 0
    %1024 = vmatprep.subr.bf16.mxu0 0
    %1025 = vmatpush1.bf16.xpose.msra.mxu0 0
    %1026 = vmatprep.subr.bf16.mxu0 0
    %1027 = vmatpush1.bf16.xpose.msra.mxu0 0
    %1028 = vmatprep.mubr.bf16.mxu0 0
    %1029 = vmatmul.mubr.bf16.gmra.mrb[0].mxu0 %v991
    %v1030 = vpop.f32.mrb[0].mxu0
    %v1031 = vadd.f32 0.0, %v1030
    %v1032 = vpop.f32.mrb[0].mxu0
    %v1033 = vpop.f32.mrb[0].mxu0
    %v1034 = vpop.f32.mrb[0].mxu0
    %1035 = vdwg.mxu0
    %v1037 = vsel %vm897, %v764, 0
    %v1040 = vsel %vm897, %v824, 0
    %1042 = vmatprep.subr.bf16.mxu0 0
    %1043 = vmatpush1.bf16.xpose.msra.mxu0 %v1040
    %1044 = vmatprep.subr.bf16.mxu0 0
    %1045 = vmatpush1.bf16.xpose.msra.mxu0 0
    %1046 = vmatprep.subr.bf16.mxu0 0
    %1047 = vmatpush1.bf16.xpose.msra.mxu0 0
    %1048 = vmatprep.subr.bf16.mxu0 0
    %1049 = vmatpush1.bf16.xpose.msra.mxu0 0
    %1050 = vmatprep.subr.bf16.mxu0 0
    %1051 = vmatpush1.bf16.xpose.msra.mxu0 0
    %1052 = vmatprep.subr.bf16.mxu0 0
    %1053 = vmatpush1.bf16.xpose.msra.mxu0 0
    %1054 = vmatprep.subr.bf16.mxu0 0
    %1055 = vmatpush1.bf16.xpose.msra.mxu0 0
    %1056 = vmatprep.subr.bf16.mxu0 0
    %1057 = vmatpush1.bf16.xpose.msra.mxu0 0
    %1058 = vmatprep.subr.bf16.mxu0 0
    %1059 = vmatpush1.bf16.xpose.msra.mxu0 0
    %1060 = vmatprep.subr.bf16.mxu0 0
    %1061 = vmatpush1.bf16.xpose.msra.mxu0 0
    %1062 = vmatprep.subr.bf16.mxu0 0
    %1063 = vmatpush1.bf16.xpose.msra.mxu0 0
    %1064 = vmatprep.subr.bf16.mxu0 0
    %1065 = vmatpush1.bf16.xpose.msra.mxu0 0
    %1066 = vmatprep.subr.bf16.mxu0 0
    %1067 = vmatpush1.bf16.xpose.msra.mxu0 0
    %1068 = vmatprep.subr.bf16.mxu0 0
    %1069 = vmatpush1.bf16.xpose.msra.mxu0 0
    %1070 = vmatprep.subr.bf16.mxu0 0
    %1071 = vmatpush1.bf16.xpose.msra.mxu0 0
    %1072 = vmatprep.subr.bf16.mxu0 0
    %1073 = vmatpush1.bf16.xpose.msra.mxu0 0
    %1074 = vmatprep.mubr.bf16.mxu0 0
    %1075 = vmatmul.mubr.bf16.gmra.mrb[0].mxu0 %v1037
    %v1076 = vpop.f32.mrb[0].mxu0
    %v1077 = vadd.f32 0.0, %v1076
    %v1078 = vpop.f32.mrb[0].mxu0
    %v1079 = vpop.f32.mrb[0].mxu0
    %v1080 = vpop.f32.mrb[0].mxu0
    %1081 = vdwg.mxu0
    %v1083 = vsel %vm897, %v765, 0
    %v1086 = vsel %vm897, %v825, 0
    %1088 = vmatprep.subr.bf16.mxu0 0
    %1089 = vmatpush1.bf16.xpose.msra.mxu0 %v1086
    %1090 = vmatprep.subr.bf16.mxu0 0
    %1091 = vmatpush1.bf16.xpose.msra.mxu0 0
    %1092 = vmatprep.subr.bf16.mxu0 0
    %1093 = vmatpush1.bf16.xpose.msra.mxu0 0
    %1094 = vmatprep.subr.bf16.mxu0 0
    %1095 = vmatpush1.bf16.xpose.msra.mxu0 0
    %1096 = vmatprep.subr.bf16.mxu0 0
    %1097 = vmatpush1.bf16.xpose.msra.mxu0 0
    %1098 = vmatprep.subr.bf16.mxu0 0
    %1099 = vmatpush1.bf16.xpose.msra.mxu0 0
    %1100 = vmatprep.subr.bf16.mxu0 0
    %1101 = vmatpush1.bf16.xpose.msra.mxu0 0
    %1102 = vmatprep.subr.bf16.mxu0 0
    %1103 = vmatpush1.bf16.xpose.msra.mxu0 0
    %1104 = vmatprep.subr.bf16.mxu0 0
    %1105 = vmatpush1.bf16.xpose.msra.mxu0 0
    %1106 = vmatprep.subr.bf16.mxu0 0
    %1107 = vmatpush1.bf16.xpose.msra.mxu0 0
    %1108 = vmatprep.subr.bf16.mxu0 0
    %1109 = vmatpush1.bf16.xpose.msra.mxu0 0
    %1110 = vmatprep.subr.bf16.mxu0 0
    %1111 = vmatpush1.bf16.xpose.msra.mxu0 0
    %1112 = vmatprep.subr.bf16.mxu0 0
    %1113 = vmatpush1.bf16.xpose.msra.mxu0 0
    %1114 = vmatprep.subr.bf16.mxu0 0
    %1115 = vmatpush1.bf16.xpose.msra.mxu0 0
    %1116 = vmatprep.subr.bf16.mxu0 0
    %1117 = vmatpush1.bf16.xpose.msra.mxu0 0
    %1118 = vmatprep.subr.bf16.mxu0 0
    %1119 = vmatpush1.bf16.xpose.msra.mxu0 0
    %1120 = vmatprep.mubr.bf16.mxu0 0
    %1121 = vmatmul.mubr.bf16.gmra.mrb[0].mxu0 %v1083
    %v1122 = vpop.f32.mrb[0].mxu0
    %v1123 = vadd.f32 0.0, %v1122
    %v1124 = vpop.f32.mrb[0].mxu0
    %v1125 = vpop.f32.mrb[0].mxu0
    %v1126 = vpop.f32.mrb[0].mxu0
    %1127 = vdwg.mxu0
    %v1129 = vsel %vm897, %v766, 0
    %v1132 = vsel %vm897, %v826, 0
    %1134 = vmatprep.subr.bf16.mxu0 0
    %1135 = vmatpush1.bf16.xpose.msra.mxu0 %v1132
    %1136 = vmatprep.subr.bf16.mxu0 0
    %1137 = vmatpush1.bf16.xpose.msra.mxu0 0
    %1138 = vmatprep.subr.bf16.mxu0 0
    %1139 = vmatpush1.bf16.xpose.msra.mxu0 0
    %1140 = vmatprep.subr.bf16.mxu0 0
    %1141 = vmatpush1.bf16.xpose.msra.mxu0 0
    %1142 = vmatprep.subr.bf16.mxu0 0
    %1143 = vmatpush1.bf16.xpose.msra.mxu0 0
    %1144 = vmatprep.subr.bf16.mxu0 0
    %1145 = vmatpush1.bf16.xpose.msra.mxu0 0
    %1146 = vmatprep.subr.bf16.mxu0 0
    %1147 = vmatpush1.bf16.xpose.msra.mxu0 0
    %1148 = vmatprep.subr.bf16.mxu0 0
    %1149 = vmatpush1.bf16.xpose.msra.mxu0 0
    %1150 = vmatprep.subr.bf16.mxu0 0
    %1151 = vmatpush1.bf16.xpose.msra.mxu0 0
    %1152 = vmatprep.subr.bf16.mxu0 0
    %1153 = vmatpush1.bf16.xpose.msra.mxu0 0
    %1154 = vmatprep.subr.bf16.mxu0 0
    %1155 = vmatpush1.bf16.xpose.msra.mxu0 0
    %1156 = vmatprep.subr.bf16.mxu0 0
    %1157 = vmatpush1.bf16.xpose.msra.mxu0 0
    %1158 = vmatprep.subr.bf16.mxu0 0
    %1159 = vmatpush1.bf16.xpose.msra.mxu0 0
    %1160 = vmatprep.subr.bf16.mxu0 0
    %1161 = vmatpush1.bf16.xpose.msra.mxu0 0
    %1162 = vmatprep.subr.bf16.mxu0 0
    %1163 = vmatpush1.bf16.xpose.msra.mxu0 0
    %1164 = vmatprep.subr.bf16.mxu0 0
    %1165 = vmatpush1.bf16.xpose.msra.mxu0 0
    %1166 = vmatprep.mubr.bf16.mxu0 0
    %1167 = vmatmul.mubr.bf16.gmra.mrb[0].mxu0 %v1129
    %v1168 = vpop.f32.mrb[0].mxu0
    %v1169 = vadd.f32 0.0, %v1168
    %v1170 = vpop.f32.mrb[0].mxu0
    %v1171 = vpop.f32.mrb[0].mxu0
    %v1172 = vpop.f32.mrb[0].mxu0
    %1173 = vdwg.mxu0
    %v1175 = vsel %vm897, %v767, 0
    %v1178 = vsel %vm897, %v827, 0
    %1180 = vmatprep.subr.bf16.mxu0 0
    %1181 = vmatpush1.bf16.xpose.msra.mxu0 %v1178
    %1182 = vmatprep.subr.bf16.mxu0 0
    %1183 = vmatpush1.bf16.xpose.msra.mxu0 0
    %1184 = vmatprep.subr.bf16.mxu0 0
    %1185 = vmatpush1.bf16.xpose.msra.mxu0 0
    %1186 = vmatprep.subr.bf16.mxu0 0
    %1187 = vmatpush1.bf16.xpose.msra.mxu0 0
    %1188 = vmatprep.subr.bf16.mxu0 0
    %1189 = vmatpush1.bf16.xpose.msra.mxu0 0
    %1190 = vmatprep.subr.bf16.mxu0 0
    %1191 = vmatpush1.bf16.xpose.msra.mxu0 0
    %1192 = vmatprep.subr.bf16.mxu0 0
    %1193 = vmatpush1.bf16.xpose.msra.mxu0 0
    %1194 = vmatprep.subr.bf16.mxu0 0
    %1195 = vmatpush1.bf16.xpose.msra.mxu0 0
    %1196 = vmatprep.subr.bf16.mxu0 0
    %1197 = vmatpush1.bf16.xpose.msra.mxu0 0
    %1198 = vmatprep.subr.bf16.mxu0 0
    %1199 = vmatpush1.bf16.xpose.msra.mxu0 0
    %1200 = vmatprep.subr.bf16.mxu0 0
    %1201 = vmatpush1.bf16.xpose.msra.mxu0 0
    %1202 = vmatprep.subr.bf16.mxu0 0
    %1203 = vmatpush1.bf16.xpose.msra.mxu0 0
    %1204 = vmatprep.subr.bf16.mxu0 0
    %1205 = vmatpush1.bf16.xpose.msra.mxu0 0
    %1206 = vmatprep.subr.bf16.mxu0 0
    %1207 = vmatpush1.bf16.xpose.msra.mxu0 0
    %1208 = vmatprep.subr.bf16.mxu0 0
    %1209 = vmatpush1.bf16.xpose.msra.mxu0 0
    %1210 = vmatprep.subr.bf16.mxu0 0
    %1211 = vmatpush1.bf16.xpose.msra.mxu0 0
    %1212 = vmatprep.mubr.bf16.mxu0 0
    %1213 = vmatmul.mubr.bf16.gmra.mrb[0].mxu0 %v1175
    %v1214 = vpop.f32.mrb[0].mxu0
    %v1215 = vadd.f32 0.0, %v1214
    %v1216 = vpop.f32.mrb[0].mxu0
    %v1217 = vpop.f32.mrb[0].mxu0
    %v1218 = vpop.f32.mrb[0].mxu0
    %1219 = vdwg.mxu0
    %v1221 = vsel %vm897, %v768, 0
    %v1224 = vsel %vm897, %v828, 0
    %1226 = vmatprep.subr.bf16.mxu0 0
    %1227 = vmatpush1.bf16.xpose.msra.mxu0 %v1224
    %1228 = vmatprep.subr.bf16.mxu0 0
    %1229 = vmatpush1.bf16.xpose.msra.mxu0 0
    %1230 = vmatprep.subr.bf16.mxu0 0
    %1231 = vmatpush1.bf16.xpose.msra.mxu0 0
    %1232 = vmatprep.subr.bf16.mxu0 0
    %1233 = vmatpush1.bf16.xpose.msra.mxu0 0
    %1234 = vmatprep.subr.bf16.mxu0 0
    %1235 = vmatpush1.bf16.xpose.msra.mxu0 0
    %1236 = vmatprep.subr.bf16.mxu0 0
    %1237 = vmatpush1.bf16.xpose.msra.mxu0 0
    %1238 = vmatprep.subr.bf16.mxu0 0
    %1239 = vmatpush1.bf16.xpose.msra.mxu0 0
    %1240 = vmatprep.subr.bf16.mxu0 0
    %1241 = vmatpush1.bf16.xpose.msra.mxu0 0
    %1242 = vmatprep.subr.bf16.mxu0 0
    %1243 = vmatpush1.bf16.xpose.msra.mxu0 0
    %1244 = vmatprep.subr.bf16.mxu0 0
    %1245 = vmatpush1.bf16.xpose.msra.mxu0 0
    %1246 = vmatprep.subr.bf16.mxu0 0
    %1247 = vmatpush1.bf16.xpose.msra.mxu0 0
    %1248 = vmatprep.subr.bf16.mxu0 0
    %1249 = vmatpush1.bf16.xpose.msra.mxu0 0
    %1250 = vmatprep.subr.bf16.mxu0 0
    %1251 = vmatpush1.bf16.xpose.msra.mxu0 0
    %1252 = vmatprep.subr.bf16.mxu0 0
    %1253 = vmatpush1.bf16.xpose.msra.mxu0 0
    %1254 = vmatprep.subr.bf16.mxu0 0
    %1255 = vmatpush1.bf16.xpose.msra.mxu0 0
    %1256 = vmatprep.subr.bf16.mxu0 0
    %1257 = vmatpush1.bf16.xpose.msra.mxu0 0
    %1258 = vmatprep.mubr.bf16.mxu0 0
    %1259 = vmatmul.mubr.bf16.gmra.mrb[0].mxu0 %v1221
    %v1260 = vpop.f32.mrb[0].mxu0
    %v1261 = vadd.f32 0.0, %v1260
    %v1262 = vpop.f32.mrb[0].mxu0
    %v1263 = vpop.f32.mrb[0].mxu0
    %v1264 = vpop.f32.mrb[0].mxu0
    %1265 = vdwg.mxu0
    %v1267 = vsel %vm897, %v769, 0
    %v1270 = vsel %vm897, %v829, 0
    %1272 = vmatprep.subr.bf16.mxu0 0
    %1273 = vmatpush1.bf16.xpose.msra.mxu0 %v1270
    %1274 = vmatprep.subr.bf16.mxu0 0
    %1275 = vmatpush1.bf16.xpose.msra.mxu0 0
    %1276 = vmatprep.subr.bf16.mxu0 0
    %1277 = vmatpush1.bf16.xpose.msra.mxu0 0
    %1278 = vmatprep.subr.bf16.mxu0 0
    %1279 = vmatpush1.bf16.xpose.msra.mxu0 0
    %1280 = vmatprep.subr.bf16.mxu0 0
    %1281 = vmatpush1.bf16.xpose.msra.mxu0 0
    %1282 = vmatprep.subr.bf16.mxu0 0
    %1283 = vmatpush1.bf16.xpose.msra.mxu0 0
    %1284 = vmatprep.subr.bf16.mxu0 0
    %1285 = vmatpush1.bf16.xpose.msra.mxu0 0
    %1286 = vmatprep.subr.bf16.mxu0 0
    %1287 = vmatpush1.bf16.xpose.msra.mxu0 0
    %1288 = vmatprep.subr.bf16.mxu0 0
    %1289 = vmatpush1.bf16.xpose.msra.mxu0 0
    %1290 = vmatprep.subr.bf16.mxu0 0
    %1291 = vmatpush1.bf16.xpose.msra.mxu0 0
    %1292 = vmatprep.subr.bf16.mxu0 0
    %1293 = vmatpush1.bf16.xpose.msra.mxu0 0
    %1294 = vmatprep.subr.bf16.mxu0 0
    %1295 = vmatpush1.bf16.xpose.msra.mxu0 0
    %1296 = vmatprep.subr.bf16.mxu0 0
    %1297 = vmatpush1.bf16.xpose.msra.mxu0 0
    %1298 = vmatprep.subr.bf16.mxu0 0
    %1299 = vmatpush1.bf16.xpose.msra.mxu0 0
    %1300 = vmatprep.subr.bf16.mxu0 0
    %1301 = vmatpush1.bf16.xpose.msra.mxu0 0
    %1302 = vmatprep.subr.bf16.mxu0 0
    %1303 = vmatpush1.bf16.xpose.msra.mxu0 0
    %1304 = vmatprep.mubr.bf16.mxu0 0
    %1305 = vmatmul.mubr.bf16.gmra.mrb[0].mxu0 %v1267
    %v1306 = vpop.f32.mrb[0].mxu0
    %v1307 = vadd.f32 0.0, %v1306
    %v1308 = vpop.f32.mrb[0].mxu0
    %v1309 = vpop.f32.mrb[0].mxu0
    %v1310 = vpop.f32.mrb[0].mxu0
    %1311 = vdwg.mxu0
    %v1313 = vsel %vm897, %v770, 0
    %v1316 = vsel %vm897, %v830, 0
    %1318 = vmatprep.subr.bf16.mxu0 0
    %1319 = vmatpush1.bf16.xpose.msra.mxu0 %v1316
    %1320 = vmatprep.subr.bf16.mxu0 0
    %1321 = vmatpush1.bf16.xpose.msra.mxu0 0
    %1322 = vmatprep.subr.bf16.mxu0 0
    %1323 = vmatpush1.bf16.xpose.msra.mxu0 0
    %1324 = vmatprep.subr.bf16.mxu0 0
    %1325 = vmatpush1.bf16.xpose.msra.mxu0 0
    %1326 = vmatprep.subr.bf16.mxu0 0
    %1327 = vmatpush1.bf16.xpose.msra.mxu0 0
    %1328 = vmatprep.subr.bf16.mxu0 0
    %1329 = vmatpush1.bf16.xpose.msra.mxu0 0
    %1330 = vmatprep.subr.bf16.mxu0 0
    %1331 = vmatpush1.bf16.xpose.msra.mxu0 0
    %1332 = vmatprep.subr.bf16.mxu0 0
    %1333 = vmatpush1.bf16.xpose.msra.mxu0 0
    %1334 = vmatprep.subr.bf16.mxu0 0
    %1335 = vmatpush1.bf16.xpose.msra.mxu0 0
    %1336 = vmatprep.subr.bf16.mxu0 0
    %1337 = vmatpush1.bf16.xpose.msra.mxu0 0
    %1338 = vmatprep.subr.bf16.mxu0 0
    %1339 = vmatpush1.bf16.xpose.msra.mxu0 0
    %1340 = vmatprep.subr.bf16.mxu0 0
    %1341 = vmatpush1.bf16.xpose.msra.mxu0 0
    %1342 = vmatprep.subr.bf16.mxu0 0
    %1343 = vmatpush1.bf16.xpose.msra.mxu0 0
    %1344 = vmatprep.subr.bf16.mxu0 0
    %1345 = vmatpush1.bf16.xpose.msra.mxu0 0
    %1346 = vmatprep.subr.bf16.mxu0 0
    %1347 = vmatpush1.bf16.xpose.msra.mxu0 0
    %1348 = vmatprep.subr.bf16.mxu0 0
    %1349 = vmatpush1.bf16.xpose.msra.mxu0 0
    %1350 = vmatprep.mubr.bf16.mxu0 0
    %1351 = vmatmul.mubr.bf16.gmra.mrb[0].mxu0 %v1313
    %v1352 = vpop.f32.mrb[0].mxu0
    %v1353 = vadd.f32 0.0, %v1352
    %v1354 = vpop.f32.mrb[0].mxu0
    %v1355 = vpop.f32.mrb[0].mxu0
    %v1356 = vpop.f32.mrb[0].mxu0
    %1357 = vdwg.mxu0
    %v1359 = vsel %vm897, %v771, 0
    %v1362 = vsel %vm897, %v831, 0
    %1364 = vmatprep.subr.bf16.mxu0 0
    %1365 = vmatpush1.bf16.xpose.msra.mxu0 %v1362
    %1366 = vmatprep.subr.bf16.mxu0 0
    %1367 = vmatpush1.bf16.xpose.msra.mxu0 0
    %1368 = vmatprep.subr.bf16.mxu0 0
    %1369 = vmatpush1.bf16.xpose.msra.mxu0 0
    %1370 = vmatprep.subr.bf16.mxu0 0
    %1371 = vmatpush1.bf16.xpose.msra.mxu0 0
    %1372 = vmatprep.subr.bf16.mxu0 0
    %1373 = vmatpush1.bf16.xpose.msra.mxu0 0
    %1374 = vmatprep.subr.bf16.mxu0 0
    %1375 = vmatpush1.bf16.xpose.msra.mxu0 0
    %1376 = vmatprep.subr.bf16.mxu0 0
    %1377 = vmatpush1.bf16.xpose.msra.mxu0 0
    %1378 = vmatprep.subr.bf16.mxu0 0
    %1379 = vmatpush1.bf16.xpose.msra.mxu0 0
    %1380 = vmatprep.subr.bf16.mxu0 0
    %1381 = vmatpush1.bf16.xpose.msra.mxu0 0
    %1382 = vmatprep.subr.bf16.mxu0 0
    %1383 = vmatpush1.bf16.xpose.msra.mxu0 0
    %1384 = vmatprep.subr.bf16.mxu0 0
    %1385 = vmatpush1.bf16.xpose.msra.mxu0 0
    %1386 = vmatprep.subr.bf16.mxu0 0
    %1387 = vmatpush1.bf16.xpose.msra.mxu0 0
    %1388 = vmatprep.subr.bf16.mxu0 0
    %1389 = vmatpush1.bf16.xpose.msra.mxu0 0
    %1390 = vmatprep.subr.bf16.mxu0 0
    %1391 = vmatpush1.bf16.xpose.msra.mxu0 0
    %1392 = vmatprep.subr.bf16.mxu0 0
    %1393 = vmatpush1.bf16.xpose.msra.mxu0 0
    %1394 = vmatprep.subr.bf16.mxu0 0
    %1395 = vmatpush1.bf16.xpose.msra.mxu0 0
    %1396 = vmatprep.mubr.bf16.mxu0 0
    %1397 = vmatmul.mubr.bf16.gmra.mrb[0].mxu0 %v1359
    %v1398 = vpop.f32.mrb[0].mxu0
    %v1399 = vadd.f32 0.0, %v1398
    %v1400 = vpop.f32.mrb[0].mxu0
    %v1401 = vpop.f32.mrb[0].mxu0
    %v1402 = vpop.f32.mrb[0].mxu0
    %1403 = vdwg.mxu0
    %v1405 = vsel %vm897, %v772, 0
    %v1408 = vsel %vm897, %v832, 0
    %1410 = vmatprep.subr.bf16.mxu0 0
    %1411 = vmatpush1.bf16.xpose.msra.mxu0 %v1408
    %1412 = vmatprep.subr.bf16.mxu0 0
    %1413 = vmatpush1.bf16.xpose.msra.mxu0 0
    %1414 = vmatprep.subr.bf16.mxu0 0
    %1415 = vmatpush1.bf16.xpose.msra.mxu0 0
    %1416 = vmatprep.subr.bf16.mxu0 0
    %1417 = vmatpush1.bf16.xpose.msra.mxu0 0
    %1418 = vmatprep.subr.bf16.mxu0 0
    %1419 = vmatpush1.bf16.xpose.msra.mxu0 0
    %1420 = vmatprep.subr.bf16.mxu0 0
    %1421 = vmatpush1.bf16.xpose.msra.mxu0 0
    %1422 = vmatprep.subr.bf16.mxu0 0
    %1423 = vmatpush1.bf16.xpose.msra.mxu0 0
    %1424 = vmatprep.subr.bf16.mxu0 0
    %1425 = vmatpush1.bf16.xpose.msra.mxu0 0
    %1426 = vmatprep.subr.bf16.mxu0 0
    %1427 = vmatpush1.bf16.xpose.msra.mxu0 0
    %1428 = vmatprep.subr.bf16.mxu0 0
    %1429 = vmatpush1.bf16.xpose.msra.mxu0 0
    %1430 = vmatprep.subr.bf16.mxu0 0
    %1431 = vmatpush1.bf16.xpose.msra.mxu0 0
    %1432 = vmatprep.subr.bf16.mxu0 0
    %1433 = vmatpush1.bf16.xpose.msra.mxu0 0
    %1434 = vmatprep.subr.bf16.mxu0 0
    %1435 = vmatpush1.bf16.xpose.msra.mxu0 0
    %1436 = vmatprep.subr.bf16.mxu0 0
    %1437 = vmatpush1.bf16.xpose.msra.mxu0 0
    %1438 = vmatprep.subr.bf16.mxu0 0
    %1439 = vmatpush1.bf16.xpose.msra.mxu0 0
    %1440 = vmatprep.subr.bf16.mxu0 0
    %1441 = vmatpush1.bf16.xpose.msra.mxu0 0
    %1442 = vmatprep.mubr.bf16.mxu0 0
    %1443 = vmatmul.mubr.bf16.gmra.mrb[0].mxu0 %v1405
    %v1444 = vpop.f32.mrb[0].mxu0
    %v1445 = vadd.f32 0.0, %v1444
    %v1446 = vpop.f32.mrb[0].mxu0
    %v1447 = vpop.f32.mrb[0].mxu0
    %v1448 = vpop.f32.mrb[0].mxu0
    %1449 = vdwg.mxu0
    %v1451 = vsel %vm897, %v773, 0
    %v1454 = vsel %vm897, %v833, 0
    %1456 = vmatprep.subr.bf16.mxu0 0
    %1457 = vmatpush1.bf16.xpose.msra.mxu0 %v1454
    %1458 = vmatprep.subr.bf16.mxu0 0
    %1459 = vmatpush1.bf16.xpose.msra.mxu0 0
    %1460 = vmatprep.subr.bf16.mxu0 0
    %1461 = vmatpush1.bf16.xpose.msra.mxu0 0
    %1462 = vmatprep.subr.bf16.mxu0 0
    %1463 = vmatpush1.bf16.xpose.msra.mxu0 0
    %1464 = vmatprep.subr.bf16.mxu0 0
    %1465 = vmatpush1.bf16.xpose.msra.mxu0 0
    %1466 = vmatprep.subr.bf16.mxu0 0
    %1467 = vmatpush1.bf16.xpose.msra.mxu0 0
    %1468 = vmatprep.subr.bf16.mxu0 0
    %1469 = vmatpush1.bf16.xpose.msra.mxu0 0
    %1470 = vmatprep.subr.bf16.mxu0 0
    %1471 = vmatpush1.bf16.xpose.msra.mxu0 0
    %1472 = vmatprep.subr.bf16.mxu0 0
    %1473 = vmatpush1.bf16.xpose.msra.mxu0 0
    %1474 = vmatprep.subr.bf16.mxu0 0
    %1475 = vmatpush1.bf16.xpose.msra.mxu0 0
    %1476 = vmatprep.subr.bf16.mxu0 0
    %1477 = vmatpush1.bf16.xpose.msra.mxu0 0
    %1478 = vmatprep.subr.bf16.mxu0 0
    %1479 = vmatpush1.bf16.xpose.msra.mxu0 0
    %1480 = vmatprep.subr.bf16.mxu0 0
    %1481 = vmatpush1.bf16.xpose.msra.mxu0 0
    %1482 = vmatprep.subr.bf16.mxu0 0
    %1483 = vmatpush1.bf16.xpose.msra.mxu0 0
    %1484 = vmatprep.subr.bf16.mxu0 0
    %1485 = vmatpush1.bf16.xpose.msra.mxu0 0
    %1486 = vmatprep.subr.bf16.mxu0 0
    %1487 = vmatpush1.bf16.xpose.msra.mxu0 0
    %1488 = vmatprep.mubr.bf16.mxu0 0
    %1489 = vmatmul.mubr.bf16.gmra.mrb[0].mxu0 %v1451
    %v1490 = vpop.f32.mrb[0].mxu0
    %v1491 = vadd.f32 0.0, %v1490
    %v1492 = vpop.f32.mrb[0].mxu0
    %v1493 = vpop.f32.mrb[0].mxu0
    %v1494 = vpop.f32.mrb[0].mxu0
    %1495 = vdwg.mxu0
    %v1497 = vsel %vm897, %v774, 0
    %v1500 = vsel %vm897, %v834, 0
    %1502 = vmatprep.subr.bf16.mxu0 0
    %1503 = vmatpush1.bf16.xpose.msra.mxu0 %v1500
    %1504 = vmatprep.subr.bf16.mxu0 0
    %1505 = vmatpush1.bf16.xpose.msra.mxu0 0
    %1506 = vmatprep.subr.bf16.mxu0 0
    %1507 = vmatpush1.bf16.xpose.msra.mxu0 0
    %1508 = vmatprep.subr.bf16.mxu0 0
    %1509 = vmatpush1.bf16.xpose.msra.mxu0 0
    %1510 = vmatprep.subr.bf16.mxu0 0
    %1511 = vmatpush1.bf16.xpose.msra.mxu0 0
    %1512 = vmatprep.subr.bf16.mxu0 0
    %1513 = vmatpush1.bf16.xpose.msra.mxu0 0
    %1514 = vmatprep.subr.bf16.mxu0 0
    %1515 = vmatpush1.bf16.xpose.msra.mxu0 0
    %1516 = vmatprep.subr.bf16.mxu0 0
    %1517 = vmatpush1.bf16.xpose.msra.mxu0 0
    %1518 = vmatprep.subr.bf16.mxu0 0
    %1519 = vmatpush1.bf16.xpose.msra.mxu0 0
    %1520 = vmatprep.subr.bf16.mxu0 0
    %1521 = vmatpush1.bf16.xpose.msra.mxu0 0
    %1522 = vmatprep.subr.bf16.mxu0 0
    %1523 = vmatpush1.bf16.xpose.msra.mxu0 0
    %1524 = vmatprep.subr.bf16.mxu0 0
    %1525 = vmatpush1.bf16.xpose.msra.mxu0 0
    %1526 = vmatprep.subr.bf16.mxu0 0
    %1527 = vmatpush1.bf16.xpose.msra.mxu0 0
    %1528 = vmatprep.subr.bf16.mxu0 0
    %1529 = vmatpush1.bf16.xpose.msra.mxu0 0
    %1530 = vmatprep.subr.bf16.mxu0 0
    %1531 = vmatpush1.bf16.xpose.msra.mxu0 0
    %1532 = vmatprep.subr.bf16.mxu0 0
    %1533 = vmatpush1.bf16.xpose.msra.mxu0 0
    %1534 = vmatprep.mubr.bf16.mxu0 0
    %1535 = vmatmul.mubr.bf16.gmra.mrb[0].mxu0 %v1497
    %v1536 = vpop.f32.mrb[0].mxu0
    %v1537 = vadd.f32 0.0, %v1536
    %v1538 = vpop.f32.mrb[0].mxu0
    %v1539 = vpop.f32.mrb[0].mxu0
    %v1540 = vpop.f32.mrb[0].mxu0
    %1541 = vdwg.mxu0
    %v1543 = vsel %vm897, %v775, 0
    %v1546 = vsel %vm897, %v835, 0
    %1548 = vmatprep.subr.bf16.mxu0 0
    %1549 = vmatpush1.bf16.xpose.msra.mxu0 %v1546
    %1550 = vmatprep.subr.bf16.mxu0 0
    %1551 = vmatpush1.bf16.xpose.msra.mxu0 0
    %1552 = vmatprep.subr.bf16.mxu0 0
    %1553 = vmatpush1.bf16.xpose.msra.mxu0 0
    %1554 = vmatprep.subr.bf16.mxu0 0
    %1555 = vmatpush1.bf16.xpose.msra.mxu0 0
    %1556 = vmatprep.subr.bf16.mxu0 0
    %1557 = vmatpush1.bf16.xpose.msra.mxu0 0
    %1558 = vmatprep.subr.bf16.mxu0 0
    %1559 = vmatpush1.bf16.xpose.msra.mxu0 0
    %1560 = vmatprep.subr.bf16.mxu0 0
    %1561 = vmatpush1.bf16.xpose.msra.mxu0 0
    %1562 = vmatprep.subr.bf16.mxu0 0
    %1563 = vmatpush1.bf16.xpose.msra.mxu0 0
    %1564 = vmatprep.subr.bf16.mxu0 0
    %1565 = vmatpush1.bf16.xpose.msra.mxu0 0
    %1566 = vmatprep.subr.bf16.mxu0 0
    %1567 = vmatpush1.bf16.xpose.msra.mxu0 0
    %1568 = vmatprep.subr.bf16.mxu0 0
    %1569 = vmatpush1.bf16.xpose.msra.mxu0 0
    %1570 = vmatprep.subr.bf16.mxu0 0
    %1571 = vmatpush1.bf16.xpose.msra.mxu0 0
    %1572 = vmatprep.subr.bf16.mxu0 0
    %1573 = vmatpush1.bf16.xpose.msra.mxu0 0
    %1574 = vmatprep.subr.bf16.mxu0 0
    %1575 = vmatpush1.bf16.xpose.msra.mxu0 0
    %1576 = vmatprep.subr.bf16.mxu0 0
    %1577 = vmatpush1.bf16.xpose.msra.mxu0 0
    %1578 = vmatprep.subr.bf16.mxu0 0
    %1579 = vmatpush1.bf16.xpose.msra.mxu0 0
    %1580 = vmatprep.mubr.bf16.mxu0 0
    %1581 = vmatmul.mubr.bf16.gmra.mrb[0].mxu0 %v1543
    %v1582 = vpop.f32.mrb[0].mxu0
    %v1583 = vadd.f32 0.0, %v1582
    %v1584 = vpop.f32.mrb[0].mxu0
    %v1585 = vpop.f32.mrb[0].mxu0
    %v1586 = vpop.f32.mrb[0].mxu0
    %1587 = vdwg.mxu0
    %v1589 = vsel %vm897, %v776, 0
    %v1592 = vsel %vm897, %v836, 0
    %1594 = vmatprep.subr.bf16.mxu0 0
    %1595 = vmatpush1.bf16.xpose.msra.mxu0 %v1592
    %1596 = vmatprep.subr.bf16.mxu0 0
    %1597 = vmatpush1.bf16.xpose.msra.mxu0 0
    %1598 = vmatprep.subr.bf16.mxu0 0
    %1599 = vmatpush1.bf16.xpose.msra.mxu0 0
    %1600 = vmatprep.subr.bf16.mxu0 0
    %1601 = vmatpush1.bf16.xpose.msra.mxu0 0
    %1602 = vmatprep.subr.bf16.mxu0 0
    %1603 = vmatpush1.bf16.xpose.msra.mxu0 0
    %1604 = vmatprep.subr.bf16.mxu0 0
    %1605 = vmatpush1.bf16.xpose.msra.mxu0 0
    %1606 = vmatprep.subr.bf16.mxu0 0
    %1607 = vmatpush1.bf16.xpose.msra.mxu0 0
    %1608 = vmatprep.subr.bf16.mxu0 0
    %1609 = vmatpush1.bf16.xpose.msra.mxu0 0
    %1610 = vmatprep.subr.bf16.mxu0 0
    %1611 = vmatpush1.bf16.xpose.msra.mxu0 0
    %1612 = vmatprep.subr.bf16.mxu0 0
    %1613 = vmatpush1.bf16.xpose.msra.mxu0 0
    %1614 = vmatprep.subr.bf16.mxu0 0
    %1615 = vmatpush1.bf16.xpose.msra.mxu0 0
    %1616 = vmatprep.subr.bf16.mxu0 0
    %1617 = vmatpush1.bf16.xpose.msra.mxu0 0
    %1618 = vmatprep.subr.bf16.mxu0 0
    %1619 = vmatpush1.bf16.xpose.msra.mxu0 0
    %1620 = vmatprep.subr.bf16.mxu0 0
    %1621 = vmatpush1.bf16.xpose.msra.mxu0 0
    %1622 = vmatprep.subr.bf16.mxu0 0
    %1623 = vmatpush1.bf16.xpose.msra.mxu0 0
    %1624 = vmatprep.subr.bf16.mxu0 0
    %1625 = vmatpush1.bf16.xpose.msra.mxu0 0
    %1626 = vmatprep.mubr.bf16.mxu0 0
    %1627 = vmatmul.mubr.bf16.gmra.mrb[0].mxu0 %v1589
    %v1628 = vpop.f32.mrb[0].mxu0
    %v1629 = vadd.f32 0.0, %v1628
    %v1630 = vpop.f32.mrb[0].mxu0
    %v1631 = vpop.f32.mrb[0].mxu0
    %v1632 = vpop.f32.mrb[0].mxu0
    %1633 = vdwg.mxu0
    %vm1634 = vcmask 64512
    %v1635 = vsel %vm1634, %v939, -inf
    %1636 = vmax.xlane.f32.xlu0 %v1635
    %v1637 = vpop.xlane.xlu0 %1636
    %v1638 = vsel %vm1634, %v985, -inf
    %1639 = vmax.xlane.f32.xlu0 %v1638
    %v1640 = vpop.xlane.xlu0 %1639
    %v1641 = vsel %vm1634, %v1031, -inf
    %1642 = vmax.xlane.f32.xlu0 %v1641
    %v1643 = vpop.xlane.xlu0 %1642
    %v1644 = vsel %vm1634, %v1077, -inf
    %1645 = vmax.xlane.f32.xlu0 %v1644
    %v1646 = vpop.xlane.xlu0 %1645
    %v1647 = vsel %vm1634, %v1123, -inf
    %1648 = vmax.xlane.f32.xlu0 %v1647
    %v1649 = vpop.xlane.xlu0 %1648
    %v1650 = vsel %vm1634, %v1169, -inf
    %1651 = vmax.xlane.f32.xlu0 %v1650
    %v1652 = vpop.xlane.xlu0 %1651
    %v1653 = vsel %vm1634, %v1215, -inf
    %1654 = vmax.xlane.f32.xlu0 %v1653
    %v1655 = vpop.xlane.xlu0 %1654
    %v1656 = vsel %vm1634, %v1261, -inf
    %1657 = vmax.xlane.f32.xlu0 %v1656
    %v1658 = vpop.xlane.xlu0 %1657
    %v1659 = vsel %vm1634, %v1307, -inf
    %1660 = vmax.xlane.f32.xlu0 %v1659
    %v1661 = vpop.xlane.xlu0 %1660
    %v1662 = vsel %vm1634, %v1353, -inf
    %1663 = vmax.xlane.f32.xlu0 %v1662
    %v1664 = vpop.xlane.xlu0 %1663
    %v1665 = vsel %vm1634, %v1399, -inf
    %1666 = vmax.xlane.f32.xlu0 %v1665
    %v1667 = vpop.xlane.xlu0 %1666
    %v1668 = vsel %vm1634, %v1445, -inf
    %1669 = vmax.xlane.f32.xlu0 %v1668
    %v1670 = vpop.xlane.xlu0 %1669
    %v1671 = vsel %vm1634, %v1491, -inf
    %1672 = vmax.xlane.f32.xlu0 %v1671
    %v1673 = vpop.xlane.xlu0 %1672
    %v1674 = vsel %vm1634, %v1537, -inf
    %1675 = vmax.xlane.f32.xlu0 %v1674
    %v1676 = vpop.xlane.xlu0 %1675
    %v1677 = vsel %vm1634, %v1583, -inf
    %1678 = vmax.xlane.f32.xlu0 %v1677
    %v1679 = vpop.xlane.xlu0 %1678
    %v1680 = vsel %vm1634, %v1629, -inf
    %1681 = vmax.xlane.f32.xlu0 %v1680
    %v1682 = vpop.xlane.xlu0 %1681
    %v1683 = vsub.f32 %v939, %v1637
    %v1684 = vsub.f32 %v985, %v1640
    %v1685 = vsub.f32 %v1031, %v1643
    %v1686 = vsub.f32 %v1077, %v1646
    %v1687 = vsub.f32 %v1123, %v1649
    %v1688 = vsub.f32 %v1169, %v1652
    %v1689 = vsub.f32 %v1215, %v1655
    %v1690 = vsub.f32 %v1261, %v1658
    %v1691 = vsub.f32 %v1307, %v1661
    %v1692 = vsub.f32 %v1353, %v1664
    %v1693 = vsub.f32 %v1399, %v1667
    %v1694 = vsub.f32 %v1445, %v1670
    %v1695 = vsub.f32 %v1491, %v1673
    %v1696 = vsub.f32 %v1537, %v1676
    %v1697 = vsub.f32 %v1583, %v1679
    %v1698 = vsub.f32 %v1629, %v1682
    %v1699 = vmul.f32 %v1683, 1.442695
    %v1700 = vpow.pop %v1699
    %v1701 = vmul.f32 %v1684, 1.442695
    %v1702 = vpow.pop %v1701
    %v1703 = vmul.f32 %v1685, 1.442695
    %v1704 = vpow.pop %v1703
    %v1705 = vmul.f32 %v1686, 1.442695
    %v1706 = vpow.pop %v1705
    %v1707 = vmul.f32 %v1687, 1.442695
    %v1708 = vpow.pop %v1707
    %v1709 = vmul.f32 %v1688, 1.442695
    %v1710 = vpow.pop %v1709
    %v1711 = vmul.f32 %v1689, 1.442695
    %v1712 = vpow.pop %v1711
    %v1713 = vmul.f32 %v1690, 1.442695
    %v1714 = vpow.pop %v1713
    %v1715 = vmul.f32 %v1691, 1.442695
    %v1716 = vpow.pop %v1715
    %v1717 = vmul.f32 %v1692, 1.442695
    %v1718 = vpow.pop %v1717
    %v1719 = vmul.f32 %v1693, 1.442695
    %v1720 = vpow.pop %v1719
    %v1721 = vmul.f32 %v1694, 1.442695
    %v1722 = vpow.pop %v1721
    %v1723 = vmul.f32 %v1695, 1.442695
    %v1724 = vpow.pop %v1723
    %v1725 = vmul.f32 %v1696, 1.442695
    %v1726 = vpow.pop %v1725
    %v1727 = vmul.f32 %v1697, 1.442695
    %v1728 = vpow.pop %v1727
    %v1729 = vmul.f32 %v1698, 1.442695
    %v1730 = vpow.pop %v1729
    %v1731 = vsel %vm1634, %v1700, 0.0
    %1732 = vadd.xlane.f32.xlu0 %v1731
    %v1733 = vpop.xlane.xlu0 %1732
    %v1734 = vsel %vm1634, %v1702, 0.0
    %1735 = vadd.xlane.f32.xlu0 %v1734
    %v1736 = vpop.xlane.xlu0 %1735
    %v1737 = vsel %vm1634, %v1704, 0.0
    %1738 = vadd.xlane.f32.xlu0 %v1737
    %v1739 = vpop.xlane.xlu0 %1738
    %v1740 = vsel %vm1634, %v1706, 0.0
    %1741 = vadd.xlane.f32.xlu0 %v1740
    %v1742 = vpop.xlane.xlu0 %1741
    %v1743 = vsel %vm1634, %v1708, 0.0
    %1744 = vadd.xlane.f32.xlu0 %v1743
    %v1745 = vpop.xlane.xlu0 %1744
    %v1746 = vsel %vm1634, %v1710, 0.0
    %1747 = vadd.xlane.f32.xlu0 %v1746
    %v1748 = vpop.xlane.xlu0 %1747
    %v1749 = vsel %vm1634, %v1712, 0.0
    %1750 = vadd.xlane.f32.xlu0 %v1749
    %v1751 = vpop.xlane.xlu0 %1750
    %v1752 = vsel %vm1634, %v1714, 0.0
    %1753 = vadd.xlane.f32.xlu0 %v1752
    %v1754 = vpop.xlane.xlu0 %1753
    %v1755 = vsel %vm1634, %v1716, 0.0
    %1756 = vadd.xlane.f32.xlu0 %v1755
    %v1757 = vpop.xlane.xlu0 %1756
    %v1758 = vsel %vm1634, %v1718, 0.0
    %1759 = vadd.xlane.f32.xlu0 %v1758
    %v1760 = vpop.xlane.xlu0 %1759
    %v1761 = vsel %vm1634, %v1720, 0.0
    %1762 = vadd.xlane.f32.xlu0 %v1761
    %v1763 = vpop.xlane.xlu0 %1762
    %v1764 = vsel %vm1634, %v1722, 0.0
    %1765 = vadd.xlane.f32.xlu0 %v1764
    %v1766 = vpop.xlane.xlu0 %1765
    %v1767 = vsel %vm1634, %v1724, 0.0
    %1768 = vadd.xlane.f32.xlu0 %v1767
    %v1769 = vpop.xlane.xlu0 %1768
    %v1770 = vsel %vm1634, %v1726, 0.0
    %1771 = vadd.xlane.f32.xlu0 %v1770
    %v1772 = vpop.xlane.xlu0 %1771
    %v1773 = vsel %vm1634, %v1728, 0.0
    %1774 = vadd.xlane.f32.xlu0 %v1773
    %v1775 = vpop.xlane.xlu0 %1774
    %v1776 = vsel %vm1634, %v1730, 0.0
    %1777 = vadd.xlane.f32.xlu0 %v1776
    %v1778 = vpop.xlane.xlu0 %1777
    %v1779 = vrcp.pop %v1733
    %v1780 = vrcp.pop %v1736
    %v1781 = vrcp.pop %v1739
    %v1782 = vrcp.pop %v1742
    %v1783 = vrcp.pop %v1745
    %v1784 = vrcp.pop %v1748
    %v1785 = vrcp.pop %v1751
    %v1786 = vrcp.pop %v1754
    %v1787 = vrcp.pop %v1757
    %v1788 = vrcp.pop %v1760
    %v1789 = vrcp.pop %v1763
    %v1790 = vrcp.pop %v1766
    %v1791 = vrcp.pop %v1769
    %v1792 = vrcp.pop %v1772
    %v1793 = vrcp.pop %v1775
    %v1794 = vrcp.pop %v1778
    %v1795 = vmul.f32 %v1700, %v1779
    %v1796 = vmul.f32 %v1702, %v1780
    %v1797 = vmul.f32 %v1704, %v1781
    %v1798 = vmul.f32 %v1706, %v1782
    %v1799 = vmul.f32 %v1708, %v1783
    %v1800 = vmul.f32 %v1710, %v1784
    %v1801 = vmul.f32 %v1712, %v1785
    %v1802 = vmul.f32 %v1714, %v1786
    %v1803 = vmul.f32 %v1716, %v1787
    %v1804 = vmul.f32 %v1718, %v1788
    %v1805 = vmul.f32 %v1720, %v1789
    %v1806 = vmul.f32 %v1722, %v1790
    %v1807 = vmul.f32 %v1724, %v1791
    %v1808 = vmul.f32 %v1726, %v1792
    %v1809 = vmul.f32 %v1728, %v1793
    %v1810 = vmul.f32 %v1730, %v1794
    %v1811 = vpack.c.bf16 %v1795, %v1795
    %v1812 = vpack.c.bf16 %v1796, %v1796
    %v1813 = vpack.c.bf16 %v1797, %v1797
    %v1814 = vpack.c.bf16 %v1798, %v1798
    %v1815 = vpack.c.bf16 %v1799, %v1799
    %v1816 = vpack.c.bf16 %v1800, %v1800
    %v1817 = vpack.c.bf16 %v1801, %v1801
    %v1818 = vpack.c.bf16 %v1802, %v1802
    %v1819 = vpack.c.bf16 %v1803, %v1803
    %v1820 = vpack.c.bf16 %v1804, %v1804
    %v1821 = vpack.c.bf16 %v1805, %v1805
    %v1822 = vpack.c.bf16 %v1806, %v1806
    %v1823 = vpack.c.bf16 %v1807, %v1807
    %v1824 = vpack.c.bf16 %v1808, %v1808
    %v1825 = vpack.c.bf16 %v1809, %v1809
    %v1826 = vpack.c.bf16 %v1810, %v1810
    %v1828 = vsel %vm1634, %v1811, 0
    %vm1830 = vcmask 1043456
    %v1832 = vsel %vm1830, %v881, 0
    %1834 = vmatprep.subr.bf16.mxu0 0
    %1835 = vmatpush1.bf16.msra.mxu0 %v1832
    %1836 = vmatprep.subr.bf16.mxu0 0
    %1837 = vmatpush1.bf16.msra.mxu0 0
    %1838 = vmatprep.subr.bf16.mxu0 0
    %1839 = vmatpush1.bf16.msra.mxu0 0
    %1840 = vmatprep.subr.bf16.mxu0 0
    %1841 = vmatpush1.bf16.msra.mxu0 0
    %1842 = vmatprep.subr.bf16.mxu0 0
    %1843 = vmatpush1.bf16.msra.mxu0 0
    %1844 = vmatprep.subr.bf16.mxu0 0
    %1845 = vmatpush1.bf16.msra.mxu0 0
    %1846 = vmatprep.subr.bf16.mxu0 0
    %1847 = vmatpush1.bf16.msra.mxu0 0
    %1848 = vmatprep.subr.bf16.mxu0 0
    %1849 = vmatpush1.bf16.msra.mxu0 0
    %1850 = vmatprep.subr.bf16.mxu0 0
    %1851 = vmatpush1.bf16.msra.mxu0 0
    %1852 = vmatprep.subr.bf16.mxu0 0
    %1853 = vmatpush1.bf16.msra.mxu0 0
    %1854 = vmatprep.subr.bf16.mxu0 0
    %1855 = vmatpush1.bf16.msra.mxu0 0
    %1856 = vmatprep.subr.bf16.mxu0 0
    %1857 = vmatpush1.bf16.msra.mxu0 0
    %1858 = vmatprep.subr.bf16.mxu0 0
    %1859 = vmatpush1.bf16.msra.mxu0 0
    %1860 = vmatprep.subr.bf16.mxu0 0
    %1861 = vmatpush1.bf16.msra.mxu0 0
    %1862 = vmatprep.subr.bf16.mxu0 0
    %1863 = vmatpush1.bf16.msra.mxu0 0
    %1864 = vmatprep.subr.bf16.mxu0 0
    %1865 = vmatpush1.bf16.msra.mxu0 0
    %1866 = vmatprep.mubr.bf16.mxu0 0
    %1867 = vmatmul.mubr.bf16.gmra.mrb[0].mxu0 %v1828
    %v1868 = vpop.f32.mrb[0].mxu0
    %v1869 = vadd.f32 0.0, %v1868
    %v1870 = vpop.f32.mrb[0].mxu0
    %v1871 = vpop.f32.mrb[0].mxu0
    %v1872 = vpop.f32.mrb[0].mxu0
    %1873 = vdwg.mxu0
    %v1875 = vsel %vm1634, %v1812, 0
    %v1878 = vsel %vm1830, %v882, 0
    %1880 = vmatprep.subr.bf16.mxu0 0
    %1881 = vmatpush1.bf16.msra.mxu0 %v1878
    %1882 = vmatprep.subr.bf16.mxu0 0
    %1883 = vmatpush1.bf16.msra.mxu0 0
    %1884 = vmatprep.subr.bf16.mxu0 0
    %1885 = vmatpush1.bf16.msra.mxu0 0
    %1886 = vmatprep.subr.bf16.mxu0 0
    %1887 = vmatpush1.bf16.msra.mxu0 0
    %1888 = vmatprep.subr.bf16.mxu0 0
    %1889 = vmatpush1.bf16.msra.mxu0 0
    %1890 = vmatprep.subr.bf16.mxu0 0
    %1891 = vmatpush1.bf16.msra.mxu0 0
    %1892 = vmatprep.subr.bf16.mxu0 0
    %1893 = vmatpush1.bf16.msra.mxu0 0
    %1894 = vmatprep.subr.bf16.mxu0 0
    %1895 = vmatpush1.bf16.msra.mxu0 0
    %1896 = vmatprep.subr.bf16.mxu0 0
    %1897 = vmatpush1.bf16.msra.mxu0 0
    %1898 = vmatprep.subr.bf16.mxu0 0
    %1899 = vmatpush1.bf16.msra.mxu0 0
    %1900 = vmatprep.subr.bf16.mxu0 0
    %1901 = vmatpush1.bf16.msra.mxu0 0
    %1902 = vmatprep.subr.bf16.mxu0 0
    %1903 = vmatpush1.bf16.msra.mxu0 0
    %1904 = vmatprep.subr.bf16.mxu0 0
    %1905 = vmatpush1.bf16.msra.mxu0 0
    %1906 = vmatprep.subr.bf16.mxu0 0
    %1907 = vmatpush1.bf16.msra.mxu0 0
    %1908 = vmatprep.subr.bf16.mxu0 0
    %1909 = vmatpush1.bf16.msra.mxu0 0
    %1910 = vmatprep.subr.bf16.mxu0 0
    %1911 = vmatpush1.bf16.msra.mxu0 0
    %1912 = vmatprep.mubr.bf16.mxu0 0
    %1913 = vmatmul.mubr.bf16.gmra.mrb[0].mxu0 %v1875
    %v1914 = vpop.f32.mrb[0].mxu0
    %v1915 = vadd.f32 0.0, %v1914
    %v1916 = vpop.f32.mrb[0].mxu0
    %v1917 = vpop.f32.mrb[0].mxu0
    %v1918 = vpop.f32.mrb[0].mxu0
    %1919 = vdwg.mxu0
    %v1921 = vsel %vm1634, %v1813, 0
    %v1924 = vsel %vm1830, %v883, 0
    %1926 = vmatprep.subr.bf16.mxu0 0
    %1927 = vmatpush1.bf16.msra.mxu0 %v1924
    %1928 = vmatprep.subr.bf16.mxu0 0
    %1929 = vmatpush1.bf16.msra.mxu0 0
    %1930 = vmatprep.subr.bf16.mxu0 0
    %1931 = vmatpush1.bf16.msra.mxu0 0
    %1932 = vmatprep.subr.bf16.mxu0 0
    %1933 = vmatpush1.bf16.msra.mxu0 0
    %1934 = vmatprep.subr.bf16.mxu0 0
    %1935 = vmatpush1.bf16.msra.mxu0 0
    %1936 = vmatprep.subr.bf16.mxu0 0
    %1937 = vmatpush1.bf16.msra.mxu0 0
    %1938 = vmatprep.subr.bf16.mxu0 0
    %1939 = vmatpush1.bf16.msra.mxu0 0
    %1940 = vmatprep.subr.bf16.mxu0 0
    %1941 = vmatpush1.bf16.msra.mxu0 0
    %1942 = vmatprep.subr.bf16.mxu0 0
    %1943 = vmatpush1.bf16.msra.mxu0 0
    %1944 = vmatprep.subr.bf16.mxu0 0
    %1945 = vmatpush1.bf16.msra.mxu0 0
    %1946 = vmatprep.subr.bf16.mxu0 0
    %1947 = vmatpush1.bf16.msra.mxu0 0
    %1948 = vmatprep.subr.bf16.mxu0 0
    %1949 = vmatpush1.bf16.msra.mxu0 0
    %1950 = vmatprep.subr.bf16.mxu0 0
    %1951 = vmatpush1.bf16.msra.mxu0 0
    %1952 = vmatprep.subr.bf16.mxu0 0
    %1953 = vmatpush1.bf16.msra.mxu0 0
    %1954 = vmatprep.subr.bf16.mxu0 0
    %1955 = vmatpush1.bf16.msra.mxu0 0
    %1956 = vmatprep.subr.bf16.mxu0 0
    %1957 = vmatpush1.bf16.msra.mxu0 0
    %1958 = vmatprep.mubr.bf16.mxu0 0
    %1959 = vmatmul.mubr.bf16.gmra.mrb[0].mxu0 %v1921
    %v1960 = vpop.f32.mrb[0].mxu0
    %v1961 = vadd.f32 0.0, %v1960
    %v1962 = vpop.f32.mrb[0].mxu0
    %v1963 = vpop.f32.mrb[0].mxu0
    %v1964 = vpop.f32.mrb[0].mxu0
    %1965 = vdwg.mxu0
    %v1967 = vsel %vm1634, %v1814, 0
    %v1970 = vsel %vm1830, %v884, 0
    %1972 = vmatprep.subr.bf16.mxu0 0
    %1973 = vmatpush1.bf16.msra.mxu0 %v1970
    %1974 = vmatprep.subr.bf16.mxu0 0
    %1975 = vmatpush1.bf16.msra.mxu0 0
    %1976 = vmatprep.subr.bf16.mxu0 0
    %1977 = vmatpush1.bf16.msra.mxu0 0
    %1978 = vmatprep.subr.bf16.mxu0 0
    %1979 = vmatpush1.bf16.msra.mxu0 0
    %1980 = vmatprep.subr.bf16.mxu0 0
    %1981 = vmatpush1.bf16.msra.mxu0 0
    %1982 = vmatprep.subr.bf16.mxu0 0
    %1983 = vmatpush1.bf16.msra.mxu0 0
    %1984 = vmatprep.subr.bf16.mxu0 0
    %1985 = vmatpush1.bf16.msra.mxu0 0
    %1986 = vmatprep.subr.bf16.mxu0 0
    %1987 = vmatpush1.bf16.msra.mxu0 0
    %1988 = vmatprep.subr.bf16.mxu0 0
    %1989 = vmatpush1.bf16.msra.mxu0 0
    %1990 = vmatprep.subr.bf16.mxu0 0
    %1991 = vmatpush1.bf16.msra.mxu0 0
    %1992 = vmatprep.subr.bf16.mxu0 0
    %1993 = vmatpush1.bf16.msra.mxu0 0
    %1994 = vmatprep.subr.bf16.mxu0 0
    %1995 = vmatpush1.bf16.msra.mxu0 0
    %1996 = vmatprep.subr.bf16.mxu0 0
    %1997 = vmatpush1.bf16.msra.mxu0 0
    %1998 = vmatprep.subr.bf16.mxu0 0
    %1999 = vmatpush1.bf16.msra.mxu0 0
    %2000 = vmatprep.subr.bf16.mxu0 0
    %2001 = vmatpush1.bf16.msra.mxu0 0
    %2002 = vmatprep.subr.bf16.mxu0 0
    %2003 = vmatpush1.bf16.msra.mxu0 0
    %2004 = vmatprep.mubr.bf16.mxu0 0
    %2005 = vmatmul.mubr.bf16.gmra.mrb[0].mxu0 %v1967
    %v2006 = vpop.f32.mrb[0].mxu0
    %v2007 = vadd.f32 0.0, %v2006
    %v2008 = vpop.f32.mrb[0].mxu0
    %v2009 = vpop.f32.mrb[0].mxu0
    %v2010 = vpop.f32.mrb[0].mxu0
    %2011 = vdwg.mxu0
    %v2013 = vsel %vm1634, %v1815, 0
    %v2016 = vsel %vm1830, %v885, 0
    %2018 = vmatprep.subr.bf16.mxu0 0
    %2019 = vmatpush1.bf16.msra.mxu0 %v2016
    %2020 = vmatprep.subr.bf16.mxu0 0
    %2021 = vmatpush1.bf16.msra.mxu0 0
    %2022 = vmatprep.subr.bf16.mxu0 0
    %2023 = vmatpush1.bf16.msra.mxu0 0
    %2024 = vmatprep.subr.bf16.mxu0 0
    %2025 = vmatpush1.bf16.msra.mxu0 0
    %2026 = vmatprep.subr.bf16.mxu0 0
    %2027 = vmatpush1.bf16.msra.mxu0 0
    %2028 = vmatprep.subr.bf16.mxu0 0
    %2029 = vmatpush1.bf16.msra.mxu0 0
    %2030 = vmatprep.subr.bf16.mxu0 0
    %2031 = vmatpush1.bf16.msra.mxu0 0
    %2032 = vmatprep.subr.bf16.mxu0 0
    %2033 = vmatpush1.bf16.msra.mxu0 0
    %2034 = vmatprep.subr.bf16.mxu0 0
    %2035 = vmatpush1.bf16.msra.mxu0 0
    %2036 = vmatprep.subr.bf16.mxu0 0
    %2037 = vmatpush1.bf16.msra.mxu0 0
    %2038 = vmatprep.subr.bf16.mxu0 0
    %2039 = vmatpush1.bf16.msra.mxu0 0
    %2040 = vmatprep.subr.bf16.mxu0 0
    %2041 = vmatpush1.bf16.msra.mxu0 0
    %2042 = vmatprep.subr.bf16.mxu0 0
    %2043 = vmatpush1.bf16.msra.mxu0 0
    %2044 = vmatprep.subr.bf16.mxu0 0
    %2045 = vmatpush1.bf16.msra.mxu0 0
    %2046 = vmatprep.subr.bf16.mxu0 0
    %2047 = vmatpush1.bf16.msra.mxu0 0
    %2048 = vmatprep.subr.bf16.mxu0 0
    %2049 = vmatpush1.bf16.msra.mxu0 0
    %2050 = vmatprep.mubr.bf16.mxu0 0
    %2051 = vmatmul.mubr.bf16.gmra.mrb[0].mxu0 %v2013
    %v2052 = vpop.f32.mrb[0].mxu0
    %v2053 = vadd.f32 0.0, %v2052
    %v2054 = vpop.f32.mrb[0].mxu0
    %v2055 = vpop.f32.mrb[0].mxu0
    %v2056 = vpop.f32.mrb[0].mxu0
    %2057 = vdwg.mxu0
    %v2059 = vsel %vm1634, %v1816, 0
    %v2062 = vsel %vm1830, %v886, 0
    %2064 = vmatprep.subr.bf16.mxu0 0
    %2065 = vmatpush1.bf16.msra.mxu0 %v2062
    %2066 = vmatprep.subr.bf16.mxu0 0
    %2067 = vmatpush1.bf16.msra.mxu0 0
    %2068 = vmatprep.subr.bf16.mxu0 0
    %2069 = vmatpush1.bf16.msra.mxu0 0
    %2070 = vmatprep.subr.bf16.mxu0 0
    %2071 = vmatpush1.bf16.msra.mxu0 0
    %2072 = vmatprep.subr.bf16.mxu0 0
    %2073 = vmatpush1.bf16.msra.mxu0 0
    %2074 = vmatprep.subr.bf16.mxu0 0
    %2075 = vmatpush1.bf16.msra.mxu0 0
    %2076 = vmatprep.subr.bf16.mxu0 0
    %2077 = vmatpush1.bf16.msra.mxu0 0
    %2078 = vmatprep.subr.bf16.mxu0 0
    %2079 = vmatpush1.bf16.msra.mxu0 0
    %2080 = vmatprep.subr.bf16.mxu0 0
    %2081 = vmatpush1.bf16.msra.mxu0 0
    %2082 = vmatprep.subr.bf16.mxu0 0
    %2083 = vmatpush1.bf16.msra.mxu0 0
    %2084 = vmatprep.subr.bf16.mxu0 0
    %2085 = vmatpush1.bf16.msra.mxu0 0
    %2086 = vmatprep.subr.bf16.mxu0 0
    %2087 = vmatpush1.bf16.msra.mxu0 0
    %2088 = vmatprep.subr.bf16.mxu0 0
    %2089 = vmatpush1.bf16.msra.mxu0 0
    %2090 = vmatprep.subr.bf16.mxu0 0
    %2091 = vmatpush1.bf16.msra.mxu0 0
    %2092 = vmatprep.subr.bf16.mxu0 0
    %2093 = vmatpush1.bf16.msra.mxu0 0
    %2094 = vmatprep.subr.bf16.mxu0 0
    %2095 = vmatpush1.bf16.msra.mxu0 0
    %2096 = vmatprep.mubr.bf16.mxu0 0
    %2097 = vmatmul.mubr.bf16.gmra.mrb[0].mxu0 %v2059
    %v2098 = vpop.f32.mrb[0].mxu0
    %v2099 = vadd.f32 0.0, %v2098
    %v2100 = vpop.f32.mrb[0].mxu0
    %v2101 = vpop.f32.mrb[0].mxu0
    %v2102 = vpop.f32.mrb[0].mxu0
    %2103 = vdwg.mxu0
    %v2105 = vsel %vm1634, %v1817, 0
    %v2108 = vsel %vm1830, %v887, 0
    %2110 = vmatprep.subr.bf16.mxu0 0
    %2111 = vmatpush1.bf16.msra.mxu0 %v2108
    %2112 = vmatprep.subr.bf16.mxu0 0
    %2113 = vmatpush1.bf16.msra.mxu0 0
    %2114 = vmatprep.subr.bf16.mxu0 0
    %2115 = vmatpush1.bf16.msra.mxu0 0
    %2116 = vmatprep.subr.bf16.mxu0 0
    %2117 = vmatpush1.bf16.msra.mxu0 0
    %2118 = vmatprep.subr.bf16.mxu0 0
    %2119 = vmatpush1.bf16.msra.mxu0 0
    %2120 = vmatprep.subr.bf16.mxu0 0
    %2121 = vmatpush1.bf16.msra.mxu0 0
    %2122 = vmatprep.subr.bf16.mxu0 0
    %2123 = vmatpush1.bf16.msra.mxu0 0
    %2124 = vmatprep.subr.bf16.mxu0 0
    %2125 = vmatpush1.bf16.msra.mxu0 0
    %2126 = vmatprep.subr.bf16.mxu0 0
    %2127 = vmatpush1.bf16.msra.mxu0 0
    %2128 = vmatprep.subr.bf16.mxu0 0
    %2129 = vmatpush1.bf16.msra.mxu0 0
    %2130 = vmatprep.subr.bf16.mxu0 0
    %2131 = vmatpush1.bf16.msra.mxu0 0
    %2132 = vmatprep.subr.bf16.mxu0 0
    %2133 = vmatpush1.bf16.msra.mxu0 0
    %2134 = vmatprep.subr.bf16.mxu0 0
    %2135 = vmatpush1.bf16.msra.mxu0 0
    %2136 = vmatprep.subr.bf16.mxu0 0
    %2137 = vmatpush1.bf16.msra.mxu0 0
    %2138 = vmatprep.subr.bf16.mxu0 0
    %2139 = vmatpush1.bf16.msra.mxu0 0
    %2140 = vmatprep.subr.bf16.mxu0 0
    %2141 = vmatpush1.bf16.msra.mxu0 0
    %2142 = vmatprep.mubr.bf16.mxu0 0
    %2143 = vmatmul.mubr.bf16.gmra.mrb[0].mxu0 %v2105
    %v2144 = vpop.f32.mrb[0].mxu0
    %v2145 = vadd.f32 0.0, %v2144
    %v2146 = vpop.f32.mrb[0].mxu0
    %v2147 = vpop.f32.mrb[0].mxu0
    %v2148 = vpop.f32.mrb[0].mxu0
    %2149 = vdwg.mxu0
    %v2151 = vsel %vm1634, %v1818, 0
    %v2154 = vsel %vm1830, %v888, 0
    %2156 = vmatprep.subr.bf16.mxu0 0
    %2157 = vmatpush1.bf16.msra.mxu0 %v2154
    %2158 = vmatprep.subr.bf16.mxu0 0
    %2159 = vmatpush1.bf16.msra.mxu0 0
    %2160 = vmatprep.subr.bf16.mxu0 0
    %2161 = vmatpush1.bf16.msra.mxu0 0
    %2162 = vmatprep.subr.bf16.mxu0 0
    %2163 = vmatpush1.bf16.msra.mxu0 0
    %2164 = vmatprep.subr.bf16.mxu0 0
    %2165 = vmatpush1.bf16.msra.mxu0 0
    %2166 = vmatprep.subr.bf16.mxu0 0
    %2167 = vmatpush1.bf16.msra.mxu0 0
    %2168 = vmatprep.subr.bf16.mxu0 0
    %2169 = vmatpush1.bf16.msra.mxu0 0
    %2170 = vmatprep.subr.bf16.mxu0 0
    %2171 = vmatpush1.bf16.msra.mxu0 0
    %2172 = vmatprep.subr.bf16.mxu0 0
    %2173 = vmatpush1.bf16.msra.mxu0 0
    %2174 = vmatprep.subr.bf16.mxu0 0
    %2175 = vmatpush1.bf16.msra.mxu0 0
    %2176 = vmatprep.subr.bf16.mxu0 0
    %2177 = vmatpush1.bf16.msra.mxu0 0
    %2178 = vmatprep.subr.bf16.mxu0 0
    %2179 = vmatpush1.bf16.msra.mxu0 0
    %2180 = vmatprep.subr.bf16.mxu0 0
    %2181 = vmatpush1.bf16.msra.mxu0 0
    %2182 = vmatprep.subr.bf16.mxu0 0
    %2183 = vmatpush1.bf16.msra.mxu0 0
    %2184 = vmatprep.subr.bf16.mxu0 0
    %2185 = vmatpush1.bf16.msra.mxu0 0
    %2186 = vmatprep.subr.bf16.mxu0 0
    %2187 = vmatpush1.bf16.msra.mxu0 0
    %2188 = vmatprep.mubr.bf16.mxu0 0
    %2189 = vmatmul.mubr.bf16.gmra.mrb[0].mxu0 %v2151
    %v2190 = vpop.f32.mrb[0].mxu0
    %v2191 = vadd.f32 0.0, %v2190
    %v2192 = vpop.f32.mrb[0].mxu0
    %v2193 = vpop.f32.mrb[0].mxu0
    %v2194 = vpop.f32.mrb[0].mxu0
    %2195 = vdwg.mxu0
    %v2197 = vsel %vm1634, %v1819, 0
    %v2200 = vsel %vm1830, %v889, 0
    %2202 = vmatprep.subr.bf16.mxu0 0
    %2203 = vmatpush1.bf16.msra.mxu0 %v2200
    %2204 = vmatprep.subr.bf16.mxu0 0
    %2205 = vmatpush1.bf16.msra.mxu0 0
    %2206 = vmatprep.subr.bf16.mxu0 0
    %2207 = vmatpush1.bf16.msra.mxu0 0
    %2208 = vmatprep.subr.bf16.mxu0 0
    %2209 = vmatpush1.bf16.msra.mxu0 0
    %2210 = vmatprep.subr.bf16.mxu0 0
    %2211 = vmatpush1.bf16.msra.mxu0 0
    %2212 = vmatprep.subr.bf16.mxu0 0
    %2213 = vmatpush1.bf16.msra.mxu0 0
    %2214 = vmatprep.subr.bf16.mxu0 0
    %2215 = vmatpush1.bf16.msra.mxu0 0
    %2216 = vmatprep.subr.bf16.mxu0 0
    %2217 = vmatpush1.bf16.msra.mxu0 0
    %2218 = vmatprep.subr.bf16.mxu0 0
    %2219 = vmatpush1.bf16.msra.mxu0 0
    %2220 = vmatprep.subr.bf16.mxu0 0
    %2221 = vmatpush1.bf16.msra.mxu0 0
    %2222 = vmatprep.subr.bf16.mxu0 0
    %2223 = vmatpush1.bf16.msra.mxu0 0
    %2224 = vmatprep.subr.bf16.mxu0 0
    %2225 = vmatpush1.bf16.msra.mxu0 0
    %2226 = vmatprep.subr.bf16.mxu0 0
    %2227 = vmatpush1.bf16.msra.mxu0 0
    %2228 = vmatprep.subr.bf16.mxu0 0
    %2229 = vmatpush1.bf16.msra.mxu0 0
    %2230 = vmatprep.subr.bf16.mxu0 0
    %2231 = vmatpush1.bf16.msra.mxu0 0
    %2232 = vmatprep.subr.bf16.mxu0 0
    %2233 = vmatpush1.bf16.msra.mxu0 0
    %2234 = vmatprep.mubr.bf16.mxu0 0
    %2235 = vmatmul.mubr.bf16.gmra.mrb[0].mxu0 %v2197
    %v2236 = vpop.f32.mrb[0].mxu0
    %v2237 = vadd.f32 0.0, %v2236
    %v2238 = vpop.f32.mrb[0].mxu0
    %v2239 = vpop.f32.mrb[0].mxu0
    %v2240 = vpop.f32.mrb[0].mxu0
    %2241 = vdwg.mxu0
    %v2243 = vsel %vm1634, %v1820, 0
    %v2246 = vsel %vm1830, %v890, 0
    %2248 = vmatprep.subr.bf16.mxu0 0
    %2249 = vmatpush1.bf16.msra.mxu0 %v2246
    %2250 = vmatprep.subr.bf16.mxu0 0
    %2251 = vmatpush1.bf16.msra.mxu0 0
    %2252 = vmatprep.subr.bf16.mxu0 0
    %2253 = vmatpush1.bf16.msra.mxu0 0
    %2254 = vmatprep.subr.bf16.mxu0 0
    %2255 = vmatpush1.bf16.msra.mxu0 0
    %2256 = vmatprep.subr.bf16.mxu0 0
    %2257 = vmatpush1.bf16.msra.mxu0 0
    %2258 = vmatprep.subr.bf16.mxu0 0
    %2259 = vmatpush1.bf16.msra.mxu0 0
    %2260 = vmatprep.subr.bf16.mxu0 0
    %2261 = vmatpush1.bf16.msra.mxu0 0
    %2262 = vmatprep.subr.bf16.mxu0 0
    %2263 = vmatpush1.bf16.msra.mxu0 0
    %2264 = vmatprep.subr.bf16.mxu0 0
    %2265 = vmatpush1.bf16.msra.mxu0 0
    %2266 = vmatprep.subr.bf16.mxu0 0
    %2267 = vmatpush1.bf16.msra.mxu0 0
    %2268 = vmatprep.subr.bf16.mxu0 0
    %2269 = vmatpush1.bf16.msra.mxu0 0
    %2270 = vmatprep.subr.bf16.mxu0 0
    %2271 = vmatpush1.bf16.msra.mxu0 0
    %2272 = vmatprep.subr.bf16.mxu0 0
    %2273 = vmatpush1.bf16.msra.mxu0 0
    %2274 = vmatprep.subr.bf16.mxu0 0
    %2275 = vmatpush1.bf16.msra.mxu0 0
    %2276 = vmatprep.subr.bf16.mxu0 0
    %2277 = vmatpush1.bf16.msra.mxu0 0
    %2278 = vmatprep.subr.bf16.mxu0 0
    %2279 = vmatpush1.bf16.msra.mxu0 0
    %2280 = vmatprep.mubr.bf16.mxu0 0
    %2281 = vmatmul.mubr.bf16.gmra.mrb[0].mxu0 %v2243
    %v2282 = vpop.f32.mrb[0].mxu0
    %v2283 = vadd.f32 0.0, %v2282
    %v2284 = vpop.f32.mrb[0].mxu0
    %v2285 = vpop.f32.mrb[0].mxu0
    %v2286 = vpop.f32.mrb[0].mxu0
    %2287 = vdwg.mxu0
    %v2289 = vsel %vm1634, %v1821, 0
    %v2292 = vsel %vm1830, %v891, 0
    %2294 = vmatprep.subr.bf16.mxu0 0
    %2295 = vmatpush1.bf16.msra.mxu0 %v2292
    %2296 = vmatprep.subr.bf16.mxu0 0
    %2297 = vmatpush1.bf16.msra.mxu0 0
    %2298 = vmatprep.subr.bf16.mxu0 0
    %2299 = vmatpush1.bf16.msra.mxu0 0
    %2300 = vmatprep.subr.bf16.mxu0 0
    %2301 = vmatpush1.bf16.msra.mxu0 0
    %2302 = vmatprep.subr.bf16.mxu0 0
    %2303 = vmatpush1.bf16.msra.mxu0 0
    %2304 = vmatprep.subr.bf16.mxu0 0
    %2305 = vmatpush1.bf16.msra.mxu0 0
    %2306 = vmatprep.subr.bf16.mxu0 0
    %2307 = vmatpush1.bf16.msra.mxu0 0
    %2308 = vmatprep.subr.bf16.mxu0 0
    %2309 = vmatpush1.bf16.msra.mxu0 0
    %2310 = vmatprep.subr.bf16.mxu0 0
    %2311 = vmatpush1.bf16.msra.mxu0 0
    %2312 = vmatprep.subr.bf16.mxu0 0
    %2313 = vmatpush1.bf16.msra.mxu0 0
    %2314 = vmatprep.subr.bf16.mxu0 0
    %2315 = vmatpush1.bf16.msra.mxu0 0
    %2316 = vmatprep.subr.bf16.mxu0 0
    %2317 = vmatpush1.bf16.msra.mxu0 0
    %2318 = vmatprep.subr.bf16.mxu0 0
    %2319 = vmatpush1.bf16.msra.mxu0 0
    %2320 = vmatprep.subr.bf16.mxu0 0
    %2321 = vmatpush1.bf16.msra.mxu0 0
    %2322 = vmatprep.subr.bf16.mxu0 0
    %2323 = vmatpush1.bf16.msra.mxu0 0
    %2324 = vmatprep.subr.bf16.mxu0 0
    %2325 = vmatpush1.bf16.msra.mxu0 0
    %2326 = vmatprep.mubr.bf16.mxu0 0
    %2327 = vmatmul.mubr.bf16.gmra.mrb[0].mxu0 %v2289
    %v2328 = vpop.f32.mrb[0].mxu0
    %v2329 = vadd.f32 0.0, %v2328
    %v2330 = vpop.f32.mrb[0].mxu0
    %v2331 = vpop.f32.mrb[0].mxu0
    %v2332 = vpop.f32.mrb[0].mxu0
    %2333 = vdwg.mxu0
    %v2335 = vsel %vm1634, %v1822, 0
    %v2338 = vsel %vm1830, %v892, 0
    %2340 = vmatprep.subr.bf16.mxu0 0
    %2341 = vmatpush1.bf16.msra.mxu0 %v2338
    %2342 = vmatprep.subr.bf16.mxu0 0
    %2343 = vmatpush1.bf16.msra.mxu0 0
    %2344 = vmatprep.subr.bf16.mxu0 0
    %2345 = vmatpush1.bf16.msra.mxu0 0
    %2346 = vmatprep.subr.bf16.mxu0 0
    %2347 = vmatpush1.bf16.msra.mxu0 0
    %2348 = vmatprep.subr.bf16.mxu0 0
    %2349 = vmatpush1.bf16.msra.mxu0 0
    %2350 = vmatprep.subr.bf16.mxu0 0
    %2351 = vmatpush1.bf16.msra.mxu0 0
    %2352 = vmatprep.subr.bf16.mxu0 0
    %2353 = vmatpush1.bf16.msra.mxu0 0
    %2354 = vmatprep.subr.bf16.mxu0 0
    %2355 = vmatpush1.bf16.msra.mxu0 0
    %2356 = vmatprep.subr.bf16.mxu0 0
    %2357 = vmatpush1.bf16.msra.mxu0 0
    %2358 = vmatprep.subr.bf16.mxu0 0
    %2359 = vmatpush1.bf16.msra.mxu0 0
    %2360 = vmatprep.subr.bf16.mxu0 0
    %2361 = vmatpush1.bf16.msra.mxu0 0
    %2362 = vmatprep.subr.bf16.mxu0 0
    %2363 = vmatpush1.bf16.msra.mxu0 0
    %2364 = vmatprep.subr.bf16.mxu0 0
    %2365 = vmatpush1.bf16.msra.mxu0 0
    %2366 = vmatprep.subr.bf16.mxu0 0
    %2367 = vmatpush1.bf16.msra.mxu0 0
    %2368 = vmatprep.subr.bf16.mxu0 0
    %2369 = vmatpush1.bf16.msra.mxu0 0
    %2370 = vmatprep.subr.bf16.mxu0 0
    %2371 = vmatpush1.bf16.msra.mxu0 0
    %2372 = vmatprep.mubr.bf16.mxu0 0
    %2373 = vmatmul.mubr.bf16.gmra.mrb[0].mxu0 %v2335
    %v2374 = vpop.f32.mrb[0].mxu0
    %v2375 = vadd.f32 0.0, %v2374
    %v2376 = vpop.f32.mrb[0].mxu0
    %v2377 = vpop.f32.mrb[0].mxu0
    %v2378 = vpop.f32.mrb[0].mxu0
    %2379 = vdwg.mxu0
    %v2381 = vsel %vm1634, %v1823, 0
    %v2384 = vsel %vm1830, %v893, 0
    %2386 = vmatprep.subr.bf16.mxu0 0
    %2387 = vmatpush1.bf16.msra.mxu0 %v2384
    %2388 = vmatprep.subr.bf16.mxu0 0
    %2389 = vmatpush1.bf16.msra.mxu0 0
    %2390 = vmatprep.subr.bf16.mxu0 0
    %2391 = vmatpush1.bf16.msra.mxu0 0
    %2392 = vmatprep.subr.bf16.mxu0 0
    %2393 = vmatpush1.bf16.msra.mxu0 0
    %2394 = vmatprep.subr.bf16.mxu0 0
    %2395 = vmatpush1.bf16.msra.mxu0 0
    %2396 = vmatprep.subr.bf16.mxu0 0
    %2397 = vmatpush1.bf16.msra.mxu0 0
    %2398 = vmatprep.subr.bf16.mxu0 0
    %2399 = vmatpush1.bf16.msra.mxu0 0
    %2400 = vmatprep.subr.bf16.mxu0 0
    %2401 = vmatpush1.bf16.msra.mxu0 0
    %2402 = vmatprep.subr.bf16.mxu0 0
    %2403 = vmatpush1.bf16.msra.mxu0 0
    %2404 = vmatprep.subr.bf16.mxu0 0
    %2405 = vmatpush1.bf16.msra.mxu0 0
    %2406 = vmatprep.subr.bf16.mxu0 0
    %2407 = vmatpush1.bf16.msra.mxu0 0
    %2408 = vmatprep.subr.bf16.mxu0 0
    %2409 = vmatpush1.bf16.msra.mxu0 0
    %2410 = vmatprep.subr.bf16.mxu0 0
    %2411 = vmatpush1.bf16.msra.mxu0 0
    %2412 = vmatprep.subr.bf16.mxu0 0
    %2413 = vmatpush1.bf16.msra.mxu0 0
    %2414 = vmatprep.subr.bf16.mxu0 0
    %2415 = vmatpush1.bf16.msra.mxu0 0
    %2416 = vmatprep.subr.bf16.mxu0 0
    %2417 = vmatpush1.bf16.msra.mxu0 0
    %2418 = vmatprep.mubr.bf16.mxu0 0
    %2419 = vmatmul.mubr.bf16.gmra.mrb[0].mxu0 %v2381
    %v2420 = vpop.f32.mrb[0].mxu0
    %v2421 = vadd.f32 0.0, %v2420
    %v2422 = vpop.f32.mrb[0].mxu0
    %v2423 = vpop.f32.mrb[0].mxu0
    %v2424 = vpop.f32.mrb[0].mxu0
    %2425 = vdwg.mxu0
    %v2427 = vsel %vm1634, %v1824, 0
    %v2430 = vsel %vm1830, %v894, 0
    %2432 = vmatprep.subr.bf16.mxu0 0
    %2433 = vmatpush1.bf16.msra.mxu0 %v2430
    %2434 = vmatprep.subr.bf16.mxu0 0
    %2435 = vmatpush1.bf16.msra.mxu0 0
    %2436 = vmatprep.subr.bf16.mxu0 0
    %2437 = vmatpush1.bf16.msra.mxu0 0
    %2438 = vmatprep.subr.bf16.mxu0 0
    %2439 = vmatpush1.bf16.msra.mxu0 0
    %2440 = vmatprep.subr.bf16.mxu0 0
    %2441 = vmatpush1.bf16.msra.mxu0 0
    %2442 = vmatprep.subr.bf16.mxu0 0
    %2443 = vmatpush1.bf16.msra.mxu0 0
    %2444 = vmatprep.subr.bf16.mxu0 0
    %2445 = vmatpush1.bf16.msra.mxu0 0
    %2446 = vmatprep.subr.bf16.mxu0 0
    %2447 = vmatpush1.bf16.msra.mxu0 0
    %2448 = vmatprep.subr.bf16.mxu0 0
    %2449 = vmatpush1.bf16.msra.mxu0 0
    %2450 = vmatprep.subr.bf16.mxu0 0
    %2451 = vmatpush1.bf16.msra.mxu0 0
    %2452 = vmatprep.subr.bf16.mxu0 0
    %2453 = vmatpush1.bf16.msra.mxu0 0
    %2454 = vmatprep.subr.bf16.mxu0 0
    %2455 = vmatpush1.bf16.msra.mxu0 0
    %2456 = vmatprep.subr.bf16.mxu0 0
    %2457 = vmatpush1.bf16.msra.mxu0 0
    %2458 = vmatprep.subr.bf16.mxu0 0
    %2459 = vmatpush1.bf16.msra.mxu0 0
    %2460 = vmatprep.subr.bf16.mxu0 0
    %2461 = vmatpush1.bf16.msra.mxu0 0
    %2462 = vmatprep.subr.bf16.mxu0 0
    %2463 = vmatpush1.bf16.msra.mxu0 0
    %2464 = vmatprep.mubr.bf16.mxu0 0
    %2465 = vmatmul.mubr.bf16.gmra.mrb[0].mxu0 %v2427
    %v2466 = vpop.f32.mrb[0].mxu0
    %v2467 = vadd.f32 0.0, %v2466
    %v2468 = vpop.f32.mrb[0].mxu0
    %v2469 = vpop.f32.mrb[0].mxu0
    %v2470 = vpop.f32.mrb[0].mxu0
    %2471 = vdwg.mxu0
    %v2473 = vsel %vm1634, %v1825, 0
    %v2476 = vsel %vm1830, %v895, 0
    %2478 = vmatprep.subr.bf16.mxu0 0
    %2479 = vmatpush1.bf16.msra.mxu0 %v2476
    %2480 = vmatprep.subr.bf16.mxu0 0
    %2481 = vmatpush1.bf16.msra.mxu0 0
    %2482 = vmatprep.subr.bf16.mxu0 0
    %2483 = vmatpush1.bf16.msra.mxu0 0
    %2484 = vmatprep.subr.bf16.mxu0 0
    %2485 = vmatpush1.bf16.msra.mxu0 0
    %2486 = vmatprep.subr.bf16.mxu0 0
    %2487 = vmatpush1.bf16.msra.mxu0 0
    %2488 = vmatprep.subr.bf16.mxu0 0
    %2489 = vmatpush1.bf16.msra.mxu0 0
    %2490 = vmatprep.subr.bf16.mxu0 0
    %2491 = vmatpush1.bf16.msra.mxu0 0
    %2492 = vmatprep.subr.bf16.mxu0 0
    %2493 = vmatpush1.bf16.msra.mxu0 0
    %2494 = vmatprep.subr.bf16.mxu0 0
    %2495 = vmatpush1.bf16.msra.mxu0 0
    %2496 = vmatprep.subr.bf16.mxu0 0
    %2497 = vmatpush1.bf16.msra.mxu0 0
    %2498 = vmatprep.subr.bf16.mxu0 0
    %2499 = vmatpush1.bf16.msra.mxu0 0
    %2500 = vmatprep.subr.bf16.mxu0 0
    %2501 = vmatpush1.bf16.msra.mxu0 0
    %2502 = vmatprep.subr.bf16.mxu0 0
    %2503 = vmatpush1.bf16.msra.mxu0 0
    %2504 = vmatprep.subr.bf16.mxu0 0
    %2505 = vmatpush1.bf16.msra.mxu0 0
    %2506 = vmatprep.subr.bf16.mxu0 0
    %2507 = vmatpush1.bf16.msra.mxu0 0
    %2508 = vmatprep.subr.bf16.mxu0 0
    %2509 = vmatpush1.bf16.msra.mxu0 0
    %2510 = vmatprep.mubr.bf16.mxu0 0
    %2511 = vmatmul.mubr.bf16.gmra.mrb[0].mxu0 %v2473
    %v2512 = vpop.f32.mrb[0].mxu0
    %v2513 = vadd.f32 0.0, %v2512
    %v2514 = vpop.f32.mrb[0].mxu0
    %v2515 = vpop.f32.mrb[0].mxu0
    %v2516 = vpop.f32.mrb[0].mxu0
    %2517 = vdwg.mxu0
    %v2519 = vsel %vm1634, %v1826, 0
    %v2522 = vsel %vm1830, %v896, 0
    %2524 = vmatprep.subr.bf16.mxu0 0
    %2525 = vmatpush1.bf16.msra.mxu0 %v2522
    %2526 = vmatprep.subr.bf16.mxu0 0
    %2527 = vmatpush1.bf16.msra.mxu0 0
    %2528 = vmatprep.subr.bf16.mxu0 0
    %2529 = vmatpush1.bf16.msra.mxu0 0
    %2530 = vmatprep.subr.bf16.mxu0 0
    %2531 = vmatpush1.bf16.msra.mxu0 0
    %2532 = vmatprep.subr.bf16.mxu0 0
    %2533 = vmatpush1.bf16.msra.mxu0 0
    %2534 = vmatprep.subr.bf16.mxu0 0
    %2535 = vmatpush1.bf16.msra.mxu0 0
    %2536 = vmatprep.subr.bf16.mxu0 0
    %2537 = vmatpush1.bf16.msra.mxu0 0
    %2538 = vmatprep.subr.bf16.mxu0 0
    %2539 = vmatpush1.bf16.msra.mxu0 0
    %2540 = vmatprep.subr.bf16.mxu0 0
    %2541 = vmatpush1.bf16.msra.mxu0 0
    %2542 = vmatprep.subr.bf16.mxu0 0
    %2543 = vmatpush1.bf16.msra.mxu0 0
    %2544 = vmatprep.subr.bf16.mxu0 0
    %2545 = vmatpush1.bf16.msra.mxu0 0
    %2546 = vmatprep.subr.bf16.mxu0 0
    %2547 = vmatpush1.bf16.msra.mxu0 0
    %2548 = vmatprep.subr.bf16.mxu0 0
    %2549 = vmatpush1.bf16.msra.mxu0 0
    %2550 = vmatprep.subr.bf16.mxu0 0
    %2551 = vmatpush1.bf16.msra.mxu0 0
    %2552 = vmatprep.subr.bf16.mxu0 0
    %2553 = vmatpush1.bf16.msra.mxu0 0
    %2554 = vmatprep.subr.bf16.mxu0 0
    %2555 = vmatpush1.bf16.msra.mxu0 0
    %2556 = vmatprep.mubr.bf16.mxu0 0
    %2557 = vmatmul.mubr.bf16.gmra.mrb[0].mxu0 %v2519
    %v2558 = vpop.f32.mrb[0].mxu0
    %v2559 = vadd.f32 0.0, %v2558
    %v2560 = vpop.f32.mrb[0].mxu0
    %v2561 = vpop.f32.mrb[0].mxu0
    %v2562 = vpop.f32.mrb[0].mxu0
    %2563 = vdwg.mxu0
    %2566 = vrot.lane.b32.xlu0 %v1961, 16
    %v2567 = vpop.permute.xlu0 %2566
    %2568 = vrot.lane.b32.xlu0 %v2007, 16
    %v2569 = vpop.permute.xlu0 %2568
    %2574 = vrot.lane.b32.xlu0 %v2053, 32
    %v2575 = vpop.permute.xlu0 %2574
    %2576 = vrot.lane.b32.xlu0 %v2099, 32
    %v2577 = vpop.permute.xlu0 %2576
    %2582 = vrot.lane.b32.xlu0 %v2145, 48
    %v2583 = vpop.permute.xlu0 %2582
    %2584 = vrot.lane.b32.xlu0 %v2191, 48
    %v2585 = vpop.permute.xlu0 %2584
    %2590 = vrot.lane.b32.xlu0 %v2237, 64
    %v2591 = vpop.permute.xlu0 %2590
    %2592 = vrot.lane.b32.xlu0 %v2283, 64
    %v2593 = vpop.permute.xlu0 %2592
    %2598 = vrot.lane.b32.xlu0 %v2329, 80
    %v2599 = vpop.permute.xlu0 %2598
    %2600 = vrot.lane.b32.xlu0 %v2375, 80
    %v2601 = vpop.permute.xlu0 %2600
    %2606 = vrot.lane.b32.xlu0 %v2421, 96
    %v2607 = vpop.permute.xlu0 %2606
    %2608 = vrot.lane.b32.xlu0 %v2467, 96
    %v2609 = vpop.permute.xlu0 %2608
    %2614 = vrot.lane.b32.xlu0 %v2513, 112
    %v2615 = vpop.permute.xlu0 %2614
    %2616 = vrot.lane.b32.xlu0 %v2559, 112
    %v2617 = vpop.permute.xlu0 %2616
    %v2620 = vsel %vm897, %v1869, %v2567
    %v2621 = vsel %vm897, %v1915, %v2569
    %v2622 = vsel %vm304, %v2620, %v2575
    %v2623 = vsel %vm304, %v2621, %v2577
    %vm2624 = vcmask 392192
    %v2625 = vsel %vm2624, %v2622, %v2583
    %v2626 = vsel %vm2624, %v2623, %v2585
    %vm2627 = vcmask 523264
    %v2628 = vsel %vm2627, %v2625, %v2591
    %v2629 = vsel %vm2627, %v2626, %v2593
    %vm2630 = vcmask 654336
    %v2631 = vsel %vm2630, %v2628, %v2599
    %v2632 = vsel %vm2630, %v2629, %v2601
    %vm2633 = vcmask 785408
    %v2634 = vsel %vm2633, %v2631, %v2607
    %v2635 = vsel %vm2633, %v2632, %v2609
    %vm2636 = vcmask 916480
    %v2637 = vsel %vm2636, %v2634, %v2615
    %v2638 = vsel %vm2636, %v2635, %v2617
    %v2639 = vpack.c.bf16 %v2638, %v2637
    %v2640 = vld [vmem:[#allocation14] sm:$0xf]
    %v2641 = vld [vmem:[#allocation14 + $0x4] sm:$0xf]
    %v2642 = vld [vmem:[#allocation14 + $0x8] sm:$0xf]
    %v2643 = vld [vmem:[#allocation14 + $0xc] sm:$0xf]
    %v2644 = vld [vmem:[#allocation14 + $0x10] sm:$0xf]
    %v2645 = vld [vmem:[#allocation14 + $0x14] sm:$0xf]
    %v2646 = vld [vmem:[#allocation14 + $0x18] sm:$0xf]
    %v2647 = vld [vmem:[#allocation14 + $0x1c] sm:$0xf]
    %v2648 = vld [vmem:[#allocation14 + $0x20] sm:$0xf]
    %v2649 = vld [vmem:[#allocation14 + $0x24] sm:$0xf]
    %v2650 = vld [vmem:[#allocation14 + $0x28] sm:$0xf]
    %v2651 = vld [vmem:[#allocation14 + $0x2c] sm:$0xf]
    %v2652 = vld [vmem:[#allocation14 + $0x30] sm:$0xf]
    %v2653 = vld [vmem:[#allocation14 + $0x34] sm:$0xf]
    %v2654 = vld [vmem:[#allocation14 + $0x38] sm:$0xf]
    %v2655 = vld [vmem:[#allocation14 + $0x3c] sm:$0xf]
    %v2656 = vld [vmem:[#allocation16] sm:$0x1]
    %v2657 = vlaneseq
    %v2658 = vshrl.u32 %v2657, 7
    %v2659 = vsub.s32 0, %v2658
    %v2660 = vrot.slane %v2656, %v2659
    %v2677 = vunpack.c.l.b16 %v2640
    %v2678 = vunpack.c.l.b16 %v2641
    %v2679 = vunpack.c.l.b16 %v2642
    %v2680 = vunpack.c.l.b16 %v2643
    %v2681 = vunpack.c.l.b16 %v2644
    %v2682 = vunpack.c.l.b16 %v2645
    %v2683 = vunpack.c.l.b16 %v2646
    %v2684 = vunpack.c.l.b16 %v2647
    %v2685 = vunpack.c.l.b16 %v2648
    %v2686 = vunpack.c.l.b16 %v2649
    %v2687 = vunpack.c.l.b16 %v2650
    %v2688 = vunpack.c.l.b16 %v2651
    %v2689 = vunpack.c.l.b16 %v2652
    %v2690 = vunpack.c.l.b16 %v2653
    %v2691 = vunpack.c.l.b16 %v2654
    %v2692 = vunpack.c.l.b16 %v2655
    %v2693 = vpack.c.b16 %v2678, %v2677
    %v2694 = vpack.c.b16 %v2680, %v2679
    %v2695 = vpack.c.b16 %v2682, %v2681
    %v2696 = vpack.c.b16 %v2684, %v2683
    %v2697 = vpack.c.b16 %v2686, %v2685
    %v2698 = vpack.c.b16 %v2688, %v2687
    %v2699 = vpack.c.b16 %v2690, %v2689
    %v2700 = vpack.c.b16 %v2692, %v2691
    %2709 = vmatprep.subr.bf16.mxu0 0
    %2710 = vmatpush1.bf16.msra.mxu0 %v2693
    %2711 = vmatprep.subr.bf16.mxu0 0
    %2712 = vmatpush1.bf16.msra.mxu0 %v2694
    %2713 = vmatprep.subr.bf16.mxu0 0
    %2714 = vmatpush1.bf16.msra.mxu0 %v2695
    %2715 = vmatprep.subr.bf16.mxu0 0
    %2716 = vmatpush1.bf16.msra.mxu0 %v2696
    %2717 = vmatprep.subr.bf16.mxu0 0
    %2718 = vmatpush1.bf16.msra.mxu0 %v2697
    %2719 = vmatprep.subr.bf16.mxu0 0
    %2720 = vmatpush1.bf16.msra.mxu0 %v2698
    %2721 = vmatprep.subr.bf16.mxu0 0
    %2722 = vmatpush1.bf16.msra.mxu0 %v2699
    %2723 = vmatprep.subr.bf16.mxu0 0
    %2724 = vmatpush1.bf16.msra.mxu0 %v2700
    %2725 = vmatprep.subr.bf16.mxu0 0
    %2726 = vmatpush1.bf16.msra.mxu0 0
    %2727 = vmatprep.subr.bf16.mxu0 0
    %2728 = vmatpush1.bf16.msra.mxu0 0
    %2729 = vmatprep.subr.bf16.mxu0 0
    %2730 = vmatpush1.bf16.msra.mxu0 0
    %2731 = vmatprep.subr.bf16.mxu0 0
    %2732 = vmatpush1.bf16.msra.mxu0 0
    %2733 = vmatprep.subr.bf16.mxu0 0
    %2734 = vmatpush1.bf16.msra.mxu0 0
    %2735 = vmatprep.subr.bf16.mxu0 0
    %2736 = vmatpush1.bf16.msra.mxu0 0
    %2737 = vmatprep.subr.bf16.mxu0 0
    %2738 = vmatpush1.bf16.msra.mxu0 0
    %2739 = vmatprep.subr.bf16.mxu0 0
    %2740 = vmatpush1.bf16.msra.mxu0 0
    %2741 = vmatprep.mubr.bf16.mxu0 0
    %2742 = vmatmul.mubr.bf16.gmra.mrb[0].mxu0 %v2639
    %v2743 = vpop.f32.mrb[0].mxu0
    %v2744 = vadd.f32 %v2660, %v2743
    %v2745 = vpop.f32.mrb[0].mxu0
    %v2746 = vpop.f32.mrb[0].mxu0
    %v2747 = vadd.f32 %v2660, %v2746
    %v2748 = vpop.f32.mrb[0].mxu0
    %2749 = vdwg.mxu0
    %v2750 = vadd.f32 %v378, %v2744
    %v2751 = vadd.f32 %v383, %v2747
    %v2752 = vld [vmem:[#allocation17] sm:$0x1]
    %v2753 = vld [vmem:[#allocation19] sm:$0x1]
    %2754 = vadd.xlane.f32.xlu0 %v2750
    %v2755 = vpop.xlane.xlu0 %2754
    %2756 = vadd.xlane.f32.xlu0 %v2751
    %v2757 = vpop.xlane.xlu0 %2756
    %v2758 = vrcp.pop 128.0
    %v2759 = vmul.f32 %v2755, %v2758
    %v2760 = vmul.f32 %v2757, %v2758
    %v2761 = vmul.f32 %v2750, %v2750
    %v2762 = vmul.f32 %v2751, %v2751
    %2763 = vadd.xlane.f32.xlu0 %v2761
    %v2764 = vpop.xlane.xlu0 %2763
    %2765 = vadd.xlane.f32.xlu0 %v2762
    %v2766 = vpop.xlane.xlu0 %2765
    %v2767 = vmul.f32 %v2764, %v2758
    %v2768 = vmul.f32 %v2766, %v2758
    %v2769 = vmul.f32 %v2759, %v2759
    %v2770 = vmul.f32 %v2760, %v2760
    %v2771 = vsub.f32 %v2767, %v2769
    %v2772 = vsub.f32 %v2768, %v2770
    %v2773 = vsub.f32 %v2750, %v2759
    %v2774 = vsub.f32 %v2751, %v2760
    %v2775 = vadd.f32 %v2771, 1e-05
    %v2776 = vadd.f32 %v2772, 1e-05
    %v2777 = vrsqrt.pop %v2775
    %v2778 = vrsqrt.pop %v2776
    %v2779 = vmul.f32 %v2773, %v2777
    %v2780 = vmul.f32 %v2774, %v2778
    %v2781 = vlaneseq
    %v2782 = vshrl.u32 %v2781, 7
    %v2783 = vsub.s32 0, %v2782
    %v2784 = vrot.slane %v2752, %v2783
    %v2785 = vmul.f32 %v2779, %v2784
    %v2786 = vmul.f32 %v2780, %v2784
    %v2787 = vlaneseq
    %v2788 = vshrl.u32 %v2787, 7
    %v2789 = vsub.s32 0, %v2788
    %v2790 = vrot.slane %v2753, %v2789
    %v2791 = vadd.f32 %v2785, %v2790
    %v2792 = vadd.f32 %v2786, %v2790
    %v2793 = vpack.c.bf16 %v2792, %v2791
    %v2794 = vld [vmem:[#allocation20] sm:$0xff]
    %v2795 = vld [vmem:[#allocation20 + $0x8] sm:$0xff]
    %v2796 = vld [vmem:[#allocation20 + $0x10] sm:$0xff]
    %v2797 = vld [vmem:[#allocation20 + $0x18] sm:$0xff]
    %v2798 = vld [vmem:[#allocation20 + $0x20] sm:$0xff]
    %v2799 = vld [vmem:[#allocation20 + $0x28] sm:$0xff]
    %v2800 = vld [vmem:[#allocation20 + $0x30] sm:$0xff]
    %v2801 = vld [vmem:[#allocation20 + $0x38] sm:$0xff]
    %v2802 = vld [vmem:[#allocation20 + $0x40] sm:$0xff]
    %v2803 = vld [vmem:[#allocation20 + $0x48] sm:$0xff]
    %v2804 = vld [vmem:[#allocation20 + $0x50] sm:$0xff]
    %v2805 = vld [vmem:[#allocation20 + $0x58] sm:$0xff]
    %v2806 = vld [vmem:[#allocation20 + $0x60] sm:$0xff]
    %v2807 = vld [vmem:[#allocation20 + $0x68] sm:$0xff]
    %v2808 = vld [vmem:[#allocation20 + $0x70] sm:$0xff]
    %v2809 = vld [vmem:[#allocation20 + $0x78] sm:$0xff]
    %v2810 = vld [vmem:[#allocation22] ss:$4 sm:$0x3]
    %v2812 = vlaneseq
    %v2813 = vshrl.u32 %v2812, 7
    %v2814 = vsub.s32 0, %v2813
    %v2815 = vrot.slane %v2810, %v2814
    %v2816 = vlaneseq
    %v2817 = vshrl.u32 %v2816, 7
    %v2818 = vsub.s32 1, %v2817
    %v2819 = vrot.slane %v2810, %v2818
    %v2838 = vunpack.c.l.b16 %v2794
    %v2839 = vunpack.c.h.b16 %v2794
    %v2840 = vunpack.c.l.b16 %v2795
    %v2841 = vunpack.c.h.b16 %v2795
    %v2842 = vunpack.c.l.b16 %v2796
    %v2843 = vunpack.c.h.b16 %v2796
    %v2844 = vunpack.c.l.b16 %v2797
    %v2845 = vunpack.c.h.b16 %v2797
    %v2846 = vunpack.c.l.b16 %v2798
    %v2847 = vunpack.c.h.b16 %v2798
    %v2848 = vunpack.c.l.b16 %v2799
    %v2849 = vunpack.c.h.b16 %v2799
    %v2850 = vunpack.c.l.b16 %v2800
    %v2851 = vunpack.c.h.b16 %v2800
    %v2852 = vunpack.c.l.b16 %v2801
    %v2853 = vunpack.c.h.b16 %v2801
    %v2854 = vunpack.c.l.b16 %v2802
    %v2855 = vunpack.c.h.b16 %v2802
    %v2856 = vunpack.c.l.b16 %v2803
    %v2857 = vunpack.c.h.b16 %v2803
    %v2858 = vunpack.c.l.b16 %v2804
    %v2859 = vunpack.c.h.b16 %v2804
    %v2860 = vunpack.c.l.b16 %v2805
    %v2861 = vunpack.c.h.b16 %v2805
    %v2862 = vunpack.c.l.b16 %v2806
    %v2863 = vunpack.c.h.b16 %v2806
    %v2864 = vunpack.c.l.b16 %v2807
    %v2865 = vunpack.c.h.b16 %v2807
    %v2866 = vunpack.c.l.b16 %v2808
    %v2867 = vunpack.c.h.b16 %v2808
    %v2868 = vunpack.c.l.b16 %v2809
    %v2869 = vunpack.c.h.b16 %v2809
    %v2870 = vpack.c.b16 %v2840, %v2838
    %v2871 = vpack.c.b16 %v2841, %v2839
    %v2872 = vpack.c.b16 %v2844, %v2842
    %v2873 = vpack.c.b16 %v2845, %v2843
    %v2874 = vpack.c.b16 %v2848, %v2846
    %v2875 = vpack.c.b16 %v2849, %v2847
    %v2876 = vpack.c.b16 %v2852, %v2850
    %v2877 = vpack.c.b16 %v2853, %v2851
    %v2878 = vpack.c.b16 %v2856, %v2854
    %v2879 = vpack.c.b16 %v2857, %v2855
    %v2880 = vpack.c.b16 %v2860, %v2858
    %v2881 = vpack.c.b16 %v2861, %v2859
    %v2882 = vpack.c.b16 %v2864, %v2862
    %v2883 = vpack.c.b16 %v2865, %v2863
    %v2884 = vpack.c.b16 %v2868, %v2866
    %v2885 = vpack.c.b16 %v2869, %v2867
    %2902 = vmatprep.subr.bf16.mxu0 %v2871
    %2903 = vmatpush1.bf16.msra.mxu0 %v2870
    %2904 = vmatprep.subr.bf16.mxu0 %v2873
    %2905 = vmatpush1.bf16.msra.mxu0 %v2872
    %2906 = vmatprep.subr.bf16.mxu0 %v2875
    %2907 = vmatpush1.bf16.msra.mxu0 %v2874
    %2908 = vmatprep.subr.bf16.mxu0 %v2877
    %2909 = vmatpush1.bf16.msra.mxu0 %v2876
    %2910 = vmatprep.subr.bf16.mxu0 %v2879
    %2911 = vmatpush1.bf16.msra.mxu0 %v2878
    %2912 = vmatprep.subr.bf16.mxu0 %v2881
    %2913 = vmatpush1.bf16.msra.mxu0 %v2880
    %2914 = vmatprep.subr.bf16.mxu0 %v2883
    %2915 = vmatpush1.bf16.msra.mxu0 %v2882
    %2916 = vmatprep.subr.bf16.mxu0 %v2885
    %2917 = vmatpush1.bf16.msra.mxu0 %v2884
    %2918 = vmatprep.subr.bf16.mxu0 0
    %2919 = vmatpush1.bf16.msra.mxu0 0
    %2920 = vmatprep.subr.bf16.mxu0 0
    %2921 = vmatpush1.bf16.msra.mxu0 0
    %2922 = vmatprep.subr.bf16.mxu0 0
    %2923 = vmatpush1.bf16.msra.mxu0 0
    %2924 = vmatprep.subr.bf16.mxu0 0
    %2925 = vmatpush1.bf16.msra.mxu0 0
    %2926 = vmatprep.subr.bf16.mxu0 0
    %2927 = vmatpush1.bf16.msra.mxu0 0
    %2928 = vmatprep.subr.bf16.mxu0 0
    %2929 = vmatpush1.bf16.msra.mxu0 0
    %2930 = vmatprep.subr.bf16.mxu0 0
    %2931 = vmatpush1.bf16.msra.mxu0 0
    %2932 = vmatprep.subr.bf16.mxu0 0
    %2933 = vmatpush1.bf16.msra.mxu0 0
    %2934 = vmatprep.mubr.bf16.mxu0 0
    %2935 = vmatmul.mubr.bf16.gmra.mrb[0].mxu0 %v2793
    %v2936 = vpop.f32.mrb[0].mxu0
    %v2937 = vadd.f32 %v2815, %v2936
    %v2938 = vpop.f32.mrb[0].mxu0
    %v2939 = vadd.f32 %v2819, %v2938
    %v2940 = vpop.f32.mrb[0].mxu0
    %v2941 = vadd.f32 %v2815, %v2940
    %v2942 = vpop.f32.mrb[0].mxu0
    %v2943 = vadd.f32 %v2819, %v2942
    %2944 = vdwg.mxu0
    %v2945 = vmax.f32 %v2937, 0.0
    %v2946 = vmax.f32 %v2939, 0.0
    %v2947 = vmax.f32 %v2941, 0.0
    %v2948 = vmax.f32 %v2943, 0.0
    %v2949 = vpack.c.bf16 %v2947, %v2945
    %v2950 = vpack.c.bf16 %v2948, %v2946
    %v2951 = vld [vmem:[#allocation23] sm:$0xf]
    %v2952 = vld [vmem:[#allocation23 + $0x4] sm:$0xf]
    %v2953 = vld [vmem:[#allocation23 + $0x8] sm:$0xf]
    %v2954 = vld [vmem:[#allocation23 + $0xc] sm:$0xf]
    %v2955 = vld [vmem:[#allocation23 + $0x10] sm:$0xf]
    %v2956 = vld [vmem:[#allocation23 + $0x14] sm:$0xf]
    %v2957 = vld [vmem:[#allocation23 + $0x18] sm:$0xf]
    %v2958 = vld [vmem:[#allocation23 + $0x1c] sm:$0xf]
    %v2959 = vld [vmem:[#allocation23 + $0x20] sm:$0xf]
    %v2960 = vld [vmem:[#allocation23 + $0x24] sm:$0xf]
    %v2961 = vld [vmem:[#allocation23 + $0x28] sm:$0xf]
    %v2962 = vld [vmem:[#allocation23 + $0x2c] sm:$0xf]
    %v2963 = vld [vmem:[#allocation23 + $0x30] sm:$0xf]
    %v2964 = vld [vmem:[#allocation23 + $0x34] sm:$0xf]
    %v2965 = vld [vmem:[#allocation23 + $0x38] sm:$0xf]
    %v2966 = vld [vmem:[#allocation23 + $0x3c] sm:$0xf]
    %v2967 = vld [vmem:[#allocation23 + $0x40] sm:$0xf]
    %v2968 = vld [vmem:[#allocation23 + $0x44] sm:$0xf]
    %v2969 = vld [vmem:[#allocation23 + $0x48] sm:$0xf]
    %v2970 = vld [vmem:[#allocation23 + $0x4c] sm:$0xf]
    %v2971 = vld [vmem:[#allocation23 + $0x50] sm:$0xf]
    %v2972 = vld [vmem:[#allocation23 + $0x54] sm:$0xf]
    %v2973 = vld [vmem:[#allocation23 + $0x58] sm:$0xf]
    %v2974 = vld [vmem:[#allocation23 + $0x5c] sm:$0xf]
    %v2975 = vld [vmem:[#allocation23 + $0x60] sm:$0xf]
    %v2976 = vld [vmem:[#allocation23 + $0x64] sm:$0xf]
    %v2977 = vld [vmem:[#allocation23 + $0x68] sm:$0xf]
    %v2978 = vld [vmem:[#allocation23 + $0x6c] sm:$0xf]
    %v2979 = vld [vmem:[#allocation23 + $0x70] sm:$0xf]
    %v2980 = vld [vmem:[#allocation23 + $0x74] sm:$0xf]
    %v2981 = vld [vmem:[#allocation23 + $0x78] sm:$0xf]
    %v2982 = vld [vmem:[#allocation23 + $0x7c] sm:$0xf]
    %v2983 = vld [vmem:[#allocation25] sm:$0x1]
    %v2984 = vlaneseq
    %v2985 = vshrl.u32 %v2984, 7
    %v2986 = vsub.s32 0, %v2985
    %v2987 = vrot.slane %v2983, %v2986
    %v3020 = vunpack.c.l.b16 %v2951
    %v3021 = vunpack.c.l.b16 %v2952
    %v3022 = vunpack.c.l.b16 %v2953
    %v3023 = vunpack.c.l.b16 %v2954
    %v3024 = vunpack.c.l.b16 %v2955
    %v3025 = vunpack.c.l.b16 %v2956
    %v3026 = vunpack.c.l.b16 %v2957
    %v3027 = vunpack.c.l.b16 %v2958
    %v3028 = vunpack.c.l.b16 %v2959
    %v3029 = vunpack.c.l.b16 %v2960
    %v3030 = vunpack.c.l.b16 %v2961
    %v3031 = vunpack.c.l.b16 %v2962
    %v3032 = vunpack.c.l.b16 %v2963
    %v3033 = vunpack.c.l.b16 %v2964
    %v3034 = vunpack.c.l.b16 %v2965
    %v3035 = vunpack.c.l.b16 %v2966
    %v3036 = vunpack.c.l.b16 %v2967
    %v3037 = vunpack.c.l.b16 %v2968
    %v3038 = vunpack.c.l.b16 %v2969
    %v3039 = vunpack.c.l.b16 %v2970
    %v3040 = vunpack.c.l.b16 %v2971
    %v3041 = vunpack.c.l.b16 %v2972
    %v3042 = vunpack.c.l.b16 %v2973
    %v3043 = vunpack.c.l.b16 %v2974
    %v3044 = vunpack.c.l.b16 %v2975
    %v3045 = vunpack.c.l.b16 %v2976
    %v3046 = vunpack.c.l.b16 %v2977
    %v3047 = vunpack.c.l.b16 %v2978
    %v3048 = vunpack.c.l.b16 %v2979
    %v3049 = vunpack.c.l.b16 %v2980
    %v3050 = vunpack.c.l.b16 %v2981
    %v3051 = vunpack.c.l.b16 %v2982
    %v3052 = vpack.c.b16 %v3021, %v3020
    %v3053 = vpack.c.b16 %v3023, %v3022
    %v3054 = vpack.c.b16 %v3025, %v3024
    %v3055 = vpack.c.b16 %v3027, %v3026
    %v3056 = vpack.c.b16 %v3029, %v3028
    %v3057 = vpack.c.b16 %v3031, %v3030
    %v3058 = vpack.c.b16 %v3033, %v3032
    %v3059 = vpack.c.b16 %v3035, %v3034
    %v3060 = vpack.c.b16 %v3037, %v3036
    %v3061 = vpack.c.b16 %v3039, %v3038
    %v3062 = vpack.c.b16 %v3041, %v3040
    %v3063 = vpack.c.b16 %v3043, %v3042
    %v3064 = vpack.c.b16 %v3045, %v3044
    %v3065 = vpack.c.b16 %v3047, %v3046
    %v3066 = vpack.c.b16 %v3049, %v3048
    %v3067 = vpack.c.b16 %v3051, %v3050
    %3084 = vmatprep.subr.bf16.mxu0 0
    %3085 = vmatpush1.bf16.msra.mxu0 %v3052
    %3086 = vmatprep.subr.bf16.mxu0 0
    %3087 = vmatpush1.bf16.msra.mxu0 %v3053
    %3088 = vmatprep.subr.bf16.mxu0 0
    %3089 = vmatpush1.bf16.msra.mxu0 %v3054
    %3090 = vmatprep.subr.bf16.mxu0 0
    %3091 = vmatpush1.bf16.msra.mxu0 %v3055
    %3092 = vmatprep.subr.bf16.mxu0 0
    %3093 = vmatpush1.bf16.msra.mxu0 %v3056
    %3094 = vmatprep.subr.bf16.mxu0 0
    %3095 = vmatpush1.bf16.msra.mxu0 %v3057
    %3096 = vmatprep.subr.bf16.mxu0 0
    %3097 = vmatpush1.bf16.msra.mxu0 %v3058
    %3098 = vmatprep.subr.bf16.mxu0 0
    %3099 = vmatpush1.bf16.msra.mxu0 %v3059
    %3100 = vmatprep.subr.bf16.mxu0 0
    %3101 = vmatpush1.bf16.msra.mxu0 %v3060
    %3102 = vmatprep.subr.bf16.mxu0 0
    %3103 = vmatpush1.bf16.msra.mxu0 %v3061
    %3104 = vmatprep.subr.bf16.mxu0 0
    %3105 = vmatpush1.bf16.msra.mxu0 %v3062
    %3106 = vmatprep.subr.bf16.mxu0 0
    %3107 = vmatpush1.bf16.msra.mxu0 %v3063
    %3108 = vmatprep.subr.bf16.mxu0 0
    %3109 = vmatpush1.bf16.msra.mxu0 %v3064
    %3110 = vmatprep.subr.bf16.mxu0 0
    %3111 = vmatpush1.bf16.msra.mxu0 %v3065
    %3112 = vmatprep.subr.bf16.mxu0 0
    %3113 = vmatpush1.bf16.msra.mxu0 %v3066
    %3114 = vmatprep.subr.bf16.mxu0 0
    %3115 = vmatpush1.bf16.msra.mxu0 %v3067
    %3116 = vmatprep.mubr.bf16.mxu0 %v2950
    %3117 = vmatmul.mubr.bf16.gmra.mrb[0].mxu0 %v2949
    %v3118 = vpop.f32.mrb[0].mxu0
    %v3119 = vadd.f32 %v2987, %v3118
    %v3120 = vpop.f32.mrb[0].mxu0
    %v3121 = vpop.f32.mrb[0].mxu0
    %v3122 = vadd.f32 %v2987, %v3121
    %v3123 = vpop.f32.mrb[0].mxu0
    %3124 = vdwg.mxu0
    %v3125 = vadd.f32 %v2791, %v3119
    %v3126 = vadd.f32 %v2792, %v3122
    %v3127 = vld [vmem:[#allocation26] sm:$0x1]
    %v3128 = vld [vmem:[#allocation28] sm:$0x1]
    %3129 = vadd.xlane.f32.xlu0 %v3125
    %v3130 = vpop.xlane.xlu0 %3129
    %3131 = vadd.xlane.f32.xlu0 %v3126
    %v3132 = vpop.xlane.xlu0 %3131
    %v3133 = vmul.f32 %v3130, %v2758
    %v3134 = vmul.f32 %v3132, %v2758
    %v3135 = vmul.f32 %v3125, %v3125
    %v3136 = vmul.f32 %v3126, %v3126
    %3137 = vadd.xlane.f32.xlu0 %v3135
    %v3138 = vpop.xlane.xlu0 %3137
    %3139 = vadd.xlane.f32.xlu0 %v3136
    %v3140 = vpop.xlane.xlu0 %3139
    %v3141 = vmul.f32 %v3138, %v2758
    %v3142 = vmul.f32 %v3140, %v2758
    %v3143 = vmul.f32 %v3133, %v3133
    %v3144 = vmul.f32 %v3134, %v3134
    %v3145 = vsub.f32 %v3141, %v3143
    %v3146 = vsub.f32 %v3142, %v3144
    %v3147 = vsub.f32 %v3125, %v3133
    %v3148 = vsub.f32 %v3126, %v3134
    %v3149 = vadd.f32 %v3145, 1e-05
    %v3150 = vadd.f32 %v3146, 1e-05
    %v3151 = vrsqrt.pop %v3149
    %v3152 = vrsqrt.pop %v3150
    %v3153 = vmul.f32 %v3147, %v3151
    %v3154 = vmul.f32 %v3148, %v3152
    %v3155 = vlaneseq
    %v3156 = vshrl.u32 %v3155, 7
    %v3157 = vsub.s32 0, %v3156
    %v3158 = vrot.slane %v3127, %v3157
    %v3159 = vmul.f32 %v3153, %v3158
    %v3160 = vmul.f32 %v3154, %v3158
    %v3161 = vlaneseq
    %v3162 = vshrl.u32 %v3161, 7
    %v3163 = vsub.s32 0, %v3162
    %v3164 = vrot.slane %v3128, %v3163
    %v3165 = vadd.f32 %v3159, %v3164
    %v3166 = vadd.f32 %v3160, %v3164
    %v3167 = vpack.c.bf16 %v3166, %v3165
    %s3168 = scalar_lea.vmem [#allocation7], 64
    %v3169 = vld [vmem:[%s3168] sm:$0xf]
    %v3170 = vld [vmem:[%s3168 + $0x4] sm:$0xf]
    %v3171 = vld [vmem:[%s3168 + $0x8] sm:$0xf]
    %v3172 = vld [vmem:[%s3168 + $0xc] sm:$0xf]
    %v3173 = vld [vmem:[%s3168 + $0x10] sm:$0xf]
    %v3174 = vld [vmem:[%s3168 + $0x14] sm:$0xf]
    %v3175 = vld [vmem:[%s3168 + $0x18] sm:$0xf]
    %v3176 = vld [vmem:[%s3168 + $0x1c] sm:$0xf]
    %v3177 = vld [vmem:[%s3168 + $0x20] sm:$0xf]
    %v3178 = vld [vmem:[%s3168 + $0x24] sm:$0xf]
    %v3179 = vld [vmem:[%s3168 + $0x28] sm:$0xf]
    %v3180 = vld [vmem:[%s3168 + $0x2c] sm:$0xf]
    %v3181 = vld [vmem:[%s3168 + $0x30] sm:$0xf]
    %v3182 = vld [vmem:[%s3168 + $0x34] sm:$0xf]
    %v3183 = vld [vmem:[%s3168 + $0x38] sm:$0xf]
    %v3184 = vld [vmem:[%s3168 + $0x3c] sm:$0xf]
    %v3185 = vld [vmem:[%s3 + $0x1] sm:$0x1]
    %v3186 = vlaneseq
    %v3187 = vshrl.u32 %v3186, 7
    %v3188 = vsub.s32 0, %v3187
    %v3189 = vrot.slane %v3185, %v3188
    %v3206 = vunpack.c.l.b16 %v3169
    %v3207 = vunpack.c.l.b16 %v3170
    %v3208 = vunpack.c.l.b16 %v3171
    %v3209 = vunpack.c.l.b16 %v3172
    %v3210 = vunpack.c.l.b16 %v3173
    %v3211 = vunpack.c.l.b16 %v3174
    %v3212 = vunpack.c.l.b16 %v3175
    %v3213 = vunpack.c.l.b16 %v3176
    %v3214 = vunpack.c.l.b16 %v3177
    %v3215 = vunpack.c.l.b16 %v3178
    %v3216 = vunpack.c.l.b16 %v3179
    %v3217 = vunpack.c.l.b16 %v3180
    %v3218 = vunpack.c.l.b16 %v3181
    %v3219 = vunpack.c.l.b16 %v3182
    %v3220 = vunpack.c.l.b16 %v3183
    %v3221 = vunpack.c.l.b16 %v3184
    %v3222 = vpack.c.b16 %v3207, %v3206
    %v3223 = vpack.c.b16 %v3209, %v3208
    %v3224 = vpack.c.b16 %v3211, %v3210
    %v3225 = vpack.c.b16 %v3213, %v3212
    %v3226 = vpack.c.b16 %v3215, %v3214
    %v3227 = vpack.c.b16 %v3217, %v3216
    %v3228 = vpack.c.b16 %v3219, %v3218
    %v3229 = vpack.c.b16 %v3221, %v3220
    %3238 = vmatprep.subr.bf16.mxu0 0
    %3239 = vmatpush1.bf16.msra.mxu0 %v3222
    %3240 = vmatprep.subr.bf16.mxu0 0
    %3241 = vmatpush1.bf16.msra.mxu0 %v3223
    %3242 = vmatprep.subr.bf16.mxu0 0
    %3243 = vmatpush1.bf16.msra.mxu0 %v3224
    %3244 = vmatprep.subr.bf16.mxu0 0
    %3245 = vmatpush1.bf16.msra.mxu0 %v3225
    %3246 = vmatprep.subr.bf16.mxu0 0
    %3247 = vmatpush1.bf16.msra.mxu0 %v3226
    %3248 = vmatprep.subr.bf16.mxu0 0
    %3249 = vmatpush1.bf16.msra.mxu0 %v3227
    %3250 = vmatprep.subr.bf16.mxu0 0
    %3251 = vmatpush1.bf16.msra.mxu0 %v3228
    %3252 = vmatprep.subr.bf16.mxu0 0
    %3253 = vmatpush1.bf16.msra.mxu0 %v3229
    %3254 = vmatprep.subr.bf16.mxu0 0
    %3255 = vmatpush1.bf16.msra.mxu0 0
    %3256 = vmatprep.subr.bf16.mxu0 0
    %3257 = vmatpush1.bf16.msra.mxu0 0
    %3258 = vmatprep.subr.bf16.mxu0 0
    %3259 = vmatpush1.bf16.msra.mxu0 0
    %3260 = vmatprep.subr.bf16.mxu0 0
    %3261 = vmatpush1.bf16.msra.mxu0 0
    %3262 = vmatprep.subr.bf16.mxu0 0
    %3263 = vmatpush1.bf16.msra.mxu0 0
    %3264 = vmatprep.subr.bf16.mxu0 0
    %3265 = vmatpush1.bf16.msra.mxu0 0
    %3266 = vmatprep.subr.bf16.mxu0 0
    %3267 = vmatpush1.bf16.msra.mxu0 0
    %3268 = vmatprep.subr.bf16.mxu0 0
    %3269 = vmatpush1.bf16.msra.mxu0 0
    %3270 = vmatprep.mubr.bf16.mxu0 0
    %3271 = vmatmul.mubr.bf16.gmra.mrb[0].mxu0 %v3167
    %v3272 = vpop.f32.mrb[0].mxu0
    %v3273 = vadd.f32 %v3189, %v3272
    %v3274 = vpop.f32.mrb[0].mxu0
    %v3275 = vpop.f32.mrb[0].mxu0
    %v3276 = vadd.f32 %v3189, %v3275
    %v3277 = vpop.f32.mrb[0].mxu0
    %3278 = vdwg.mxu0
    %s3279 = scalar_lea.vmem [#allocation8], 64
    %v3280 = vld [vmem:[%s3279] sm:$0xf]
    %v3281 = vld [vmem:[%s3279 + $0x4] sm:$0xf]
    %v3282 = vld [vmem:[%s3279 + $0x8] sm:$0xf]
    %v3283 = vld [vmem:[%s3279 + $0xc] sm:$0xf]
    %v3284 = vld [vmem:[%s3279 + $0x10] sm:$0xf]
    %v3285 = vld [vmem:[%s3279 + $0x14] sm:$0xf]
    %v3286 = vld [vmem:[%s3279 + $0x18] sm:$0xf]
    %v3287 = vld [vmem:[%s3279 + $0x1c] sm:$0xf]
    %v3288 = vld [vmem:[%s3279 + $0x20] sm:$0xf]
    %v3289 = vld [vmem:[%s3279 + $0x24] sm:$0xf]
    %v3290 = vld [vmem:[%s3279 + $0x28] sm:$0xf]
    %v3291 = vld [vmem:[%s3279 + $0x2c] sm:$0xf]
    %v3292 = vld [vmem:[%s3279 + $0x30] sm:$0xf]
    %v3293 = vld [vmem:[%s3279 + $0x34] sm:$0xf]
    %v3294 = vld [vmem:[%s3279 + $0x38] sm:$0xf]
    %v3295 = vld [vmem:[%s3279 + $0x3c] sm:$0xf]
    %v3296 = vld [vmem:[#allocation10 + $0x1] sm:$0x1]
    %v3297 = vlaneseq
    %v3298 = vshrl.u32 %v3297, 7
    %v3299 = vsub.s32 0, %v3298
    %v3300 = vrot.slane %v3296, %v3299
    %v3317 = vunpack.c.l.b16 %v3280
    %v3318 = vunpack.c.l.b16 %v3281
    %v3319 = vunpack.c.l.b16 %v3282
    %v3320 = vunpack.c.l.b16 %v3283
    %v3321 = vunpack.c.l.b16 %v3284
    %v3322 = vunpack.c.l.b16 %v3285
    %v3323 = vunpack.c.l.b16 %v3286
    %v3324 = vunpack.c.l.b16 %v3287
    %v3325 = vunpack.c.l.b16 %v3288
    %v3326 = vunpack.c.l.b16 %v3289
    %v3327 = vunpack.c.l.b16 %v3290
    %v3328 = vunpack.c.l.b16 %v3291
    %v3329 = vunpack.c.l.b16 %v3292
    %v3330 = vunpack.c.l.b16 %v3293
    %v3331 = vunpack.c.l.b16 %v3294
    %v3332 = vunpack.c.l.b16 %v3295
    %v3333 = vpack.c.b16 %v3318, %v3317
    %v3334 = vpack.c.b16 %v3320, %v3319
    %v3335 = vpack.c.b16 %v3322, %v3321
    %v3336 = vpack.c.b16 %v3324, %v3323
    %v3337 = vpack.c.b16 %v3326, %v3325
    %v3338 = vpack.c.b16 %v3328, %v3327
    %v3339 = vpack.c.b16 %v3330, %v3329
    %v3340 = vpack.c.b16 %v3332, %v3331
    %3349 = vmatprep.subr.bf16.mxu0 0
    %3350 = vmatpush1.bf16.msra.mxu0 %v3333
    %3351 = vmatprep.subr.bf16.mxu0 0
    %3352 = vmatpush1.bf16.msra.mxu0 %v3334
    %3353 = vmatprep.subr.bf16.mxu0 0
    %3354 = vmatpush1.bf16.msra.mxu0 %v3335
    %3355 = vmatprep.subr.bf16.mxu0 0
    %3356 = vmatpush1.bf16.msra.mxu0 %v3336
    %3357 = vmatprep.subr.bf16.mxu0 0
    %3358 = vmatpush1.bf16.msra.mxu0 %v3337
    %3359 = vmatprep.subr.bf16.mxu0 0
    %3360 = vmatpush1.bf16.msra.mxu0 %v3338
    %3361 = vmatprep.subr.bf16.mxu0 0
    %3362 = vmatpush1.bf16.msra.mxu0 %v3339
    %3363 = vmatprep.subr.bf16.mxu0 0
    %3364 = vmatpush1.bf16.msra.mxu0 %v3340
    %3365 = vmatprep.subr.bf16.mxu0 0
    %3366 = vmatpush1.bf16.msra.mxu0 0
    %3367 = vmatprep.subr.bf16.mxu0 0
    %3368 = vmatpush1.bf16.msra.mxu0 0
    %3369 = vmatprep.subr.bf16.mxu0 0
    %3370 = vmatpush1.bf16.msra.mxu0 0
    %3371 = vmatprep.subr.bf16.mxu0 0
    %3372 = vmatpush1.bf16.msra.mxu0 0
    %3373 = vmatprep.subr.bf16.mxu0 0
    %3374 = vmatpush1.bf16.msra.mxu0 0
    %3375 = vmatprep.subr.bf16.mxu0 0
    %3376 = vmatpush1.bf16.msra.mxu0 0
    %3377 = vmatprep.subr.bf16.mxu0 0
    %3378 = vmatpush1.bf16.msra.mxu0 0
    %3379 = vmatprep.subr.bf16.mxu0 0
    %3380 = vmatpush1.bf16.msra.mxu0 0
    %3381 = vmatprep.mubr.bf16.mxu0 0
    %3382 = vmatmul.mubr.bf16.gmra.mrb[0].mxu0 %v3167
    %v3383 = vpop.f32.mrb[0].mxu0
    %v3384 = vadd.f32 %v3300, %v3383
    %v3385 = vpop.f32.mrb[0].mxu0
    %v3386 = vpop.f32.mrb[0].mxu0
    %v3387 = vadd.f32 %v3300, %v3386
    %v3388 = vpop.f32.mrb[0].mxu0
    %3389 = vdwg.mxu0
    %s3390 = scalar_lea.vmem [#allocation11], 64
    %v3391 = vld [vmem:[%s3390] sm:$0xf]
    %v3392 = vld [vmem:[%s3390 + $0x4] sm:$0xf]
    %v3393 = vld [vmem:[%s3390 + $0x8] sm:$0xf]
    %v3394 = vld [vmem:[%s3390 + $0xc] sm:$0xf]
    %v3395 = vld [vmem:[%s3390 + $0x10] sm:$0xf]
    %v3396 = vld [vmem:[%s3390 + $0x14] sm:$0xf]
    %v3397 = vld [vmem:[%s3390 + $0x18] sm:$0xf]
    %v3398 = vld [vmem:[%s3390 + $0x1c] sm:$0xf]
    %v3399 = vld [vmem:[%s3390 + $0x20] sm:$0xf]
    %v3400 = vld [vmem:[%s3390 + $0x24] sm:$0xf]
    %v3401 = vld [vmem:[%s3390 + $0x28] sm:$0xf]
    %v3402 = vld [vmem:[%s3390 + $0x2c] sm:$0xf]
    %v3403 = vld [vmem:[%s3390 + $0x30] sm:$0xf]
    %v3404 = vld [vmem:[%s3390 + $0x34] sm:$0xf]
    %v3405 = vld [vmem:[%s3390 + $0x38] sm:$0xf]
    %v3406 = vld [vmem:[%s3390 + $0x3c] sm:$0xf]
    %v3407 = vld [vmem:[#allocation13 + $0x1] sm:$0x1]
    %v3408 = vlaneseq
    %v3409 = vshrl.u32 %v3408, 7
    %v3410 = vsub.s32 0, %v3409
    %v3411 = vrot.slane %v3407, %v3410
    %v3428 = vunpack.c.l.b16 %v3391
    %v3429 = vunpack.c.l.b16 %v3392
    %v3430 = vunpack.c.l.b16 %v3393
    %v3431 = vunpack.c.l.b16 %v3394
    %v3432 = vunpack.c.l.b16 %v3395
    %v3433 = vunpack.c.l.b16 %v3396
    %v3434 = vunpack.c.l.b16 %v3397
    %v3435 = vunpack.c.l.b16 %v3398
    %v3436 = vunpack.c.l.b16 %v3399
    %v3437 = vunpack.c.l.b16 %v3400
    %v3438 = vunpack.c.l.b16 %v3401
    %v3439 = vunpack.c.l.b16 %v3402
    %v3440 = vunpack.c.l.b16 %v3403
    %v3441 = vunpack.c.l.b16 %v3404
    %v3442 = vunpack.c.l.b16 %v3405
    %v3443 = vunpack.c.l.b16 %v3406
    %v3444 = vpack.c.b16 %v3429, %v3428
    %v3445 = vpack.c.b16 %v3431, %v3430
    %v3446 = vpack.c.b16 %v3433, %v3432
    %v3447 = vpack.c.b16 %v3435, %v3434
    %v3448 = vpack.c.b16 %v3437, %v3436
    %v3449 = vpack.c.b16 %v3439, %v3438
    %v3450 = vpack.c.b16 %v3441, %v3440
    %v3451 = vpack.c.b16 %v3443, %v3442
    %3460 = vmatprep.subr.bf16.mxu0 0
    %3461 = vmatpush1.bf16.msra.mxu0 %v3444
    %3462 = vmatprep.subr.bf16.mxu0 0
    %3463 = vmatpush1.bf16.msra.mxu0 %v3445
    %3464 = vmatprep.subr.bf16.mxu0 0
    %3465 = vmatpush1.bf16.msra.mxu0 %v3446
    %3466 = vmatprep.subr.bf16.mxu0 0
    %3467 = vmatpush1.bf16.msra.mxu0 %v3447
    %3468 = vmatprep.subr.bf16.mxu0 0
    %3469 = vmatpush1.bf16.msra.mxu0 %v3448
    %3470 = vmatprep.subr.bf16.mxu0 0
    %3471 = vmatpush1.bf16.msra.mxu0 %v3449
    %3472 = vmatprep.subr.bf16.mxu0 0
    %3473 = vmatpush1.bf16.msra.mxu0 %v3450
    %3474 = vmatprep.subr.bf16.mxu0 0
    %3475 = vmatpush1.bf16.msra.mxu0 %v3451
    %3476 = vmatprep.subr.bf16.mxu0 0
    %3477 = vmatpush1.bf16.msra.mxu0 0
    %3478 = vmatprep.subr.bf16.mxu0 0
    %3479 = vmatpush1.bf16.msra.mxu0 0
    %3480 = vmatprep.subr.bf16.mxu0 0
    %3481 = vmatpush1.bf16.msra.mxu0 0
    %3482 = vmatprep.subr.bf16.mxu0 0
    %3483 = vmatpush1.bf16.msra.mxu0 0
    %3484 = vmatprep.subr.bf16.mxu0 0
    %3485 = vmatpush1.bf16.msra.mxu0 0
    %3486 = vmatprep.subr.bf16.mxu0 0
    %3487 = vmatpush1.bf16.msra.mxu0 0
    %3488 = vmatprep.subr.bf16.mxu0 0
    %3489 = vmatpush1.bf16.msra.mxu0 0
    %3490 = vmatprep.subr.bf16.mxu0 0
    %3491 = vmatpush1.bf16.msra.mxu0 0
    %3492 = vmatprep.mubr.bf16.mxu0 0
    %3493 = vmatmul.mubr.bf16.gmra.mrb[0].mxu0 %v3167
    %v3494 = vpop.f32.mrb[0].mxu0
    %v3495 = vadd.f32 %v3411, %v3494
    %v3496 = vpop.f32.mrb[0].mxu0
    %v3497 = vpop.f32.mrb[0].mxu0
    %v3498 = vadd.f32 %v3411, %v3497
    %v3499 = vpop.f32.mrb[0].mxu0
    %3500 = vdwg.mxu0
    %3503 = vrot.lane.b32.xlu0 %v3273, 112
    %v3504 = vpop.permute.xlu0 %3503
    %3505 = vrot.lane.b32.xlu0 %v3276, 112
    %v3506 = vpop.permute.xlu0 %3505
    %3509 = vrot.lane.b32.xlu0 %v3273, 96
    %v3510 = vpop.permute.xlu0 %3509
    %3511 = vrot.lane.b32.xlu0 %v3276, 96
    %v3512 = vpop.permute.xlu0 %3511
    %3515 = vrot.lane.b32.xlu0 %v3273, 80
    %v3516 = vpop.permute.xlu0 %3515
    %3517 = vrot.lane.b32.xlu0 %v3276, 80
    %v3518 = vpop.permute.xlu0 %3517
    %3521 = vrot.lane.b32.xlu0 %v3273, 64
    %v3522 = vpop.permute.xlu0 %3521
    %3523 = vrot.lane.b32.xlu0 %v3276, 64
    %v3524 = vpop.permute.xlu0 %3523
    %3527 = vrot.lane.b32.xlu0 %v3273, 48
    %v3528 = vpop.permute.xlu0 %3527
    %3529 = vrot.lane.b32.xlu0 %v3276, 48
    %v3530 = vpop.permute.xlu0 %3529
    %3533 = vrot.lane.b32.xlu0 %v3273, 32
    %v3534 = vpop.permute.xlu0 %3533
    %3535 = vrot.lane.b32.xlu0 %v3276, 32
    %v3536 = vpop.permute.xlu0 %3535
    %3539 = vrot.lane.b32.xlu0 %v3273, 16
    %v3540 = vpop.permute.xlu0 %3539
    %3541 = vrot.lane.b32.xlu0 %v3276, 16
    %v3542 = vpop.permute.xlu0 %3541
    %v3545 = vpack.c.bf16 %v3273, %v3273
    %v3546 = vpack.c.bf16 %v3276, %v3276
    %v3547 = vpack.c.bf16 %v3504, %v3504
    %v3548 = vpack.c.bf16 %v3506, %v3506
    %v3549 = vpack.c.bf16 %v3510, %v3510
    %v3550 = vpack.c.bf16 %v3512, %v3512
    %v3551 = vpack.c.bf16 %v3516, %v3516
    %v3552 = vpack.c.bf16 %v3518, %v3518
    %v3553 = vpack.c.bf16 %v3522, %v3522
    %v3554 = vpack.c.bf16 %v3524, %v3524
    %v3555 = vpack.c.bf16 %v3528, %v3528
    %v3556 = vpack.c.bf16 %v3530, %v3530
    %v3557 = vpack.c.bf16 %v3534, %v3534
    %v3558 = vpack.c.bf16 %v3536, %v3536
    %v3559 = vpack.c.bf16 %v3540, %v3540
    %v3560 = vpack.c.bf16 %v3542, %v3542
    %3563 = vrot.lane.b32.xlu0 %v3384, 112
    %v3564 = vpop.permute.xlu0 %3563
    %3565 = vrot.lane.b32.xlu0 %v3387, 112
    %v3566 = vpop.permute.xlu0 %3565
    %3569 = vrot.lane.b32.xlu0 %v3384, 96
    %v3570 = vpop.permute.xlu0 %3569
    %3571 = vrot.lane.b32.xlu0 %v3387, 96
    %v3572 = vpop.permute.xlu0 %3571
    %3575 = vrot.lane.b32.xlu0 %v3384, 80
    %v3576 = vpop.permute.xlu0 %3575
    %3577 = vrot.lane.b32.xlu0 %v3387, 80
    %v3578 = vpop.permute.xlu0 %3577
    %3581 = vrot.lane.b32.xlu0 %v3384, 64
    %v3582 = vpop.permute.xlu0 %3581
    %3583 = vrot.lane.b32.xlu0 %v3387, 64
    %v3584 = vpop.permute.xlu0 %3583
    %3587 = vrot.lane.b32.xlu0 %v3384, 48
    %v3588 = vpop.permute.xlu0 %3587
    %3589 = vrot.lane.b32.xlu0 %v3387, 48
    %v3590 = vpop.permute.xlu0 %3589
    %3593 = vrot.lane.b32.xlu0 %v3384, 32
    %v3594 = vpop.permute.xlu0 %3593
    %3595 = vrot.lane.b32.xlu0 %v3387, 32
    %v3596 = vpop.permute.xlu0 %3595
    %3599 = vrot.lane.b32.xlu0 %v3384, 16
    %v3600 = vpop.permute.xlu0 %3599
    %3601 = vrot.lane.b32.xlu0 %v3387, 16
    %v3602 = vpop.permute.xlu0 %3601
    %v3605 = vpack.c.bf16 %v3384, %v3384
    %v3606 = vpack.c.bf16 %v3387, %v3387
    %v3607 = vpack.c.bf16 %v3564, %v3564
    %v3608 = vpack.c.bf16 %v3566, %v3566
    %v3609 = vpack.c.bf16 %v3570, %v3570
    %v3610 = vpack.c.bf16 %v3572, %v3572
    %v3611 = vpack.c.bf16 %v3576, %v3576
    %v3612 = vpack.c.bf16 %v3578, %v3578
    %v3613 = vpack.c.bf16 %v3582, %v3582
    %v3614 = vpack.c.bf16 %v3584, %v3584
    %v3615 = vpack.c.bf16 %v3588, %v3588
    %v3616 = vpack.c.bf16 %v3590, %v3590
    %v3617 = vpack.c.bf16 %v3594, %v3594
    %v3618 = vpack.c.bf16 %v3596, %v3596
    %v3619 = vpack.c.bf16 %v3600, %v3600
    %v3620 = vpack.c.bf16 %v3602, %v3602
    %3623 = vrot.lane.b32.xlu0 %v3495, 112
    %v3624 = vpop.permute.xlu0 %3623
    %3625 = vrot.lane.b32.xlu0 %v3498, 112
    %v3626 = vpop.permute.xlu0 %3625
    %3629 = vrot.lane.b32.xlu0 %v3495, 96
    %v3630 = vpop.permute.xlu0 %3629
    %3631 = vrot.lane.b32.xlu0 %v3498, 96
    %v3632 = vpop.permute.xlu0 %3631
    %3635 = vrot.lane.b32.xlu0 %v3495, 80
    %v3636 = vpop.permute.xlu0 %3635
    %3637 = vrot.lane.b32.xlu0 %v3498, 80
    %v3638 = vpop.permute.xlu0 %3637
    %3641 = vrot.lane.b32.xlu0 %v3495, 64
    %v3642 = vpop.permute.xlu0 %3641
    %3643 = vrot.lane.b32.xlu0 %v3498, 64
    %v3644 = vpop.permute.xlu0 %3643
    %3647 = vrot.lane.b32.xlu0 %v3495, 48
    %v3648 = vpop.permute.xlu0 %3647
    %3649 = vrot.lane.b32.xlu0 %v3498, 48
    %v3650 = vpop.permute.xlu0 %3649
    %3653 = vrot.lane.b32.xlu0 %v3495, 32
    %v3654 = vpop.permute.xlu0 %3653
    %3655 = vrot.lane.b32.xlu0 %v3498, 32
    %v3656 = vpop.permute.xlu0 %3655
    %3659 = vrot.lane.b32.xlu0 %v3495, 16
    %v3660 = vpop.permute.xlu0 %3659
    %3661 = vrot.lane.b32.xlu0 %v3498, 16
    %v3662 = vpop.permute.xlu0 %3661
    %v3665 = vpack.c.bf16 %v3495, %v3495
    %v3666 = vpack.c.bf16 %v3498, %v3498
    %v3667 = vpack.c.bf16 %v3624, %v3624
    %v3668 = vpack.c.bf16 %v3626, %v3626
    %v3669 = vpack.c.bf16 %v3630, %v3630
    %v3670 = vpack.c.bf16 %v3632, %v3632
    %v3671 = vpack.c.bf16 %v3636, %v3636
    %v3672 = vpack.c.bf16 %v3638, %v3638
    %v3673 = vpack.c.bf16 %v3642, %v3642
    %v3674 = vpack.c.bf16 %v3644, %v3644
    %v3675 = vpack.c.bf16 %v3648, %v3648
    %v3676 = vpack.c.bf16 %v3650, %v3650
    %v3677 = vpack.c.bf16 %v3654, %v3654
    %v3678 = vpack.c.bf16 %v3656, %v3656
    %v3679 = vpack.c.bf16 %v3660, %v3660
    %v3680 = vpack.c.bf16 %v3662, %v3662
    %v3682 = vsel %vm897, %v3545, 0
    %v3685 = vsel %vm897, %v3605, 0
    %3687 = vmatprep.subr.bf16.mxu0 0
    %3688 = vmatpush1.bf16.xpose.msra.mxu0 %v3685
    %3689 = vmatprep.subr.bf16.mxu0 0
    %3690 = vmatpush1.bf16.xpose.msra.mxu0 0
    %3691 = vmatprep.subr.bf16.mxu0 0
    %3692 = vmatpush1.bf16.xpose.msra.mxu0 0
    %3693 = vmatprep.subr.bf16.mxu0 0
    %3694 = vmatpush1.bf16.xpose.msra.mxu0 0
    %3695 = vmatprep.subr.bf16.mxu0 0
    %3696 = vmatpush1.bf16.xpose.msra.mxu0 0
    %3697 = vmatprep.subr.bf16.mxu0 0
    %3698 = vmatpush1.bf16.xpose.msra.mxu0 0
    %3699 = vmatprep.subr.bf16.mxu0 0
    %3700 = vmatpush1.bf16.xpose.msra.mxu0 0
    %3701 = vmatprep.subr.bf16.mxu0 0
    %3702 = vmatpush1.bf16.xpose.msra.mxu0 0
    %3703 = vmatprep.subr.bf16.mxu0 0
    %3704 = vmatpush1.bf16.xpose.msra.mxu0 0
    %3705 = vmatprep.subr.bf16.mxu0 0
    %3706 = vmatpush1.bf16.xpose.msra.mxu0 0
    %3707 = vmatprep.subr.bf16.mxu0 0
    %3708 = vmatpush1.bf16.xpose.msra.mxu0 0
    %3709 = vmatprep.subr.bf16.mxu0 0
    %3710 = vmatpush1.bf16.xpose.msra.mxu0 0
    %3711 = vmatprep.subr.bf16.mxu0 0
    %3712 = vmatpush1.bf16.xpose.msra.mxu0 0
    %3713 = vmatprep.subr.bf16.mxu0 0
    %3714 = vmatpush1.bf16.xpose.msra.mxu0 0
    %3715 = vmatprep.subr.bf16.mxu0 0
    %3716 = vmatpush1.bf16.xpose.msra.mxu0 0
    %3717 = vmatprep.subr.bf16.mxu0 0
    %3718 = vmatpush1.bf16.xpose.msra.mxu0 0
    %3719 = vmatprep.mubr.bf16.mxu0 0
    %3720 = vmatmul.mubr.bf16.gmra.mrb[0].mxu0 %v3682
    %v3721 = vpop.f32.mrb[0].mxu0
    %v3722 = vadd.f32 0.0, %v3721
    %v3723 = vpop.f32.mrb[0].mxu0
    %v3724 = vpop.f32.mrb[0].mxu0
    %v3725 = vpop.f32.mrb[0].mxu0
    %3726 = vdwg.mxu0
    %v3728 = vsel %vm897, %v3546, 0
    %v3731 = vsel %vm897, %v3606, 0
    %3733 = vmatprep.subr.bf16.mxu0 0
    %3734 = vmatpush1.bf16.xpose.msra.mxu0 %v3731
    %3735 = vmatprep.subr.bf16.mxu0 0
    %3736 = vmatpush1.bf16.xpose.msra.mxu0 0
    %3737 = vmatprep.subr.bf16.mxu0 0
    %3738 = vmatpush1.bf16.xpose.msra.mxu0 0
    %3739 = vmatprep.subr.bf16.mxu0 0
    %3740 = vmatpush1.bf16.xpose.msra.mxu0 0
    %3741 = vmatprep.subr.bf16.mxu0 0
    %3742 = vmatpush1.bf16.xpose.msra.mxu0 0
    %3743 = vmatprep.subr.bf16.mxu0 0
    %3744 = vmatpush1.bf16.xpose.msra.mxu0 0
    %3745 = vmatprep.subr.bf16.mxu0 0
    %3746 = vmatpush1.bf16.xpose.msra.mxu0 0
    %3747 = vmatprep.subr.bf16.mxu0 0
    %3748 = vmatpush1.bf16.xpose.msra.mxu0 0
    %3749 = vmatprep.subr.bf16.mxu0 0
    %3750 = vmatpush1.bf16.xpose.msra.mxu0 0
    %3751 = vmatprep.subr.bf16.mxu0 0
    %3752 = vmatpush1.bf16.xpose.msra.mxu0 0
    %3753 = vmatprep.subr.bf16.mxu0 0
    %3754 = vmatpush1.bf16.xpose.msra.mxu0 0
    %3755 = vmatprep.subr.bf16.mxu0 0
    %3756 = vmatpush1.bf16.xpose.msra.mxu0 0
    %3757 = vmatprep.subr.bf16.mxu0 0
    %3758 = vmatpush1.bf16.xpose.msra.mxu0 0
    %3759 = vmatprep.subr.bf16.mxu0 0
    %3760 = vmatpush1.bf16.xpose.msra.mxu0 0
    %3761 = vmatprep.subr.bf16.mxu0 0
    %3762 = vmatpush1.bf16.xpose.msra.mxu0 0
    %3763 = vmatprep.subr.bf16.mxu0 0
    %3764 = vmatpush1.bf16.xpose.msra.mxu0 0
    %3765 = vmatprep.mubr.bf16.mxu0 0
    %3766 = vmatmul.mubr.bf16.gmra.mrb[0].mxu0 %v3728
    %v3767 = vpop.f32.mrb[0].mxu0
    %v3768 = vadd.f32 0.0, %v3767
    %v3769 = vpop.f32.mrb[0].mxu0
    %v3770 = vpop.f32.mrb[0].mxu0
    %v3771 = vpop.f32.mrb[0].mxu0
    %3772 = vdwg.mxu0
    %v3774 = vsel %vm897, %v3547, 0
    %v3777 = vsel %vm897, %v3607, 0
    %3779 = vmatprep.subr.bf16.mxu0 0
    %3780 = vmatpush1.bf16.xpose.msra.mxu0 %v3777
    %3781 = vmatprep.subr.bf16.mxu0 0
    %3782 = vmatpush1.bf16.xpose.msra.mxu0 0
    %3783 = vmatprep.subr.bf16.mxu0 0
    %3784 = vmatpush1.bf16.xpose.msra.mxu0 0
    %3785 = vmatprep.subr.bf16.mxu0 0
    %3786 = vmatpush1.bf16.xpose.msra.mxu0 0
    %3787 = vmatprep.subr.bf16.mxu0 0
    %3788 = vmatpush1.bf16.xpose.msra.mxu0 0
    %3789 = vmatprep.subr.bf16.mxu0 0
    %3790 = vmatpush1.bf16.xpose.msra.mxu0 0
    %3791 = vmatprep.subr.bf16.mxu0 0
    %3792 = vmatpush1.bf16.xpose.msra.mxu0 0
    %3793 = vmatprep.subr.bf16.mxu0 0
    %3794 = vmatpush1.bf16.xpose.msra.mxu0 0
    %3795 = vmatprep.subr.bf16.mxu0 0
    %3796 = vmatpush1.bf16.xpose.msra.mxu0 0
    %3797 = vmatprep.subr.bf16.mxu0 0
    %3798 = vmatpush1.bf16.xpose.msra.mxu0 0
    %3799 = vmatprep.subr.bf16.mxu0 0
    %3800 = vmatpush1.bf16.xpose.msra.mxu0 0
    %3801 = vmatprep.subr.bf16.mxu0 0
    %3802 = vmatpush1.bf16.xpose.msra.mxu0 0
    %3803 = vmatprep.subr.bf16.mxu0 0
    %3804 = vmatpush1.bf16.xpose.msra.mxu0 0
    %3805 = vmatprep.subr.bf16.mxu0 0
    %3806 = vmatpush1.bf16.xpose.msra.mxu0 0
    %3807 = vmatprep.subr.bf16.mxu0 0
    %3808 = vmatpush1.bf16.xpose.msra.mxu0 0
    %3809 = vmatprep.subr.bf16.mxu0 0
    %3810 = vmatpush1.bf16.xpose.msra.mxu0 0
    %3811 = vmatprep.mubr.bf16.mxu0 0
    %3812 = vmatmul.mubr.bf16.gmra.mrb[0].mxu0 %v3774
    %v3813 = vpop.f32.mrb[0].mxu0
    %v3814 = vadd.f32 0.0, %v3813
    %v3815 = vpop.f32.mrb[0].mxu0
    %v3816 = vpop.f32.mrb[0].mxu0
    %v3817 = vpop.f32.mrb[0].mxu0
    %3818 = vdwg.mxu0
    %v3820 = vsel %vm897, %v3548, 0
    %v3823 = vsel %vm897, %v3608, 0
    %3825 = vmatprep.subr.bf16.mxu0 0
    %3826 = vmatpush1.bf16.xpose.msra.mxu0 %v3823
    %3827 = vmatprep.subr.bf16.mxu0 0
    %3828 = vmatpush1.bf16.xpose.msra.mxu0 0
    %3829 = vmatprep.subr.bf16.mxu0 0
    %3830 = vmatpush1.bf16.xpose.msra.mxu0 0
    %3831 = vmatprep.subr.bf16.mxu0 0
    %3832 = vmatpush1.bf16.xpose.msra.mxu0 0
    %3833 = vmatprep.subr.bf16.mxu0 0
    %3834 = vmatpush1.bf16.xpose.msra.mxu0 0
    %3835 = vmatprep.subr.bf16.mxu0 0
    %3836 = vmatpush1.bf16.xpose.msra.mxu0 0
    %3837 = vmatprep.subr.bf16.mxu0 0
    %3838 = vmatpush1.bf16.xpose.msra.mxu0 0
    %3839 = vmatprep.subr.bf16.mxu0 0
    %3840 = vmatpush1.bf16.xpose.msra.mxu0 0
    %3841 = vmatprep.subr.bf16.mxu0 0
    %3842 = vmatpush1.bf16.xpose.msra.mxu0 0
    %3843 = vmatprep.subr.bf16.mxu0 0
    %3844 = vmatpush1.bf16.xpose.msra.mxu0 0
    %3845 = vmatprep.subr.bf16.mxu0 0
    %3846 = vmatpush1.bf16.xpose.msra.mxu0 0
    %3847 = vmatprep.subr.bf16.mxu0 0
    %3848 = vmatpush1.bf16.xpose.msra.mxu0 0
    %3849 = vmatprep.subr.bf16.mxu0 0
    %3850 = vmatpush1.bf16.xpose.msra.mxu0 0
    %3851 = vmatprep.subr.bf16.mxu0 0
    %3852 = vmatpush1.bf16.xpose.msra.mxu0 0
    %3853 = vmatprep.subr.bf16.mxu0 0
    %3854 = vmatpush1.bf16.xpose.msra.mxu0 0
    %3855 = vmatprep.subr.bf16.mxu0 0
    %3856 = vmatpush1.bf16.xpose.msra.mxu0 0
    %3857 = vmatprep.mubr.bf16.mxu0 0
    %3858 = vmatmul.mubr.bf16.gmra.mrb[0].mxu0 %v3820
    %v3859 = vpop.f32.mrb[0].mxu0
    %v3860 = vadd.f32 0.0, %v3859
    %v3861 = vpop.f32.mrb[0].mxu0
    %v3862 = vpop.f32.mrb[0].mxu0
    %v3863 = vpop.f32.mrb[0].mxu0
    %3864 = vdwg.mxu0
    %v3866 = vsel %vm897, %v3549, 0
    %v3869 = vsel %vm897, %v3609, 0
    %3871 = vmatprep.subr.bf16.mxu0 0
    %3872 = vmatpush1.bf16.xpose.msra.mxu0 %v3869
    %3873 = vmatprep.subr.bf16.mxu0 0
    %3874 = vmatpush1.bf16.xpose.msra.mxu0 0
    %3875 = vmatprep.subr.bf16.mxu0 0
    %3876 = vmatpush1.bf16.xpose.msra.mxu0 0
    %3877 = vmatprep.subr.bf16.mxu0 0
    %3878 = vmatpush1.bf16.xpose.msra.mxu0 0
    %3879 = vmatprep.subr.bf16.mxu0 0
    %3880 = vmatpush1.bf16.xpose.msra.mxu0 0
    %3881 = vmatprep.subr.bf16.mxu0 0
    %3882 = vmatpush1.bf16.xpose.msra.mxu0 0
    %3883 = vmatprep.subr.bf16.mxu0 0
    %3884 = vmatpush1.bf16.xpose.msra.mxu0 0
    %3885 = vmatprep.subr.bf16.mxu0 0
    %3886 = vmatpush1.bf16.xpose.msra.mxu0 0
    %3887 = vmatprep.subr.bf16.mxu0 0
    %3888 = vmatpush1.bf16.xpose.msra.mxu0 0
    %3889 = vmatprep.subr.bf16.mxu0 0
    %3890 = vmatpush1.bf16.xpose.msra.mxu0 0
    %3891 = vmatprep.subr.bf16.mxu0 0
    %3892 = vmatpush1.bf16.xpose.msra.mxu0 0
    %3893 = vmatprep.subr.bf16.mxu0 0
    %3894 = vmatpush1.bf16.xpose.msra.mxu0 0
    %3895 = vmatprep.subr.bf16.mxu0 0
    %3896 = vmatpush1.bf16.xpose.msra.mxu0 0
    %3897 = vmatprep.subr.bf16.mxu0 0
    %3898 = vmatpush1.bf16.xpose.msra.mxu0 0
    %3899 = vmatprep.subr.bf16.mxu0 0
    %3900 = vmatpush1.bf16.xpose.msra.mxu0 0
    %3901 = vmatprep.subr.bf16.mxu0 0
    %3902 = vmatpush1.bf16.xpose.msra.mxu0 0
    %3903 = vmatprep.mubr.bf16.mxu0 0
    %3904 = vmatmul.mubr.bf16.gmra.mrb[0].mxu0 %v3866
    %v3905 = vpop.f32.mrb[0].mxu0
    %v3906 = vadd.f32 0.0, %v3905
    %v3907 = vpop.f32.mrb[0].mxu0
    %v3908 = vpop.f32.mrb[0].mxu0
    %v3909 = vpop.f32.mrb[0].mxu0
    %3910 = vdwg.mxu0
    %v3912 = vsel %vm897, %v3550, 0
    %v3915 = vsel %vm897, %v3610, 0
    %3917 = vmatprep.subr.bf16.mxu0 0
    %3918 = vmatpush1.bf16.xpose.msra.mxu0 %v3915
    %3919 = vmatprep.subr.bf16.mxu0 0
    %3920 = vmatpush1.bf16.xpose.msra.mxu0 0
    %3921 = vmatprep.subr.bf16.mxu0 0
    %3922 = vmatpush1.bf16.xpose.msra.mxu0 0
    %3923 = vmatprep.subr.bf16.mxu0 0
    %3924 = vmatpush1.bf16.xpose.msra.mxu0 0
    %3925 = vmatprep.subr.bf16.mxu0 0
    %3926 = vmatpush1.bf16.xpose.msra.mxu0 0
    %3927 = vmatprep.subr.bf16.mxu0 0
    %3928 = vmatpush1.bf16.xpose.msra.mxu0 0
    %3929 = vmatprep.subr.bf16.mxu0 0
    %3930 = vmatpush1.bf16.xpose.msra.mxu0 0
    %3931 = vmatprep.subr.bf16.mxu0 0
    %3932 = vmatpush1.bf16.xpose.msra.mxu0 0
    %3933 = vmatprep.subr.bf16.mxu0 0
    %3934 = vmatpush1.bf16.xpose.msra.mxu0 0
    %3935 = vmatprep.subr.bf16.mxu0 0
    %3936 = vmatpush1.bf16.xpose.msra.mxu0 0
    %3937 = vmatprep.subr.bf16.mxu0 0
    %3938 = vmatpush1.bf16.xpose.msra.mxu0 0
    %3939 = vmatprep.subr.bf16.mxu0 0
    %3940 = vmatpush1.bf16.xpose.msra.mxu0 0
    %3941 = vmatprep.subr.bf16.mxu0 0
    %3942 = vmatpush1.bf16.xpose.msra.mxu0 0
    %3943 = vmatprep.subr.bf16.mxu0 0
    %3944 = vmatpush1.bf16.xpose.msra.mxu0 0
    %3945 = vmatprep.subr.bf16.mxu0 0
    %3946 = vmatpush1.bf16.xpose.msra.mxu0 0
    %3947 = vmatprep.subr.bf16.mxu0 0
    %3948 = vmatpush1.bf16.xpose.msra.mxu0 0
    %3949 = vmatprep.mubr.bf16.mxu0 0
    %3950 = vmatmul.mubr.bf16.gmra.mrb[0].mxu0 %v3912
    %v3951 = vpop.f32.mrb[0].mxu0
    %v3952 = vadd.f32 0.0, %v3951
    %v3953 = vpop.f32.mrb[0].mxu0
    %v3954 = vpop.f32.mrb[0].mxu0
    %v3955 = vpop.f32.mrb[0].mxu0
    %3956 = vdwg.mxu0
    %v3958 = vsel %vm897, %v3551, 0
    %v3961 = vsel %vm897, %v3611, 0
    %3963 = vmatprep.subr.bf16.mxu0 0
    %3964 = vmatpush1.bf16.xpose.msra.mxu0 %v3961
    %3965 = vmatprep.subr.bf16.mxu0 0
    %3966 = vmatpush1.bf16.xpose.msra.mxu0 0
    %3967 = vmatprep.subr.bf16.mxu0 0
    %3968 = vmatpush1.bf16.xpose.msra.mxu0 0
    %3969 = vmatprep.subr.bf16.mxu0 0
    %3970 = vmatpush1.bf16.xpose.msra.mxu0 0
    %3971 = vmatprep.subr.bf16.mxu0 0
    %3972 = vmatpush1.bf16.xpose.msra.mxu0 0
    %3973 = vmatprep.subr.bf16.mxu0 0
    %3974 = vmatpush1.bf16.xpose.msra.mxu0 0
    %3975 = vmatprep.subr.bf16.mxu0 0
    %3976 = vmatpush1.bf16.xpose.msra.mxu0 0
    %3977 = vmatprep.subr.bf16.mxu0 0
    %3978 = vmatpush1.bf16.xpose.msra.mxu0 0
    %3979 = vmatprep.subr.bf16.mxu0 0
    %3980 = vmatpush1.bf16.xpose.msra.mxu0 0
    %3981 = vmatprep.subr.bf16.mxu0 0
    %3982 = vmatpush1.bf16.xpose.msra.mxu0 0
    %3983 = vmatprep.subr.bf16.mxu0 0
    %3984 = vmatpush1.bf16.xpose.msra.mxu0 0
    %3985 = vmatprep.subr.bf16.mxu0 0
    %3986 = vmatpush1.bf16.xpose.msra.mxu0 0
    %3987 = vmatprep.subr.bf16.mxu0 0
    %3988 = vmatpush1.bf16.xpose.msra.mxu0 0
    %3989 = vmatprep.subr.bf16.mxu0 0
    %3990 = vmatpush1.bf16.xpose.msra.mxu0 0
    %3991 = vmatprep.subr.bf16.mxu0 0
    %3992 = vmatpush1.bf16.xpose.msra.mxu0 0
    %3993 = vmatprep.subr.bf16.mxu0 0
    %3994 = vmatpush1.bf16.xpose.msra.mxu0 0
    %3995 = vmatprep.mubr.bf16.mxu0 0
    %3996 = vmatmul.mubr.bf16.gmra.mrb[0].mxu0 %v3958
    %v3997 = vpop.f32.mrb[0].mxu0
    %v3998 = vadd.f32 0.0, %v3997
    %v3999 = vpop.f32.mrb[0].mxu0
    %v4000 = vpop.f32.mrb[0].mxu0
    %v4001 = vpop.f32.mrb[0].mxu0
    %4002 = vdwg.mxu0
    %v4004 = vsel %vm897, %v3552, 0
    %v4007 = vsel %vm897, %v3612, 0
    %4009 = vmatprep.subr.bf16.mxu0 0
    %4010 = vmatpush1.bf16.xpose.msra.mxu0 %v4007
    %4011 = vmatprep.subr.bf16.mxu0 0
    %4012 = vmatpush1.bf16.xpose.msra.mxu0 0
    %4013 = vmatprep.subr.bf16.mxu0 0
    %4014 = vmatpush1.bf16.xpose.msra.mxu0 0
    %4015 = vmatprep.subr.bf16.mxu0 0
    %4016 = vmatpush1.bf16.xpose.msra.mxu0 0
    %4017 = vmatprep.subr.bf16.mxu0 0
    %4018 = vmatpush1.bf16.xpose.msra.mxu0 0
    %4019 = vmatprep.subr.bf16.mxu0 0
    %4020 = vmatpush1.bf16.xpose.msra.mxu0 0
    %4021 = vmatprep.subr.bf16.mxu0 0
    %4022 = vmatpush1.bf16.xpose.msra.mxu0 0
    %4023 = vmatprep.subr.bf16.mxu0 0
    %4024 = vmatpush1.bf16.xpose.msra.mxu0 0
    %4025 = vmatprep.subr.bf16.mxu0 0
    %4026 = vmatpush1.bf16.xpose.msra.mxu0 0
    %4027 = vmatprep.subr.bf16.mxu0 0
    %4028 = vmatpush1.bf16.xpose.msra.mxu0 0
    %4029 = vmatprep.subr.bf16.mxu0 0
    %4030 = vmatpush1.bf16.xpose.msra.mxu0 0
    %4031 = vmatprep.subr.bf16.mxu0 0
    %4032 = vmatpush1.bf16.xpose.msra.mxu0 0
    %4033 = vmatprep.subr.bf16.mxu0 0
    %4034 = vmatpush1.bf16.xpose.msra.mxu0 0
    %4035 = vmatprep.subr.bf16.mxu0 0
    %4036 = vmatpush1.bf16.xpose.msra.mxu0 0
    %4037 = vmatprep.subr.bf16.mxu0 0
    %4038 = vmatpush1.bf16.xpose.msra.mxu0 0
    %4039 = vmatprep.subr.bf16.mxu0 0
    %4040 = vmatpush1.bf16.xpose.msra.mxu0 0
    %4041 = vmatprep.mubr.bf16.mxu0 0
    %4042 = vmatmul.mubr.bf16.gmra.mrb[0].mxu0 %v4004
    %v4043 = vpop.f32.mrb[0].mxu0
    %v4044 = vadd.f32 0.0, %v4043
    %v4045 = vpop.f32.mrb[0].mxu0
    %v4046 = vpop.f32.mrb[0].mxu0
    %v4047 = vpop.f32.mrb[0].mxu0
    %4048 = vdwg.mxu0
    %v4050 = vsel %vm897, %v3553, 0
    %v4053 = vsel %vm897, %v3613, 0
    %4055 = vmatprep.subr.bf16.mxu0 0
    %4056 = vmatpush1.bf16.xpose.msra.mxu0 %v4053
    %4057 = vmatprep.subr.bf16.mxu0 0
    %4058 = vmatpush1.bf16.xpose.msra.mxu0 0
    %4059 = vmatprep.subr.bf16.mxu0 0
    %4060 = vmatpush1.bf16.xpose.msra.mxu0 0
    %4061 = vmatprep.subr.bf16.mxu0 0
    %4062 = vmatpush1.bf16.xpose.msra.mxu0 0
    %4063 = vmatprep.subr.bf16.mxu0 0
    %4064 = vmatpush1.bf16.xpose.msra.mxu0 0
    %4065 = vmatprep.subr.bf16.mxu0 0
    %4066 = vmatpush1.bf16.xpose.msra.mxu0 0
    %4067 = vmatprep.subr.bf16.mxu0 0
    %4068 = vmatpush1.bf16.xpose.msra.mxu0 0
    %4069 = vmatprep.subr.bf16.mxu0 0
    %4070 = vmatpush1.bf16.xpose.msra.mxu0 0
    %4071 = vmatprep.subr.bf16.mxu0 0
    %4072 = vmatpush1.bf16.xpose.msra.mxu0 0
    %4073 = vmatprep.subr.bf16.mxu0 0
    %4074 = vmatpush1.bf16.xpose.msra.mxu0 0
    %4075 = vmatprep.subr.bf16.mxu0 0
    %4076 = vmatpush1.bf16.xpose.msra.mxu0 0
    %4077 = vmatprep.subr.bf16.mxu0 0
    %4078 = vmatpush1.bf16.xpose.msra.mxu0 0
    %4079 = vmatprep.subr.bf16.mxu0 0
    %4080 = vmatpush1.bf16.xpose.msra.mxu0 0
    %4081 = vmatprep.subr.bf16.mxu0 0
    %4082 = vmatpush1.bf16.xpose.msra.mxu0 0
    %4083 = vmatprep.subr.bf16.mxu0 0
    %4084 = vmatpush1.bf16.xpose.msra.mxu0 0
    %4085 = vmatprep.subr.bf16.mxu0 0
    %4086 = vmatpush1.bf16.xpose.msra.mxu0 0
    %4087 = vmatprep.mubr.bf16.mxu0 0
    %4088 = vmatmul.mubr.bf16.gmra.mrb[0].mxu0 %v4050
    %v4089 = vpop.f32.mrb[0].mxu0
    %v4090 = vadd.f32 0.0, %v4089
    %v4091 = vpop.f32.mrb[0].mxu0
    %v4092 = vpop.f32.mrb[0].mxu0
    %v4093 = vpop.f32.mrb[0].mxu0
    %4094 = vdwg.mxu0
    %v4096 = vsel %vm897, %v3554, 0
    %v4099 = vsel %vm897, %v3614, 0
    %4101 = vmatprep.subr.bf16.mxu0 0
    %4102 = vmatpush1.bf16.xpose.msra.mxu0 %v4099
    %4103 = vmatprep.subr.bf16.mxu0 0
    %4104 = vmatpush1.bf16.xpose.msra.mxu0 0
    %4105 = vmatprep.subr.bf16.mxu0 0
    %4106 = vmatpush1.bf16.xpose.msra.mxu0 0
    %4107 = vmatprep.subr.bf16.mxu0 0
    %4108 = vmatpush1.bf16.xpose.msra.mxu0 0
    %4109 = vmatprep.subr.bf16.mxu0 0
    %4110 = vmatpush1.bf16.xpose.msra.mxu0 0
    %4111 = vmatprep.subr.bf16.mxu0 0
    %4112 = vmatpush1.bf16.xpose.msra.mxu0 0
    %4113 = vmatprep.subr.bf16.mxu0 0
    %4114 = vmatpush1.bf16.xpose.msra.mxu0 0
    %4115 = vmatprep.subr.bf16.mxu0 0
    %4116 = vmatpush1.bf16.xpose.msra.mxu0 0
    %4117 = vmatprep.subr.bf16.mxu0 0
    %4118 = vmatpush1.bf16.xpose.msra.mxu0 0
    %4119 = vmatprep.subr.bf16.mxu0 0
    %4120 = vmatpush1.bf16.xpose.msra.mxu0 0
    %4121 = vmatprep.subr.bf16.mxu0 0
    %4122 = vmatpush1.bf16.xpose.msra.mxu0 0
    %4123 = vmatprep.subr.bf16.mxu0 0
    %4124 = vmatpush1.bf16.xpose.msra.mxu0 0
    %4125 = vmatprep.subr.bf16.mxu0 0
    %4126 = vmatpush1.bf16.xpose.msra.mxu0 0
    %4127 = vmatprep.subr.bf16.mxu0 0
    %4128 = vmatpush1.bf16.xpose.msra.mxu0 0
    %4129 = vmatprep.subr.bf16.mxu0 0
    %4130 = vmatpush1.bf16.xpose.msra.mxu0 0
    %4131 = vmatprep.subr.bf16.mxu0 0
    %4132 = vmatpush1.bf16.xpose.msra.mxu0 0
    %4133 = vmatprep.mubr.bf16.mxu0 0
    %4134 = vmatmul.mubr.bf16.gmra.mrb[0].mxu0 %v4096
    %v4135 = vpop.f32.mrb[0].mxu0
    %v4136 = vadd.f32 0.0, %v4135
    %v4137 = vpop.f32.mrb[0].mxu0
    %v4138 = vpop.f32.mrb[0].mxu0
    %v4139 = vpop.f32.mrb[0].mxu0
    %4140 = vdwg.mxu0
    %v4142 = vsel %vm897, %v3555, 0
    %v4145 = vsel %vm897, %v3615, 0
    %4147 = vmatprep.subr.bf16.mxu0 0
    %4148 = vmatpush1.bf16.xpose.msra.mxu0 %v4145
    %4149 = vmatprep.subr.bf16.mxu0 0
    %4150 = vmatpush1.bf16.xpose.msra.mxu0 0
    %4151 = vmatprep.subr.bf16.mxu0 0
    %4152 = vmatpush1.bf16.xpose.msra.mxu0 0
    %4153 = vmatprep.subr.bf16.mxu0 0
    %4154 = vmatpush1.bf16.xpose.msra.mxu0 0
    %4155 = vmatprep.subr.bf16.mxu0 0
    %4156 = vmatpush1.bf16.xpose.msra.mxu0 0
    %4157 = vmatprep.subr.bf16.mxu0 0
    %4158 = vmatpush1.bf16.xpose.msra.mxu0 0
    %4159 = vmatprep.subr.bf16.mxu0 0
    %4160 = vmatpush1.bf16.xpose.msra.mxu0 0
    %4161 = vmatprep.subr.bf16.mxu0 0
    %4162 = vmatpush1.bf16.xpose.msra.mxu0 0
    %4163 = vmatprep.subr.bf16.mxu0 0
    %4164 = vmatpush1.bf16.xpose.msra.mxu0 0
    %4165 = vmatprep.subr.bf16.mxu0 0
    %4166 = vmatpush1.bf16.xpose.msra.mxu0 0
    %4167 = vmatprep.subr.bf16.mxu0 0
    %4168 = vmatpush1.bf16.xpose.msra.mxu0 0
    %4169 = vmatprep.subr.bf16.mxu0 0
    %4170 = vmatpush1.bf16.xpose.msra.mxu0 0
    %4171 = vmatprep.subr.bf16.mxu0 0
    %4172 = vmatpush1.bf16.xpose.msra.mxu0 0
    %4173 = vmatprep.subr.bf16.mxu0 0
    %4174 = vmatpush1.bf16.xpose.msra.mxu0 0
    %4175 = vmatprep.subr.bf16.mxu0 0
    %4176 = vmatpush1.bf16.xpose.msra.mxu0 0
    %4177 = vmatprep.subr.bf16.mxu0 0
    %4178 = vmatpush1.bf16.xpose.msra.mxu0 0
    %4179 = vmatprep.mubr.bf16.mxu0 0
    %4180 = vmatmul.mubr.bf16.gmra.mrb[0].mxu0 %v4142
    %v4181 = vpop.f32.mrb[0].mxu0
    %v4182 = vadd.f32 0.0, %v4181
    %v4183 = vpop.f32.mrb[0].mxu0
    %v4184 = vpop.f32.mrb[0].mxu0
    %v4185 = vpop.f32.mrb[0].mxu0
    %4186 = vdwg.mxu0
    %v4188 = vsel %vm897, %v3556, 0
    %v4191 = vsel %vm897, %v3616, 0
    %4193 = vmatprep.subr.bf16.mxu0 0
    %4194 = vmatpush1.bf16.xpose.msra.mxu0 %v4191
    %4195 = vmatprep.subr.bf16.mxu0 0
    %4196 = vmatpush1.bf16.xpose.msra.mxu0 0
    %4197 = vmatprep.subr.bf16.mxu0 0
    %4198 = vmatpush1.bf16.xpose.msra.mxu0 0
    %4199 = vmatprep.subr.bf16.mxu0 0
    %4200 = vmatpush1.bf16.xpose.msra.mxu0 0
    %4201 = vmatprep.subr.bf16.mxu0 0
    %4202 = vmatpush1.bf16.xpose.msra.mxu0 0
    %4203 = vmatprep.subr.bf16.mxu0 0
    %4204 = vmatpush1.bf16.xpose.msra.mxu0 0
    %4205 = vmatprep.subr.bf16.mxu0 0
    %4206 = vmatpush1.bf16.xpose.msra.mxu0 0
    %4207 = vmatprep.subr.bf16.mxu0 0
    %4208 = vmatpush1.bf16.xpose.msra.mxu0 0
    %4209 = vmatprep.subr.bf16.mxu0 0
    %4210 = vmatpush1.bf16.xpose.msra.mxu0 0
    %4211 = vmatprep.subr.bf16.mxu0 0
    %4212 = vmatpush1.bf16.xpose.msra.mxu0 0
    %4213 = vmatprep.subr.bf16.mxu0 0
    %4214 = vmatpush1.bf16.xpose.msra.mxu0 0
    %4215 = vmatprep.subr.bf16.mxu0 0
    %4216 = vmatpush1.bf16.xpose.msra.mxu0 0
    %4217 = vmatprep.subr.bf16.mxu0 0
    %4218 = vmatpush1.bf16.xpose.msra.mxu0 0
    %4219 = vmatprep.subr.bf16.mxu0 0
    %4220 = vmatpush1.bf16.xpose.msra.mxu0 0
    %4221 = vmatprep.subr.bf16.mxu0 0
    %4222 = vmatpush1.bf16.xpose.msra.mxu0 0
    %4223 = vmatprep.subr.bf16.mxu0 0
    %4224 = vmatpush1.bf16.xpose.msra.mxu0 0
    %4225 = vmatprep.mubr.bf16.mxu0 0
    %4226 = vmatmul.mubr.bf16.gmra.mrb[0].mxu0 %v4188
    %v4227 = vpop.f32.mrb[0].mxu0
    %v4228 = vadd.f32 0.0, %v4227
    %v4229 = vpop.f32.mrb[0].mxu0
    %v4230 = vpop.f32.mrb[0].mxu0
    %v4231 = vpop.f32.mrb[0].mxu0
    %4232 = vdwg.mxu0
    %v4234 = vsel %vm897, %v3557, 0
    %v4237 = vsel %vm897, %v3617, 0
    %4239 = vmatprep.subr.bf16.mxu0 0
    %4240 = vmatpush1.bf16.xpose.msra.mxu0 %v4237
    %4241 = vmatprep.subr.bf16.mxu0 0
    %4242 = vmatpush1.bf16.xpose.msra.mxu0 0
    %4243 = vmatprep.subr.bf16.mxu0 0
    %4244 = vmatpush1.bf16.xpose.msra.mxu0 0
    %4245 = vmatprep.subr.bf16.mxu0 0
    %4246 = vmatpush1.bf16.xpose.msra.mxu0 0
    %4247 = vmatprep.subr.bf16.mxu0 0
    %4248 = vmatpush1.bf16.xpose.msra.mxu0 0
    %4249 = vmatprep.subr.bf16.mxu0 0
    %4250 = vmatpush1.bf16.xpose.msra.mxu0 0
    %4251 = vmatprep.subr.bf16.mxu0 0
    %4252 = vmatpush1.bf16.xpose.msra.mxu0 0
    %4253 = vmatprep.subr.bf16.mxu0 0
    %4254 = vmatpush1.bf16.xpose.msra.mxu0 0
    %4255 = vmatprep.subr.bf16.mxu0 0
    %4256 = vmatpush1.bf16.xpose.msra.mxu0 0
    %4257 = vmatprep.subr.bf16.mxu0 0
    %4258 = vmatpush1.bf16.xpose.msra.mxu0 0
    %4259 = vmatprep.subr.bf16.mxu0 0
    %4260 = vmatpush1.bf16.xpose.msra.mxu0 0
    %4261 = vmatprep.subr.bf16.mxu0 0
    %4262 = vmatpush1.bf16.xpose.msra.mxu0 0
    %4263 = vmatprep.subr.bf16.mxu0 0
    %4264 = vmatpush1.bf16.xpose.msra.mxu0 0
    %4265 = vmatprep.subr.bf16.mxu0 0
    %4266 = vmatpush1.bf16.xpose.msra.mxu0 0
    %4267 = vmatprep.subr.bf16.mxu0 0
    %4268 = vmatpush1.bf16.xpose.msra.mxu0 0
    %4269 = vmatprep.subr.bf16.mxu0 0
    %4270 = vmatpush1.bf16.xpose.msra.mxu0 0
    %4271 = vmatprep.mubr.bf16.mxu0 0
    %4272 = vmatmul.mubr.bf16.gmra.mrb[0].mxu0 %v4234
    %v4273 = vpop.f32.mrb[0].mxu0
    %v4274 = vadd.f32 0.0, %v4273
    %v4275 = vpop.f32.mrb[0].mxu0
    %v4276 = vpop.f32.mrb[0].mxu0
    %v4277 = vpop.f32.mrb[0].mxu0
    %4278 = vdwg.mxu0
    %v4280 = vsel %vm897, %v3558, 0
    %v4283 = vsel %vm897, %v3618, 0
    %4285 = vmatprep.subr.bf16.mxu0 0
    %4286 = vmatpush1.bf16.xpose.msra.mxu0 %v4283
    %4287 = vmatprep.subr.bf16.mxu0 0
    %4288 = vmatpush1.bf16.xpose.msra.mxu0 0
    %4289 = vmatprep.subr.bf16.mxu0 0
    %4290 = vmatpush1.bf16.xpose.msra.mxu0 0
    %4291 = vmatprep.subr.bf16.mxu0 0
    %4292 = vmatpush1.bf16.xpose.msra.mxu0 0
    %4293 = vmatprep.subr.bf16.mxu0 0
    %4294 = vmatpush1.bf16.xpose.msra.mxu0 0
    %4295 = vmatprep.subr.bf16.mxu0 0
    %4296 = vmatpush1.bf16.xpose.msra.mxu0 0
    %4297 = vmatprep.subr.bf16.mxu0 0
    %4298 = vmatpush1.bf16.xpose.msra.mxu0 0
    %4299 = vmatprep.subr.bf16.mxu0 0
    %4300 = vmatpush1.bf16.xpose.msra.mxu0 0
    %4301 = vmatprep.subr.bf16.mxu0 0
    %4302 = vmatpush1.bf16.xpose.msra.mxu0 0
    %4303 = vmatprep.subr.bf16.mxu0 0
    %4304 = vmatpush1.bf16.xpose.msra.mxu0 0
    %4305 = vmatprep.subr.bf16.mxu0 0
    %4306 = vmatpush1.bf16.xpose.msra.mxu0 0
    %4307 = vmatprep.subr.bf16.mxu0 0
    %4308 = vmatpush1.bf16.xpose.msra.mxu0 0
    %4309 = vmatprep.subr.bf16.mxu0 0
    %4310 = vmatpush1.bf16.xpose.msra.mxu0 0
    %4311 = vmatprep.subr.bf16.mxu0 0
    %4312 = vmatpush1.bf16.xpose.msra.mxu0 0
    %4313 = vmatprep.subr.bf16.mxu0 0
    %4314 = vmatpush1.bf16.xpose.msra.mxu0 0
    %4315 = vmatprep.subr.bf16.mxu0 0
    %4316 = vmatpush1.bf16.xpose.msra.mxu0 0
    %4317 = vmatprep.mubr.bf16.mxu0 0
    %4318 = vmatmul.mubr.bf16.gmra.mrb[0].mxu0 %v4280
    %v4319 = vpop.f32.mrb[0].mxu0
    %v4320 = vadd.f32 0.0, %v4319
    %v4321 = vpop.f32.mrb[0].mxu0
    %v4322 = vpop.f32.mrb[0].mxu0
    %v4323 = vpop.f32.mrb[0].mxu0
    %4324 = vdwg.mxu0
    %v4326 = vsel %vm897, %v3559, 0
    %v4329 = vsel %vm897, %v3619, 0
    %4331 = vmatprep.subr.bf16.mxu0 0
    %4332 = vmatpush1.bf16.xpose.msra.mxu0 %v4329
    %4333 = vmatprep.subr.bf16.mxu0 0
    %4334 = vmatpush1.bf16.xpose.msra.mxu0 0
    %4335 = vmatprep.subr.bf16.mxu0 0
    %4336 = vmatpush1.bf16.xpose.msra.mxu0 0
    %4337 = vmatprep.subr.bf16.mxu0 0
    %4338 = vmatpush1.bf16.xpose.msra.mxu0 0
    %4339 = vmatprep.subr.bf16.mxu0 0
    %4340 = vmatpush1.bf16.xpose.msra.mxu0 0
    %4341 = vmatprep.subr.bf16.mxu0 0
    %4342 = vmatpush1.bf16.xpose.msra.mxu0 0
    %4343 = vmatprep.subr.bf16.mxu0 0
    %4344 = vmatpush1.bf16.xpose.msra.mxu0 0
    %4345 = vmatprep.subr.bf16.mxu0 0
    %4346 = vmatpush1.bf16.xpose.msra.mxu0 0
    %4347 = vmatprep.subr.bf16.mxu0 0
    %4348 = vmatpush1.bf16.xpose.msra.mxu0 0
    %4349 = vmatprep.subr.bf16.mxu0 0
    %4350 = vmatpush1.bf16.xpose.msra.mxu0 0
    %4351 = vmatprep.subr.bf16.mxu0 0
    %4352 = vmatpush1.bf16.xpose.msra.mxu0 0
    %4353 = vmatprep.subr.bf16.mxu0 0
    %4354 = vmatpush1.bf16.xpose.msra.mxu0 0
    %4355 = vmatprep.subr.bf16.mxu0 0
    %4356 = vmatpush1.bf16.xpose.msra.mxu0 0
    %4357 = vmatprep.subr.bf16.mxu0 0
    %4358 = vmatpush1.bf16.xpose.msra.mxu0 0
    %4359 = vmatprep.subr.bf16.mxu0 0
    %4360 = vmatpush1.bf16.xpose.msra.mxu0 0
    %4361 = vmatprep.subr.bf16.mxu0 0
    %4362 = vmatpush1.bf16.xpose.msra.mxu0 0
    %4363 = vmatprep.mubr.bf16.mxu0 0
    %4364 = vmatmul.mubr.bf16.gmra.mrb[0].mxu0 %v4326
    %v4365 = vpop.f32.mrb[0].mxu0
    %v4366 = vadd.f32 0.0, %v4365
    %v4367 = vpop.f32.mrb[0].mxu0
    %v4368 = vpop.f32.mrb[0].mxu0
    %v4369 = vpop.f32.mrb[0].mxu0
    %4370 = vdwg.mxu0
    %v4372 = vsel %vm897, %v3560, 0
    %v4375 = vsel %vm897, %v3620, 0
    %4377 = vmatprep.subr.bf16.mxu0 0
    %4378 = vmatpush1.bf16.xpose.msra.mxu0 %v4375
    %4379 = vmatprep.subr.bf16.mxu0 0
    %4380 = vmatpush1.bf16.xpose.msra.mxu0 0
    %4381 = vmatprep.subr.bf16.mxu0 0
    %4382 = vmatpush1.bf16.xpose.msra.mxu0 0
    %4383 = vmatprep.subr.bf16.mxu0 0
    %4384 = vmatpush1.bf16.xpose.msra.mxu0 0
    %4385 = vmatprep.subr.bf16.mxu0 0
    %4386 = vmatpush1.bf16.xpose.msra.mxu0 0
    %4387 = vmatprep.subr.bf16.mxu0 0
    %4388 = vmatpush1.bf16.xpose.msra.mxu0 0
    %4389 = vmatprep.subr.bf16.mxu0 0
    %4390 = vmatpush1.bf16.xpose.msra.mxu0 0
    %4391 = vmatprep.subr.bf16.mxu0 0
    %4392 = vmatpush1.bf16.xpose.msra.mxu0 0
    %4393 = vmatprep.subr.bf16.mxu0 0
    %4394 = vmatpush1.bf16.xpose.msra.mxu0 0
    %4395 = vmatprep.subr.bf16.mxu0 0
    %4396 = vmatpush1.bf16.xpose.msra.mxu0 0
    %4397 = vmatprep.subr.bf16.mxu0 0
    %4398 = vmatpush1.bf16.xpose.msra.mxu0 0
    %4399 = vmatprep.subr.bf16.mxu0 0
    %4400 = vmatpush1.bf16.xpose.msra.mxu0 0
    %4401 = vmatprep.subr.bf16.mxu0 0
    %4402 = vmatpush1.bf16.xpose.msra.mxu0 0
    %4403 = vmatprep.subr.bf16.mxu0 0
    %4404 = vmatpush1.bf16.xpose.msra.mxu0 0
    %4405 = vmatprep.subr.bf16.mxu0 0
    %4406 = vmatpush1.bf16.xpose.msra.mxu0 0
    %4407 = vmatprep.subr.bf16.mxu0 0
    %4408 = vmatpush1.bf16.xpose.msra.mxu0 0
    %4409 = vmatprep.mubr.bf16.mxu0 0
    %4410 = vmatmul.mubr.bf16.gmra.mrb[0].mxu0 %v4372
    %v4411 = vpop.f32.mrb[0].mxu0
    %v4412 = vadd.f32 0.0, %v4411
    %v4413 = vpop.f32.mrb[0].mxu0
    %v4414 = vpop.f32.mrb[0].mxu0
    %v4415 = vpop.f32.mrb[0].mxu0
    %4416 = vdwg.mxu0
    %v4417 = vsel %vm1634, %v3722, -inf
    %4418 = vmax.xlane.f32.xlu0 %v4417
    %v4419 = vpop.xlane.xlu0 %4418
    %v4420 = vsel %vm1634, %v3768, -inf
    %4421 = vmax.xlane.f32.xlu0 %v4420
    %v4422 = vpop.xlane.xlu0 %4421
    %v4423 = vsel %vm1634, %v3814, -inf
    %4424 = vmax.xlane.f32.xlu0 %v4423
    %v4425 = vpop.xlane.xlu0 %4424
    %v4426 = vsel %vm1634, %v3860, -inf
    %4427 = vmax.xlane.f32.xlu0 %v4426
    %v4428 = vpop.xlane.xlu0 %4427
    %v4429 = vsel %vm1634, %v3906, -inf
    %4430 = vmax.xlane.f32.xlu0 %v4429
    %v4431 = vpop.xlane.xlu0 %4430
    %v4432 = vsel %vm1634, %v3952, -inf
    %4433 = vmax.xlane.f32.xlu0 %v4432
    %v4434 = vpop.xlane.xlu0 %4433
    %v4435 = vsel %vm1634, %v3998, -inf
    %4436 = vmax.xlane.f32.xlu0 %v4435
    %v4437 = vpop.xlane.xlu0 %4436
    %v4438 = vsel %vm1634, %v4044, -inf
    %4439 = vmax.xlane.f32.xlu0 %v4438
    %v4440 = vpop.xlane.xlu0 %4439
    %v4441 = vsel %vm1634, %v4090, -inf
    %4442 = vmax.xlane.f32.xlu0 %v4441
    %v4443 = vpop.xlane.xlu0 %4442
    %v4444 = vsel %vm1634, %v4136, -inf
    %4445 = vmax.xlane.f32.xlu0 %v4444
    %v4446 = vpop.xlane.xlu0 %4445
    %v4447 = vsel %vm1634, %v4182, -inf
    %4448 = vmax.xlane.f32.xlu0 %v4447
    %v4449 = vpop.xlane.xlu0 %4448
    %v4450 = vsel %vm1634, %v4228, -inf
    %4451 = vmax.xlane.f32.xlu0 %v4450
    %v4452 = vpop.xlane.xlu0 %4451
    %v4453 = vsel %vm1634, %v4274, -inf
    %4454 = vmax.xlane.f32.xlu0 %v4453
    %v4455 = vpop.xlane.xlu0 %4454
    %v4456 = vsel %vm1634, %v4320, -inf
    %4457 = vmax.xlane.f32.xlu0 %v4456
    %v4458 = vpop.xlane.xlu0 %4457
    %v4459 = vsel %vm1634, %v4366, -inf
    %4460 = vmax.xlane.f32.xlu0 %v4459
    %v4461 = vpop.xlane.xlu0 %4460
    %v4462 = vsel %vm1634, %v4412, -inf
    %4463 = vmax.xlane.f32.xlu0 %v4462
    %v4464 = vpop.xlane.xlu0 %4463
    %v4465 = vsub.f32 %v3722, %v4419
    %v4466 = vsub.f32 %v3768, %v4422
    %v4467 = vsub.f32 %v3814, %v4425
    %v4468 = vsub.f32 %v3860, %v4428
    %v4469 = vsub.f32 %v3906, %v4431
    %v4470 = vsub.f32 %v3952, %v4434
    %v4471 = vsub.f32 %v3998, %v4437
    %v4472 = vsub.f32 %v4044, %v4440
    %v4473 = vsub.f32 %v4090, %v4443
    %v4474 = vsub.f32 %v4136, %v4446
    %v4475 = vsub.f32 %v4182, %v4449
    %v4476 = vsub.f32 %v4228, %v4452
    %v4477 = vsub.f32 %v4274, %v4455
    %v4478 = vsub.f32 %v4320, %v4458
    %v4479 = vsub.f32 %v4366, %v4461
    %v4480 = vsub.f32 %v4412, %v4464
    %v4481 = vmul.f32 %v4465, 1.442695
    %v4482 = vpow.pop %v4481
    %v4483 = vmul.f32 %v4466, 1.442695
    %v4484 = vpow.pop %v4483
    %v4485 = vmul.f32 %v4467, 1.442695
    %v4486 = vpow.pop %v4485
    %v4487 = vmul.f32 %v4468, 1.442695
    %v4488 = vpow.pop %v4487
    %v4489 = vmul.f32 %v4469, 1.442695
    %v4490 = vpow.pop %v4489
    %v4491 = vmul.f32 %v4470, 1.442695
    %v4492 = vpow.pop %v4491
    %v4493 = vmul.f32 %v4471, 1.442695
    %v4494 = vpow.pop %v4493
    %v4495 = vmul.f32 %v4472, 1.442695
    %v4496 = vpow.pop %v4495
    %v4497 = vmul.f32 %v4473, 1.442695
    %v4498 = vpow.pop %v4497
    %v4499 = vmul.f32 %v4474, 1.442695
    %v4500 = vpow.pop %v4499
    %v4501 = vmul.f32 %v4475, 1.442695
    %v4502 = vpow.pop %v4501
    %v4503 = vmul.f32 %v4476, 1.442695
    %v4504 = vpow.pop %v4503
    %v4505 = vmul.f32 %v4477, 1.442695
    %v4506 = vpow.pop %v4505
    %v4507 = vmul.f32 %v4478, 1.442695
    %v4508 = vpow.pop %v4507
    %v4509 = vmul.f32 %v4479, 1.442695
    %v4510 = vpow.pop %v4509
    %v4511 = vmul.f32 %v4480, 1.442695
    %v4512 = vpow.pop %v4511
    %v4513 = vsel %vm1634, %v4482, 0.0
    %4514 = vadd.xlane.f32.xlu0 %v4513
    %v4515 = vpop.xlane.xlu0 %4514
    %v4516 = vsel %vm1634, %v4484, 0.0
    %4517 = vadd.xlane.f32.xlu0 %v4516
    %v4518 = vpop.xlane.xlu0 %4517
    %v4519 = vsel %vm1634, %v4486, 0.0
    %4520 = vadd.xlane.f32.xlu0 %v4519
    %v4521 = vpop.xlane.xlu0 %4520
    %v4522 = vsel %vm1634, %v4488, 0.0
    %4523 = vadd.xlane.f32.xlu0 %v4522
    %v4524 = vpop.xlane.xlu0 %4523
    %v4525 = vsel %vm1634, %v4490, 0.0
    %4526 = vadd.xlane.f32.xlu0 %v4525
    %v4527 = vpop.xlane.xlu0 %4526
    %v4528 = vsel %vm1634, %v4492, 0.0
    %4529 = vadd.xlane.f32.xlu0 %v4528
    %v4530 = vpop.xlane.xlu0 %4529
    %v4531 = vsel %vm1634, %v4494, 0.0
    %4532 = vadd.xlane.f32.xlu0 %v4531
    %v4533 = vpop.xlane.xlu0 %4532
    %v4534 = vsel %vm1634, %v4496, 0.0
    %4535 = vadd.xlane.f32.xlu0 %v4534
    %v4536 = vpop.xlane.xlu0 %4535
    %v4537 = vsel %vm1634, %v4498, 0.0
    %4538 = vadd.xlane.f32.xlu0 %v4537
    %v4539 = vpop.xlane.xlu0 %4538
    %v4540 = vsel %vm1634, %v4500, 0.0
    %4541 = vadd.xlane.f32.xlu0 %v4540
    %v4542 = vpop.xlane.xlu0 %4541
    %v4543 = vsel %vm1634, %v4502, 0.0
    %4544 = vadd.xlane.f32.xlu0 %v4543
    %v4545 = vpop.xlane.xlu0 %4544
    %v4546 = vsel %vm1634, %v4504, 0.0
    %4547 = vadd.xlane.f32.xlu0 %v4546
    %v4548 = vpop.xlane.xlu0 %4547
    %v4549 = vsel %vm1634, %v4506, 0.0
    %4550 = vadd.xlane.f32.xlu0 %v4549
    %v4551 = vpop.xlane.xlu0 %4550
    %v4552 = vsel %vm1634, %v4508, 0.0
    %4553 = vadd.xlane.f32.xlu0 %v4552
    %v4554 = vpop.xlane.xlu0 %4553
    %v4555 = vsel %vm1634, %v4510, 0.0
    %4556 = vadd.xlane.f32.xlu0 %v4555
    %v4557 = vpop.xlane.xlu0 %4556
    %v4558 = vsel %vm1634, %v4512, 0.0
    %4559 = vadd.xlane.f32.xlu0 %v4558
    %v4560 = vpop.xlane.xlu0 %4559
    %v4561 = vrcp.pop %v4515
    %v4562 = vrcp.pop %v4518
    %v4563 = vrcp.pop %v4521
    %v4564 = vrcp.pop %v4524
    %v4565 = vrcp.pop %v4527
    %v4566 = vrcp.pop %v4530
    %v4567 = vrcp.pop %v4533
    %v4568 = vrcp.pop %v4536
    %v4569 = vrcp.pop %v4539
    %v4570 = vrcp.pop %v4542
    %v4571 = vrcp.pop %v4545
    %v4572 = vrcp.pop %v4548
    %v4573 = vrcp.pop %v4551
    %v4574 = vrcp.pop %v4554
    %v4575 = vrcp.pop %v4557
    %v4576 = vrcp.pop %v4560
    %v4577 = vmul.f32 %v4482, %v4561
    %v4578 = vmul.f32 %v4484, %v4562
    %v4579 = vmul.f32 %v4486, %v4563
    %v4580 = vmul.f32 %v4488, %v4564
    %v4581 = vmul.f32 %v4490, %v4565
    %v4582 = vmul.f32 %v4492, %v4566
    %v4583 = vmul.f32 %v4494, %v4567
    %v4584 = vmul.f32 %v4496, %v4568
    %v4585 = vmul.f32 %v4498, %v4569
    %v4586 = vmul.f32 %v4500, %v4570
    %v4587 = vmul.f32 %v4502, %v4571
    %v4588 = vmul.f32 %v4504, %v4572
    %v4589 = vmul.f32 %v4506, %v4573
    %v4590 = vmul.f32 %v4508, %v4574
    %v4591 = vmul.f32 %v4510, %v4575
    %v4592 = vmul.f32 %v4512, %v4576
    %v4593 = vpack.c.bf16 %v4577, %v4577
    %v4594 = vpack.c.bf16 %v4578, %v4578
    %v4595 = vpack.c.bf16 %v4579, %v4579
    %v4596 = vpack.c.bf16 %v4580, %v4580
    %v4597 = vpack.c.bf16 %v4581, %v4581
    %v4598 = vpack.c.bf16 %v4582, %v4582
    %v4599 = vpack.c.bf16 %v4583, %v4583
    %v4600 = vpack.c.bf16 %v4584, %v4584
    %v4601 = vpack.c.bf16 %v4585, %v4585
    %v4602 = vpack.c.bf16 %v4586, %v4586
    %v4603 = vpack.c.bf16 %v4587, %v4587
    %v4604 = vpack.c.bf16 %v4588, %v4588
    %v4605 = vpack.c.bf16 %v4589, %v4589
    %v4606 = vpack.c.bf16 %v4590, %v4590
    %v4607 = vpack.c.bf16 %v4591, %v4591
    %v4608 = vpack.c.bf16 %v4592, %v4592
    %v4610 = vsel %vm1634, %v4593, 0
    %v4613 = vsel %vm1830, %v3665, 0
    %4615 = vmatprep.subr.bf16.mxu0 0
    %4616 = vmatpush1.bf16.msra.mxu0 %v4613
    %4617 = vmatprep.subr.bf16.mxu0 0
    %4618 = vmatpush1.bf16.msra.mxu0 0
    %4619 = vmatprep.subr.bf16.mxu0 0
    %4620 = vmatpush1.bf16.msra.mxu0 0
    %4621 = vmatprep.subr.bf16.mxu0 0
    %4622 = vmatpush1.bf16.msra.mxu0 0
    %4623 = vmatprep.subr.bf16.mxu0 0
    %4624 = vmatpush1.bf16.msra.mxu0 0
    %4625 = vmatprep.subr.bf16.mxu0 0
    %4626 = vmatpush1.bf16.msra.mxu0 0
    %4627 = vmatprep.subr.bf16.mxu0 0
    %4628 = vmatpush1.bf16.msra.mxu0 0
    %4629 = vmatprep.subr.bf16.mxu0 0
    %4630 = vmatpush1.bf16.msra.mxu0 0
    %4631 = vmatprep.subr.bf16.mxu0 0
    %4632 = vmatpush1.bf16.msra.mxu0 0
    %4633 = vmatprep.subr.bf16.mxu0 0
    %4634 = vmatpush1.bf16.msra.mxu0 0
    %4635 = vmatprep.subr.bf16.mxu0 0
    %4636 = vmatpush1.bf16.msra.mxu0 0
    %4637 = vmatprep.subr.bf16.mxu0 0
    %4638 = vmatpush1.bf16.msra.mxu0 0
    %4639 = vmatprep.subr.bf16.mxu0 0
    %4640 = vmatpush1.bf16.msra.mxu0 0
    %4641 = vmatprep.subr.bf16.mxu0 0
    %4642 = vmatpush1.bf16.msra.mxu0 0
    %4643 = vmatprep.subr.bf16.mxu0 0
    %4644 = vmatpush1.bf16.msra.mxu0 0
    %4645 = vmatprep.subr.bf16.mxu0 0
    %4646 = vmatpush1.bf16.msra.mxu0 0
    %4647 = vmatprep.mubr.bf16.mxu0 0
    %4648 = vmatmul.mubr.bf16.gmra.mrb[0].mxu0 %v4610
    %v4649 = vpop.f32.mrb[0].mxu0
    %v4650 = vadd.f32 0.0, %v4649
    %v4651 = vpop.f32.mrb[0].mxu0
    %v4652 = vpop.f32.mrb[0].mxu0
    %v4653 = vpop.f32.mrb[0].mxu0
    %4654 = vdwg.mxu0
    %v4656 = vsel %vm1634, %v4594, 0
    %v4659 = vsel %vm1830, %v3666, 0
    %4661 = vmatprep.subr.bf16.mxu0 0
    %4662 = vmatpush1.bf16.msra.mxu0 %v4659
    %4663 = vmatprep.subr.bf16.mxu0 0
    %4664 = vmatpush1.bf16.msra.mxu0 0
    %4665 = vmatprep.subr.bf16.mxu0 0
    %4666 = vmatpush1.bf16.msra.mxu0 0
    %4667 = vmatprep.subr.bf16.mxu0 0
    %4668 = vmatpush1.bf16.msra.mxu0 0
    %4669 = vmatprep.subr.bf16.mxu0 0
    %4670 = vmatpush1.bf16.msra.mxu0 0
    %4671 = vmatprep.subr.bf16.mxu0 0
    %4672 = vmatpush1.bf16.msra.mxu0 0
    %4673 = vmatprep.subr.bf16.mxu0 0
    %4674 = vmatpush1.bf16.msra.mxu0 0
    %4675 = vmatprep.subr.bf16.mxu0 0
    %4676 = vmatpush1.bf16.msra.mxu0 0
    %4677 = vmatprep.subr.bf16.mxu0 0
    %4678 = vmatpush1.bf16.msra.mxu0 0
    %4679 = vmatprep.subr.bf16.mxu0 0
    %4680 = vmatpush1.bf16.msra.mxu0 0
    %4681 = vmatprep.subr.bf16.mxu0 0
    %4682 = vmatpush1.bf16.msra.mxu0 0
    %4683 = vmatprep.subr.bf16.mxu0 0
    %4684 = vmatpush1.bf16.msra.mxu0 0
    %4685 = vmatprep.subr.bf16.mxu0 0
    %4686 = vmatpush1.bf16.msra.mxu0 0
    %4687 = vmatprep.subr.bf16.mxu0 0
    %4688 = vmatpush1.bf16.msra.mxu0 0
    %4689 = vmatprep.subr.bf16.mxu0 0
    %4690 = vmatpush1.bf16.msra.mxu0 0
    %4691 = vmatprep.subr.bf16.mxu0 0
    %4692 = vmatpush1.bf16.msra.mxu0 0
    %4693 = vmatprep.mubr.bf16.mxu0 0
    %4694 = vmatmul.mubr.bf16.gmra.mrb[0].mxu0 %v4656
    %v4695 = vpop.f32.mrb[0].mxu0
    %v4696 = vadd.f32 0.0, %v4695
    %v4697 = vpop.f32.mrb[0].mxu0
    %v4698 = vpop.f32.mrb[0].mxu0
    %v4699 = vpop.f32.mrb[0].mxu0
    %4700 = vdwg.mxu0
    %v4702 = vsel %vm1634, %v4595, 0
    %v4705 = vsel %vm1830, %v3667, 0
    %4707 = vmatprep.subr.bf16.mxu0 0
    %4708 = vmatpush1.bf16.msra.mxu0 %v4705
    %4709 = vmatprep.subr.bf16.mxu0 0
    %4710 = vmatpush1.bf16.msra.mxu0 0
    %4711 = vmatprep.subr.bf16.mxu0 0
    %4712 = vmatpush1.bf16.msra.mxu0 0
    %4713 = vmatprep.subr.bf16.mxu0 0
    %4714 = vmatpush1.bf16.msra.mxu0 0
    %4715 = vmatprep.subr.bf16.mxu0 0
    %4716 = vmatpush1.bf16.msra.mxu0 0
    %4717 = vmatprep.subr.bf16.mxu0 0
    %4718 = vmatpush1.bf16.msra.mxu0 0
    %4719 = vmatprep.subr.bf16.mxu0 0
    %4720 = vmatpush1.bf16.msra.mxu0 0
    %4721 = vmatprep.subr.bf16.mxu0 0
    %4722 = vmatpush1.bf16.msra.mxu0 0
    %4723 = vmatprep.subr.bf16.mxu0 0
    %4724 = vmatpush1.bf16.msra.mxu0 0
    %4725 = vmatprep.subr.bf16.mxu0 0
    %4726 = vmatpush1.bf16.msra.mxu0 0
    %4727 = vmatprep.subr.bf16.mxu0 0
    %4728 = vmatpush1.bf16.msra.mxu0 0
    %4729 = vmatprep.subr.bf16.mxu0 0
    %4730 = vmatpush1.bf16.msra.mxu0 0
    %4731 = vmatprep.subr.bf16.mxu0 0
    %4732 = vmatpush1.bf16.msra.mxu0 0
    %4733 = vmatprep.subr.bf16.mxu0 0
    %4734 = vmatpush1.bf16.msra.mxu0 0
    %4735 = vmatprep.subr.bf16.mxu0 0
    %4736 = vmatpush1.bf16.msra.mxu0 0
    %4737 = vmatprep.subr.bf16.mxu0 0
    %4738 = vmatpush1.bf16.msra.mxu0 0
    %4739 = vmatprep.mubr.bf16.mxu0 0
    %4740 = vmatmul.mubr.bf16.gmra.mrb[0].mxu0 %v4702
    %v4741 = vpop.f32.mrb[0].mxu0
    %v4742 = vadd.f32 0.0, %v4741
    %v4743 = vpop.f32.mrb[0].mxu0
    %v4744 = vpop.f32.mrb[0].mxu0
    %v4745 = vpop.f32.mrb[0].mxu0
    %4746 = vdwg.mxu0
    %v4748 = vsel %vm1634, %v4596, 0
    %v4751 = vsel %vm1830, %v3668, 0
    %4753 = vmatprep.subr.bf16.mxu0 0
    %4754 = vmatpush1.bf16.msra.mxu0 %v4751
    %4755 = vmatprep.subr.bf16.mxu0 0
    %4756 = vmatpush1.bf16.msra.mxu0 0
    %4757 = vmatprep.subr.bf16.mxu0 0
    %4758 = vmatpush1.bf16.msra.mxu0 0
    %4759 = vmatprep.subr.bf16.mxu0 0
    %4760 = vmatpush1.bf16.msra.mxu0 0
    %4761 = vmatprep.subr.bf16.mxu0 0
    %4762 = vmatpush1.bf16.msra.mxu0 0
    %4763 = vmatprep.subr.bf16.mxu0 0
    %4764 = vmatpush1.bf16.msra.mxu0 0
    %4765 = vmatprep.subr.bf16.mxu0 0
    %4766 = vmatpush1.bf16.msra.mxu0 0
    %4767 = vmatprep.subr.bf16.mxu0 0
    %4768 = vmatpush1.bf16.msra.mxu0 0
    %4769 = vmatprep.subr.bf16.mxu0 0
    %4770 = vmatpush1.bf16.msra.mxu0 0
    %4771 = vmatprep.subr.bf16.mxu0 0
    %4772 = vmatpush1.bf16.msra.mxu0 0
    %4773 = vmatprep.subr.bf16.mxu0 0
    %4774 = vmatpush1.bf16.msra.mxu0 0
    %4775 = vmatprep.subr.bf16.mxu0 0
    %4776 = vmatpush1.bf16.msra.mxu0 0
    %4777 = vmatprep.subr.bf16.mxu0 0
    %4778 = vmatpush1.bf16.msra.mxu0 0
    %4779 = vmatprep.subr.bf16.mxu0 0
    %4780 = vmatpush1.bf16.msra.mxu0 0
    %4781 = vmatprep.subr.bf16.mxu0 0
    %4782 = vmatpush1.bf16.msra.mxu0 0
    %4783 = vmatprep.subr.bf16.mxu0 0
    %4784 = vmatpush1.bf16.msra.mxu0 0
    %4785 = vmatprep.mubr.bf16.mxu0 0
    %4786 = vmatmul.mubr.bf16.gmra.mrb[0].mxu0 %v4748
    %v4787 = vpop.f32.mrb[0].mxu0
    %v4788 = vadd.f32 0.0, %v4787
    %v4789 = vpop.f32.mrb[0].mxu0
    %v4790 = vpop.f32.mrb[0].mxu0
    %v4791 = vpop.f32.mrb[0].mxu0
    %4792 = vdwg.mxu0
    %v4794 = vsel %vm1634, %v4597, 0
    %v4797 = vsel %vm1830, %v3669, 0
    %4799 = vmatprep.subr.bf16.mxu0 0
    %4800 = vmatpush1.bf16.msra.mxu0 %v4797
    %4801 = vmatprep.subr.bf16.mxu0 0
    %4802 = vmatpush1.bf16.msra.mxu0 0
    %4803 = vmatprep.subr.bf16.mxu0 0
    %4804 = vmatpush1.bf16.msra.mxu0 0
    %4805 = vmatprep.subr.bf16.mxu0 0
    %4806 = vmatpush1.bf16.msra.mxu0 0
    %4807 = vmatprep.subr.bf16.mxu0 0
    %4808 = vmatpush1.bf16.msra.mxu0 0
    %4809 = vmatprep.subr.bf16.mxu0 0
    %4810 = vmatpush1.bf16.msra.mxu0 0
    %4811 = vmatprep.subr.bf16.mxu0 0
    %4812 = vmatpush1.bf16.msra.mxu0 0
    %4813 = vmatprep.subr.bf16.mxu0 0
    %4814 = vmatpush1.bf16.msra.mxu0 0
    %4815 = vmatprep.subr.bf16.mxu0 0
    %4816 = vmatpush1.bf16.msra.mxu0 0
    %4817 = vmatprep.subr.bf16.mxu0 0
    %4818 = vmatpush1.bf16.msra.mxu0 0
    %4819 = vmatprep.subr.bf16.mxu0 0
    %4820 = vmatpush1.bf16.msra.mxu0 0
    %4821 = vmatprep.subr.bf16.mxu0 0
    %4822 = vmatpush1.bf16.msra.mxu0 0
    %4823 = vmatprep.subr.bf16.mxu0 0
    %4824 = vmatpush1.bf16.msra.mxu0 0
    %4825 = vmatprep.subr.bf16.mxu0 0
    %4826 = vmatpush1.bf16.msra.mxu0 0
    %4827 = vmatprep.subr.bf16.mxu0 0
    %4828 = vmatpush1.bf16.msra.mxu0 0
    %4829 = vmatprep.subr.bf16.mxu0 0
    %4830 = vmatpush1.bf16.msra.mxu0 0
    %4831 = vmatprep.mubr.bf16.mxu0 0
    %4832 = vmatmul.mubr.bf16.gmra.mrb[0].mxu0 %v4794
    %v4833 = vpop.f32.mrb[0].mxu0
    %v4834 = vadd.f32 0.0, %v4833
    %v4835 = vpop.f32.mrb[0].mxu0
    %v4836 = vpop.f32.mrb[0].mxu0
    %v4837 = vpop.f32.mrb[0].mxu0
    %4838 = vdwg.mxu0
    %v4840 = vsel %vm1634, %v4598, 0
    %v4843 = vsel %vm1830, %v3670, 0
    %4845 = vmatprep.subr.bf16.mxu0 0
    %4846 = vmatpush1.bf16.msra.mxu0 %v4843
    %4847 = vmatprep.subr.bf16.mxu0 0
    %4848 = vmatpush1.bf16.msra.mxu0 0
    %4849 = vmatprep.subr.bf16.mxu0 0
    %4850 = vmatpush1.bf16.msra.mxu0 0
    %4851 = vmatprep.subr.bf16.mxu0 0
    %4852 = vmatpush1.bf16.msra.mxu0 0
    %4853 = vmatprep.subr.bf16.mxu0 0
    %4854 = vmatpush1.bf16.msra.mxu0 0
    %4855 = vmatprep.subr.bf16.mxu0 0
    %4856 = vmatpush1.bf16.msra.mxu0 0
    %4857 = vmatprep.subr.bf16.mxu0 0
    %4858 = vmatpush1.bf16.msra.mxu0 0
    %4859 = vmatprep.subr.bf16.mxu0 0
    %4860 = vmatpush1.bf16.msra.mxu0 0
    %4861 = vmatprep.subr.bf16.mxu0 0
    %4862 = vmatpush1.bf16.msra.mxu0 0
    %4863 = vmatprep.subr.bf16.mxu0 0
    %4864 = vmatpush1.bf16.msra.mxu0 0
    %4865 = vmatprep.subr.bf16.mxu0 0
    %4866 = vmatpush1.bf16.msra.mxu0 0
    %4867 = vmatprep.subr.bf16.mxu0 0
    %4868 = vmatpush1.bf16.msra.mxu0 0
    %4869 = vmatprep.subr.bf16.mxu0 0
    %4870 = vmatpush1.bf16.msra.mxu0 0
    %4871 = vmatprep.subr.bf16.mxu0 0
    %4872 = vmatpush1.bf16.msra.mxu0 0
    %4873 = vmatprep.subr.bf16.mxu0 0
    %4874 = vmatpush1.bf16.msra.mxu0 0
    %4875 = vmatprep.subr.bf16.mxu0 0
    %4876 = vmatpush1.bf16.msra.mxu0 0
    %4877 = vmatprep.mubr.bf16.mxu0 0
    %4878 = vmatmul.mubr.bf16.gmra.mrb[0].mxu0 %v4840
    %v4879 = vpop.f32.mrb[0].mxu0
    %v4880 = vadd.f32 0.0, %v4879
    %v4881 = vpop.f32.mrb[0].mxu0
    %v4882 = vpop.f32.mrb[0].mxu0
    %v4883 = vpop.f32.mrb[0].mxu0
    %4884 = vdwg.mxu0
    %v4886 = vsel %vm1634, %v4599, 0
    %v4889 = vsel %vm1830, %v3671, 0
    %4891 = vmatprep.subr.bf16.mxu0 0
    %4892 = vmatpush1.bf16.msra.mxu0 %v4889
    %4893 = vmatprep.subr.bf16.mxu0 0
    %4894 = vmatpush1.bf16.msra.mxu0 0
    %4895 = vmatprep.subr.bf16.mxu0 0
    %4896 = vmatpush1.bf16.msra.mxu0 0
    %4897 = vmatprep.subr.bf16.mxu0 0
    %4898 = vmatpush1.bf16.msra.mxu0 0
    %4899 = vmatprep.subr.bf16.mxu0 0
    %4900 = vmatpush1.bf16.msra.mxu0 0
    %4901 = vmatprep.subr.bf16.mxu0 0
    %4902 = vmatpush1.bf16.msra.mxu0 0
    %4903 = vmatprep.subr.bf16.mxu0 0
    %4904 = vmatpush1.bf16.msra.mxu0 0
    %4905 = vmatprep.subr.bf16.mxu0 0
    %4906 = vmatpush1.bf16.msra.mxu0 0
    %4907 = vmatprep.subr.bf16.mxu0 0
    %4908 = vmatpush1.bf16.msra.mxu0 0
    %4909 = vmatprep.subr.bf16.mxu0 0
    %4910 = vmatpush1.bf16.msra.mxu0 0
    %4911 = vmatprep.subr.bf16.mxu0 0
    %4912 = vmatpush1.bf16.msra.mxu0 0
    %4913 = vmatprep.subr.bf16.mxu0 0
    %4914 = vmatpush1.bf16.msra.mxu0 0
    %4915 = vmatprep.subr.bf16.mxu0 0
    %4916 = vmatpush1.bf16.msra.mxu0 0
    %4917 = vmatprep.subr.bf16.mxu0 0
    %4918 = vmatpush1.bf16.msra.mxu0 0
    %4919 = vmatprep.subr.bf16.mxu0 0
    %4920 = vmatpush1.bf16.msra.mxu0 0
    %4921 = vmatprep.subr.bf16.mxu0 0
    %4922 = vmatpush1.bf16.msra.mxu0 0
    %4923 = vmatprep.mubr.bf16.mxu0 0
    %4924 = vmatmul.mubr.bf16.gmra.mrb[0].mxu0 %v4886
    %v4925 = vpop.f32.mrb[0].mxu0
    %v4926 = vadd.f32 0.0, %v4925
    %v4927 = vpop.f32.mrb[0].mxu0
    %v4928 = vpop.f32.mrb[0].mxu0
    %v4929 = vpop.f32.mrb[0].mxu0
    %4930 = vdwg.mxu0
    %v4932 = vsel %vm1634, %v4600, 0
    %v4935 = vsel %vm1830, %v3672, 0
    %4937 = vmatprep.subr.bf16.mxu0 0
    %4938 = vmatpush1.bf16.msra.mxu0 %v4935
    %4939 = vmatprep.subr.bf16.mxu0 0
    %4940 = vmatpush1.bf16.msra.mxu0 0
    %4941 = vmatprep.subr.bf16.mxu0 0
    %4942 = vmatpush1.bf16.msra.mxu0 0
    %4943 = vmatprep.subr.bf16.mxu0 0
    %4944 = vmatpush1.bf16.msra.mxu0 0
    %4945 = vmatprep.subr.bf16.mxu0 0
    %4946 = vmatpush1.bf16.msra.mxu0 0
    %4947 = vmatprep.subr.bf16.mxu0 0
    %4948 = vmatpush1.bf16.msra.mxu0 0
    %4949 = vmatprep.subr.bf16.mxu0 0
    %4950 = vmatpush1.bf16.msra.mxu0 0
    %4951 = vmatprep.subr.bf16.mxu0 0
    %4952 = vmatpush1.bf16.msra.mxu0 0
    %4953 = vmatprep.subr.bf16.mxu0 0
    %4954 = vmatpush1.bf16.msra.mxu0 0
    %4955 = vmatprep.subr.bf16.mxu0 0
    %4956 = vmatpush1.bf16.msra.mxu0 0
    %4957 = vmatprep.subr.bf16.mxu0 0
    %4958 = vmatpush1.bf16.msra.mxu0 0
    %4959 = vmatprep.subr.bf16.mxu0 0
    %4960 = vmatpush1.bf16.msra.mxu0 0
    %4961 = vmatprep.subr.bf16.mxu0 0
    %4962 = vmatpush1.bf16.msra.mxu0 0
    %4963 = vmatprep.subr.bf16.mxu0 0
    %4964 = vmatpush1.bf16.msra.mxu0 0
    %4965 = vmatprep.subr.bf16.mxu0 0
    %4966 = vmatpush1.bf16.msra.mxu0 0
    %4967 = vmatprep.subr.bf16.mxu0 0
    %4968 = vmatpush1.bf16.msra.mxu0 0
    %4969 = vmatprep.mubr.bf16.mxu0 0
    %4970 = vmatmul.mubr.bf16.gmra.mrb[0].mxu0 %v4932
    %v4971 = vpop.f32.mrb[0].mxu0
    %v4972 = vadd.f32 0.0, %v4971
    %v4973 = vpop.f32.mrb[0].mxu0
    %v4974 = vpop.f32.mrb[0].mxu0
    %v4975 = vpop.f32.mrb[0].mxu0
    %4976 = vdwg.mxu0
    %v4978 = vsel %vm1634, %v4601, 0
    %v4981 = vsel %vm1830, %v3673, 0
    %4983 = vmatprep.subr.bf16.mxu0 0
    %4984 = vmatpush1.bf16.msra.mxu0 %v4981
    %4985 = vmatprep.subr.bf16.mxu0 0
    %4986 = vmatpush1.bf16.msra.mxu0 0
    %4987 = vmatprep.subr.bf16.mxu0 0
    %4988 = vmatpush1.bf16.msra.mxu0 0
    %4989 = vmatprep.subr.bf16.mxu0 0
    %4990 = vmatpush1.bf16.msra.mxu0 0
    %4991 = vmatprep.subr.bf16.mxu0 0
    %4992 = vmatpush1.bf16.msra.mxu0 0
    %4993 = vmatprep.subr.bf16.mxu0 0
    %4994 = vmatpush1.bf16.msra.mxu0 0
    %4995 = vmatprep.subr.bf16.mxu0 0
    %4996 = vmatpush1.bf16.msra.mxu0 0
    %4997 = vmatprep.subr.bf16.mxu0 0
    %4998 = vmatpush1.bf16.msra.mxu0 0
    %4999 = vmatprep.subr.bf16.mxu0 0
    %5000 = vmatpush1.bf16.msra.mxu0 0
    %5001 = vmatprep.subr.bf16.mxu0 0
    %5002 = vmatpush1.bf16.msra.mxu0 0
    %5003 = vmatprep.subr.bf16.mxu0 0
    %5004 = vmatpush1.bf16.msra.mxu0 0
    %5005 = vmatprep.subr.bf16.mxu0 0
    %5006 = vmatpush1.bf16.msra.mxu0 0
    %5007 = vmatprep.subr.bf16.mxu0 0
    %5008 = vmatpush1.bf16.msra.mxu0 0
    %5009 = vmatprep.subr.bf16.mxu0 0
    %5010 = vmatpush1.bf16.msra.mxu0 0
    %5011 = vmatprep.subr.bf16.mxu0 0
    %5012 = vmatpush1.bf16.msra.mxu0 0
    %5013 = vmatprep.subr.bf16.mxu0 0
    %5014 = vmatpush1.bf16.msra.mxu0 0
    %5015 = vmatprep.mubr.bf16.mxu0 0
    %5016 = vmatmul.mubr.bf16.gmra.mrb[0].mxu0 %v4978
    %v5017 = vpop.f32.mrb[0].mxu0
    %v5018 = vadd.f32 0.0, %v5017
    %v5019 = vpop.f32.mrb[0].mxu0
    %v5020 = vpop.f32.mrb[0].mxu0
    %v5021 = vpop.f32.mrb[0].mxu0
    %5022 = vdwg.mxu0
    %v5024 = vsel %vm1634, %v4602, 0
    %v5027 = vsel %vm1830, %v3674, 0
    %5029 = vmatprep.subr.bf16.mxu0 0
    %5030 = vmatpush1.bf16.msra.mxu0 %v5027
    %5031 = vmatprep.subr.bf16.mxu0 0
    %5032 = vmatpush1.bf16.msra.mxu0 0
    %5033 = vmatprep.subr.bf16.mxu0 0
    %5034 = vmatpush1.bf16.msra.mxu0 0
    %5035 = vmatprep.subr.bf16.mxu0 0
    %5036 = vmatpush1.bf16.msra.mxu0 0
    %5037 = vmatprep.subr.bf16.mxu0 0
    %5038 = vmatpush1.bf16.msra.mxu0 0
    %5039 = vmatprep.subr.bf16.mxu0 0
    %5040 = vmatpush1.bf16.msra.mxu0 0
    %5041 = vmatprep.subr.bf16.mxu0 0
    %5042 = vmatpush1.bf16.msra.mxu0 0
    %5043 = vmatprep.subr.bf16.mxu0 0
    %5044 = vmatpush1.bf16.msra.mxu0 0
    %5045 = vmatprep.subr.bf16.mxu0 0
    %5046 = vmatpush1.bf16.msra.mxu0 0
    %5047 = vmatprep.subr.bf16.mxu0 0
    %5048 = vmatpush1.bf16.msra.mxu0 0
    %5049 = vmatprep.subr.bf16.mxu0 0
    %5050 = vmatpush1.bf16.msra.mxu0 0
    %5051 = vmatprep.subr.bf16.mxu0 0
    %5052 = vmatpush1.bf16.msra.mxu0 0
    %5053 = vmatprep.subr.bf16.mxu0 0
    %5054 = vmatpush1.bf16.msra.mxu0 0
    %5055 = vmatprep.subr.bf16.mxu0 0
    %5056 = vmatpush1.bf16.msra.mxu0 0
    %5057 = vmatprep.subr.bf16.mxu0 0
    %5058 = vmatpush1.bf16.msra.mxu0 0
    %5059 = vmatprep.subr.bf16.mxu0 0
    %5060 = vmatpush1.bf16.msra.mxu0 0
    %5061 = vmatprep.mubr.bf16.mxu0 0
    %5062 = vmatmul.mubr.bf16.gmra.mrb[0].mxu0 %v5024
    %v5063 = vpop.f32.mrb[0].mxu0
    %v5064 = vadd.f32 0.0, %v5063
    %v5065 = vpop.f32.mrb[0].mxu0
    %v5066 = vpop.f32.mrb[0].mxu0
    %v5067 = vpop.f32.mrb[0].mxu0
    %5068 = vdwg.mxu0
    %v5070 = vsel %vm1634, %v4603, 0
    %v5073 = vsel %vm1830, %v3675, 0
    %5075 = vmatprep.subr.bf16.mxu0 0
    %5076 = vmatpush1.bf16.msra.mxu0 %v5073
    %5077 = vmatprep.subr.bf16.mxu0 0
    %5078 = vmatpush1.bf16.msra.mxu0 0
    %5079 = vmatprep.subr.bf16.mxu0 0
    %5080 = vmatpush1.bf16.msra.mxu0 0
    %5081 = vmatprep.subr.bf16.mxu0 0
    %5082 = vmatpush1.bf16.msra.mxu0 0
    %5083 = vmatprep.subr.bf16.mxu0 0
    %5084 = vmatpush1.bf16.msra.mxu0 0
    %5085 = vmatprep.subr.bf16.mxu0 0
    %5086 = vmatpush1.bf16.msra.mxu0 0
    %5087 = vmatprep.subr.bf16.mxu0 0
    %5088 = vmatpush1.bf16.msra.mxu0 0
    %5089 = vmatprep.subr.bf16.mxu0 0
    %5090 = vmatpush1.bf16.msra.mxu0 0
    %5091 = vmatprep.subr.bf16.mxu0 0
    %5092 = vmatpush1.bf16.msra.mxu0 0
    %5093 = vmatprep.subr.bf16.mxu0 0
    %5094 = vmatpush1.bf16.msra.mxu0 0
    %5095 = vmatprep.subr.bf16.mxu0 0
    %5096 = vmatpush1.bf16.msra.mxu0 0
    %5097 = vmatprep.subr.bf16.mxu0 0
    %5098 = vmatpush1.bf16.msra.mxu0 0
    %5099 = vmatprep.subr.bf16.mxu0 0
    %5100 = vmatpush1.bf16.msra.mxu0 0
    %5101 = vmatprep.subr.bf16.mxu0 0
    %5102 = vmatpush1.bf16.msra.mxu0 0
    %5103 = vmatprep.subr.bf16.mxu0 0
    %5104 = vmatpush1.bf16.msra.mxu0 0
    %5105 = vmatprep.subr.bf16.mxu0 0
    %5106 = vmatpush1.bf16.msra.mxu0 0
    %5107 = vmatprep.mubr.bf16.mxu0 0
    %5108 = vmatmul.mubr.bf16.gmra.mrb[0].mxu0 %v5070
    %v5109 = vpop.f32.mrb[0].mxu0
    %v5110 = vadd.f32 0.0, %v5109
    %v5111 = vpop.f32.mrb[0].mxu0
    %v5112 = vpop.f32.mrb[0].mxu0
    %v5113 = vpop.f32.mrb[0].mxu0
    %5114 = vdwg.mxu0
    %v5116 = vsel %vm1634, %v4604, 0
    %v5119 = vsel %vm1830, %v3676, 0
    %5121 = vmatprep.subr.bf16.mxu0 0
    %5122 = vmatpush1.bf16.msra.mxu0 %v5119
    %5123 = vmatprep.subr.bf16.mxu0 0
    %5124 = vmatpush1.bf16.msra.mxu0 0
    %5125 = vmatprep.subr.bf16.mxu0 0
    %5126 = vmatpush1.bf16.msra.mxu0 0
    %5127 = vmatprep.subr.bf16.mxu0 0
    %5128 = vmatpush1.bf16.msra.mxu0 0
    %5129 = vmatprep.subr.bf16.mxu0 0
    %5130 = vmatpush1.bf16.msra.mxu0 0
    %5131 = vmatprep.subr.bf16.mxu0 0
    %5132 = vmatpush1.bf16.msra.mxu0 0
    %5133 = vmatprep.subr.bf16.mxu0 0
    %5134 = vmatpush1.bf16.msra.mxu0 0
    %5135 = vmatprep.subr.bf16.mxu0 0
    %5136 = vmatpush1.bf16.msra.mxu0 0
    %5137 = vmatprep.subr.bf16.mxu0 0
    %5138 = vmatpush1.bf16.msra.mxu0 0
    %5139 = vmatprep.subr.bf16.mxu0 0
    %5140 = vmatpush1.bf16.msra.mxu0 0
    %5141 = vmatprep.subr.bf16.mxu0 0
    %5142 = vmatpush1.bf16.msra.mxu0 0
    %5143 = vmatprep.subr.bf16.mxu0 0
    %5144 = vmatpush1.bf16.msra.mxu0 0
    %5145 = vmatprep.subr.bf16.mxu0 0
    %5146 = vmatpush1.bf16.msra.mxu0 0
    %5147 = vmatprep.subr.bf16.mxu0 0
    %5148 = vmatpush1.bf16.msra.mxu0 0
    %5149 = vmatprep.subr.bf16.mxu0 0
    %5150 = vmatpush1.bf16.msra.mxu0 0
    %5151 = vmatprep.subr.bf16.mxu0 0
    %5152 = vmatpush1.bf16.msra.mxu0 0
    %5153 = vmatprep.mubr.bf16.mxu0 0
    %5154 = vmatmul.mubr.bf16.gmra.mrb[0].mxu0 %v5116
    %v5155 = vpop.f32.mrb[0].mxu0
    %v5156 = vadd.f32 0.0, %v5155
    %v5157 = vpop.f32.mrb[0].mxu0
    %v5158 = vpop.f32.mrb[0].mxu0
    %v5159 = vpop.f32.mrb[0].mxu0
    %5160 = vdwg.mxu0
    %v5162 = vsel %vm1634, %v4605, 0
    %v5165 = vsel %vm1830, %v3677, 0
    %5167 = vmatprep.subr.bf16.mxu0 0
    %5168 = vmatpush1.bf16.msra.mxu0 %v5165
    %5169 = vmatprep.subr.bf16.mxu0 0
    %5170 = vmatpush1.bf16.msra.mxu0 0
    %5171 = vmatprep.subr.bf16.mxu0 0
    %5172 = vmatpush1.bf16.msra.mxu0 0
    %5173 = vmatprep.subr.bf16.mxu0 0
    %5174 = vmatpush1.bf16.msra.mxu0 0
    %5175 = vmatprep.subr.bf16.mxu0 0
    %5176 = vmatpush1.bf16.msra.mxu0 0
    %5177 = vmatprep.subr.bf16.mxu0 0
    %5178 = vmatpush1.bf16.msra.mxu0 0
    %5179 = vmatprep.subr.bf16.mxu0 0
    %5180 = vmatpush1.bf16.msra.mxu0 0
    %5181 = vmatprep.subr.bf16.mxu0 0
    %5182 = vmatpush1.bf16.msra.mxu0 0
    %5183 = vmatprep.subr.bf16.mxu0 0
    %5184 = vmatpush1.bf16.msra.mxu0 0
    %5185 = vmatprep.subr.bf16.mxu0 0
    %5186 = vmatpush1.bf16.msra.mxu0 0
    %5187 = vmatprep.subr.bf16.mxu0 0
    %5188 = vmatpush1.bf16.msra.mxu0 0
    %5189 = vmatprep.subr.bf16.mxu0 0
    %5190 = vmatpush1.bf16.msra.mxu0 0
    %5191 = vmatprep.subr.bf16.mxu0 0
    %5192 = vmatpush1.bf16.msra.mxu0 0
    %5193 = vmatprep.subr.bf16.mxu0 0
    %5194 = vmatpush1.bf16.msra.mxu0 0
    %5195 = vmatprep.subr.bf16.mxu0 0
    %5196 = vmatpush1.bf16.msra.mxu0 0
    %5197 = vmatprep.subr.bf16.mxu0 0
    %5198 = vmatpush1.bf16.msra.mxu0 0
    %5199 = vmatprep.mubr.bf16.mxu0 0
    %5200 = vmatmul.mubr.bf16.gmra.mrb[0].mxu0 %v5162
    %v5201 = vpop.f32.mrb[0].mxu0
    %v5202 = vadd.f32 0.0, %v5201
    %v5203 = vpop.f32.mrb[0].mxu0
    %v5204 = vpop.f32.mrb[0].mxu0
    %v5205 = vpop.f32.mrb[0].mxu0
    %5206 = vdwg.mxu0
    %v5208 = vsel %vm1634, %v4606, 0
    %v5211 = vsel %vm1830, %v3678, 0
    %5213 = vmatprep.subr.bf16.mxu0 0
    %5214 = vmatpush1.bf16.msra.mxu0 %v5211
    %5215 = vmatprep.subr.bf16.mxu0 0
    %5216 = vmatpush1.bf16.msra.mxu0 0
    %5217 = vmatprep.subr.bf16.mxu0 0
    %5218 = vmatpush1.bf16.msra.mxu0 0
    %5219 = vmatprep.subr.bf16.mxu0 0
    %5220 = vmatpush1.bf16.msra.mxu0 0
    %5221 = vmatprep.subr.bf16.mxu0 0
    %5222 = vmatpush1.bf16.msra.mxu0 0
    %5223 = vmatprep.subr.bf16.mxu0 0
    %5224 = vmatpush1.bf16.msra.mxu0 0
    %5225 = vmatprep.subr.bf16.mxu0 0
    %5226 = vmatpush1.bf16.msra.mxu0 0
    %5227 = vmatprep.subr.bf16.mxu0 0
    %5228 = vmatpush1.bf16.msra.mxu0 0
    %5229 = vmatprep.subr.bf16.mxu0 0
    %5230 = vmatpush1.bf16.msra.mxu0 0
    %5231 = vmatprep.subr.bf16.mxu0 0
    %5232 = vmatpush1.bf16.msra.mxu0 0
    %5233 = vmatprep.subr.bf16.mxu0 0
    %5234 = vmatpush1.bf16.msra.mxu0 0
    %5235 = vmatprep.subr.bf16.mxu0 0
    %5236 = vmatpush1.bf16.msra.mxu0 0
    %5237 = vmatprep.subr.bf16.mxu0 0
    %5238 = vmatpush1.bf16.msra.mxu0 0
    %5239 = vmatprep.subr.bf16.mxu0 0
    %5240 = vmatpush1.bf16.msra.mxu0 0
    %5241 = vmatprep.subr.bf16.mxu0 0
    %5242 = vmatpush1.bf16.msra.mxu0 0
    %5243 = vmatprep.subr.bf16.mxu0 0
    %5244 = vmatpush1.bf16.msra.mxu0 0
    %5245 = vmatprep.mubr.bf16.mxu0 0
    %5246 = vmatmul.mubr.bf16.gmra.mrb[0].mxu0 %v5208
    %v5247 = vpop.f32.mrb[0].mxu0
    %v5248 = vadd.f32 0.0, %v5247
    %v5249 = vpop.f32.mrb[0].mxu0
    %v5250 = vpop.f32.mrb[0].mxu0
    %v5251 = vpop.f32.mrb[0].mxu0
    %5252 = vdwg.mxu0
    %v5254 = vsel %vm1634, %v4607, 0
    %v5257 = vsel %vm1830, %v3679, 0
    %5259 = vmatprep.subr.bf16.mxu0 0
    %5260 = vmatpush1.bf16.msra.mxu0 %v5257
    %5261 = vmatprep.subr.bf16.mxu0 0
    %5262 = vmatpush1.bf16.msra.mxu0 0
    %5263 = vmatprep.subr.bf16.mxu0 0
    %5264 = vmatpush1.bf16.msra.mxu0 0
    %5265 = vmatprep.subr.bf16.mxu0 0
    %5266 = vmatpush1.bf16.msra.mxu0 0
    %5267 = vmatprep.subr.bf16.mxu0 0
    %5268 = vmatpush1.bf16.msra.mxu0 0
    %5269 = vmatprep.subr.bf16.mxu0 0
    %5270 = vmatpush1.bf16.msra.mxu0 0
    %5271 = vmatprep.subr.bf16.mxu0 0
    %5272 = vmatpush1.bf16.msra.mxu0 0
    %5273 = vmatprep.subr.bf16.mxu0 0
    %5274 = vmatpush1.bf16.msra.mxu0 0
    %5275 = vmatprep.subr.bf16.mxu0 0
    %5276 = vmatpush1.bf16.msra.mxu0 0
    %5277 = vmatprep.subr.bf16.mxu0 0
    %5278 = vmatpush1.bf16.msra.mxu0 0
    %5279 = vmatprep.subr.bf16.mxu0 0
    %5280 = vmatpush1.bf16.msra.mxu0 0
    %5281 = vmatprep.subr.bf16.mxu0 0
    %5282 = vmatpush1.bf16.msra.mxu0 0
    %5283 = vmatprep.subr.bf16.mxu0 0
    %5284 = vmatpush1.bf16.msra.mxu0 0
    %5285 = vmatprep.subr.bf16.mxu0 0
    %5286 = vmatpush1.bf16.msra.mxu0 0
    %5287 = vmatprep.subr.bf16.mxu0 0
    %5288 = vmatpush1.bf16.msra.mxu0 0
    %5289 = vmatprep.subr.bf16.mxu0 0
    %5290 = vmatpush1.bf16.msra.mxu0 0
    %5291 = vmatprep.mubr.bf16.mxu0 0
    %5292 = vmatmul.mubr.bf16.gmra.mrb[0].mxu0 %v5254
    %v5293 = vpop.f32.mrb[0].mxu0
    %v5294 = vadd.f32 0.0, %v5293
    %v5295 = vpop.f32.mrb[0].mxu0
    %v5296 = vpop.f32.mrb[0].mxu0
    %v5297 = vpop.f32.mrb[0].mxu0
    %5298 = vdwg.mxu0
    %v5300 = vsel %vm1634, %v4608, 0
    %v5303 = vsel %vm1830, %v3680, 0
    %5305 = vmatprep.subr.bf16.mxu0 0
    %5306 = vmatpush1.bf16.msra.mxu0 %v5303
    %5307 = vmatprep.subr.bf16.mxu0 0
    %5308 = vmatpush1.bf16.msra.mxu0 0
    %5309 = vmatprep.subr.bf16.mxu0 0
    %5310 = vmatpush1.bf16.msra.mxu0 0
    %5311 = vmatprep.subr.bf16.mxu0 0
    %5312 = vmatpush1.bf16.msra.mxu0 0
    %5313 = vmatprep.subr.bf16.mxu0 0
    %5314 = vmatpush1.bf16.msra.mxu0 0
    %5315 = vmatprep.subr.bf16.mxu0 0
    %5316 = vmatpush1.bf16.msra.mxu0 0
    %5317 = vmatprep.subr.bf16.mxu0 0
    %5318 = vmatpush1.bf16.msra.mxu0 0
    %5319 = vmatprep.subr.bf16.mxu0 0
    %5320 = vmatpush1.bf16.msra.mxu0 0
    %5321 = vmatprep.subr.bf16.mxu0 0
    %5322 = vmatpush1.bf16.msra.mxu0 0
    %5323 = vmatprep.subr.bf16.mxu0 0
    %5324 = vmatpush1.bf16.msra.mxu0 0
    %5325 = vmatprep.subr.bf16.mxu0 0
    %5326 = vmatpush1.bf16.msra.mxu0 0
    %5327 = vmatprep.subr.bf16.mxu0 0
    %5328 = vmatpush1.bf16.msra.mxu0 0
    %5329 = vmatprep.subr.bf16.mxu0 0
    %5330 = vmatpush1.bf16.msra.mxu0 0
    %5331 = vmatprep.subr.bf16.mxu0 0
    %5332 = vmatpush1.bf16.msra.mxu0 0
    %5333 = vmatprep.subr.bf16.mxu0 0
    %5334 = vmatpush1.bf16.msra.mxu0 0
    %5335 = vmatprep.subr.bf16.mxu0 0
    %5336 = vmatpush1.bf16.msra.mxu0 0
    %5337 = vmatprep.mubr.bf16.mxu0 0
    %5338 = vmatmul.mubr.bf16.gmra.mrb[0].mxu0 %v5300
    %v5339 = vpop.f32.mrb[0].mxu0
    %v5340 = vadd.f32 0.0, %v5339
    %v5341 = vpop.f32.mrb[0].mxu0
    %v5342 = vpop.f32.mrb[0].mxu0
    %v5343 = vpop.f32.mrb[0].mxu0
    %5344 = vdwg.mxu0
    %5347 = vrot.lane.b32.xlu0 %v4742, 16
    %v5348 = vpop.permute.xlu0 %5347
    %5349 = vrot.lane.b32.xlu0 %v4788, 16
    %v5350 = vpop.permute.xlu0 %5349
    %5355 = vrot.lane.b32.xlu0 %v4834, 32
    %v5356 = vpop.permute.xlu0 %5355
    %5357 = vrot.lane.b32.xlu0 %v4880, 32
    %v5358 = vpop.permute.xlu0 %5357
    %5363 = vrot.lane.b32.xlu0 %v4926, 48
    %v5364 = vpop.permute.xlu0 %5363
    %5365 = vrot.lane.b32.xlu0 %v4972, 48
    %v5366 = vpop.permute.xlu0 %5365
    %5371 = vrot.lane.b32.xlu0 %v5018, 64
    %v5372 = vpop.permute.xlu0 %5371
    %5373 = vrot.lane.b32.xlu0 %v5064, 64
    %v5374 = vpop.permute.xlu0 %5373
    %5379 = vrot.lane.b32.xlu0 %v5110, 80
    %v5380 = vpop.permute.xlu0 %5379
    %5381 = vrot.lane.b32.xlu0 %v5156, 80
    %v5382 = vpop.permute.xlu0 %5381
    %5387 = vrot.lane.b32.xlu0 %v5202, 96
    %v5388 = vpop.permute.xlu0 %5387
    %5389 = vrot.lane.b32.xlu0 %v5248, 96
    %v5390 = vpop.permute.xlu0 %5389
    %5395 = vrot.lane.b32.xlu0 %v5294, 112
    %v5396 = vpop.permute.xlu0 %5395
    %5397 = vrot.lane.b32.xlu0 %v5340, 112
    %v5398 = vpop.permute.xlu0 %5397
    %v5401 = vsel %vm897, %v4650, %v5348
    %v5402 = vsel %vm897, %v4696, %v5350
    %v5403 = vsel %vm304, %v5401, %v5356
    %v5404 = vsel %vm304, %v5402, %v5358
    %v5405 = vsel %vm2624, %v5403, %v5364
    %v5406 = vsel %vm2624, %v5404, %v5366
    %v5407 = vsel %vm2627, %v5405, %v5372
    %v5408 = vsel %vm2627, %v5406, %v5374
    %v5409 = vsel %vm2630, %v5407, %v5380
    %v5410 = vsel %vm2630, %v5408, %v5382
    %v5411 = vsel %vm2633, %v5409, %v5388
    %v5412 = vsel %vm2633, %v5410, %v5390
    %v5413 = vsel %vm2636, %v5411, %v5396
    %v5414 = vsel %vm2636, %v5412, %v5398
    %v5415 = vpack.c.bf16 %v5414, %v5413
    %s5416 = scalar_lea.vmem [#allocation14], 64
    %v5417 = vld [vmem:[%s5416] sm:$0xf]
    %v5418 = vld [vmem:[%s5416 + $0x4] sm:$0xf]
    %v5419 = vld [vmem:[%s5416 + $0x8] sm:$0xf]
    %v5420 = vld [vmem:[%s5416 + $0xc] sm:$0xf]
    %v5421 = vld [vmem:[%s5416 + $0x10] sm:$0xf]
    %v5422 = vld [vmem:[%s5416 + $0x14] sm:$0xf]
    %v5423 = vld [vmem:[%s5416 + $0x18] sm:$0xf]
    %v5424 = vld [vmem:[%s5416 + $0x1c] sm:$0xf]
    %v5425 = vld [vmem:[%s5416 + $0x20] sm:$0xf]
    %v5426 = vld [vmem:[%s5416 + $0x24] sm:$0xf]
    %v5427 = vld [vmem:[%s5416 + $0x28] sm:$0xf]
    %v5428 = vld [vmem:[%s5416 + $0x2c] sm:$0xf]
    %v5429 = vld [vmem:[%s5416 + $0x30] sm:$0xf]
    %v5430 = vld [vmem:[%s5416 + $0x34] sm:$0xf]
    %v5431 = vld [vmem:[%s5416 + $0x38] sm:$0xf]
    %v5432 = vld [vmem:[%s5416 + $0x3c] sm:$0xf]
    %v5433 = vld [vmem:[#allocation16 + $0x1] sm:$0x1]
    %v5434 = vlaneseq
    %v5435 = vshrl.u32 %v5434, 7
    %v5436 = vsub.s32 0, %v5435
    %v5437 = vrot.slane %v5433, %v5436
    %v5454 = vunpack.c.l.b16 %v5417
    %v5455 = vunpack.c.l.b16 %v5418
    %v5456 = vunpack.c.l.b16 %v5419
    %v5457 = vunpack.c.l.b16 %v5420
    %v5458 = vunpack.c.l.b16 %v5421
    %v5459 = vunpack.c.l.b16 %v5422
    %v5460 = vunpack.c.l.b16 %v5423
    %v5461 = vunpack.c.l.b16 %v5424
    %v5462 = vunpack.c.l.b16 %v5425
    %v5463 = vunpack.c.l.b16 %v5426
    %v5464 = vunpack.c.l.b16 %v5427
    %v5465 = vunpack.c.l.b16 %v5428
    %v5466 = vunpack.c.l.b16 %v5429
    %v5467 = vunpack.c.l.b16 %v5430
    %v5468 = vunpack.c.l.b16 %v5431
    %v5469 = vunpack.c.l.b16 %v5432
    %v5470 = vpack.c.b16 %v5455, %v5454
    %v5471 = vpack.c.b16 %v5457, %v5456
    %v5472 = vpack.c.b16 %v5459, %v5458
    %v5473 = vpack.c.b16 %v5461, %v5460
    %v5474 = vpack.c.b16 %v5463, %v5462
    %v5475 = vpack.c.b16 %v5465, %v5464
    %v5476 = vpack.c.b16 %v5467, %v5466
    %v5477 = vpack.c.b16 %v5469, %v5468
    %5486 = vmatprep.subr.bf16.mxu0 0
    %5487 = vmatpush1.bf16.msra.mxu0 %v5470
    %5488 = vmatprep.subr.bf16.mxu0 0
    %5489 = vmatpush1.bf16.msra.mxu0 %v5471
    %5490 = vmatprep.subr.bf16.mxu0 0
    %5491 = vmatpush1.bf16.msra.mxu0 %v5472
    %5492 = vmatprep.subr.bf16.mxu0 0
    %5493 = vmatpush1.bf16.msra.mxu0 %v5473
    %5494 = vmatprep.subr.bf16.mxu0 0
    %5495 = vmatpush1.bf16.msra.mxu0 %v5474
    %5496 = vmatprep.subr.bf16.mxu0 0
    %5497 = vmatpush1.bf16.msra.mxu0 %v5475
    %5498 = vmatprep.subr.bf16.mxu0 0
    %5499 = vmatpush1.bf16.msra.mxu0 %v5476
    %5500 = vmatprep.subr.bf16.mxu0 0
    %5501 = vmatpush1.bf16.msra.mxu0 %v5477
    %5502 = vmatprep.subr.bf16.mxu0 0
    %5503 = vmatpush1.bf16.msra.mxu0 0
    %5504 = vmatprep.subr.bf16.mxu0 0
    %5505 = vmatpush1.bf16.msra.mxu0 0
    %5506 = vmatprep.subr.bf16.mxu0 0
    %5507 = vmatpush1.bf16.msra.mxu0 0
    %5508 = vmatprep.subr.bf16.mxu0 0
    %5509 = vmatpush1.bf16.msra.mxu0 0
    %5510 = vmatprep.subr.bf16.mxu0 0
    %5511 = vmatpush1.bf16.msra.mxu0 0
    %5512 = vmatprep.subr.bf16.mxu0 0
    %5513 = vmatpush1.bf16.msra.mxu0 0
    %5514 = vmatprep.subr.bf16.mxu0 0
    %5515 = vmatpush1.bf16.msra.mxu0 0
    %5516 = vmatprep.subr.bf16.mxu0 0
    %5517 = vmatpush1.bf16.msra.mxu0 0
    %5518 = vmatprep.mubr.bf16.mxu0 0
    %5519 = vmatmul.mubr.bf16.gmra.mrb[0].mxu0 %v5415
    %v5520 = vpop.f32.mrb[0].mxu0
    %v5521 = vadd.f32 %v5437, %v5520
    %v5522 = vpop.f32.mrb[0].mxu0
    %v5523 = vpop.f32.mrb[0].mxu0
    %v5524 = vadd.f32 %v5437, %v5523
    %v5525 = vpop.f32.mrb[0].mxu0
    %5526 = vdwg.mxu0
    %v5527 = vadd.f32 %v3165, %v5521
    %v5528 = vadd.f32 %v3166, %v5524
    %v5529 = vld [vmem:[#allocation17 + $0x1] sm:$0x1]
    %v5530 = vld [vmem:[#allocation19 + $0x1] sm:$0x1]
    %5531 = vadd.xlane.f32.xlu0 %v5527
    %v5532 = vpop.xlane.xlu0 %5531
    %5533 = vadd.xlane.f32.xlu0 %v5528
    %v5534 = vpop.xlane.xlu0 %5533
    %v5535 = vmul.f32 %v5532, %v2758
    %v5536 = vmul.f32 %v5534, %v2758
    %v5537 = vmul.f32 %v5527, %v5527
    %v5538 = vmul.f32 %v5528, %v5528
    %5539 = vadd.xlane.f32.xlu0 %v5537
    %v5540 = vpop.xlane.xlu0 %5539
    %5541 = vadd.xlane.f32.xlu0 %v5538
    %v5542 = vpop.xlane.xlu0 %5541
    %v5543 = vmul.f32 %v5540, %v2758
    %v5544 = vmul.f32 %v5542, %v2758
    %v5545 = vmul.f32 %v5535, %v5535
    %v5546 = vmul.f32 %v5536, %v5536
    %v5547 = vsub.f32 %v5543, %v5545
    %v5548 = vsub.f32 %v5544, %v5546
    %v5549 = vsub.f32 %v5527, %v5535
    %v5550 = vsub.f32 %v5528, %v5536
    %v5551 = vadd.f32 %v5547, 1e-05
    %v5552 = vadd.f32 %v5548, 1e-05
    %v5553 = vrsqrt.pop %v5551
    %v5554 = vrsqrt.pop %v5552
    %v5555 = vmul.f32 %v5549, %v5553
    %v5556 = vmul.f32 %v5550, %v5554
    %v5557 = vlaneseq
    %v5558 = vshrl.u32 %v5557, 7
    %v5559 = vsub.s32 0, %v5558
    %v5560 = vrot.slane %v5529, %v5559
    %v5561 = vmul.f32 %v5555, %v5560
    %v5562 = vmul.f32 %v5556, %v5560
    %v5563 = vlaneseq
    %v5564 = vshrl.u32 %v5563, 7
    %v5565 = vsub.s32 0, %v5564
    %v5566 = vrot.slane %v5530, %v5565
    %v5567 = vadd.f32 %v5561, %v5566
    %v5568 = vadd.f32 %v5562, %v5566
    %v5569 = vpack.c.bf16 %v5568, %v5567
    %s5570 = scalar_lea.vmem [#allocation20], 128
    %v5571 = vld [vmem:[%s5570] sm:$0xff]
    %v5572 = vld [vmem:[%s5570 + $0x8] sm:$0xff]
    %v5573 = vld [vmem:[%s5570 + $0x10] sm:$0xff]
    %v5574 = vld [vmem:[%s5570 + $0x18] sm:$0xff]
    %v5575 = vld [vmem:[%s5570 + $0x20] sm:$0xff]
    %v5576 = vld [vmem:[%s5570 + $0x28] sm:$0xff]
    %v5577 = vld [vmem:[%s5570 + $0x30] sm:$0xff]
    %v5578 = vld [vmem:[%s5570 + $0x38] sm:$0xff]
    %v5579 = vld [vmem:[%s5570 + $0x40] sm:$0xff]
    %v5580 = vld [vmem:[%s5570 + $0x48] sm:$0xff]
    %v5581 = vld [vmem:[%s5570 + $0x50] sm:$0xff]
    %v5582 = vld [vmem:[%s5570 + $0x58] sm:$0xff]
    %v5583 = vld [vmem:[%s5570 + $0x60] sm:$0xff]
    %v5584 = vld [vmem:[%s5570 + $0x68] sm:$0xff]
    %v5585 = vld [vmem:[%s5570 + $0x70] sm:$0xff]
    %v5586 = vld [vmem:[%s5570 + $0x78] sm:$0xff]
    %s5587 = scalar_lea.vmem [#allocation22], 1
    %v5588 = vld [vmem:[%s5587] ss:$4 sm:$0x3]
    %v5590 = vlaneseq
    %v5591 = vshrl.u32 %v5590, 7
    %v5592 = vsub.s32 0, %v5591
    %v5593 = vrot.slane %v5588, %v5592
    %v5594 = vlaneseq
    %v5595 = vshrl.u32 %v5594, 7
    %v5596 = vsub.s32 1, %v5595
    %v5597 = vrot.slane %v5588, %v5596
    %v5616 = vunpack.c.l.b16 %v5571
    %v5617 = vunpack.c.h.b16 %v5571
    %v5618 = vunpack.c.l.b16 %v5572
    %v5619 = vunpack.c.h.b16 %v5572
    %v5620 = vunpack.c.l.b16 %v5573
    %v5621 = vunpack.c.h.b16 %v5573
    %v5622 = vunpack.c.l.b16 %v5574
    %v5623 = vunpack.c.h.b16 %v5574
    %v5624 = vunpack.c.l.b16 %v5575
    %v5625 = vunpack.c.h.b16 %v5575
    %v5626 = vunpack.c.l.b16 %v5576
    %v5627 = vunpack.c.h.b16 %v5576
    %v5628 = vunpack.c.l.b16 %v5577
    %v5629 = vunpack.c.h.b16 %v5577
    %v5630 = vunpack.c.l.b16 %v5578
    %v5631 = vunpack.c.h.b16 %v5578
    %v5632 = vunpack.c.l.b16 %v5579
    %v5633 = vunpack.c.h.b16 %v5579
    %v5634 = vunpack.c.l.b16 %v5580
    %v5635 = vunpack.c.h.b16 %v5580
    %v5636 = vunpack.c.l.b16 %v5581
    %v5637 = vunpack.c.h.b16 %v5581
    %v5638 = vunpack.c.l.b16 %v5582
    %v5639 = vunpack.c.h.b16 %v5582
    %v5640 = vunpack.c.l.b16 %v5583
    %v5641 = vunpack.c.h.b16 %v5583
    %v5642 = vunpack.c.l.b16 %v5584
    %v5643 = vunpack.c.h.b16 %v5584
    %v5644 = vunpack.c.l.b16 %v5585
    %v5645 = vunpack.c.h.b16 %v5585
    %v5646 = vunpack.c.l.b16 %v5586
    %v5647 = vunpack.c.h.b16 %v5586
    %v5648 = vpack.c.b16 %v5618, %v5616
    %v5649 = vpack.c.b16 %v5619, %v5617
    %v5650 = vpack.c.b16 %v5622, %v5620
    %v5651 = vpack.c.b16 %v5623, %v5621
    %v5652 = vpack.c.b16 %v5626, %v5624
    %v5653 = vpack.c.b16 %v5627, %v5625
    %v5654 = vpack.c.b16 %v5630, %v5628
    %v5655 = vpack.c.b16 %v5631, %v5629
    %v5656 = vpack.c.b16 %v5634, %v5632
    %v5657 = vpack.c.b16 %v5635, %v5633
    %v5658 = vpack.c.b16 %v5638, %v5636
    %v5659 = vpack.c.b16 %v5639, %v5637
    %v5660 = vpack.c.b16 %v5642, %v5640
    %v5661 = vpack.c.b16 %v5643, %v5641
    %v5662 = vpack.c.b16 %v5646, %v5644
    %v5663 = vpack.c.b16 %v5647, %v5645
    %5680 = vmatprep.subr.bf16.mxu0 %v5649
    %5681 = vmatpush1.bf16.msra.mxu0 %v5648
    %5682 = vmatprep.subr.bf16.mxu0 %v5651
    %5683 = vmatpush1.bf16.msra.mxu0 %v5650
    %5684 = vmatprep.subr.bf16.mxu0 %v5653
    %5685 = vmatpush1.bf16.msra.mxu0 %v5652
    %5686 = vmatprep.subr.bf16.mxu0 %v5655
    %5687 = vmatpush1.bf16.msra.mxu0 %v5654
    %5688 = vmatprep.subr.bf16.mxu0 %v5657
    %5689 = vmatpush1.bf16.msra.mxu0 %v5656
    %5690 = vmatprep.subr.bf16.mxu0 %v5659
    %5691 = vmatpush1.bf16.msra.mxu0 %v5658
    %5692 = vmatprep.subr.bf16.mxu0 %v5661
    %5693 = vmatpush1.bf16.msra.mxu0 %v5660
    %5694 = vmatprep.subr.bf16.mxu0 %v5663
    %5695 = vmatpush1.bf16.msra.mxu0 %v5662
    %5696 = vmatprep.subr.bf16.mxu0 0
    %5697 = vmatpush1.bf16.msra.mxu0 0
    %5698 = vmatprep.subr.bf16.mxu0 0
    %5699 = vmatpush1.bf16.msra.mxu0 0
    %5700 = vmatprep.subr.bf16.mxu0 0
    %5701 = vmatpush1.bf16.msra.mxu0 0
    %5702 = vmatprep.subr.bf16.mxu0 0
    %5703 = vmatpush1.bf16.msra.mxu0 0
    %5704 = vmatprep.subr.bf16.mxu0 0
    %5705 = vmatpush1.bf16.msra.mxu0 0
    %5706 = vmatprep.subr.bf16.mxu0 0
    %5707 = vmatpush1.bf16.msra.mxu0 0
    %5708 = vmatprep.subr.bf16.mxu0 0
    %5709 = vmatpush1.bf16.msra.mxu0 0
    %5710 = vmatprep.subr.bf16.mxu0 0
    %5711 = vmatpush1.bf16.msra.mxu0 0
    %5712 = vmatprep.mubr.bf16.mxu0 0
    %5713 = vmatmul.mubr.bf16.gmra.mrb[0].mxu0 %v5569
    %v5714 = vpop.f32.mrb[0].mxu0
    %v5715 = vadd.f32 %v5593, %v5714
    %v5716 = vpop.f32.mrb[0].mxu0
    %v5717 = vadd.f32 %v5597, %v5716
    %v5718 = vpop.f32.mrb[0].mxu0
    %v5719 = vadd.f32 %v5593, %v5718
    %v5720 = vpop.f32.mrb[0].mxu0
    %v5721 = vadd.f32 %v5597, %v5720
    %5722 = vdwg.mxu0
    %v5723 = vmax.f32 %v5715, 0.0
    %v5724 = vmax.f32 %v5717, 0.0
    %v5725 = vmax.f32 %v5719, 0.0
    %v5726 = vmax.f32 %v5721, 0.0
    %v5727 = vpack.c.bf16 %v5725, %v5723
    %v5728 = vpack.c.bf16 %v5726, %v5724
    %s5729 = scalar_lea.vmem [#allocation23], 128
    %v5730 = vld [vmem:[%s5729] sm:$0xf]
    %v5731 = vld [vmem:[%s5729 + $0x4] sm:$0xf]
    %v5732 = vld [vmem:[%s5729 + $0x8] sm:$0xf]
    %v5733 = vld [vmem:[%s5729 + $0xc] sm:$0xf]
    %v5734 = vld [vmem:[%s5729 + $0x10] sm:$0xf]
    %v5735 = vld [vmem:[%s5729 + $0x14] sm:$0xf]
    %v5736 = vld [vmem:[%s5729 + $0x18] sm:$0xf]
    %v5737 = vld [vmem:[%s5729 + $0x1c] sm:$0xf]
    %v5738 = vld [vmem:[%s5729 + $0x20] sm:$0xf]
    %v5739 = vld [vmem:[%s5729 + $0x24] sm:$0xf]
    %v5740 = vld [vmem:[%s5729 + $0x28] sm:$0xf]
    %v5741 = vld [vmem:[%s5729 + $0x2c] sm:$0xf]
    %v5742 = vld [vmem:[%s5729 + $0x30] sm:$0xf]
    %v5743 = vld [vmem:[%s5729 + $0x34] sm:$0xf]
    %v5744 = vld [vmem:[%s5729 + $0x38] sm:$0xf]
    %v5745 = vld [vmem:[%s5729 + $0x3c] sm:$0xf]
    %v5746 = vld [vmem:[%s5729 + $0x40] sm:$0xf]
    %v5747 = vld [vmem:[%s5729 + $0x44] sm:$0xf]
    %v5748 = vld [vmem:[%s5729 + $0x48] sm:$0xf]
    %v5749 = vld [vmem:[%s5729 + $0x4c] sm:$0xf]
    %v5750 = vld [vmem:[%s5729 + $0x50] sm:$0xf]
    %v5751 = vld [vmem:[%s5729 + $0x54] sm:$0xf]
    %v5752 = vld [vmem:[%s5729 + $0x58] sm:$0xf]
    %v5753 = vld [vmem:[%s5729 + $0x5c] sm:$0xf]
    %v5754 = vld [vmem:[%s5729 + $0x60] sm:$0xf]
    %v5755 = vld [vmem:[%s5729 + $0x64] sm:$0xf]
    %v5756 = vld [vmem:[%s5729 + $0x68] sm:$0xf]
    %v5757 = vld [vmem:[%s5729 + $0x6c] sm:$0xf]
    %v5758 = vld [vmem:[%s5729 + $0x70] sm:$0xf]
    %v5759 = vld [vmem:[%s5729 + $0x74] sm:$0xf]
    %v5760 = vld [vmem:[%s5729 + $0x78] sm:$0xf]
    %v5761 = vld [vmem:[%s5729 + $0x7c] sm:$0xf]
    %v5762 = vld [vmem:[#allocation25 + $0x1] sm:$0x1]
    %v5763 = vlaneseq
    %v5764 = vshrl.u32 %v5763, 7
    %v5765 = vsub.s32 0, %v5764
    %v5766 = vrot.slane %v5762, %v5765
    %v5799 = vunpack.c.l.b16 %v5730
    %v5800 = vunpack.c.l.b16 %v5731
    %v5801 = vunpack.c.l.b16 %v5732
    %v5802 = vunpack.c.l.b16 %v5733
    %v5803 = vunpack.c.l.b16 %v5734
    %v5804 = vunpack.c.l.b16 %v5735
    %v5805 = vunpack.c.l.b16 %v5736
    %v5806 = vunpack.c.l.b16 %v5737
    %v5807 = vunpack.c.l.b16 %v5738
    %v5808 = vunpack.c.l.b16 %v5739
    %v5809 = vunpack.c.l.b16 %v5740
    %v5810 = vunpack.c.l.b16 %v5741
    %v5811 = vunpack.c.l.b16 %v5742
    %v5812 = vunpack.c.l.b16 %v5743
    %v5813 = vunpack.c.l.b16 %v5744
    %v5814 = vunpack.c.l.b16 %v5745
    %v5815 = vunpack.c.l.b16 %v5746
    %v5816 = vunpack.c.l.b16 %v5747
    %v5817 = vunpack.c.l.b16 %v5748
    %v5818 = vunpack.c.l.b16 %v5749
    %v5819 = vunpack.c.l.b16 %v5750
    %v5820 = vunpack.c.l.b16 %v5751
    %v5821 = vunpack.c.l.b16 %v5752
    %v5822 = vunpack.c.l.b16 %v5753
    %v5823 = vunpack.c.l.b16 %v5754
    %v5824 = vunpack.c.l.b16 %v5755
    %v5825 = vunpack.c.l.b16 %v5756
    %v5826 = vunpack.c.l.b16 %v5757
    %v5827 = vunpack.c.l.b16 %v5758
    %v5828 = vunpack.c.l.b16 %v5759
    %v5829 = vunpack.c.l.b16 %v5760
    %v5830 = vunpack.c.l.b16 %v5761
    %v5831 = vpack.c.b16 %v5800, %v5799
    %v5832 = vpack.c.b16 %v5802, %v5801
    %v5833 = vpack.c.b16 %v5804, %v5803
    %v5834 = vpack.c.b16 %v5806, %v5805
    %v5835 = vpack.c.b16 %v5808, %v5807
    %v5836 = vpack.c.b16 %v5810, %v5809
    %v5837 = vpack.c.b16 %v5812, %v5811
    %v5838 = vpack.c.b16 %v5814, %v5813
    %v5839 = vpack.c.b16 %v5816, %v5815
    %v5840 = vpack.c.b16 %v5818, %v5817
    %v5841 = vpack.c.b16 %v5820, %v5819
    %v5842 = vpack.c.b16 %v5822, %v5821
    %v5843 = vpack.c.b16 %v5824, %v5823
    %v5844 = vpack.c.b16 %v5826, %v5825
    %v5845 = vpack.c.b16 %v5828, %v5827
    %v5846 = vpack.c.b16 %v5830, %v5829
    %5863 = vmatprep.subr.bf16.mxu0 0
    %5864 = vmatpush1.bf16.msra.mxu0 %v5831
    %5865 = vmatprep.subr.bf16.mxu0 0
    %5866 = vmatpush1.bf16.msra.mxu0 %v5832
    %5867 = vmatprep.subr.bf16.mxu0 0
    %5868 = vmatpush1.bf16.msra.mxu0 %v5833
    %5869 = vmatprep.subr.bf16.mxu0 0
    %5870 = vmatpush1.bf16.msra.mxu0 %v5834
    %5871 = vmatprep.subr.bf16.mxu0 0
    %5872 = vmatpush1.bf16.msra.mxu0 %v5835
    %5873 = vmatprep.subr.bf16.mxu0 0
    %5874 = vmatpush1.bf16.msra.mxu0 %v5836
    %5875 = vmatprep.subr.bf16.mxu0 0
    %5876 = vmatpush1.bf16.msra.mxu0 %v5837
    %5877 = vmatprep.subr.bf16.mxu0 0
    %5878 = vmatpush1.bf16.msra.mxu0 %v5838
    %5879 = vmatprep.subr.bf16.mxu0 0
    %5880 = vmatpush1.bf16.msra.mxu0 %v5839
    %5881 = vmatprep.subr.bf16.mxu0 0
    %5882 = vmatpush1.bf16.msra.mxu0 %v5840
    %5883 = vmatprep.subr.bf16.mxu0 0
    %5884 = vmatpush1.bf16.msra.mxu0 %v5841
    %5885 = vmatprep.subr.bf16.mxu0 0
    %5886 = vmatpush1.bf16.msra.mxu0 %v5842
    %5887 = vmatprep.subr.bf16.mxu0 0
    %5888 = vmatpush1.bf16.msra.mxu0 %v5843
    %5889 = vmatprep.subr.bf16.mxu0 0
    %5890 = vmatpush1.bf16.msra.mxu0 %v5844
    %5891 = vmatprep.subr.bf16.mxu0 0
    %5892 = vmatpush1.bf16.msra.mxu0 %v5845
    %5893 = vmatprep.subr.bf16.mxu0 0
    %5894 = vmatpush1.bf16.msra.mxu0 %v5846
    %5895 = vmatprep.mubr.bf16.mxu0 %v5728
    %5896 = vmatmul.mubr.bf16.gmra.mrb[0].mxu0 %v5727
    %v5897 = vpop.f32.mrb[0].mxu0
    %v5898 = vadd.f32 %v5766, %v5897
    %v5899 = vpop.f32.mrb[0].mxu0
    %v5900 = vpop.f32.mrb[0].mxu0
    %v5901 = vadd.f32 %v5766, %v5900
    %v5902 = vpop.f32.mrb[0].mxu0
    %5903 = vdwg.mxu0
    %v5904 = vadd.f32 %v5567, %v5898
    %v5905 = vadd.f32 %v5568, %v5901
    %v5906 = vld [vmem:[#allocation26 + $0x1] sm:$0x1]
    %v5907 = vld [vmem:[#allocation28 + $0x1] sm:$0x1]
    %5908 = vadd.xlane.f32.xlu0 %v5904
    %v5909 = vpop.xlane.xlu0 %5908
    %5910 = vadd.xlane.f32.xlu0 %v5905
    %v5911 = vpop.xlane.xlu0 %5910
    %v5912 = vmul.f32 %v5909, %v2758
    %v5913 = vmul.f32 %v5911, %v2758
    %v5914 = vmul.f32 %v5904, %v5904
    %v5915 = vmul.f32 %v5905, %v5905
    %5916 = vadd.xlane.f32.xlu0 %v5914
    %v5917 = vpop.xlane.xlu0 %5916
    %5918 = vadd.xlane.f32.xlu0 %v5915
    %v5919 = vpop.xlane.xlu0 %5918
    %v5920 = vmul.f32 %v5917, %v2758
    %v5921 = vmul.f32 %v5919, %v2758
    %v5922 = vmul.f32 %v5912, %v5912
    %v5923 = vmul.f32 %v5913, %v5913
    %v5924 = vsub.f32 %v5920, %v5922
    %v5925 = vsub.f32 %v5921, %v5923
    %v5926 = vsub.f32 %v5904, %v5912
    %v5927 = vsub.f32 %v5905, %v5913
    %v5928 = vadd.f32 %v5924, 1e-05
    %v5929 = vadd.f32 %v5925, 1e-05
    %v5930 = vrsqrt.pop %v5928
    %v5931 = vrsqrt.pop %v5929
    %v5932 = vmul.f32 %v5926, %v5930
    %v5933 = vmul.f32 %v5927, %v5931
    %v5934 = vlaneseq
    %v5935 = vshrl.u32 %v5934, 7
    %v5936 = vsub.s32 0, %v5935
    %v5937 = vrot.slane %v5906, %v5936
    %v5938 = vmul.f32 %v5932, %v5937
    %v5939 = vmul.f32 %v5933, %v5937
    %v5940 = vlaneseq
    %v5941 = vshrl.u32 %v5940, 7
    %v5942 = vsub.s32 0, %v5941
    %v5943 = vrot.slane %v5907, %v5942
    %v5944 = vadd.f32 %v5938, %v5943
    %v5945 = vadd.f32 %v5939, %v5943
    %v5946 = vpack.c.bf16 %v5945, %v5944
    %s5947 = scalar_lea.vmem [#allocation7], 128
    %v5948 = vld [vmem:[%s5947] sm:$0xf]
    %v5949 = vld [vmem:[%s5947 + $0x4] sm:$0xf]
    %v5950 = vld [vmem:[%s5947 + $0x8] sm:$0xf]
    %v5951 = vld [vmem:[%s5947 + $0xc] sm:$0xf]
    %v5952 = vld [vmem:[%s5947 + $0x10] sm:$0xf]
    %v5953 = vld [vmem:[%s5947 + $0x14] sm:$0xf]
    %v5954 = vld [vmem:[%s5947 + $0x18] sm:$0xf]
    %v5955 = vld [vmem:[%s5947 + $0x1c] sm:$0xf]
    %v5956 = vld [vmem:[%s5947 + $0x20] sm:$0xf]
    %v5957 = vld [vmem:[%s5947 + $0x24] sm:$0xf]
    %v5958 = vld [vmem:[%s5947 + $0x28] sm:$0xf]
    %v5959 = vld [vmem:[%s5947 + $0x2c] sm:$0xf]
    %v5960 = vld [vmem:[%s5947 + $0x30] sm:$0xf]
    %v5961 = vld [vmem:[%s5947 + $0x34] sm:$0xf]
    %v5962 = vld [vmem:[%s5947 + $0x38] sm:$0xf]
    %v5963 = vld [vmem:[%s5947 + $0x3c] sm:$0xf]
    %v5964 = vld [vmem:[%s3 + $0x2] sm:$0x1]
    %v5965 = vlaneseq
    %v5966 = vshrl.u32 %v5965, 7
    %v5967 = vsub.s32 0, %v5966
    %v5968 = vrot.slane %v5964, %v5967
    %v5985 = vunpack.c.l.b16 %v5948
    %v5986 = vunpack.c.l.b16 %v5949
    %v5987 = vunpack.c.l.b16 %v5950
    %v5988 = vunpack.c.l.b16 %v5951
    %v5989 = vunpack.c.l.b16 %v5952
    %v5990 = vunpack.c.l.b16 %v5953
    %v5991 = vunpack.c.l.b16 %v5954
    %v5992 = vunpack.c.l.b16 %v5955
    %v5993 = vunpack.c.l.b16 %v5956
    %v5994 = vunpack.c.l.b16 %v5957
    %v5995 = vunpack.c.l.b16 %v5958
    %v5996 = vunpack.c.l.b16 %v5959
    %v5997 = vunpack.c.l.b16 %v5960
    %v5998 = vunpack.c.l.b16 %v5961
    %v5999 = vunpack.c.l.b16 %v5962
    %v6000 = vunpack.c.l.b16 %v5963
    %v6001 = vpack.c.b16 %v5986, %v5985
    %v6002 = vpack.c.b16 %v5988, %v5987
    %v6003 = vpack.c.b16 %v5990, %v5989
    %v6004 = vpack.c.b16 %v5992, %v5991
    %v6005 = vpack.c.b16 %v5994, %v5993
    %v6006 = vpack.c.b16 %v5996, %v5995
    %v6007 = vpack.c.b16 %v5998, %v5997
    %v6008 = vpack.c.b16 %v6000, %v5999
    %6017 = vmatprep.subr.bf16.mxu0 0
    %6018 = vmatpush1.bf16.msra.mxu0 %v6001
    %6019 = vmatprep.subr.bf16.mxu0 0
    %6020 = vmatpush1.bf16.msra.mxu0 %v6002
    %6021 = vmatprep.subr.bf16.mxu0 0
    %6022 = vmatpush1.bf16.msra.mxu0 %v6003
    %6023 = vmatprep.subr.bf16.mxu0 0
    %6024 = vmatpush1.bf16.msra.mxu0 %v6004
    %6025 = vmatprep.subr.bf16.mxu0 0
    %6026 = vmatpush1.bf16.msra.mxu0 %v6005
    %6027 = vmatprep.subr.bf16.mxu0 0
    %6028 = vmatpush1.bf16.msra.mxu0 %v6006
    %6029 = vmatprep.subr.bf16.mxu0 0
    %6030 = vmatpush1.bf16.msra.mxu0 %v6007
    %6031 = vmatprep.subr.bf16.mxu0 0
    %6032 = vmatpush1.bf16.msra.mxu0 %v6008
    %6033 = vmatprep.subr.bf16.mxu0 0
    %6034 = vmatpush1.bf16.msra.mxu0 0
    %6035 = vmatprep.subr.bf16.mxu0 0
    %6036 = vmatpush1.bf16.msra.mxu0 0
    %6037 = vmatprep.subr.bf16.mxu0 0
    %6038 = vmatpush1.bf16.msra.mxu0 0
    %6039 = vmatprep.subr.bf16.mxu0 0
    %6040 = vmatpush1.bf16.msra.mxu0 0
    %6041 = vmatprep.subr.bf16.mxu0 0
    %6042 = vmatpush1.bf16.msra.mxu0 0
    %6043 = vmatprep.subr.bf16.mxu0 0
    %6044 = vmatpush1.bf16.msra.mxu0 0
    %6045 = vmatprep.subr.bf16.mxu0 0
    %6046 = vmatpush1.bf16.msra.mxu0 0
    %6047 = vmatprep.subr.bf16.mxu0 0
    %6048 = vmatpush1.bf16.msra.mxu0 0
    %6049 = vmatprep.mubr.bf16.mxu0 0
    %6050 = vmatmul.mubr.bf16.gmra.mrb[0].mxu0 %v5946
    %v6051 = vpop.f32.mrb[0].mxu0
    %v6052 = vadd.f32 %v5968, %v6051
    %v6053 = vpop.f32.mrb[0].mxu0
    %v6054 = vpop.f32.mrb[0].mxu0
    %v6055 = vadd.f32 %v5968, %v6054
    %v6056 = vpop.f32.mrb[0].mxu0
    %6057 = vdwg.mxu0
    %s6058 = scalar_lea.vmem [#allocation8], 128
    %v6059 = vld [vmem:[%s6058] sm:$0xf]
    %v6060 = vld [vmem:[%s6058 + $0x4] sm:$0xf]
    %v6061 = vld [vmem:[%s6058 + $0x8] sm:$0xf]
    %v6062 = vld [vmem:[%s6058 + $0xc] sm:$0xf]
    %v6063 = vld [vmem:[%s6058 + $0x10] sm:$0xf]
    %v6064 = vld [vmem:[%s6058 + $0x14] sm:$0xf]
    %v6065 = vld [vmem:[%s6058 + $0x18] sm:$0xf]
    %v6066 = vld [vmem:[%s6058 + $0x1c] sm:$0xf]
    %v6067 = vld [vmem:[%s6058 + $0x20] sm:$0xf]
    %v6068 = vld [vmem:[%s6058 + $0x24] sm:$0xf]
    %v6069 = vld [vmem:[%s6058 + $0x28] sm:$0xf]
    %v6070 = vld [vmem:[%s6058 + $0x2c] sm:$0xf]
    %v6071 = vld [vmem:[%s6058 + $0x30] sm:$0xf]
    %v6072 = vld [vmem:[%s6058 + $0x34] sm:$0xf]
    %v6073 = vld [vmem:[%s6058 + $0x38] sm:$0xf]
    %v6074 = vld [vmem:[%s6058 + $0x3c] sm:$0xf]
    %v6075 = vld [vmem:[#allocation10 + $0x2] sm:$0x1]
    %v6076 = vlaneseq
    %v6077 = vshrl.u32 %v6076, 7
    %v6078 = vsub.s32 0, %v6077
    %v6079 = vrot.slane %v6075, %v6078
    %v6096 = vunpack.c.l.b16 %v6059
    %v6097 = vunpack.c.l.b16 %v6060
    %v6098 = vunpack.c.l.b16 %v6061
    %v6099 = vunpack.c.l.b16 %v6062
    %v6100 = vunpack.c.l.b16 %v6063
    %v6101 = vunpack.c.l.b16 %v6064
    %v6102 = vunpack.c.l.b16 %v6065
    %v6103 = vunpack.c.l.b16 %v6066
    %v6104 = vunpack.c.l.b16 %v6067
    %v6105 = vunpack.c.l.b16 %v6068
    %v6106 = vunpack.c.l.b16 %v6069
    %v6107 = vunpack.c.l.b16 %v6070
    %v6108 = vunpack.c.l.b16 %v6071
    %v6109 = vunpack.c.l.b16 %v6072
    %v6110 = vunpack.c.l.b16 %v6073
    %v6111 = vunpack.c.l.b16 %v6074
    %v6112 = vpack.c.b16 %v6097, %v6096
    %v6113 = vpack.c.b16 %v6099, %v6098
    %v6114 = vpack.c.b16 %v6101, %v6100
    %v6115 = vpack.c.b16 %v6103, %v6102
    %v6116 = vpack.c.b16 %v6105, %v6104
    %v6117 = vpack.c.b16 %v6107, %v6106
    %v6118 = vpack.c.b16 %v6109, %v6108
    %v6119 = vpack.c.b16 %v6111, %v6110
    %6128 = vmatprep.subr.bf16.mxu0 0
    %6129 = vmatpush1.bf16.msra.mxu0 %v6112
    %6130 = vmatprep.subr.bf16.mxu0 0
    %6131 = vmatpush1.bf16.msra.mxu0 %v6113
    %6132 = vmatprep.subr.bf16.mxu0 0
    %6133 = vmatpush1.bf16.msra.mxu0 %v6114
    %6134 = vmatprep.subr.bf16.mxu0 0
    %6135 = vmatpush1.bf16.msra.mxu0 %v6115
    %6136 = vmatprep.subr.bf16.mxu0 0
    %6137 = vmatpush1.bf16.msra.mxu0 %v6116
    %6138 = vmatprep.subr.bf16.mxu0 0
    %6139 = vmatpush1.bf16.msra.mxu0 %v6117
    %6140 = vmatprep.subr.bf16.mxu0 0
    %6141 = vmatpush1.bf16.msra.mxu0 %v6118
    %6142 = vmatprep.subr.bf16.mxu0 0
    %6143 = vmatpush1.bf16.msra.mxu0 %v6119
    %6144 = vmatprep.subr.bf16.mxu0 0
    %6145 = vmatpush1.bf16.msra.mxu0 0
    %6146 = vmatprep.subr.bf16.mxu0 0
    %6147 = vmatpush1.bf16.msra.mxu0 0
    %6148 = vmatprep.subr.bf16.mxu0 0
    %6149 = vmatpush1.bf16.msra.mxu0 0
    %6150 = vmatprep.subr.bf16.mxu0 0
    %6151 = vmatpush1.bf16.msra.mxu0 0
    %6152 = vmatprep.subr.bf16.mxu0 0
    %6153 = vmatpush1.bf16.msra.mxu0 0
    %6154 = vmatprep.subr.bf16.mxu0 0
    %6155 = vmatpush1.bf16.msra.mxu0 0
    %6156 = vmatprep.subr.bf16.mxu0 0
    %6157 = vmatpush1.bf16.msra.mxu0 0
    %6158 = vmatprep.subr.bf16.mxu0 0
    %6159 = vmatpush1.bf16.msra.mxu0 0
    %6160 = vmatprep.mubr.bf16.mxu0 0
    %6161 = vmatmul.mubr.bf16.gmra.mrb[0].mxu0 %v5946
    %v6162 = vpop.f32.mrb[0].mxu0
    %v6163 = vadd.f32 %v6079, %v6162
    %v6164 = vpop.f32.mrb[0].mxu0
    %v6165 = vpop.f32.mrb[0].mxu0
    %v6166 = vadd.f32 %v6079, %v6165
    %v6167 = vpop.f32.mrb[0].mxu0
    %6168 = vdwg.mxu0
    %s6169 = scalar_lea.vmem [#allocation11], 128
    %v6170 = vld [vmem:[%s6169] sm:$0xf]
    %v6171 = vld [vmem:[%s6169 + $0x4] sm:$0xf]
    %v6172 = vld [vmem:[%s6169 + $0x8] sm:$0xf]
    %v6173 = vld [vmem:[%s6169 + $0xc] sm:$0xf]
    %v6174 = vld [vmem:[%s6169 + $0x10] sm:$0xf]
    %v6175 = vld [vmem:[%s6169 + $0x14] sm:$0xf]
    %v6176 = vld [vmem:[%s6169 + $0x18] sm:$0xf]
    %v6177 = vld [vmem:[%s6169 + $0x1c] sm:$0xf]
    %v6178 = vld [vmem:[%s6169 + $0x20] sm:$0xf]
    %v6179 = vld [vmem:[%s6169 + $0x24] sm:$0xf]
    %v6180 = vld [vmem:[%s6169 + $0x28] sm:$0xf]
    %v6181 = vld [vmem:[%s6169 + $0x2c] sm:$0xf]
    %v6182 = vld [vmem:[%s6169 + $0x30] sm:$0xf]
    %v6183 = vld [vmem:[%s6169 + $0x34] sm:$0xf]
    %v6184 = vld [vmem:[%s6169 + $0x38] sm:$0xf]
    %v6185 = vld [vmem:[%s6169 + $0x3c] sm:$0xf]
    %v6186 = vld [vmem:[#allocation13 + $0x2] sm:$0x1]
    %v6187 = vlaneseq
    %v6188 = vshrl.u32 %v6187, 7
    %v6189 = vsub.s32 0, %v6188
    %v6190 = vrot.slane %v6186, %v6189
    %v6207 = vunpack.c.l.b16 %v6170
    %v6208 = vunpack.c.l.b16 %v6171
    %v6209 = vunpack.c.l.b16 %v6172
    %v6210 = vunpack.c.l.b16 %v6173
    %v6211 = vunpack.c.l.b16 %v6174
    %v6212 = vunpack.c.l.b16 %v6175
    %v6213 = vunpack.c.l.b16 %v6176
    %v6214 = vunpack.c.l.b16 %v6177
    %v6215 = vunpack.c.l.b16 %v6178
    %v6216 = vunpack.c.l.b16 %v6179
    %v6217 = vunpack.c.l.b16 %v6180
    %v6218 = vunpack.c.l.b16 %v6181
    %v6219 = vunpack.c.l.b16 %v6182
    %v6220 = vunpack.c.l.b16 %v6183
    %v6221 = vunpack.c.l.b16 %v6184
    %v6222 = vunpack.c.l.b16 %v6185
    %v6223 = vpack.c.b16 %v6208, %v6207
    %v6224 = vpack.c.b16 %v6210, %v6209
    %v6225 = vpack.c.b16 %v6212, %v6211
    %v6226 = vpack.c.b16 %v6214, %v6213
    %v6227 = vpack.c.b16 %v6216, %v6215
    %v6228 = vpack.c.b16 %v6218, %v6217
    %v6229 = vpack.c.b16 %v6220, %v6219
    %v6230 = vpack.c.b16 %v6222, %v6221
    %6239 = vmatprep.subr.bf16.mxu0 0
    %6240 = vmatpush1.bf16.msra.mxu0 %v6223
    %6241 = vmatprep.subr.bf16.mxu0 0
    %6242 = vmatpush1.bf16.msra.mxu0 %v6224
    %6243 = vmatprep.subr.bf16.mxu0 0
    %6244 = vmatpush1.bf16.msra.mxu0 %v6225
    %6245 = vmatprep.subr.bf16.mxu0 0
    %6246 = vmatpush1.bf16.msra.mxu0 %v6226
    %6247 = vmatprep.subr.bf16.mxu0 0
    %6248 = vmatpush1.bf16.msra.mxu0 %v6227
    %6249 = vmatprep.subr.bf16.mxu0 0
    %6250 = vmatpush1.bf16.msra.mxu0 %v6228
    %6251 = vmatprep.subr.bf16.mxu0 0
    %6252 = vmatpush1.bf16.msra.mxu0 %v6229
    %6253 = vmatprep.subr.bf16.mxu0 0
    %6254 = vmatpush1.bf16.msra.mxu0 %v6230
    %6255 = vmatprep.subr.bf16.mxu0 0
    %6256 = vmatpush1.bf16.msra.mxu0 0
    %6257 = vmatprep.subr.bf16.mxu0 0
    %6258 = vmatpush1.bf16.msra.mxu0 0
    %6259 = vmatprep.subr.bf16.mxu0 0
    %6260 = vmatpush1.bf16.msra.mxu0 0
    %6261 = vmatprep.subr.bf16.mxu0 0
    %6262 = vmatpush1.bf16.msra.mxu0 0
    %6263 = vmatprep.subr.bf16.mxu0 0
    %6264 = vmatpush1.bf16.msra.mxu0 0
    %6265 = vmatprep.subr.bf16.mxu0 0
    %6266 = vmatpush1.bf16.msra.mxu0 0
    %6267 = vmatprep.subr.bf16.mxu0 0
    %6268 = vmatpush1.bf16.msra.mxu0 0
    %6269 = vmatprep.subr.bf16.mxu0 0
    %6270 = vmatpush1.bf16.msra.mxu0 0
    %6271 = vmatprep.mubr.bf16.mxu0 0
    %6272 = vmatmul.mubr.bf16.gmra.mrb[0].mxu0 %v5946
    %v6273 = vpop.f32.mrb[0].mxu0
    %v6274 = vadd.f32 %v6190, %v6273
    %v6275 = vpop.f32.mrb[0].mxu0
    %v6276 = vpop.f32.mrb[0].mxu0
    %v6277 = vadd.f32 %v6190, %v6276
    %v6278 = vpop.f32.mrb[0].mxu0
    %6279 = vdwg.mxu0
    %6282 = vrot.lane.b32.xlu0 %v6052, 112
    %v6283 = vpop.permute.xlu0 %6282
    %6284 = vrot.lane.b32.xlu0 %v6055, 112
    %v6285 = vpop.permute.xlu0 %6284
    %6288 = vrot.lane.b32.xlu0 %v6052, 96
    %v6289 = vpop.permute.xlu0 %6288
    %6290 = vrot.lane.b32.xlu0 %v6055, 96
    %v6291 = vpop.permute.xlu0 %6290
    %6294 = vrot.lane.b32.xlu0 %v6052, 80
    %v6295 = vpop.permute.xlu0 %6294
    %6296 = vrot.lane.b32.xlu0 %v6055, 80
    %v6297 = vpop.permute.xlu0 %6296
    %6300 = vrot.lane.b32.xlu0 %v6052, 64
    %v6301 = vpop.permute.xlu0 %6300
    %6302 = vrot.lane.b32.xlu0 %v6055, 64
    %v6303 = vpop.permute.xlu0 %6302
    %6306 = vrot.lane.b32.xlu0 %v6052, 48
    %v6307 = vpop.permute.xlu0 %6306
    %6308 = vrot.lane.b32.xlu0 %v6055, 48
    %v6309 = vpop.permute.xlu0 %6308
    %6312 = vrot.lane.b32.xlu0 %v6052, 32
    %v6313 = vpop.permute.xlu0 %6312
    %6314 = vrot.lane.b32.xlu0 %v6055, 32
    %v6315 = vpop.permute.xlu0 %6314
    %6318 = vrot.lane.b32.xlu0 %v6052, 16
    %v6319 = vpop.permute.xlu0 %6318
    %6320 = vrot.lane.b32.xlu0 %v6055, 16
    %v6321 = vpop.permute.xlu0 %6320
    %v6324 = vpack.c.bf16 %v6052, %v6052
    %v6325 = vpack.c.bf16 %v6055, %v6055
    %v6326 = vpack.c.bf16 %v6283, %v6283
    %v6327 = vpack.c.bf16 %v6285, %v6285
    %v6328 = vpack.c.bf16 %v6289, %v6289
    %v6329 = vpack.c.bf16 %v6291, %v6291
    %v6330 = vpack.c.bf16 %v6295, %v6295
    %v6331 = vpack.c.bf16 %v6297, %v6297
    %v6332 = vpack.c.bf16 %v6301, %v6301
    %v6333 = vpack.c.bf16 %v6303, %v6303
    %v6334 = vpack.c.bf16 %v6307, %v6307
    %v6335 = vpack.c.bf16 %v6309, %v6309
    %v6336 = vpack.c.bf16 %v6313, %v6313
    %v6337 = vpack.c.bf16 %v6315, %v6315
    %v6338 = vpack.c.bf16 %v6319, %v6319
    %v6339 = vpack.c.bf16 %v6321, %v6321
    %6342 = vrot.lane.b32.xlu0 %v6163, 112
    %v6343 = vpop.permute.xlu0 %6342
    %6344 = vrot.lane.b32.xlu0 %v6166, 112
    %v6345 = vpop.permute.xlu0 %6344
    %6348 = vrot.lane.b32.xlu0 %v6163, 96
    %v6349 = vpop.permute.xlu0 %6348
    %6350 = vrot.lane.b32.xlu0 %v6166, 96
    %v6351 = vpop.permute.xlu0 %6350
    %6354 = vrot.lane.b32.xlu0 %v6163, 80
    %v6355 = vpop.permute.xlu0 %6354
    %6356 = vrot.lane.b32.xlu0 %v6166, 80
    %v6357 = vpop.permute.xlu0 %6356
    %6360 = vrot.lane.b32.xlu0 %v6163, 64
    %v6361 = vpop.permute.xlu0 %6360
    %6362 = vrot.lane.b32.xlu0 %v6166, 64
    %v6363 = vpop.permute.xlu0 %6362
    %6366 = vrot.lane.b32.xlu0 %v6163, 48
    %v6367 = vpop.permute.xlu0 %6366
    %6368 = vrot.lane.b32.xlu0 %v6166, 48
    %v6369 = vpop.permute.xlu0 %6368
    %6372 = vrot.lane.b32.xlu0 %v6163, 32
    %v6373 = vpop.permute.xlu0 %6372
    %6374 = vrot.lane.b32.xlu0 %v6166, 32
    %v6375 = vpop.permute.xlu0 %6374
    %6378 = vrot.lane.b32.xlu0 %v6163, 16
    %v6379 = vpop.permute.xlu0 %6378
    %6380 = vrot.lane.b32.xlu0 %v6166, 16
    %v6381 = vpop.permute.xlu0 %6380
    %v6384 = vpack.c.bf16 %v6163, %v6163
    %v6385 = vpack.c.bf16 %v6166, %v6166
    %v6386 = vpack.c.bf16 %v6343, %v6343
    %v6387 = vpack.c.bf16 %v6345, %v6345
    %v6388 = vpack.c.bf16 %v6349, %v6349
    %v6389 = vpack.c.bf16 %v6351, %v6351
    %v6390 = vpack.c.bf16 %v6355, %v6355
    %v6391 = vpack.c.bf16 %v6357, %v6357
    %v6392 = vpack.c.bf16 %v6361, %v6361
    %v6393 = vpack.c.bf16 %v6363, %v6363
    %v6394 = vpack.c.bf16 %v6367, %v6367
    %v6395 = vpack.c.bf16 %v6369, %v6369
    %v6396 = vpack.c.bf16 %v6373, %v6373
    %v6397 = vpack.c.bf16 %v6375, %v6375
    %v6398 = vpack.c.bf16 %v6379, %v6379
    %v6399 = vpack.c.bf16 %v6381, %v6381
    %6402 = vrot.lane.b32.xlu0 %v6274, 112
    %v6403 = vpop.permute.xlu0 %6402
    %6404 = vrot.lane.b32.xlu0 %v6277, 112
    %v6405 = vpop.permute.xlu0 %6404
    %6408 = vrot.lane.b32.xlu0 %v6274, 96
    %v6409 = vpop.permute.xlu0 %6408
    %6410 = vrot.lane.b32.xlu0 %v6277, 96
    %v6411 = vpop.permute.xlu0 %6410
    %6414 = vrot.lane.b32.xlu0 %v6274, 80
    %v6415 = vpop.permute.xlu0 %6414
    %6416 = vrot.lane.b32.xlu0 %v6277, 80
    %v6417 = vpop.permute.xlu0 %6416
    %6420 = vrot.lane.b32.xlu0 %v6274, 64
    %v6421 = vpop.permute.xlu0 %6420
    %6422 = vrot.lane.b32.xlu0 %v6277, 64
    %v6423 = vpop.permute.xlu0 %6422
    %6426 = vrot.lane.b32.xlu0 %v6274, 48
    %v6427 = vpop.permute.xlu0 %6426
    %6428 = vrot.lane.b32.xlu0 %v6277, 48
    %v6429 = vpop.permute.xlu0 %6428
    %6432 = vrot.lane.b32.xlu0 %v6274, 32
    %v6433 = vpop.permute.xlu0 %6432
    %6434 = vrot.lane.b32.xlu0 %v6277, 32
    %v6435 = vpop.permute.xlu0 %6434
    %6438 = vrot.lane.b32.xlu0 %v6274, 16
    %v6439 = vpop.permute.xlu0 %6438
    %6440 = vrot.lane.b32.xlu0 %v6277, 16
    %v6441 = vpop.permute.xlu0 %6440
    %v6444 = vpack.c.bf16 %v6274, %v6274
    %v6445 = vpack.c.bf16 %v6277, %v6277
    %v6446 = vpack.c.bf16 %v6403, %v6403
    %v6447 = vpack.c.bf16 %v6405, %v6405
    %v6448 = vpack.c.bf16 %v6409, %v6409
    %v6449 = vpack.c.bf16 %v6411, %v6411
    %v6450 = vpack.c.bf16 %v6415, %v6415
    %v6451 = vpack.c.bf16 %v6417, %v6417
    %v6452 = vpack.c.bf16 %v6421, %v6421
    %v6453 = vpack.c.bf16 %v6423, %v6423
    %v6454 = vpack.c.bf16 %v6427, %v6427
    %v6455 = vpack.c.bf16 %v6429, %v6429
    %v6456 = vpack.c.bf16 %v6433, %v6433
    %v6457 = vpack.c.bf16 %v6435, %v6435
    %v6458 = vpack.c.bf16 %v6439, %v6439
    %v6459 = vpack.c.bf16 %v6441, %v6441
    %v6461 = vsel %vm897, %v6324, 0
    %v6464 = vsel %vm897, %v6384, 0
    %6466 = vmatprep.subr.bf16.mxu0 0
    %6467 = vmatpush1.bf16.xpose.msra.mxu0 %v6464
    %6468 = vmatprep.subr.bf16.mxu0 0
    %6469 = vmatpush1.bf16.xpose.msra.mxu0 0
    %6470 = vmatprep.subr.bf16.mxu0 0
    %6471 = vmatpush1.bf16.xpose.msra.mxu0 0
    %6472 = vmatprep.subr.bf16.mxu0 0
    %6473 = vmatpush1.bf16.xpose.msra.mxu0 0
    %6474 = vmatprep.subr.bf16.mxu0 0
    %6475 = vmatpush1.bf16.xpose.msra.mxu0 0
    %6476 = vmatprep.subr.bf16.mxu0 0
    %6477 = vmatpush1.bf16.xpose.msra.mxu0 0
    %6478 = vmatprep.subr.bf16.mxu0 0
    %6479 = vmatpush1.bf16.xpose.msra.mxu0 0
    %6480 = vmatprep.subr.bf16.mxu0 0
    %6481 = vmatpush1.bf16.xpose.msra.mxu0 0
    %6482 = vmatprep.subr.bf16.mxu0 0
    %6483 = vmatpush1.bf16.xpose.msra.mxu0 0
    %6484 = vmatprep.subr.bf16.mxu0 0
    %6485 = vmatpush1.bf16.xpose.msra.mxu0 0
    %6486 = vmatprep.subr.bf16.mxu0 0
    %6487 = vmatpush1.bf16.xpose.msra.mxu0 0
    %6488 = vmatprep.subr.bf16.mxu0 0
    %6489 = vmatpush1.bf16.xpose.msra.mxu0 0
    %6490 = vmatprep.subr.bf16.mxu0 0
    %6491 = vmatpush1.bf16.xpose.msra.mxu0 0
    %6492 = vmatprep.subr.bf16.mxu0 0
    %6493 = vmatpush1.bf16.xpose.msra.mxu0 0
    %6494 = vmatprep.subr.bf16.mxu0 0
    %6495 = vmatpush1.bf16.xpose.msra.mxu0 0
    %6496 = vmatprep.subr.bf16.mxu0 0
    %6497 = vmatpush1.bf16.xpose.msra.mxu0 0
    %6498 = vmatprep.mubr.bf16.mxu0 0
    %6499 = vmatmul.mubr.bf16.gmra.mrb[0].mxu0 %v6461
    %v6500 = vpop.f32.mrb[0].mxu0
    %v6501 = vadd.f32 0.0, %v6500
    %v6502 = vpop.f32.mrb[0].mxu0
    %v6503 = vpop.f32.mrb[0].mxu0
    %v6504 = vpop.f32.mrb[0].mxu0
    %6505 = vdwg.mxu0
    %v6507 = vsel %vm897, %v6325, 0
    %v6510 = vsel %vm897, %v6385, 0
    %6512 = vmatprep.subr.bf16.mxu0 0
    %6513 = vmatpush1.bf16.xpose.msra.mxu0 %v6510
    %6514 = vmatprep.subr.bf16.mxu0 0
    %6515 = vmatpush1.bf16.xpose.msra.mxu0 0
    %6516 = vmatprep.subr.bf16.mxu0 0
    %6517 = vmatpush1.bf16.xpose.msra.mxu0 0
    %6518 = vmatprep.subr.bf16.mxu0 0
    %6519 = vmatpush1.bf16.xpose.msra.mxu0 0
    %6520 = vmatprep.subr.bf16.mxu0 0
    %6521 = vmatpush1.bf16.xpose.msra.mxu0 0
    %6522 = vmatprep.subr.bf16.mxu0 0
    %6523 = vmatpush1.bf16.xpose.msra.mxu0 0
    %6524 = vmatprep.subr.bf16.mxu0 0
    %6525 = vmatpush1.bf16.xpose.msra.mxu0 0
    %6526 = vmatprep.subr.bf16.mxu0 0
    %6527 = vmatpush1.bf16.xpose.msra.mxu0 0
    %6528 = vmatprep.subr.bf16.mxu0 0
    %6529 = vmatpush1.bf16.xpose.msra.mxu0 0
    %6530 = vmatprep.subr.bf16.mxu0 0
    %6531 = vmatpush1.bf16.xpose.msra.mxu0 0
    %6532 = vmatprep.subr.bf16.mxu0 0
    %6533 = vmatpush1.bf16.xpose.msra.mxu0 0
    %6534 = vmatprep.subr.bf16.mxu0 0
    %6535 = vmatpush1.bf16.xpose.msra.mxu0 0
    %6536 = vmatprep.subr.bf16.mxu0 0
    %6537 = vmatpush1.bf16.xpose.msra.mxu0 0
    %6538 = vmatprep.subr.bf16.mxu0 0
    %6539 = vmatpush1.bf16.xpose.msra.mxu0 0
    %6540 = vmatprep.subr.bf16.mxu0 0
    %6541 = vmatpush1.bf16.xpose.msra.mxu0 0
    %6542 = vmatprep.subr.bf16.mxu0 0
    %6543 = vmatpush1.bf16.xpose.msra.mxu0 0
    %6544 = vmatprep.mubr.bf16.mxu0 0
    %6545 = vmatmul.mubr.bf16.gmra.mrb[0].mxu0 %v6507
    %v6546 = vpop.f32.mrb[0].mxu0
    %v6547 = vadd.f32 0.0, %v6546
    %v6548 = vpop.f32.mrb[0].mxu0
    %v6549 = vpop.f32.mrb[0].mxu0
    %v6550 = vpop.f32.mrb[0].mxu0
    %6551 = vdwg.mxu0
    %v6553 = vsel %vm897, %v6326, 0
    %v6556 = vsel %vm897, %v6386, 0
    %6558 = vmatprep.subr.bf16.mxu0 0
    %6559 = vmatpush1.bf16.xpose.msra.mxu0 %v6556
    %6560 = vmatprep.subr.bf16.mxu0 0
    %6561 = vmatpush1.bf16.xpose.msra.mxu0 0
    %6562 = vmatprep.subr.bf16.mxu0 0
    %6563 = vmatpush1.bf16.xpose.msra.mxu0 0
    %6564 = vmatprep.subr.bf16.mxu0 0
    %6565 = vmatpush1.bf16.xpose.msra.mxu0 0
    %6566 = vmatprep.subr.bf16.mxu0 0
    %6567 = vmatpush1.bf16.xpose.msra.mxu0 0
    %6568 = vmatprep.subr.bf16.mxu0 0
    %6569 = vmatpush1.bf16.xpose.msra.mxu0 0
    %6570 = vmatprep.subr.bf16.mxu0 0
    %6571 = vmatpush1.bf16.xpose.msra.mxu0 0
    %6572 = vmatprep.subr.bf16.mxu0 0
    %6573 = vmatpush1.bf16.xpose.msra.mxu0 0
    %6574 = vmatprep.subr.bf16.mxu0 0
    %6575 = vmatpush1.bf16.xpose.msra.mxu0 0
    %6576 = vmatprep.subr.bf16.mxu0 0
    %6577 = vmatpush1.bf16.xpose.msra.mxu0 0
    %6578 = vmatprep.subr.bf16.mxu0 0
    %6579 = vmatpush1.bf16.xpose.msra.mxu0 0
    %6580 = vmatprep.subr.bf16.mxu0 0
    %6581 = vmatpush1.bf16.xpose.msra.mxu0 0
    %6582 = vmatprep.subr.bf16.mxu0 0
    %6583 = vmatpush1.bf16.xpose.msra.mxu0 0
    %6584 = vmatprep.subr.bf16.mxu0 0
    %6585 = vmatpush1.bf16.xpose.msra.mxu0 0
    %6586 = vmatprep.subr.bf16.mxu0 0
    %6587 = vmatpush1.bf16.xpose.msra.mxu0 0
    %6588 = vmatprep.subr.bf16.mxu0 0
    %6589 = vmatpush1.bf16.xpose.msra.mxu0 0
    %6590 = vmatprep.mubr.bf16.mxu0 0
    %6591 = vmatmul.mubr.bf16.gmra.mrb[0].mxu0 %v6553
    %v6592 = vpop.f32.mrb[0].mxu0
    %v6593 = vadd.f32 0.0, %v6592
    %v6594 = vpop.f32.mrb[0].mxu0
    %v6595 = vpop.f32.mrb[0].mxu0
    %v6596 = vpop.f32.mrb[0].mxu0
    %6597 = vdwg.mxu0
    %v6599 = vsel %vm897, %v6327, 0
    %v6602 = vsel %vm897, %v6387, 0
    %6604 = vmatprep.subr.bf16.mxu0 0
    %6605 = vmatpush1.bf16.xpose.msra.mxu0 %v6602
    %6606 = vmatprep.subr.bf16.mxu0 0
    %6607 = vmatpush1.bf16.xpose.msra.mxu0 0
    %6608 = vmatprep.subr.bf16.mxu0 0
    %6609 = vmatpush1.bf16.xpose.msra.mxu0 0
    %6610 = vmatprep.subr.bf16.mxu0 0
    %6611 = vmatpush1.bf16.xpose.msra.mxu0 0
    %6612 = vmatprep.subr.bf16.mxu0 0
    %6613 = vmatpush1.bf16.xpose.msra.mxu0 0
    %6614 = vmatprep.subr.bf16.mxu0 0
    %6615 = vmatpush1.bf16.xpose.msra.mxu0 0
    %6616 = vmatprep.subr.bf16.mxu0 0
    %6617 = vmatpush1.bf16.xpose.msra.mxu0 0
    %6618 = vmatprep.subr.bf16.mxu0 0
    %6619 = vmatpush1.bf16.xpose.msra.mxu0 0
    %6620 = vmatprep.subr.bf16.mxu0 0
    %6621 = vmatpush1.bf16.xpose.msra.mxu0 0
    %6622 = vmatprep.subr.bf16.mxu0 0
    %6623 = vmatpush1.bf16.xpose.msra.mxu0 0
    %6624 = vmatprep.subr.bf16.mxu0 0
    %6625 = vmatpush1.bf16.xpose.msra.mxu0 0
    %6626 = vmatprep.subr.bf16.mxu0 0
    %6627 = vmatpush1.bf16.xpose.msra.mxu0 0
    %6628 = vmatprep.subr.bf16.mxu0 0
    %6629 = vmatpush1.bf16.xpose.msra.mxu0 0
    %6630 = vmatprep.subr.bf16.mxu0 0
    %6631 = vmatpush1.bf16.xpose.msra.mxu0 0
    %6632 = vmatprep.subr.bf16.mxu0 0
    %6633 = vmatpush1.bf16.xpose.msra.mxu0 0
    %6634 = vmatprep.subr.bf16.mxu0 0
    %6635 = vmatpush1.bf16.xpose.msra.mxu0 0
    %6636 = vmatprep.mubr.bf16.mxu0 0
    %6637 = vmatmul.mubr.bf16.gmra.mrb[0].mxu0 %v6599
    %v6638 = vpop.f32.mrb[0].mxu0
    %v6639 = vadd.f32 0.0, %v6638
    %v6640 = vpop.f32.mrb[0].mxu0
    %v6641 = vpop.f32.mrb[0].mxu0
    %v6642 = vpop.f32.mrb[0].mxu0
    %6643 = vdwg.mxu0
    %v6645 = vsel %vm897, %v6328, 0
    %v6648 = vsel %vm897, %v6388, 0
    %6650 = vmatprep.subr.bf16.mxu0 0
    %6651 = vmatpush1.bf16.xpose.msra.mxu0 %v6648
    %6652 = vmatprep.subr.bf16.mxu0 0
    %6653 = vmatpush1.bf16.xpose.msra.mxu0 0
    %6654 = vmatprep.subr.bf16.mxu0 0
    %6655 = vmatpush1.bf16.xpose.msra.mxu0 0
    %6656 = vmatprep.subr.bf16.mxu0 0
    %6657 = vmatpush1.bf16.xpose.msra.mxu0 0
    %6658 = vmatprep.subr.bf16.mxu0 0
    %6659 = vmatpush1.bf16.xpose.msra.mxu0 0
    %6660 = vmatprep.subr.bf16.mxu0 0
    %6661 = vmatpush1.bf16.xpose.msra.mxu0 0
    %6662 = vmatprep.subr.bf16.mxu0 0
    %6663 = vmatpush1.bf16.xpose.msra.mxu0 0
    %6664 = vmatprep.subr.bf16.mxu0 0
    %6665 = vmatpush1.bf16.xpose.msra.mxu0 0
    %6666 = vmatprep.subr.bf16.mxu0 0
    %6667 = vmatpush1.bf16.xpose.msra.mxu0 0
    %6668 = vmatprep.subr.bf16.mxu0 0
    %6669 = vmatpush1.bf16.xpose.msra.mxu0 0
    %6670 = vmatprep.subr.bf16.mxu0 0
    %6671 = vmatpush1.bf16.xpose.msra.mxu0 0
    %6672 = vmatprep.subr.bf16.mxu0 0
    %6673 = vmatpush1.bf16.xpose.msra.mxu0 0
    %6674 = vmatprep.subr.bf16.mxu0 0
    %6675 = vmatpush1.bf16.xpose.msra.mxu0 0
    %6676 = vmatprep.subr.bf16.mxu0 0
    %6677 = vmatpush1.bf16.xpose.msra.mxu0 0
    %6678 = vmatprep.subr.bf16.mxu0 0
    %6679 = vmatpush1.bf16.xpose.msra.mxu0 0
    %6680 = vmatprep.subr.bf16.mxu0 0
    %6681 = vmatpush1.bf16.xpose.msra.mxu0 0
    %6682 = vmatprep.mubr.bf16.mxu0 0
    %6683 = vmatmul.mubr.bf16.gmra.mrb[0].mxu0 %v6645
    %v6684 = vpop.f32.mrb[0].mxu0
    %v6685 = vadd.f32 0.0, %v6684
    %v6686 = vpop.f32.mrb[0].mxu0
    %v6687 = vpop.f32.mrb[0].mxu0
    %v6688 = vpop.f32.mrb[0].mxu0
    %6689 = vdwg.mxu0
    %v6691 = vsel %vm897, %v6329, 0
    %v6694 = vsel %vm897, %v6389, 0
    %6696 = vmatprep.subr.bf16.mxu0 0
    %6697 = vmatpush1.bf16.xpose.msra.mxu0 %v6694
    %6698 = vmatprep.subr.bf16.mxu0 0
    %6699 = vmatpush1.bf16.xpose.msra.mxu0 0
    %6700 = vmatprep.subr.bf16.mxu0 0
    %6701 = vmatpush1.bf16.xpose.msra.mxu0 0
    %6702 = vmatprep.subr.bf16.mxu0 0
    %6703 = vmatpush1.bf16.xpose.msra.mxu0 0
    %6704 = vmatprep.subr.bf16.mxu0 0
    %6705 = vmatpush1.bf16.xpose.msra.mxu0 0
    %6706 = vmatprep.subr.bf16.mxu0 0
    %6707 = vmatpush1.bf16.xpose.msra.mxu0 0
    %6708 = vmatprep.subr.bf16.mxu0 0
    %6709 = vmatpush1.bf16.xpose.msra.mxu0 0
    %6710 = vmatprep.subr.bf16.mxu0 0
    %6711 = vmatpush1.bf16.xpose.msra.mxu0 0
    %6712 = vmatprep.subr.bf16.mxu0 0
    %6713 = vmatpush1.bf16.xpose.msra.mxu0 0
    %6714 = vmatprep.subr.bf16.mxu0 0
    %6715 = vmatpush1.bf16.xpose.msra.mxu0 0
    %6716 = vmatprep.subr.bf16.mxu0 0
    %6717 = vmatpush1.bf16.xpose.msra.mxu0 0
    %6718 = vmatprep.subr.bf16.mxu0 0
    %6719 = vmatpush1.bf16.xpose.msra.mxu0 0
    %6720 = vmatprep.subr.bf16.mxu0 0
    %6721 = vmatpush1.bf16.xpose.msra.mxu0 0
    %6722 = vmatprep.subr.bf16.mxu0 0
    %6723 = vmatpush1.bf16.xpose.msra.mxu0 0
    %6724 = vmatprep.subr.bf16.mxu0 0
    %6725 = vmatpush1.bf16.xpose.msra.mxu0 0
    %6726 = vmatprep.subr.bf16.mxu0 0
    %6727 = vmatpush1.bf16.xpose.msra.mxu0 0
    %6728 = vmatprep.mubr.bf16.mxu0 0
    %6729 = vmatmul.mubr.bf16.gmra.mrb[0].mxu0 %v6691
    %v6730 = vpop.f32.mrb[0].mxu0
    %v6731 = vadd.f32 0.0, %v6730
    %v6732 = vpop.f32.mrb[0].mxu0
    %v6733 = vpop.f32.mrb[0].mxu0
    %v6734 = vpop.f32.mrb[0].mxu0
    %6735 = vdwg.mxu0
    %v6737 = vsel %vm897, %v6330, 0
    %v6740 = vsel %vm897, %v6390, 0
    %6742 = vmatprep.subr.bf16.mxu0 0
    %6743 = vmatpush1.bf16.xpose.msra.mxu0 %v6740
    %6744 = vmatprep.subr.bf16.mxu0 0
    %6745 = vmatpush1.bf16.xpose.msra.mxu0 0
    %6746 = vmatprep.subr.bf16.mxu0 0
    %6747 = vmatpush1.bf16.xpose.msra.mxu0 0
    %6748 = vmatprep.subr.bf16.mxu0 0
    %6749 = vmatpush1.bf16.xpose.msra.mxu0 0
    %6750 = vmatprep.subr.bf16.mxu0 0
    %6751 = vmatpush1.bf16.xpose.msra.mxu0 0
    %6752 = vmatprep.subr.bf16.mxu0 0
    %6753 = vmatpush1.bf16.xpose.msra.mxu0 0
    %6754 = vmatprep.subr.bf16.mxu0 0
    %6755 = vmatpush1.bf16.xpose.msra.mxu0 0
    %6756 = vmatprep.subr.bf16.mxu0 0
    %6757 = vmatpush1.bf16.xpose.msra.mxu0 0
    %6758 = vmatprep.subr.bf16.mxu0 0
    %6759 = vmatpush1.bf16.xpose.msra.mxu0 0
    %6760 = vmatprep.subr.bf16.mxu0 0
    %6761 = vmatpush1.bf16.xpose.msra.mxu0 0
    %6762 = vmatprep.subr.bf16.mxu0 0
    %6763 = vmatpush1.bf16.xpose.msra.mxu0 0
    %6764 = vmatprep.subr.bf16.mxu0 0
    %6765 = vmatpush1.bf16.xpose.msra.mxu0 0
    %6766 = vmatprep.subr.bf16.mxu0 0
    %6767 = vmatpush1.bf16.xpose.msra.mxu0 0
    %6768 = vmatprep.subr.bf16.mxu0 0
    %6769 = vmatpush1.bf16.xpose.msra.mxu0 0
    %6770 = vmatprep.subr.bf16.mxu0 0
    %6771 = vmatpush1.bf16.xpose.msra.mxu0 0
    %6772 = vmatprep.subr.bf16.mxu0 0
    %6773 = vmatpush1.bf16.xpose.msra.mxu0 0
    %6774 = vmatprep.mubr.bf16.mxu0 0
    %6775 = vmatmul.mubr.bf16.gmra.mrb[0].mxu0 %v6737
    %v6776 = vpop.f32.mrb[0].mxu0
    %v6777 = vadd.f32 0.0, %v6776
    %v6778 = vpop.f32.mrb[0].mxu0
    %v6779 = vpop.f32.mrb[0].mxu0
    %v6780 = vpop.f32.mrb[0].mxu0
    %6781 = vdwg.mxu0
    %v6783 = vsel %vm897, %v6331, 0
    %v6786 = vsel %vm897, %v6391, 0
    %6788 = vmatprep.subr.bf16.mxu0 0
    %6789 = vmatpush1.bf16.xpose.msra.mxu0 %v6786
    %6790 = vmatprep.subr.bf16.mxu0 0
    %6791 = vmatpush1.bf16.xpose.msra.mxu0 0
    %6792 = vmatprep.subr.bf16.mxu0 0
    %6793 = vmatpush1.bf16.xpose.msra.mxu0 0
    %6794 = vmatprep.subr.bf16.mxu0 0
    %6795 = vmatpush1.bf16.xpose.msra.mxu0 0
    %6796 = vmatprep.subr.bf16.mxu0 0
    %6797 = vmatpush1.bf16.xpose.msra.mxu0 0
    %6798 = vmatprep.subr.bf16.mxu0 0
    %6799 = vmatpush1.bf16.xpose.msra.mxu0 0
    %6800 = vmatprep.subr.bf16.mxu0 0
    %6801 = vmatpush1.bf16.xpose.msra.mxu0 0
    %6802 = vmatprep.subr.bf16.mxu0 0
    %6803 = vmatpush1.bf16.xpose.msra.mxu0 0
    %6804 = vmatprep.subr.bf16.mxu0 0
    %6805 = vmatpush1.bf16.xpose.msra.mxu0 0
    %6806 = vmatprep.subr.bf16.mxu0 0
    %6807 = vmatpush1.bf16.xpose.msra.mxu0 0
    %6808 = vmatprep.subr.bf16.mxu0 0
    %6809 = vmatpush1.bf16.xpose.msra.mxu0 0
    %6810 = vmatprep.subr.bf16.mxu0 0
    %6811 = vmatpush1.bf16.xpose.msra.mxu0 0
    %6812 = vmatprep.subr.bf16.mxu0 0
    %6813 = vmatpush1.bf16.xpose.msra.mxu0 0
    %6814 = vmatprep.subr.bf16.mxu0 0
    %6815 = vmatpush1.bf16.xpose.msra.mxu0 0
    %6816 = vmatprep.subr.bf16.mxu0 0
    %6817 = vmatpush1.bf16.xpose.msra.mxu0 0
    %6818 = vmatprep.subr.bf16.mxu0 0
    %6819 = vmatpush1.bf16.xpose.msra.mxu0 0
    %6820 = vmatprep.mubr.bf16.mxu0 0
    %6821 = vmatmul.mubr.bf16.gmra.mrb[0].mxu0 %v6783
    %v6822 = vpop.f32.mrb[0].mxu0
    %v6823 = vadd.f32 0.0, %v6822
    %v6824 = vpop.f32.mrb[0].mxu0
    %v6825 = vpop.f32.mrb[0].mxu0
    %v6826 = vpop.f32.mrb[0].mxu0
    %6827 = vdwg.mxu0
    %v6829 = vsel %vm897, %v6332, 0
    %v6832 = vsel %vm897, %v6392, 0
    %6834 = vmatprep.subr.bf16.mxu0 0
    %6835 = vmatpush1.bf16.xpose.msra.mxu0 %v6832
    %6836 = vmatprep.subr.bf16.mxu0 0
    %6837 = vmatpush1.bf16.xpose.msra.mxu0 0
    %6838 = vmatprep.subr.bf16.mxu0 0
    %6839 = vmatpush1.bf16.xpose.msra.mxu0 0
    %6840 = vmatprep.subr.bf16.mxu0 0
    %6841 = vmatpush1.bf16.xpose.msra.mxu0 0
    %6842 = vmatprep.subr.bf16.mxu0 0
    %6843 = vmatpush1.bf16.xpose.msra.mxu0 0
    %6844 = vmatprep.subr.bf16.mxu0 0
    %6845 = vmatpush1.bf16.xpose.msra.mxu0 0
    %6846 = vmatprep.subr.bf16.mxu0 0
    %6847 = vmatpush1.bf16.xpose.msra.mxu0 0
    %6848 = vmatprep.subr.bf16.mxu0 0
    %6849 = vmatpush1.bf16.xpose.msra.mxu0 0
    %6850 = vmatprep.subr.bf16.mxu0 0
    %6851 = vmatpush1.bf16.xpose.msra.mxu0 0
    %6852 = vmatprep.subr.bf16.mxu0 0
    %6853 = vmatpush1.bf16.xpose.msra.mxu0 0
    %6854 = vmatprep.subr.bf16.mxu0 0
    %6855 = vmatpush1.bf16.xpose.msra.mxu0 0
    %6856 = vmatprep.subr.bf16.mxu0 0
    %6857 = vmatpush1.bf16.xpose.msra.mxu0 0
    %6858 = vmatprep.subr.bf16.mxu0 0
    %6859 = vmatpush1.bf16.xpose.msra.mxu0 0
    %6860 = vmatprep.subr.bf16.mxu0 0
    %6861 = vmatpush1.bf16.xpose.msra.mxu0 0
    %6862 = vmatprep.subr.bf16.mxu0 0
    %6863 = vmatpush1.bf16.xpose.msra.mxu0 0
    %6864 = vmatprep.subr.bf16.mxu0 0
    %6865 = vmatpush1.bf16.xpose.msra.mxu0 0
    %6866 = vmatprep.mubr.bf16.mxu0 0
    %6867 = vmatmul.mubr.bf16.gmra.mrb[0].mxu0 %v6829
    %v6868 = vpop.f32.mrb[0].mxu0
    %v6869 = vadd.f32 0.0, %v6868
    %v6870 = vpop.f32.mrb[0].mxu0
    %v6871 = vpop.f32.mrb[0].mxu0
    %v6872 = vpop.f32.mrb[0].mxu0
    %6873 = vdwg.mxu0
    %v6875 = vsel %vm897, %v6333, 0
    %v6878 = vsel %vm897, %v6393, 0
    %6880 = vmatprep.subr.bf16.mxu0 0
    %6881 = vmatpush1.bf16.xpose.msra.mxu0 %v6878
    %6882 = vmatprep.subr.bf16.mxu0 0
    %6883 = vmatpush1.bf16.xpose.msra.mxu0 0
    %6884 = vmatprep.subr.bf16.mxu0 0
    %6885 = vmatpush1.bf16.xpose.msra.mxu0 0
    %6886 = vmatprep.subr.bf16.mxu0 0
    %6887 = vmatpush1.bf16.xpose.msra.mxu0 0
    %6888 = vmatprep.subr.bf16.mxu0 0
    %6889 = vmatpush1.bf16.xpose.msra.mxu0 0
    %6890 = vmatprep.subr.bf16.mxu0 0
    %6891 = vmatpush1.bf16.xpose.msra.mxu0 0
    %6892 = vmatprep.subr.bf16.mxu0 0
    %6893 = vmatpush1.bf16.xpose.msra.mxu0 0
    %6894 = vmatprep.subr.bf16.mxu0 0
    %6895 = vmatpush1.bf16.xpose.msra.mxu0 0
    %6896 = vmatprep.subr.bf16.mxu0 0
    %6897 = vmatpush1.bf16.xpose.msra.mxu0 0
    %6898 = vmatprep.subr.bf16.mxu0 0
    %6899 = vmatpush1.bf16.xpose.msra.mxu0 0
    %6900 = vmatprep.subr.bf16.mxu0 0
    %6901 = vmatpush1.bf16.xpose.msra.mxu0 0
    %6902 = vmatprep.subr.bf16.mxu0 0
    %6903 = vmatpush1.bf16.xpose.msra.mxu0 0
    %6904 = vmatprep.subr.bf16.mxu0 0
    %6905 = vmatpush1.bf16.xpose.msra.mxu0 0
    %6906 = vmatprep.subr.bf16.mxu0 0
    %6907 = vmatpush1.bf16.xpose.msra.mxu0 0
    %6908 = vmatprep.subr.bf16.mxu0 0
    %6909 = vmatpush1.bf16.xpose.msra.mxu0 0
    %6910 = vmatprep.subr.bf16.mxu0 0
    %6911 = vmatpush1.bf16.xpose.msra.mxu0 0
    %6912 = vmatprep.mubr.bf16.mxu0 0
    %6913 = vmatmul.mubr.bf16.gmra.mrb[0].mxu0 %v6875
    %v6914 = vpop.f32.mrb[0].mxu0
    %v6915 = vadd.f32 0.0, %v6914
    %v6916 = vpop.f32.mrb[0].mxu0
    %v6917 = vpop.f32.mrb[0].mxu0
    %v6918 = vpop.f32.mrb[0].mxu0
    %6919 = vdwg.mxu0
    %v6921 = vsel %vm897, %v6334, 0
    %v6924 = vsel %vm897, %v6394, 0
    %6926 = vmatprep.subr.bf16.mxu0 0
    %6927 = vmatpush1.bf16.xpose.msra.mxu0 %v6924
    %6928 = vmatprep.subr.bf16.mxu0 0
    %6929 = vmatpush1.bf16.xpose.msra.mxu0 0
    %6930 = vmatprep.subr.bf16.mxu0 0
    %6931 = vmatpush1.bf16.xpose.msra.mxu0 0
    %6932 = vmatprep.subr.bf16.mxu0 0
    %6933 = vmatpush1.bf16.xpose.msra.mxu0 0
    %6934 = vmatprep.subr.bf16.mxu0 0
    %6935 = vmatpush1.bf16.xpose.msra.mxu0 0
    %6936 = vmatprep.subr.bf16.mxu0 0
    %6937 = vmatpush1.bf16.xpose.msra.mxu0 0
    %6938 = vmatprep.subr.bf16.mxu0 0
    %6939 = vmatpush1.bf16.xpose.msra.mxu0 0
    %6940 = vmatprep.subr.bf16.mxu0 0
    %6941 = vmatpush1.bf16.xpose.msra.mxu0 0
    %6942 = vmatprep.subr.bf16.mxu0 0
    %6943 = vmatpush1.bf16.xpose.msra.mxu0 0
    %6944 = vmatprep.subr.bf16.mxu0 0
    %6945 = vmatpush1.bf16.xpose.msra.mxu0 0
    %6946 = vmatprep.subr.bf16.mxu0 0
    %6947 = vmatpush1.bf16.xpose.msra.mxu0 0
    %6948 = vmatprep.subr.bf16.mxu0 0
    %6949 = vmatpush1.bf16.xpose.msra.mxu0 0
    %6950 = vmatprep.subr.bf16.mxu0 0
    %6951 = vmatpush1.bf16.xpose.msra.mxu0 0
    %6952 = vmatprep.subr.bf16.mxu0 0
    %6953 = vmatpush1.bf16.xpose.msra.mxu0 0
    %6954 = vmatprep.subr.bf16.mxu0 0
    %6955 = vmatpush1.bf16.xpose.msra.mxu0 0
    %6956 = vmatprep.subr.bf16.mxu0 0
    %6957 = vmatpush1.bf16.xpose.msra.mxu0 0
    %6958 = vmatprep.mubr.bf16.mxu0 0
    %6959 = vmatmul.mubr.bf16.gmra.mrb[0].mxu0 %v6921
    %v6960 = vpop.f32.mrb[0].mxu0
    %v6961 = vadd.f32 0.0, %v6960
    %v6962 = vpop.f32.mrb[0].mxu0
    %v6963 = vpop.f32.mrb[0].mxu0
    %v6964 = vpop.f32.mrb[0].mxu0
    %6965 = vdwg.mxu0
    %v6967 = vsel %vm897, %v6335, 0
    %v6970 = vsel %vm897, %v6395, 0
    %6972 = vmatprep.subr.bf16.mxu0 0
    %6973 = vmatpush1.bf16.xpose.msra.mxu0 %v6970
    %6974 = vmatprep.subr.bf16.mxu0 0
    %6975 = vmatpush1.bf16.xpose.msra.mxu0 0
    %6976 = vmatprep.subr.bf16.mxu0 0
    %6977 = vmatpush1.bf16.xpose.msra.mxu0 0
    %6978 = vmatprep.subr.bf16.mxu0 0
    %6979 = vmatpush1.bf16.xpose.msra.mxu0 0
    %6980 = vmatprep.subr.bf16.mxu0 0
    %6981 = vmatpush1.bf16.xpose.msra.mxu0 0
    %6982 = vmatprep.subr.bf16.mxu0 0
    %6983 = vmatpush1.bf16.xpose.msra.mxu0 0
    %6984 = vmatprep.subr.bf16.mxu0 0
    %6985 = vmatpush1.bf16.xpose.msra.mxu0 0
    %6986 = vmatprep.subr.bf16.mxu0 0
    %6987 = vmatpush1.bf16.xpose.msra.mxu0 0
    %6988 = vmatprep.subr.bf16.mxu0 0
    %6989 = vmatpush1.bf16.xpose.msra.mxu0 0
    %6990 = vmatprep.subr.bf16.mxu0 0
    %6991 = vmatpush1.bf16.xpose.msra.mxu0 0
    %6992 = vmatprep.subr.bf16.mxu0 0
    %6993 = vmatpush1.bf16.xpose.msra.mxu0 0
    %6994 = vmatprep.subr.bf16.mxu0 0
    %6995 = vmatpush1.bf16.xpose.msra.mxu0 0
    %6996 = vmatprep.subr.bf16.mxu0 0
    %6997 = vmatpush1.bf16.xpose.msra.mxu0 0
    %6998 = vmatprep.subr.bf16.mxu0 0
    %6999 = vmatpush1.bf16.xpose.msra.mxu0 0
    %7000 = vmatprep.subr.bf16.mxu0 0
    %7001 = vmatpush1.bf16.xpose.msra.mxu0 0
    %7002 = vmatprep.subr.bf16.mxu0 0
    %7003 = vmatpush1.bf16.xpose.msra.mxu0 0
    %7004 = vmatprep.mubr.bf16.mxu0 0
    %7005 = vmatmul.mubr.bf16.gmra.mrb[0].mxu0 %v6967
    %v7006 = vpop.f32.mrb[0].mxu0
    %v7007 = vadd.f32 0.0, %v7006
    %v7008 = vpop.f32.mrb[0].mxu0
    %v7009 = vpop.f32.mrb[0].mxu0
    %v7010 = vpop.f32.mrb[0].mxu0
    %7011 = vdwg.mxu0
    %v7013 = vsel %vm897, %v6336, 0
    %v7016 = vsel %vm897, %v6396, 0
    %7018 = vmatprep.subr.bf16.mxu0 0
    %7019 = vmatpush1.bf16.xpose.msra.mxu0 %v7016
    %7020 = vmatprep.subr.bf16.mxu0 0
    %7021 = vmatpush1.bf16.xpose.msra.mxu0 0
    %7022 = vmatprep.subr.bf16.mxu0 0
    %7023 = vmatpush1.bf16.xpose.msra.mxu0 0
    %7024 = vmatprep.subr.bf16.mxu0 0
    %7025 = vmatpush1.bf16.xpose.msra.mxu0 0
    %7026 = vmatprep.subr.bf16.mxu0 0
    %7027 = vmatpush1.bf16.xpose.msra.mxu0 0
    %7028 = vmatprep.subr.bf16.mxu0 0
    %7029 = vmatpush1.bf16.xpose.msra.mxu0 0
    %7030 = vmatprep.subr.bf16.mxu0 0
    %7031 = vmatpush1.bf16.xpose.msra.mxu0 0
    %7032 = vmatprep.subr.bf16.mxu0 0
    %7033 = vmatpush1.bf16.xpose.msra.mxu0 0
    %7034 = vmatprep.subr.bf16.mxu0 0
    %7035 = vmatpush1.bf16.xpose.msra.mxu0 0
    %7036 = vmatprep.subr.bf16.mxu0 0
    %7037 = vmatpush1.bf16.xpose.msra.mxu0 0
    %7038 = vmatprep.subr.bf16.mxu0 0
    %7039 = vmatpush1.bf16.xpose.msra.mxu0 0
    %7040 = vmatprep.subr.bf16.mxu0 0
    %7041 = vmatpush1.bf16.xpose.msra.mxu0 0
    %7042 = vmatprep.subr.bf16.mxu0 0
    %7043 = vmatpush1.bf16.xpose.msra.mxu0 0
    %7044 = vmatprep.subr.bf16.mxu0 0
    %7045 = vmatpush1.bf16.xpose.msra.mxu0 0
    %7046 = vmatprep.subr.bf16.mxu0 0
    %7047 = vmatpush1.bf16.xpose.msra.mxu0 0
    %7048 = vmatprep.subr.bf16.mxu0 0
    %7049 = vmatpush1.bf16.xpose.msra.mxu0 0
    %7050 = vmatprep.mubr.bf16.mxu0 0
    %7051 = vmatmul.mubr.bf16.gmra.mrb[0].mxu0 %v7013
    %v7052 = vpop.f32.mrb[0].mxu0
    %v7053 = vadd.f32 0.0, %v7052
    %v7054 = vpop.f32.mrb[0].mxu0
    %v7055 = vpop.f32.mrb[0].mxu0
    %v7056 = vpop.f32.mrb[0].mxu0
    %7057 = vdwg.mxu0
    %v7059 = vsel %vm897, %v6337, 0
    %v7062 = vsel %vm897, %v6397, 0
    %7064 = vmatprep.subr.bf16.mxu0 0
    %7065 = vmatpush1.bf16.xpose.msra.mxu0 %v7062
    %7066 = vmatprep.subr.bf16.mxu0 0
    %7067 = vmatpush1.bf16.xpose.msra.mxu0 0
    %7068 = vmatprep.subr.bf16.mxu0 0
    %7069 = vmatpush1.bf16.xpose.msra.mxu0 0
    %7070 = vmatprep.subr.bf16.mxu0 0
    %7071 = vmatpush1.bf16.xpose.msra.mxu0 0
    %7072 = vmatprep.subr.bf16.mxu0 0
    %7073 = vmatpush1.bf16.xpose.msra.mxu0 0
    %7074 = vmatprep.subr.bf16.mxu0 0
    %7075 = vmatpush1.bf16.xpose.msra.mxu0 0
    %7076 = vmatprep.subr.bf16.mxu0 0
    %7077 = vmatpush1.bf16.xpose.msra.mxu0 0
    %7078 = vmatprep.subr.bf16.mxu0 0
    %7079 = vmatpush1.bf16.xpose.msra.mxu0 0
    %7080 = vmatprep.subr.bf16.mxu0 0
    %7081 = vmatpush1.bf16.xpose.msra.mxu0 0
    %7082 = vmatprep.subr.bf16.mxu0 0
    %7083 = vmatpush1.bf16.xpose.msra.mxu0 0
    %7084 = vmatprep.subr.bf16.mxu0 0
    %7085 = vmatpush1.bf16.xpose.msra.mxu0 0
    %7086 = vmatprep.subr.bf16.mxu0 0
    %7087 = vmatpush1.bf16.xpose.msra.mxu0 0
    %7088 = vmatprep.subr.bf16.mxu0 0
    %7089 = vmatpush1.bf16.xpose.msra.mxu0 0
    %7090 = vmatprep.subr.bf16.mxu0 0
    %7091 = vmatpush1.bf16.xpose.msra.mxu0 0
    %7092 = vmatprep.subr.bf16.mxu0 0
    %7093 = vmatpush1.bf16.xpose.msra.mxu0 0
    %7094 = vmatprep.subr.bf16.mxu0 0
    %7095 = vmatpush1.bf16.xpose.msra.mxu0 0
    %7096 = vmatprep.mubr.bf16.mxu0 0
    %7097 = vmatmul.mubr.bf16.gmra.mrb[0].mxu0 %v7059
    %v7098 = vpop.f32.mrb[0].mxu0
    %v7099 = vadd.f32 0.0, %v7098
    %v7100 = vpop.f32.mrb[0].mxu0
    %v7101 = vpop.f32.mrb[0].mxu0
    %v7102 = vpop.f32.mrb[0].mxu0
    %7103 = vdwg.mxu0
    %v7105 = vsel %vm897, %v6338, 0
    %v7108 = vsel %vm897, %v6398, 0
    %7110 = vmatprep.subr.bf16.mxu0 0
    %7111 = vmatpush1.bf16.xpose.msra.mxu0 %v7108
    %7112 = vmatprep.subr.bf16.mxu0 0
    %7113 = vmatpush1.bf16.xpose.msra.mxu0 0
    %7114 = vmatprep.subr.bf16.mxu0 0
    %7115 = vmatpush1.bf16.xpose.msra.mxu0 0
    %7116 = vmatprep.subr.bf16.mxu0 0
    %7117 = vmatpush1.bf16.xpose.msra.mxu0 0
    %7118 = vmatprep.subr.bf16.mxu0 0
    %7119 = vmatpush1.bf16.xpose.msra.mxu0 0
    %7120 = vmatprep.subr.bf16.mxu0 0
    %7121 = vmatpush1.bf16.xpose.msra.mxu0 0
    %7122 = vmatprep.subr.bf16.mxu0 0
    %7123 = vmatpush1.bf16.xpose.msra.mxu0 0
    %7124 = vmatprep.subr.bf16.mxu0 0
    %7125 = vmatpush1.bf16.xpose.msra.mxu0 0
    %7126 = vmatprep.subr.bf16.mxu0 0
    %7127 = vmatpush1.bf16.xpose.msra.mxu0 0
    %7128 = vmatprep.subr.bf16.mxu0 0
    %7129 = vmatpush1.bf16.xpose.msra.mxu0 0
    %7130 = vmatprep.subr.bf16.mxu0 0
    %7131 = vmatpush1.bf16.xpose.msra.mxu0 0
    %7132 = vmatprep.subr.bf16.mxu0 0
    %7133 = vmatpush1.bf16.xpose.msra.mxu0 0
    %7134 = vmatprep.subr.bf16.mxu0 0
    %7135 = vmatpush1.bf16.xpose.msra.mxu0 0
    %7136 = vmatprep.subr.bf16.mxu0 0
    %7137 = vmatpush1.bf16.xpose.msra.mxu0 0
    %7138 = vmatprep.subr.bf16.mxu0 0
    %7139 = vmatpush1.bf16.xpose.msra.mxu0 0
    %7140 = vmatprep.subr.bf16.mxu0 0
    %7141 = vmatpush1.bf16.xpose.msra.mxu0 0
    %7142 = vmatprep.mubr.bf16.mxu0 0
    %7143 = vmatmul.mubr.bf16.gmra.mrb[0].mxu0 %v7105
    %v7144 = vpop.f32.mrb[0].mxu0
    %v7145 = vadd.f32 0.0, %v7144
    %v7146 = vpop.f32.mrb[0].mxu0
    %v7147 = vpop.f32.mrb[0].mxu0
    %v7148 = vpop.f32.mrb[0].mxu0
    %7149 = vdwg.mxu0
    %v7151 = vsel %vm897, %v6339, 0
    %v7154 = vsel %vm897, %v6399, 0
    %7156 = vmatprep.subr.bf16.mxu0 0
    %7157 = vmatpush1.bf16.xpose.msra.mxu0 %v7154
    %7158 = vmatprep.subr.bf16.mxu0 0
    %7159 = vmatpush1.bf16.xpose.msra.mxu0 0
    %7160 = vmatprep.subr.bf16.mxu0 0
    %7161 = vmatpush1.bf16.xpose.msra.mxu0 0
    %7162 = vmatprep.subr.bf16.mxu0 0
    %7163 = vmatpush1.bf16.xpose.msra.mxu0 0
    %7164 = vmatprep.subr.bf16.mxu0 0
    %7165 = vmatpush1.bf16.xpose.msra.mxu0 0
    %7166 = vmatprep.subr.bf16.mxu0 0
    %7167 = vmatpush1.bf16.xpose.msra.mxu0 0
    %7168 = vmatprep.subr.bf16.mxu0 0
    %7169 = vmatpush1.bf16.xpose.msra.mxu0 0
    %7170 = vmatprep.subr.bf16.mxu0 0
    %7171 = vmatpush1.bf16.xpose.msra.mxu0 0
    %7172 = vmatprep.subr.bf16.mxu0 0
    %7173 = vmatpush1.bf16.xpose.msra.mxu0 0
    %7174 = vmatprep.subr.bf16.mxu0 0
    %7175 = vmatpush1.bf16.xpose.msra.mxu0 0
    %7176 = vmatprep.subr.bf16.mxu0 0
    %7177 = vmatpush1.bf16.xpose.msra.mxu0 0
    %7178 = vmatprep.subr.bf16.mxu0 0
    %7179 = vmatpush1.bf16.xpose.msra.mxu0 0
    %7180 = vmatprep.subr.bf16.mxu0 0
    %7181 = vmatpush1.bf16.xpose.msra.mxu0 0
    %7182 = vmatprep.subr.bf16.mxu0 0
    %7183 = vmatpush1.bf16.xpose.msra.mxu0 0
    %7184 = vmatprep.subr.bf16.mxu0 0
    %7185 = vmatpush1.bf16.xpose.msra.mxu0 0
    %7186 = vmatprep.subr.bf16.mxu0 0
    %7187 = vmatpush1.bf16.xpose.msra.mxu0 0
    %7188 = vmatprep.mubr.bf16.mxu0 0
    %7189 = vmatmul.mubr.bf16.gmra.mrb[0].mxu0 %v7151
    %v7190 = vpop.f32.mrb[0].mxu0
    %v7191 = vadd.f32 0.0, %v7190
    %v7192 = vpop.f32.mrb[0].mxu0
    %v7193 = vpop.f32.mrb[0].mxu0
    %v7194 = vpop.f32.mrb[0].mxu0
    %7195 = vdwg.mxu0
    %v7196 = vsel %vm1634, %v6501, -inf
    %7197 = vmax.xlane.f32.xlu0 %v7196
    %v7198 = vpop.xlane.xlu0 %7197
    %v7199 = vsel %vm1634, %v6547, -inf
    %7200 = vmax.xlane.f32.xlu0 %v7199
    %v7201 = vpop.xlane.xlu0 %7200
    %v7202 = vsel %vm1634, %v6593, -inf
    %7203 = vmax.xlane.f32.xlu0 %v7202
    %v7204 = vpop.xlane.xlu0 %7203
    %v7205 = vsel %vm1634, %v6639, -inf
    %7206 = vmax.xlane.f32.xlu0 %v7205
    %v7207 = vpop.xlane.xlu0 %7206
    %v7208 = vsel %vm1634, %v6685, -inf
    %7209 = vmax.xlane.f32.xlu0 %v7208
    %v7210 = vpop.xlane.xlu0 %7209
    %v7211 = vsel %vm1634, %v6731, -inf
    %7212 = vmax.xlane.f32.xlu0 %v7211
    %v7213 = vpop.xlane.xlu0 %7212
    %v7214 = vsel %vm1634, %v6777, -inf
    %7215 = vmax.xlane.f32.xlu0 %v7214
    %v7216 = vpop.xlane.xlu0 %7215
    %v7217 = vsel %vm1634, %v6823, -inf
    %7218 = vmax.xlane.f32.xlu0 %v7217
    %v7219 = vpop.xlane.xlu0 %7218
    %v7220 = vsel %vm1634, %v6869, -inf
    %7221 = vmax.xlane.f32.xlu0 %v7220
    %v7222 = vpop.xlane.xlu0 %7221
    %v7223 = vsel %vm1634, %v6915, -inf
    %7224 = vmax.xlane.f32.xlu0 %v7223
    %v7225 = vpop.xlane.xlu0 %7224
    %v7226 = vsel %vm1634, %v6961, -inf
    %7227 = vmax.xlane.f32.xlu0 %v7226
    %v7228 = vpop.xlane.xlu0 %7227
    %v7229 = vsel %vm1634, %v7007, -inf
    %7230 = vmax.xlane.f32.xlu0 %v7229
    %v7231 = vpop.xlane.xlu0 %7230
    %v7232 = vsel %vm1634, %v7053, -inf
    %7233 = vmax.xlane.f32.xlu0 %v7232
    %v7234 = vpop.xlane.xlu0 %7233
    %v7235 = vsel %vm1634, %v7099, -inf
    %7236 = vmax.xlane.f32.xlu0 %v7235
    %v7237 = vpop.xlane.xlu0 %7236
    %v7238 = vsel %vm1634, %v7145, -inf
    %7239 = vmax.xlane.f32.xlu0 %v7238
    %v7240 = vpop.xlane.xlu0 %7239
    %v7241 = vsel %vm1634, %v7191, -inf
    %7242 = vmax.xlane.f32.xlu0 %v7241
    %v7243 = vpop.xlane.xlu0 %7242
    %v7244 = vsub.f32 %v6501, %v7198
    %v7245 = vsub.f32 %v6547, %v7201
    %v7246 = vsub.f32 %v6593, %v7204
    %v7247 = vsub.f32 %v6639, %v7207
    %v7248 = vsub.f32 %v6685, %v7210
    %v7249 = vsub.f32 %v6731, %v7213
    %v7250 = vsub.f32 %v6777, %v7216
    %v7251 = vsub.f32 %v6823, %v7219
    %v7252 = vsub.f32 %v6869, %v7222
    %v7253 = vsub.f32 %v6915, %v7225
    %v7254 = vsub.f32 %v6961, %v7228
    %v7255 = vsub.f32 %v7007, %v7231
    %v7256 = vsub.f32 %v7053, %v7234
    %v7257 = vsub.f32 %v7099, %v7237
    %v7258 = vsub.f32 %v7145, %v7240
    %v7259 = vsub.f32 %v7191, %v7243
    %v7260 = vmul.f32 %v7244, 1.442695
    %v7261 = vpow.pop %v7260
    %v7262 = vmul.f32 %v7245, 1.442695
    %v7263 = vpow.pop %v7262
    %v7264 = vmul.f32 %v7246, 1.442695
    %v7265 = vpow.pop %v7264
    %v7266 = vmul.f32 %v7247, 1.442695
    %v7267 = vpow.pop %v7266
    %v7268 = vmul.f32 %v7248, 1.442695
    %v7269 = vpow.pop %v7268
    %v7270 = vmul.f32 %v7249, 1.442695
    %v7271 = vpow.pop %v7270
    %v7272 = vmul.f32 %v7250, 1.442695
    %v7273 = vpow.pop %v7272
    %v7274 = vmul.f32 %v7251, 1.442695
    %v7275 = vpow.pop %v7274
    %v7276 = vmul.f32 %v7252, 1.442695
    %v7277 = vpow.pop %v7276
    %v7278 = vmul.f32 %v7253, 1.442695
    %v7279 = vpow.pop %v7278
    %v7280 = vmul.f32 %v7254, 1.442695
    %v7281 = vpow.pop %v7280
    %v7282 = vmul.f32 %v7255, 1.442695
    %v7283 = vpow.pop %v7282
    %v7284 = vmul.f32 %v7256, 1.442695
    %v7285 = vpow.pop %v7284
    %v7286 = vmul.f32 %v7257, 1.442695
    %v7287 = vpow.pop %v7286
    %v7288 = vmul.f32 %v7258, 1.442695
    %v7289 = vpow.pop %v7288
    %v7290 = vmul.f32 %v7259, 1.442695
    %v7291 = vpow.pop %v7290
    %v7292 = vsel %vm1634, %v7261, 0.0
    %7293 = vadd.xlane.f32.xlu0 %v7292
    %v7294 = vpop.xlane.xlu0 %7293
    %v7295 = vsel %vm1634, %v7263, 0.0
    %7296 = vadd.xlane.f32.xlu0 %v7295
    %v7297 = vpop.xlane.xlu0 %7296
    %v7298 = vsel %vm1634, %v7265, 0.0
    %7299 = vadd.xlane.f32.xlu0 %v7298
    %v7300 = vpop.xlane.xlu0 %7299
    %v7301 = vsel %vm1634, %v7267, 0.0
    %7302 = vadd.xlane.f32.xlu0 %v7301
    %v7303 = vpop.xlane.xlu0 %7302
    %v7304 = vsel %vm1634, %v7269, 0.0
    %7305 = vadd.xlane.f32.xlu0 %v7304
    %v7306 = vpop.xlane.xlu0 %7305
    %v7307 = vsel %vm1634, %v7271, 0.0
    %7308 = vadd.xlane.f32.xlu0 %v7307
    %v7309 = vpop.xlane.xlu0 %7308
    %v7310 = vsel %vm1634, %v7273, 0.0
    %7311 = vadd.xlane.f32.xlu0 %v7310
    %v7312 = vpop.xlane.xlu0 %7311
    %v7313 = vsel %vm1634, %v7275, 0.0
    %7314 = vadd.xlane.f32.xlu0 %v7313
    %v7315 = vpop.xlane.xlu0 %7314
    %v7316 = vsel %vm1634, %v7277, 0.0
    %7317 = vadd.xlane.f32.xlu0 %v7316
    %v7318 = vpop.xlane.xlu0 %7317
    %v7319 = vsel %vm1634, %v7279, 0.0
    %7320 = vadd.xlane.f32.xlu0 %v7319
    %v7321 = vpop.xlane.xlu0 %7320
    %v7322 = vsel %vm1634, %v7281, 0.0
    %7323 = vadd.xlane.f32.xlu0 %v7322
    %v7324 = vpop.xlane.xlu0 %7323
    %v7325 = vsel %vm1634, %v7283, 0.0
    %7326 = vadd.xlane.f32.xlu0 %v7325
    %v7327 = vpop.xlane.xlu0 %7326
    %v7328 = vsel %vm1634, %v7285, 0.0
    %7329 = vadd.xlane.f32.xlu0 %v7328
    %v7330 = vpop.xlane.xlu0 %7329
    %v7331 = vsel %vm1634, %v7287, 0.0
    %7332 = vadd.xlane.f32.xlu0 %v7331
    %v7333 = vpop.xlane.xlu0 %7332
    %v7334 = vsel %vm1634, %v7289, 0.0
    %7335 = vadd.xlane.f32.xlu0 %v7334
    %v7336 = vpop.xlane.xlu0 %7335
    %v7337 = vsel %vm1634, %v7291, 0.0
    %7338 = vadd.xlane.f32.xlu0 %v7337
    %v7339 = vpop.xlane.xlu0 %7338
    %v7340 = vrcp.pop %v7294
    %v7341 = vrcp.pop %v7297
    %v7342 = vrcp.pop %v7300
    %v7343 = vrcp.pop %v7303
    %v7344 = vrcp.pop %v7306
    %v7345 = vrcp.pop %v7309
    %v7346 = vrcp.pop %v7312
    %v7347 = vrcp.pop %v7315
    %v7348 = vrcp.pop %v7318
    %v7349 = vrcp.pop %v7321
    %v7350 = vrcp.pop %v7324
    %v7351 = vrcp.pop %v7327
    %v7352 = vrcp.pop %v7330
    %v7353 = vrcp.pop %v7333
    %v7354 = vrcp.pop %v7336
    %v7355 = vrcp.pop %v7339
    %v7356 = vmul.f32 %v7261, %v7340
    %v7357 = vmul.f32 %v7263, %v7341
    %v7358 = vmul.f32 %v7265, %v7342
    %v7359 = vmul.f32 %v7267, %v7343
    %v7360 = vmul.f32 %v7269, %v7344
    %v7361 = vmul.f32 %v7271, %v7345
    %v7362 = vmul.f32 %v7273, %v7346
    %v7363 = vmul.f32 %v7275, %v7347
    %v7364 = vmul.f32 %v7277, %v7348
    %v7365 = vmul.f32 %v7279, %v7349
    %v7366 = vmul.f32 %v7281, %v7350
    %v7367 = vmul.f32 %v7283, %v7351
    %v7368 = vmul.f32 %v7285, %v7352
    %v7369 = vmul.f32 %v7287, %v7353
    %v7370 = vmul.f32 %v7289, %v7354
    %v7371 = vmul.f32 %v7291, %v7355
    %v7372 = vpack.c.bf16 %v7356, %v7356
    %v7373 = vpack.c.bf16 %v7357, %v7357
    %v7374 = vpack.c.bf16 %v7358, %v7358
    %v7375 = vpack.c.bf16 %v7359, %v7359
    %v7376 = vpack.c.bf16 %v7360, %v7360
    %v7377 = vpack.c.bf16 %v7361, %v7361
    %v7378 = vpack.c.bf16 %v7362, %v7362
    %v7379 = vpack.c.bf16 %v7363, %v7363
    %v7380 = vpack.c.bf16 %v7364, %v7364
    %v7381 = vpack.c.bf16 %v7365, %v7365
    %v7382 = vpack.c.bf16 %v7366, %v7366
    %v7383 = vpack.c.bf16 %v7367, %v7367
    %v7384 = vpack.c.bf16 %v7368, %v7368
    %v7385 = vpack.c.bf16 %v7369, %v7369
    %v7386 = vpack.c.bf16 %v7370, %v7370
    %v7387 = vpack.c.bf16 %v7371, %v7371
    %v7389 = vsel %vm1634, %v7372, 0
    %v7392 = vsel %vm1830, %v6444, 0
    %7394 = vmatprep.subr.bf16.mxu0 0
    %7395 = vmatpush1.bf16.msra.mxu0 %v7392
    %7396 = vmatprep.subr.bf16.mxu0 0
    %7397 = vmatpush1.bf16.msra.mxu0 0
    %7398 = vmatprep.subr.bf16.mxu0 0
    %7399 = vmatpush1.bf16.msra.mxu0 0
    %7400 = vmatprep.subr.bf16.mxu0 0
    %7401 = vmatpush1.bf16.msra.mxu0 0
    %7402 = vmatprep.subr.bf16.mxu0 0
    %7403 = vmatpush1.bf16.msra.mxu0 0
    %7404 = vmatprep.subr.bf16.mxu0 0
    %7405 = vmatpush1.bf16.msra.mxu0 0
    %7406 = vmatprep.subr.bf16.mxu0 0
    %7407 = vmatpush1.bf16.msra.mxu0 0
    %7408 = vmatprep.subr.bf16.mxu0 0
    %7409 = vmatpush1.bf16.msra.mxu0 0
    %7410 = vmatprep.subr.bf16.mxu0 0
    %7411 = vmatpush1.bf16.msra.mxu0 0
    %7412 = vmatprep.subr.bf16.mxu0 0
    %7413 = vmatpush1.bf16.msra.mxu0 0
    %7414 = vmatprep.subr.bf16.mxu0 0
    %7415 = vmatpush1.bf16.msra.mxu0 0
    %7416 = vmatprep.subr.bf16.mxu0 0
    %7417 = vmatpush1.bf16.msra.mxu0 0
    %7418 = vmatprep.subr.bf16.mxu0 0
    %7419 = vmatpush1.bf16.msra.mxu0 0
    %7420 = vmatprep.subr.bf16.mxu0 0
    %7421 = vmatpush1.bf16.msra.mxu0 0
    %7422 = vmatprep.subr.bf16.mxu0 0
    %7423 = vmatpush1.bf16.msra.mxu0 0
    %7424 = vmatprep.subr.bf16.mxu0 0
    %7425 = vmatpush1.bf16.msra.mxu0 0
    %7426 = vmatprep.mubr.bf16.mxu0 0
    %7427 = vmatmul.mubr.bf16.gmra.mrb[0].mxu0 %v7389
    %v7428 = vpop.f32.mrb[0].mxu0
    %v7429 = vadd.f32 0.0, %v7428
    %v7430 = vpop.f32.mrb[0].mxu0
    %v7431 = vpop.f32.mrb[0].mxu0
    %v7432 = vpop.f32.mrb[0].mxu0
    %7433 = vdwg.mxu0
    %v7435 = vsel %vm1634, %v7373, 0
    %v7438 = vsel %vm1830, %v6445, 0
    %7440 = vmatprep.subr.bf16.mxu0 0
    %7441 = vmatpush1.bf16.msra.mxu0 %v7438
    %7442 = vmatprep.subr.bf16.mxu0 0
    %7443 = vmatpush1.bf16.msra.mxu0 0
    %7444 = vmatprep.subr.bf16.mxu0 0
    %7445 = vmatpush1.bf16.msra.mxu0 0
    %7446 = vmatprep.subr.bf16.mxu0 0
    %7447 = vmatpush1.bf16.msra.mxu0 0
    %7448 = vmatprep.subr.bf16.mxu0 0
    %7449 = vmatpush1.bf16.msra.mxu0 0
    %7450 = vmatprep.subr.bf16.mxu0 0
    %7451 = vmatpush1.bf16.msra.mxu0 0
    %7452 = vmatprep.subr.bf16.mxu0 0
    %7453 = vmatpush1.bf16.msra.mxu0 0
    %7454 = vmatprep.subr.bf16.mxu0 0
    %7455 = vmatpush1.bf16.msra.mxu0 0
    %7456 = vmatprep.subr.bf16.mxu0 0
    %7457 = vmatpush1.bf16.msra.mxu0 0
    %7458 = vmatprep.subr.bf16.mxu0 0
    %7459 = vmatpush1.bf16.msra.mxu0 0
    %7460 = vmatprep.subr.bf16.mxu0 0
    %7461 = vmatpush1.bf16.msra.mxu0 0
    %7462 = vmatprep.subr.bf16.mxu0 0
    %7463 = vmatpush1.bf16.msra.mxu0 0
    %7464 = vmatprep.subr.bf16.mxu0 0
    %7465 = vmatpush1.bf16.msra.mxu0 0
    %7466 = vmatprep.subr.bf16.mxu0 0
    %7467 = vmatpush1.bf16.msra.mxu0 0
    %7468 = vmatprep.subr.bf16.mxu0 0
    %7469 = vmatpush1.bf16.msra.mxu0 0
    %7470 = vmatprep.subr.bf16.mxu0 0
    %7471 = vmatpush1.bf16.msra.mxu0 0
    %7472 = vmatprep.mubr.bf16.mxu0 0
    %7473 = vmatmul.mubr.bf16.gmra.mrb[0].mxu0 %v7435
    %v7474 = vpop.f32.mrb[0].mxu0
    %v7475 = vadd.f32 0.0, %v7474
    %v7476 = vpop.f32.mrb[0].mxu0
    %v7477 = vpop.f32.mrb[0].mxu0
    %v7478 = vpop.f32.mrb[0].mxu0
    %7479 = vdwg.mxu0
    %v7481 = vsel %vm1634, %v7374, 0
    %v7484 = vsel %vm1830, %v6446, 0
    %7486 = vmatprep.subr.bf16.mxu0 0
    %7487 = vmatpush1.bf16.msra.mxu0 %v7484
    %7488 = vmatprep.subr.bf16.mxu0 0
    %7489 = vmatpush1.bf16.msra.mxu0 0
    %7490 = vmatprep.subr.bf16.mxu0 0
    %7491 = vmatpush1.bf16.msra.mxu0 0
    %7492 = vmatprep.subr.bf16.mxu0 0
    %7493 = vmatpush1.bf16.msra.mxu0 0
    %7494 = vmatprep.subr.bf16.mxu0 0
    %7495 = vmatpush1.bf16.msra.mxu0 0
    %7496 = vmatprep.subr.bf16.mxu0 0
    %7497 = vmatpush1.bf16.msra.mxu0 0
    %7498 = vmatprep.subr.bf16.mxu0 0
    %7499 = vmatpush1.bf16.msra.mxu0 0
    %7500 = vmatprep.subr.bf16.mxu0 0
    %7501 = vmatpush1.bf16.msra.mxu0 0
    %7502 = vmatprep.subr.bf16.mxu0 0
    %7503 = vmatpush1.bf16.msra.mxu0 0
    %7504 = vmatprep.subr.bf16.mxu0 0
    %7505 = vmatpush1.bf16.msra.mxu0 0
    %7506 = vmatprep.subr.bf16.mxu0 0
    %7507 = vmatpush1.bf16.msra.mxu0 0
    %7508 = vmatprep.subr.bf16.mxu0 0
    %7509 = vmatpush1.bf16.msra.mxu0 0
    %7510 = vmatprep.subr.bf16.mxu0 0
    %7511 = vmatpush1.bf16.msra.mxu0 0
    %7512 = vmatprep.subr.bf16.mxu0 0
    %7513 = vmatpush1.bf16.msra.mxu0 0
    %7514 = vmatprep.subr.bf16.mxu0 0
    %7515 = vmatpush1.bf16.msra.mxu0 0
    %7516 = vmatprep.subr.bf16.mxu0 0
    %7517 = vmatpush1.bf16.msra.mxu0 0
    %7518 = vmatprep.mubr.bf16.mxu0 0
    %7519 = vmatmul.mubr.bf16.gmra.mrb[0].mxu0 %v7481
    %v7520 = vpop.f32.mrb[0].mxu0
    %v7521 = vadd.f32 0.0, %v7520
    %v7522 = vpop.f32.mrb[0].mxu0
    %v7523 = vpop.f32.mrb[0].mxu0
    %v7524 = vpop.f32.mrb[0].mxu0
    %7525 = vdwg.mxu0
    %v7527 = vsel %vm1634, %v7375, 0
    %v7530 = vsel %vm1830, %v6447, 0
    %7532 = vmatprep.subr.bf16.mxu0 0
    %7533 = vmatpush1.bf16.msra.mxu0 %v7530
    %7534 = vmatprep.subr.bf16.mxu0 0
    %7535 = vmatpush1.bf16.msra.mxu0 0
    %7536 = vmatprep.subr.bf16.mxu0 0
    %7537 = vmatpush1.bf16.msra.mxu0 0
    %7538 = vmatprep.subr.bf16.mxu0 0
    %7539 = vmatpush1.bf16.msra.mxu0 0
    %7540 = vmatprep.subr.bf16.mxu0 0
    %7541 = vmatpush1.bf16.msra.mxu0 0
    %7542 = vmatprep.subr.bf16.mxu0 0
    %7543 = vmatpush1.bf16.msra.mxu0 0
    %7544 = vmatprep.subr.bf16.mxu0 0
    %7545 = vmatpush1.bf16.msra.mxu0 0
    %7546 = vmatprep.subr.bf16.mxu0 0
    %7547 = vmatpush1.bf16.msra.mxu0 0
    %7548 = vmatprep.subr.bf16.mxu0 0
    %7549 = vmatpush1.bf16.msra.mxu0 0
    %7550 = vmatprep.subr.bf16.mxu0 0
    %7551 = vmatpush1.bf16.msra.mxu0 0
    %7552 = vmatprep.subr.bf16.mxu0 0
    %7553 = vmatpush1.bf16.msra.mxu0 0
    %7554 = vmatprep.subr.bf16.mxu0 0
    %7555 = vmatpush1.bf16.msra.mxu0 0
    %7556 = vmatprep.subr.bf16.mxu0 0
    %7557 = vmatpush1.bf16.msra.mxu0 0
    %7558 = vmatprep.subr.bf16.mxu0 0
    %7559 = vmatpush1.bf16.msra.mxu0 0
    %7560 = vmatprep.subr.bf16.mxu0 0
    %7561 = vmatpush1.bf16.msra.mxu0 0
    %7562 = vmatprep.subr.bf16.mxu0 0
    %7563 = vmatpush1.bf16.msra.mxu0 0
    %7564 = vmatprep.mubr.bf16.mxu0 0
    %7565 = vmatmul.mubr.bf16.gmra.mrb[0].mxu0 %v7527
    %v7566 = vpop.f32.mrb[0].mxu0
    %v7567 = vadd.f32 0.0, %v7566
    %v7568 = vpop.f32.mrb[0].mxu0
    %v7569 = vpop.f32.mrb[0].mxu0
    %v7570 = vpop.f32.mrb[0].mxu0
    %7571 = vdwg.mxu0
    %v7573 = vsel %vm1634, %v7376, 0
    %v7576 = vsel %vm1830, %v6448, 0
    %7578 = vmatprep.subr.bf16.mxu0 0
    %7579 = vmatpush1.bf16.msra.mxu0 %v7576
    %7580 = vmatprep.subr.bf16.mxu0 0
    %7581 = vmatpush1.bf16.msra.mxu0 0
    %7582 = vmatprep.subr.bf16.mxu0 0
    %7583 = vmatpush1.bf16.msra.mxu0 0
    %7584 = vmatprep.subr.bf16.mxu0 0
    %7585 = vmatpush1.bf16.msra.mxu0 0
    %7586 = vmatprep.subr.bf16.mxu0 0
    %7587 = vmatpush1.bf16.msra.mxu0 0
    %7588 = vmatprep.subr.bf16.mxu0 0
    %7589 = vmatpush1.bf16.msra.mxu0 0
    %7590 = vmatprep.subr.bf16.mxu0 0
    %7591 = vmatpush1.bf16.msra.mxu0 0
    %7592 = vmatprep.subr.bf16.mxu0 0
    %7593 = vmatpush1.bf16.msra.mxu0 0
    %7594 = vmatprep.subr.bf16.mxu0 0
    %7595 = vmatpush1.bf16.msra.mxu0 0
    %7596 = vmatprep.subr.bf16.mxu0 0
    %7597 = vmatpush1.bf16.msra.mxu0 0
    %7598 = vmatprep.subr.bf16.mxu0 0
    %7599 = vmatpush1.bf16.msra.mxu0 0
    %7600 = vmatprep.subr.bf16.mxu0 0
    %7601 = vmatpush1.bf16.msra.mxu0 0
    %7602 = vmatprep.subr.bf16.mxu0 0
    %7603 = vmatpush1.bf16.msra.mxu0 0
    %7604 = vmatprep.subr.bf16.mxu0 0
    %7605 = vmatpush1.bf16.msra.mxu0 0
    %7606 = vmatprep.subr.bf16.mxu0 0
    %7607 = vmatpush1.bf16.msra.mxu0 0
    %7608 = vmatprep.subr.bf16.mxu0 0
    %7609 = vmatpush1.bf16.msra.mxu0 0
    %7610 = vmatprep.mubr.bf16.mxu0 0
    %7611 = vmatmul.mubr.bf16.gmra.mrb[0].mxu0 %v7573
    %v7612 = vpop.f32.mrb[0].mxu0
    %v7613 = vadd.f32 0.0, %v7612
    %v7614 = vpop.f32.mrb[0].mxu0
    %v7615 = vpop.f32.mrb[0].mxu0
    %v7616 = vpop.f32.mrb[0].mxu0
    %7617 = vdwg.mxu0
    %v7619 = vsel %vm1634, %v7377, 0
    %v7622 = vsel %vm1830, %v6449, 0
    %7624 = vmatprep.subr.bf16.mxu0 0
    %7625 = vmatpush1.bf16.msra.mxu0 %v7622
    %7626 = vmatprep.subr.bf16.mxu0 0
    %7627 = vmatpush1.bf16.msra.mxu0 0
    %7628 = vmatprep.subr.bf16.mxu0 0
    %7629 = vmatpush1.bf16.msra.mxu0 0
    %7630 = vmatprep.subr.bf16.mxu0 0
    %7631 = vmatpush1.bf16.msra.mxu0 0
    %7632 = vmatprep.subr.bf16.mxu0 0
    %7633 = vmatpush1.bf16.msra.mxu0 0
    %7634 = vmatprep.subr.bf16.mxu0 0
    %7635 = vmatpush1.bf16.msra.mxu0 0
    %7636 = vmatprep.subr.bf16.mxu0 0
    %7637 = vmatpush1.bf16.msra.mxu0 0
    %7638 = vmatprep.subr.bf16.mxu0 0
    %7639 = vmatpush1.bf16.msra.mxu0 0
    %7640 = vmatprep.subr.bf16.mxu0 0
    %7641 = vmatpush1.bf16.msra.mxu0 0
    %7642 = vmatprep.subr.bf16.mxu0 0
    %7643 = vmatpush1.bf16.msra.mxu0 0
    %7644 = vmatprep.subr.bf16.mxu0 0
    %7645 = vmatpush1.bf16.msra.mxu0 0
    %7646 = vmatprep.subr.bf16.mxu0 0
    %7647 = vmatpush1.bf16.msra.mxu0 0
    %7648 = vmatprep.subr.bf16.mxu0 0
    %7649 = vmatpush1.bf16.msra.mxu0 0
    %7650 = vmatprep.subr.bf16.mxu0 0
    %7651 = vmatpush1.bf16.msra.mxu0 0
    %7652 = vmatprep.subr.bf16.mxu0 0
    %7653 = vmatpush1.bf16.msra.mxu0 0
    %7654 = vmatprep.subr.bf16.mxu0 0
    %7655 = vmatpush1.bf16.msra.mxu0 0
    %7656 = vmatprep.mubr.bf16.mxu0 0
    %7657 = vmatmul.mubr.bf16.gmra.mrb[0].mxu0 %v7619
    %v7658 = vpop.f32.mrb[0].mxu0
    %v7659 = vadd.f32 0.0, %v7658
    %v7660 = vpop.f32.mrb[0].mxu0
    %v7661 = vpop.f32.mrb[0].mxu0
    %v7662 = vpop.f32.mrb[0].mxu0
    %7663 = vdwg.mxu0
    %v7665 = vsel %vm1634, %v7378, 0
    %v7668 = vsel %vm1830, %v6450, 0
    %7670 = vmatprep.subr.bf16.mxu0 0
    %7671 = vmatpush1.bf16.msra.mxu0 %v7668
    %7672 = vmatprep.subr.bf16.mxu0 0
    %7673 = vmatpush1.bf16.msra.mxu0 0
    %7674 = vmatprep.subr.bf16.mxu0 0
    %7675 = vmatpush1.bf16.msra.mxu0 0
    %7676 = vmatprep.subr.bf16.mxu0 0
    %7677 = vmatpush1.bf16.msra.mxu0 0
    %7678 = vmatprep.subr.bf16.mxu0 0
    %7679 = vmatpush1.bf16.msra.mxu0 0
    %7680 = vmatprep.subr.bf16.mxu0 0
    %7681 = vmatpush1.bf16.msra.mxu0 0
    %7682 = vmatprep.subr.bf16.mxu0 0
    %7683 = vmatpush1.bf16.msra.mxu0 0
    %7684 = vmatprep.subr.bf16.mxu0 0
    %7685 = vmatpush1.bf16.msra.mxu0 0
    %7686 = vmatprep.subr.bf16.mxu0 0
    %7687 = vmatpush1.bf16.msra.mxu0 0
    %7688 = vmatprep.subr.bf16.mxu0 0
    %7689 = vmatpush1.bf16.msra.mxu0 0
    %7690 = vmatprep.subr.bf16.mxu0 0
    %7691 = vmatpush1.bf16.msra.mxu0 0
    %7692 = vmatprep.subr.bf16.mxu0 0
    %7693 = vmatpush1.bf16.msra.mxu0 0
    %7694 = vmatprep.subr.bf16.mxu0 0
    %7695 = vmatpush1.bf16.msra.mxu0 0
    %7696 = vmatprep.subr.bf16.mxu0 0
    %7697 = vmatpush1.bf16.msra.mxu0 0
    %7698 = vmatprep.subr.bf16.mxu0 0
    %7699 = vmatpush1.bf16.msra.mxu0 0
    %7700 = vmatprep.subr.bf16.mxu0 0
    %7701 = vmatpush1.bf16.msra.mxu0 0
    %7702 = vmatprep.mubr.bf16.mxu0 0
    %7703 = vmatmul.mubr.bf16.gmra.mrb[0].mxu0 %v7665
    %v7704 = vpop.f32.mrb[0].mxu0
    %v7705 = vadd.f32 0.0, %v7704
    %v7706 = vpop.f32.mrb[0].mxu0
    %v7707 = vpop.f32.mrb[0].mxu0
    %v7708 = vpop.f32.mrb[0].mxu0
    %7709 = vdwg.mxu0
    %v7711 = vsel %vm1634, %v7379, 0
    %v7714 = vsel %vm1830, %v6451, 0
    %7716 = vmatprep.subr.bf16.mxu0 0
    %7717 = vmatpush1.bf16.msra.mxu0 %v7714
    %7718 = vmatprep.subr.bf16.mxu0 0
    %7719 = vmatpush1.bf16.msra.mxu0 0
    %7720 = vmatprep.subr.bf16.mxu0 0
    %7721 = vmatpush1.bf16.msra.mxu0 0
    %7722 = vmatprep.subr.bf16.mxu0 0
    %7723 = vmatpush1.bf16.msra.mxu0 0
    %7724 = vmatprep.subr.bf16.mxu0 0
    %7725 = vmatpush1.bf16.msra.mxu0 0
    %7726 = vmatprep.subr.bf16.mxu0 0
    %7727 = vmatpush1.bf16.msra.mxu0 0
    %7728 = vmatprep.subr.bf16.mxu0 0
    %7729 = vmatpush1.bf16.msra.mxu0 0
    %7730 = vmatprep.subr.bf16.mxu0 0
    %7731 = vmatpush1.bf16.msra.mxu0 0
    %7732 = vmatprep.subr.bf16.mxu0 0
    %7733 = vmatpush1.bf16.msra.mxu0 0
    %7734 = vmatprep.subr.bf16.mxu0 0
    %7735 = vmatpush1.bf16.msra.mxu0 0
    %7736 = vmatprep.subr.bf16.mxu0 0
    %7737 = vmatpush1.bf16.msra.mxu0 0
    %7738 = vmatprep.subr.bf16.mxu0 0
    %7739 = vmatpush1.bf16.msra.mxu0 0
    %7740 = vmatprep.subr.bf16.mxu0 0
    %7741 = vmatpush1.bf16.msra.mxu0 0
    %7742 = vmatprep.subr.bf16.mxu0 0
    %7743 = vmatpush1.bf16.msra.mxu0 0
    %7744 = vmatprep.subr.bf16.mxu0 0
    %7745 = vmatpush1.bf16.msra.mxu0 0
    %7746 = vmatprep.subr.bf16.mxu0 0
    %7747 = vmatpush1.bf16.msra.mxu0 0
    %7748 = vmatprep.mubr.bf16.mxu0 0
    %7749 = vmatmul.mubr.bf16.gmra.mrb[0].mxu0 %v7711
    %v7750 = vpop.f32.mrb[0].mxu0
    %v7751 = vadd.f32 0.0, %v7750
    %v7752 = vpop.f32.mrb[0].mxu0
    %v7753 = vpop.f32.mrb[0].mxu0
    %v7754 = vpop.f32.mrb[0].mxu0
    %7755 = vdwg.mxu0
    %v7757 = vsel %vm1634, %v7380, 0
    %v7760 = vsel %vm1830, %v6452, 0
    %7762 = vmatprep.subr.bf16.mxu0 0
    %7763 = vmatpush1.bf16.msra.mxu0 %v7760
    %7764 = vmatprep.subr.bf16.mxu0 0
    %7765 = vmatpush1.bf16.msra.mxu0 0
    %7766 = vmatprep.subr.bf16.mxu0 0
    %7767 = vmatpush1.bf16.msra.mxu0 0
    %7768 = vmatprep.subr.bf16.mxu0 0
    %7769 = vmatpush1.bf16.msra.mxu0 0
    %7770 = vmatprep.subr.bf16.mxu0 0
    %7771 = vmatpush1.bf16.msra.mxu0 0
    %7772 = vmatprep.subr.bf16.mxu0 0
    %7773 = vmatpush1.bf16.msra.mxu0 0
    %7774 = vmatprep.subr.bf16.mxu0 0
    %7775 = vmatpush1.bf16.msra.mxu0 0
    %7776 = vmatprep.subr.bf16.mxu0 0
    %7777 = vmatpush1.bf16.msra.mxu0 0
    %7778 = vmatprep.subr.bf16.mxu0 0
    %7779 = vmatpush1.bf16.msra.mxu0 0
    %7780 = vmatprep.subr.bf16.mxu0 0
    %7781 = vmatpush1.bf16.msra.mxu0 0
    %7782 = vmatprep.subr.bf16.mxu0 0
    %7783 = vmatpush1.bf16.msra.mxu0 0
    %7784 = vmatprep.subr.bf16.mxu0 0
    %7785 = vmatpush1.bf16.msra.mxu0 0
    %7786 = vmatprep.subr.bf16.mxu0 0
    %7787 = vmatpush1.bf16.msra.mxu0 0
    %7788 = vmatprep.subr.bf16.mxu0 0
    %7789 = vmatpush1.bf16.msra.mxu0 0
    %7790 = vmatprep.subr.bf16.mxu0 0
    %7791 = vmatpush1.bf16.msra.mxu0 0
    %7792 = vmatprep.subr.bf16.mxu0 0
    %7793 = vmatpush1.bf16.msra.mxu0 0
    %7794 = vmatprep.mubr.bf16.mxu0 0
    %7795 = vmatmul.mubr.bf16.gmra.mrb[0].mxu0 %v7757
    %v7796 = vpop.f32.mrb[0].mxu0
    %v7797 = vadd.f32 0.0, %v7796
    %v7798 = vpop.f32.mrb[0].mxu0
    %v7799 = vpop.f32.mrb[0].mxu0
    %v7800 = vpop.f32.mrb[0].mxu0
    %7801 = vdwg.mxu0
    %v7803 = vsel %vm1634, %v7381, 0
    %v7806 = vsel %vm1830, %v6453, 0
    %7808 = vmatprep.subr.bf16.mxu0 0
    %7809 = vmatpush1.bf16.msra.mxu0 %v7806
    %7810 = vmatprep.subr.bf16.mxu0 0
    %7811 = vmatpush1.bf16.msra.mxu0 0
    %7812 = vmatprep.subr.bf16.mxu0 0
    %7813 = vmatpush1.bf16.msra.mxu0 0
    %7814 = vmatprep.subr.bf16.mxu0 0
    %7815 = vmatpush1.bf16.msra.mxu0 0
    %7816 = vmatprep.subr.bf16.mxu0 0
    %7817 = vmatpush1.bf16.msra.mxu0 0
    %7818 = vmatprep.subr.bf16.mxu0 0
    %7819 = vmatpush1.bf16.msra.mxu0 0
    %7820 = vmatprep.subr.bf16.mxu0 0
    %7821 = vmatpush1.bf16.msra.mxu0 0
    %7822 = vmatprep.subr.bf16.mxu0 0
    %7823 = vmatpush1.bf16.msra.mxu0 0
    %7824 = vmatprep.subr.bf16.mxu0 0
    %7825 = vmatpush1.bf16.msra.mxu0 0
    %7826 = vmatprep.subr.bf16.mxu0 0
    %7827 = vmatpush1.bf16.msra.mxu0 0
    %7828 = vmatprep.subr.bf16.mxu0 0
    %7829 = vmatpush1.bf16.msra.mxu0 0
    %7830 = vmatprep.subr.bf16.mxu0 0
    %7831 = vmatpush1.bf16.msra.mxu0 0
    %7832 = vmatprep.subr.bf16.mxu0 0
    %7833 = vmatpush1.bf16.msra.mxu0 0
    %7834 = vmatprep.subr.bf16.mxu0 0
    %7835 = vmatpush1.bf16.msra.mxu0 0
    %7836 = vmatprep.subr.bf16.mxu0 0
    %7837 = vmatpush1.bf16.msra.mxu0 0
    %7838 = vmatprep.subr.bf16.mxu0 0
    %7839 = vmatpush1.bf16.msra.mxu0 0
    %7840 = vmatprep.mubr.bf16.mxu0 0
    %7841 = vmatmul.mubr.bf16.gmra.mrb[0].mxu0 %v7803
    %v7842 = vpop.f32.mrb[0].mxu0
    %v7843 = vadd.f32 0.0, %v7842
    %v7844 = vpop.f32.mrb[0].mxu0
    %v7845 = vpop.f32.mrb[0].mxu0
    %v7846 = vpop.f32.mrb[0].mxu0
    %7847 = vdwg.mxu0
    %v7849 = vsel %vm1634, %v7382, 0
    %v7852 = vsel %vm1830, %v6454, 0
    %7854 = vmatprep.subr.bf16.mxu0 0
    %7855 = vmatpush1.bf16.msra.mxu0 %v7852
    %7856 = vmatprep.subr.bf16.mxu0 0
    %7857 = vmatpush1.bf16.msra.mxu0 0
    %7858 = vmatprep.subr.bf16.mxu0 0
    %7859 = vmatpush1.bf16.msra.mxu0 0
    %7860 = vmatprep.subr.bf16.mxu0 0
    %7861 = vmatpush1.bf16.msra.mxu0 0
    %7862 = vmatprep.subr.bf16.mxu0 0
    %7863 = vmatpush1.bf16.msra.mxu0 0
    %7864 = vmatprep.subr.bf16.mxu0 0
    %7865 = vmatpush1.bf16.msra.mxu0 0
    %7866 = vmatprep.subr.bf16.mxu0 0
    %7867 = vmatpush1.bf16.msra.mxu0 0
    %7868 = vmatprep.subr.bf16.mxu0 0
    %7869 = vmatpush1.bf16.msra.mxu0 0
    %7870 = vmatprep.subr.bf16.mxu0 0
    %7871 = vmatpush1.bf16.msra.mxu0 0
    %7872 = vmatprep.subr.bf16.mxu0 0
    %7873 = vmatpush1.bf16.msra.mxu0 0
    %7874 = vmatprep.subr.bf16.mxu0 0
    %7875 = vmatpush1.bf16.msra.mxu0 0
    %7876 = vmatprep.subr.bf16.mxu0 0
    %7877 = vmatpush1.bf16.msra.mxu0 0
    %7878 = vmatprep.subr.bf16.mxu0 0
    %7879 = vmatpush1.bf16.msra.mxu0 0
    %7880 = vmatprep.subr.bf16.mxu0 0
    %7881 = vmatpush1.bf16.msra.mxu0 0
    %7882 = vmatprep.subr.bf16.mxu0 0
    %7883 = vmatpush1.bf16.msra.mxu0 0
    %7884 = vmatprep.subr.bf16.mxu0 0
    %7885 = vmatpush1.bf16.msra.mxu0 0
    %7886 = vmatprep.mubr.bf16.mxu0 0
    %7887 = vmatmul.mubr.bf16.gmra.mrb[0].mxu0 %v7849
    %v7888 = vpop.f32.mrb[0].mxu0
    %v7889 = vadd.f32 0.0, %v7888
    %v7890 = vpop.f32.mrb[0].mxu0
    %v7891 = vpop.f32.mrb[0].mxu0
    %v7892 = vpop.f32.mrb[0].mxu0
    %7893 = vdwg.mxu0
    %v7895 = vsel %vm1634, %v7383, 0
    %v7898 = vsel %vm1830, %v6455, 0
    %7900 = vmatprep.subr.bf16.mxu0 0
    %7901 = vmatpush1.bf16.msra.mxu0 %v7898
    %7902 = vmatprep.subr.bf16.mxu0 0
    %7903 = vmatpush1.bf16.msra.mxu0 0
    %7904 = vmatprep.subr.bf16.mxu0 0
    %7905 = vmatpush1.bf16.msra.mxu0 0
    %7906 = vmatprep.subr.bf16.mxu0 0
    %7907 = vmatpush1.bf16.msra.mxu0 0
    %7908 = vmatprep.subr.bf16.mxu0 0
    %7909 = vmatpush1.bf16.msra.mxu0 0
    %7910 = vmatprep.subr.bf16.mxu0 0
    %7911 = vmatpush1.bf16.msra.mxu0 0
    %7912 = vmatprep.subr.bf16.mxu0 0
    %7913 = vmatpush1.bf16.msra.mxu0 0
    %7914 = vmatprep.subr.bf16.mxu0 0
    %7915 = vmatpush1.bf16.msra.mxu0 0
    %7916 = vmatprep.subr.bf16.mxu0 0
    %7917 = vmatpush1.bf16.msra.mxu0 0
    %7918 = vmatprep.subr.bf16.mxu0 0
    %7919 = vmatpush1.bf16.msra.mxu0 0
    %7920 = vmatprep.subr.bf16.mxu0 0
    %7921 = vmatpush1.bf16.msra.mxu0 0
    %7922 = vmatprep.subr.bf16.mxu0 0
    %7923 = vmatpush1.bf16.msra.mxu0 0
    %7924 = vmatprep.subr.bf16.mxu0 0
    %7925 = vmatpush1.bf16.msra.mxu0 0
    %7926 = vmatprep.subr.bf16.mxu0 0
    %7927 = vmatpush1.bf16.msra.mxu0 0
    %7928 = vmatprep.subr.bf16.mxu0 0
    %7929 = vmatpush1.bf16.msra.mxu0 0
    %7930 = vmatprep.subr.bf16.mxu0 0
    %7931 = vmatpush1.bf16.msra.mxu0 0
    %7932 = vmatprep.mubr.bf16.mxu0 0
    %7933 = vmatmul.mubr.bf16.gmra.mrb[0].mxu0 %v7895
    %v7934 = vpop.f32.mrb[0].mxu0
    %v7935 = vadd.f32 0.0, %v7934
    %v7936 = vpop.f32.mrb[0].mxu0
    %v7937 = vpop.f32.mrb[0].mxu0
    %v7938 = vpop.f32.mrb[0].mxu0
    %7939 = vdwg.mxu0
    %v7941 = vsel %vm1634, %v7384, 0
    %v7944 = vsel %vm1830, %v6456, 0
    %7946 = vmatprep.subr.bf16.mxu0 0
    %7947 = vmatpush1.bf16.msra.mxu0 %v7944
    %7948 = vmatprep.subr.bf16.mxu0 0
    %7949 = vmatpush1.bf16.msra.mxu0 0
    %7950 = vmatprep.subr.bf16.mxu0 0
    %7951 = vmatpush1.bf16.msra.mxu0 0
    %7952 = vmatprep.subr.bf16.mxu0 0
    %7953 = vmatpush1.bf16.msra.mxu0 0
    %7954 = vmatprep.subr.bf16.mxu0 0
    %7955 = vmatpush1.bf16.msra.mxu0 0
    %7956 = vmatprep.subr.bf16.mxu0 0
    %7957 = vmatpush1.bf16.msra.mxu0 0
    %7958 = vmatprep.subr.bf16.mxu0 0
    %7959 = vmatpush1.bf16.msra.mxu0 0
    %7960 = vmatprep.subr.bf16.mxu0 0
    %7961 = vmatpush1.bf16.msra.mxu0 0
    %7962 = vmatprep.subr.bf16.mxu0 0
    %7963 = vmatpush1.bf16.msra.mxu0 0
    %7964 = vmatprep.subr.bf16.mxu0 0
    %7965 = vmatpush1.bf16.msra.mxu0 0
    %7966 = vmatprep.subr.bf16.mxu0 0
    %7967 = vmatpush1.bf16.msra.mxu0 0
    %7968 = vmatprep.subr.bf16.mxu0 0
    %7969 = vmatpush1.bf16.msra.mxu0 0
    %7970 = vmatprep.subr.bf16.mxu0 0
    %7971 = vmatpush1.bf16.msra.mxu0 0
    %7972 = vmatprep.subr.bf16.mxu0 0
    %7973 = vmatpush1.bf16.msra.mxu0 0
    %7974 = vmatprep.subr.bf16.mxu0 0
    %7975 = vmatpush1.bf16.msra.mxu0 0
    %7976 = vmatprep.subr.bf16.mxu0 0
    %7977 = vmatpush1.bf16.msra.mxu0 0
    %7978 = vmatprep.mubr.bf16.mxu0 0
    %7979 = vmatmul.mubr.bf16.gmra.mrb[0].mxu0 %v7941
    %v7980 = vpop.f32.mrb[0].mxu0
    %v7981 = vadd.f32 0.0, %v7980
    %v7982 = vpop.f32.mrb[0].mxu0
    %v7983 = vpop.f32.mrb[0].mxu0
    %v7984 = vpop.f32.mrb[0].mxu0
    %7985 = vdwg.mxu0
    %v7987 = vsel %vm1634, %v7385, 0
    %v7990 = vsel %vm1830, %v6457, 0
    %7992 = vmatprep.subr.bf16.mxu0 0
    %7993 = vmatpush1.bf16.msra.mxu0 %v7990
    %7994 = vmatprep.subr.bf16.mxu0 0
    %7995 = vmatpush1.bf16.msra.mxu0 0
    %7996 = vmatprep.subr.bf16.mxu0 0
    %7997 = vmatpush1.bf16.msra.mxu0 0
    %7998 = vmatprep.subr.bf16.mxu0 0
    %7999 = vmatpush1.bf16.msra.mxu0 0
    %8000 = vmatprep.subr.bf16.mxu0 0
    %8001 = vmatpush1.bf16.msra.mxu0 0
    %8002 = vmatprep.subr.bf16.mxu0 0
    %8003 = vmatpush1.bf16.msra.mxu0 0
    %8004 = vmatprep.subr.bf16.mxu0 0
    %8005 = vmatpush1.bf16.msra.mxu0 0
    %8006 = vmatprep.subr.bf16.mxu0 0
    %8007 = vmatpush1.bf16.msra.mxu0 0
    %8008 = vmatprep.subr.bf16.mxu0 0
    %8009 = vmatpush1.bf16.msra.mxu0 0
    %8010 = vmatprep.subr.bf16.mxu0 0
    %8011 = vmatpush1.bf16.msra.mxu0 0
    %8012 = vmatprep.subr.bf16.mxu0 0
    %8013 = vmatpush1.bf16.msra.mxu0 0
    %8014 = vmatprep.subr.bf16.mxu0 0
    %8015 = vmatpush1.bf16.msra.mxu0 0
    %8016 = vmatprep.subr.bf16.mxu0 0
    %8017 = vmatpush1.bf16.msra.mxu0 0
    %8018 = vmatprep.subr.bf16.mxu0 0
    %8019 = vmatpush1.bf16.msra.mxu0 0
    %8020 = vmatprep.subr.bf16.mxu0 0
    %8021 = vmatpush1.bf16.msra.mxu0 0
    %8022 = vmatprep.subr.bf16.mxu0 0
    %8023 = vmatpush1.bf16.msra.mxu0 0
    %8024 = vmatprep.mubr.bf16.mxu0 0
    %8025 = vmatmul.mubr.bf16.gmra.mrb[0].mxu0 %v7987
    %v8026 = vpop.f32.mrb[0].mxu0
    %v8027 = vadd.f32 0.0, %v8026
    %v8028 = vpop.f32.mrb[0].mxu0
    %v8029 = vpop.f32.mrb[0].mxu0
    %v8030 = vpop.f32.mrb[0].mxu0
    %8031 = vdwg.mxu0
    %v8033 = vsel %vm1634, %v7386, 0
    %v8036 = vsel %vm1830, %v6458, 0
    %8038 = vmatprep.subr.bf16.mxu0 0
    %8039 = vmatpush1.bf16.msra.mxu0 %v8036
    %8040 = vmatprep.subr.bf16.mxu0 0
    %8041 = vmatpush1.bf16.msra.mxu0 0
    %8042 = vmatprep.subr.bf16.mxu0 0
    %8043 = vmatpush1.bf16.msra.mxu0 0
    %8044 = vmatprep.subr.bf16.mxu0 0
    %8045 = vmatpush1.bf16.msra.mxu0 0
    %8046 = vmatprep.subr.bf16.mxu0 0
    %8047 = vmatpush1.bf16.msra.mxu0 0
    %8048 = vmatprep.subr.bf16.mxu0 0
    %8049 = vmatpush1.bf16.msra.mxu0 0
    %8050 = vmatprep.subr.bf16.mxu0 0
    %8051 = vmatpush1.bf16.msra.mxu0 0
    %8052 = vmatprep.subr.bf16.mxu0 0
    %8053 = vmatpush1.bf16.msra.mxu0 0
    %8054 = vmatprep.subr.bf16.mxu0 0
    %8055 = vmatpush1.bf16.msra.mxu0 0
    %8056 = vmatprep.subr.bf16.mxu0 0
    %8057 = vmatpush1.bf16.msra.mxu0 0
    %8058 = vmatprep.subr.bf16.mxu0 0
    %8059 = vmatpush1.bf16.msra.mxu0 0
    %8060 = vmatprep.subr.bf16.mxu0 0
    %8061 = vmatpush1.bf16.msra.mxu0 0
    %8062 = vmatprep.subr.bf16.mxu0 0
    %8063 = vmatpush1.bf16.msra.mxu0 0
    %8064 = vmatprep.subr.bf16.mxu0 0
    %8065 = vmatpush1.bf16.msra.mxu0 0
    %8066 = vmatprep.subr.bf16.mxu0 0
    %8067 = vmatpush1.bf16.msra.mxu0 0
    %8068 = vmatprep.subr.bf16.mxu0 0
    %8069 = vmatpush1.bf16.msra.mxu0 0
    %8070 = vmatprep.mubr.bf16.mxu0 0
    %8071 = vmatmul.mubr.bf16.gmra.mrb[0].mxu0 %v8033
    %v8072 = vpop.f32.mrb[0].mxu0
    %v8073 = vadd.f32 0.0, %v8072
    %v8074 = vpop.f32.mrb[0].mxu0
    %v8075 = vpop.f32.mrb[0].mxu0
    %v8076 = vpop.f32.mrb[0].mxu0
    %8077 = vdwg.mxu0
    %v8079 = vsel %vm1634, %v7387, 0
    %v8082 = vsel %vm1830, %v6459, 0
    %8084 = vmatprep.subr.bf16.mxu0 0
    %8085 = vmatpush1.bf16.msra.mxu0 %v8082
    %8086 = vmatprep.subr.bf16.mxu0 0
    %8087 = vmatpush1.bf16.msra.mxu0 0
    %8088 = vmatprep.subr.bf16.mxu0 0
    %8089 = vmatpush1.bf16.msra.mxu0 0
    %8090 = vmatprep.subr.bf16.mxu0 0
    %8091 = vmatpush1.bf16.msra.mxu0 0
    %8092 = vmatprep.subr.bf16.mxu0 0
    %8093 = vmatpush1.bf16.msra.mxu0 0
    %8094 = vmatprep.subr.bf16.mxu0 0
    %8095 = vmatpush1.bf16.msra.mxu0 0
    %8096 = vmatprep.subr.bf16.mxu0 0
    %8097 = vmatpush1.bf16.msra.mxu0 0
    %8098 = vmatprep.subr.bf16.mxu0 0
    %8099 = vmatpush1.bf16.msra.mxu0 0
    %8100 = vmatprep.subr.bf16.mxu0 0
    %8101 = vmatpush1.bf16.msra.mxu0 0
    %8102 = vmatprep.subr.bf16.mxu0 0
    %8103 = vmatpush1.bf16.msra.mxu0 0
    %8104 = vmatprep.subr.bf16.mxu0 0
    %8105 = vmatpush1.bf16.msra.mxu0 0
    %8106 = vmatprep.subr.bf16.mxu0 0
    %8107 = vmatpush1.bf16.msra.mxu0 0
    %8108 = vmatprep.subr.bf16.mxu0 0
    %8109 = vmatpush1.bf16.msra.mxu0 0
    %8110 = vmatprep.subr.bf16.mxu0 0
    %8111 = vmatpush1.bf16.msra.mxu0 0
    %8112 = vmatprep.subr.bf16.mxu0 0
    %8113 = vmatpush1.bf16.msra.mxu0 0
    %8114 = vmatprep.subr.bf16.mxu0 0
    %8115 = vmatpush1.bf16.msra.mxu0 0
    %8116 = vmatprep.mubr.bf16.mxu0 0
    %8117 = vmatmul.mubr.bf16.gmra.mrb[0].mxu0 %v8079
    %v8118 = vpop.f32.mrb[0].mxu0
    %v8119 = vadd.f32 0.0, %v8118
    %v8120 = vpop.f32.mrb[0].mxu0
    %v8121 = vpop.f32.mrb[0].mxu0
    %v8122 = vpop.f32.mrb[0].mxu0
    %8123 = vdwg.mxu0
    %8126 = vrot.lane.b32.xlu0 %v7521, 16
    %v8127 = vpop.permute.xlu0 %8126
    %8128 = vrot.lane.b32.xlu0 %v7567, 16
    %v8129 = vpop.permute.xlu0 %8128
    %8134 = vrot.lane.b32.xlu0 %v7613, 32
    %v8135 = vpop.permute.xlu0 %8134
    %8136 = vrot.lane.b32.xlu0 %v7659, 32
    %v8137 = vpop.permute.xlu0 %8136
    %8142 = vrot.lane.b32.xlu0 %v7705, 48
    %v8143 = vpop.permute.xlu0 %8142
    %8144 = vrot.lane.b32.xlu0 %v7751, 48
    %v8145 = vpop.permute.xlu0 %8144
    %8150 = vrot.lane.b32.xlu0 %v7797, 64
    %v8151 = vpop.permute.xlu0 %8150
    %8152 = vrot.lane.b32.xlu0 %v7843, 64
    %v8153 = vpop.permute.xlu0 %8152
    %8158 = vrot.lane.b32.xlu0 %v7889, 80
    %v8159 = vpop.permute.xlu0 %8158
    %8160 = vrot.lane.b32.xlu0 %v7935, 80
    %v8161 = vpop.permute.xlu0 %8160
    %8166 = vrot.lane.b32.xlu0 %v7981, 96
    %v8167 = vpop.permute.xlu0 %8166
    %8168 = vrot.lane.b32.xlu0 %v8027, 96
    %v8169 = vpop.permute.xlu0 %8168
    %8174 = vrot.lane.b32.xlu0 %v8073, 112
    %v8175 = vpop.permute.xlu0 %8174
    %8176 = vrot.lane.b32.xlu0 %v8119, 112
    %v8177 = vpop.permute.xlu0 %8176
    %v8180 = vsel %vm897, %v7429, %v8127
    %v8181 = vsel %vm897, %v7475, %v8129
    %v8182 = vsel %vm304, %v8180, %v8135
    %v8183 = vsel %vm304, %v8181, %v8137
    %v8184 = vsel %vm2624, %v8182, %v8143
    %v8185 = vsel %vm2624, %v8183, %v8145
    %v8186 = vsel %vm2627, %v8184, %v8151
    %v8187 = vsel %vm2627, %v8185, %v8153
    %v8188 = vsel %vm2630, %v8186, %v8159
    %v8189 = vsel %vm2630, %v8187, %v8161
    %v8190 = vsel %vm2633, %v8188, %v8167
    %v8191 = vsel %vm2633, %v8189, %v8169
    %v8192 = vsel %vm2636, %v8190, %v8175
    %v8193 = vsel %vm2636, %v8191, %v8177
    %v8194 = vpack.c.bf16 %v8193, %v8192
    %s8195 = scalar_lea.vmem [#allocation14], 128
    %v8196 = vld [vmem:[%s8195] sm:$0xf]
    %v8197 = vld [vmem:[%s8195 + $0x4] sm:$0xf]
    %v8198 = vld [vmem:[%s8195 + $0x8] sm:$0xf]
    %v8199 = vld [vmem:[%s8195 + $0xc] sm:$0xf]
    %v8200 = vld [vmem:[%s8195 + $0x10] sm:$0xf]
    %v8201 = vld [vmem:[%s8195 + $0x14] sm:$0xf]
    %v8202 = vld [vmem:[%s8195 + $0x18] sm:$0xf]
    %v8203 = vld [vmem:[%s8195 + $0x1c] sm:$0xf]
    %v8204 = vld [vmem:[%s8195 + $0x20] sm:$0xf]
    %v8205 = vld [vmem:[%s8195 + $0x24] sm:$0xf]
    %v8206 = vld [vmem:[%s8195 + $0x28] sm:$0xf]
    %v8207 = vld [vmem:[%s8195 + $0x2c] sm:$0xf]
    %v8208 = vld [vmem:[%s8195 + $0x30] sm:$0xf]
    %v8209 = vld [vmem:[%s8195 + $0x34] sm:$0xf]
    %v8210 = vld [vmem:[%s8195 + $0x38] sm:$0xf]
    %v8211 = vld [vmem:[%s8195 + $0x3c] sm:$0xf]
    %v8212 = vld [vmem:[#allocation16 + $0x2] sm:$0x1]
    %v8213 = vlaneseq
    %v8214 = vshrl.u32 %v8213, 7
    %v8215 = vsub.s32 0, %v8214
    %v8216 = vrot.slane %v8212, %v8215
    %v8233 = vunpack.c.l.b16 %v8196
    %v8234 = vunpack.c.l.b16 %v8197
    %v8235 = vunpack.c.l.b16 %v8198
    %v8236 = vunpack.c.l.b16 %v8199
    %v8237 = vunpack.c.l.b16 %v8200
    %v8238 = vunpack.c.l.b16 %v8201
    %v8239 = vunpack.c.l.b16 %v8202
    %v8240 = vunpack.c.l.b16 %v8203
    %v8241 = vunpack.c.l.b16 %v8204
    %v8242 = vunpack.c.l.b16 %v8205
    %v8243 = vunpack.c.l.b16 %v8206
    %v8244 = vunpack.c.l.b16 %v8207
    %v8245 = vunpack.c.l.b16 %v8208
    %v8246 = vunpack.c.l.b16 %v8209
    %v8247 = vunpack.c.l.b16 %v8210
    %v8248 = vunpack.c.l.b16 %v8211
    %v8249 = vpack.c.b16 %v8234, %v8233
    %v8250 = vpack.c.b16 %v8236, %v8235
    %v8251 = vpack.c.b16 %v8238, %v8237
    %v8252 = vpack.c.b16 %v8240, %v8239
    %v8253 = vpack.c.b16 %v8242, %v8241
    %v8254 = vpack.c.b16 %v8244, %v8243
    %v8255 = vpack.c.b16 %v8246, %v8245
    %v8256 = vpack.c.b16 %v8248, %v8247
    %8265 = vmatprep.subr.bf16.mxu0 0
    %8266 = vmatpush1.bf16.msra.mxu0 %v8249
    %8267 = vmatprep.subr.bf16.mxu0 0
    %8268 = vmatpush1.bf16.msra.mxu0 %v8250
    %8269 = vmatprep.subr.bf16.mxu0 0
    %8270 = vmatpush1.bf16.msra.mxu0 %v8251
    %8271 = vmatprep.subr.bf16.mxu0 0
    %8272 = vmatpush1.bf16.msra.mxu0 %v8252
    %8273 = vmatprep.subr.bf16.mxu0 0
    %8274 = vmatpush1.bf16.msra.mxu0 %v8253
    %8275 = vmatprep.subr.bf16.mxu0 0
    %8276 = vmatpush1.bf16.msra.mxu0 %v8254
    %8277 = vmatprep.subr.bf16.mxu0 0
    %8278 = vmatpush1.bf16.msra.mxu0 %v8255
    %8279 = vmatprep.subr.bf16.mxu0 0
    %8280 = vmatpush1.bf16.msra.mxu0 %v8256
    %8281 = vmatprep.subr.bf16.mxu0 0
    %8282 = vmatpush1.bf16.msra.mxu0 0
    %8283 = vmatprep.subr.bf16.mxu0 0
    %8284 = vmatpush1.bf16.msra.mxu0 0
    %8285 = vmatprep.subr.bf16.mxu0 0
    %8286 = vmatpush1.bf16.msra.mxu0 0
    %8287 = vmatprep.subr.bf16.mxu0 0
    %8288 = vmatpush1.bf16.msra.mxu0 0
    %8289 = vmatprep.subr.bf16.mxu0 0
    %8290 = vmatpush1.bf16.msra.mxu0 0
    %8291 = vmatprep.subr.bf16.mxu0 0
    %8292 = vmatpush1.bf16.msra.mxu0 0
    %8293 = vmatprep.subr.bf16.mxu0 0
    %8294 = vmatpush1.bf16.msra.mxu0 0
    %8295 = vmatprep.subr.bf16.mxu0 0
    %8296 = vmatpush1.bf16.msra.mxu0 0
    %8297 = vmatprep.mubr.bf16.mxu0 0
    %8298 = vmatmul.mubr.bf16.gmra.mrb[0].mxu0 %v8194
    %v8299 = vpop.f32.mrb[0].mxu0
    %v8300 = vadd.f32 %v8216, %v8299
    %v8301 = vpop.f32.mrb[0].mxu0
    %v8302 = vpop.f32.mrb[0].mxu0
    %v8303 = vadd.f32 %v8216, %v8302
    %v8304 = vpop.f32.mrb[0].mxu0
    %8305 = vdwg.mxu0
    %v8306 = vadd.f32 %v5944, %v8300
    %v8307 = vadd.f32 %v5945, %v8303
    %v8308 = vld [vmem:[#allocation17 + $0x2] sm:$0x1]
    %v8309 = vld [vmem:[#allocation19 + $0x2] sm:$0x1]
    %8310 = vadd.xlane.f32.xlu0 %v8306
    %v8311 = vpop.xlane.xlu0 %8310
    %8312 = vadd.xlane.f32.xlu0 %v8307
    %v8313 = vpop.xlane.xlu0 %8312
    %v8314 = vmul.f32 %v8311, %v2758
    %v8315 = vmul.f32 %v8313, %v2758
    %v8316 = vmul.f32 %v8306, %v8306
    %v8317 = vmul.f32 %v8307, %v8307
    %8318 = vadd.xlane.f32.xlu0 %v8316
    %v8319 = vpop.xlane.xlu0 %8318
    %8320 = vadd.xlane.f32.xlu0 %v8317
    %v8321 = vpop.xlane.xlu0 %8320
    %v8322 = vmul.f32 %v8319, %v2758
    %v8323 = vmul.f32 %v8321, %v2758
    %v8324 = vmul.f32 %v8314, %v8314
    %v8325 = vmul.f32 %v8315, %v8315
    %v8326 = vsub.f32 %v8322, %v8324
    %v8327 = vsub.f32 %v8323, %v8325
    %v8328 = vsub.f32 %v8306, %v8314
    %v8329 = vsub.f32 %v8307, %v8315
    %v8330 = vadd.f32 %v8326, 1e-05
    %v8331 = vadd.f32 %v8327, 1e-05
    %v8332 = vrsqrt.pop %v8330
    %v8333 = vrsqrt.pop %v8331
    %v8334 = vmul.f32 %v8328, %v8332
    %v8335 = vmul.f32 %v8329, %v8333
    %v8336 = vlaneseq
    %v8337 = vshrl.u32 %v8336, 7
    %v8338 = vsub.s32 0, %v8337
    %v8339 = vrot.slane %v8308, %v8338
    %v8340 = vmul.f32 %v8334, %v8339
    %v8341 = vmul.f32 %v8335, %v8339
    %v8342 = vlaneseq
    %v8343 = vshrl.u32 %v8342, 7
    %v8344 = vsub.s32 0, %v8343
    %v8345 = vrot.slane %v8309, %v8344
    %v8346 = vadd.f32 %v8340, %v8345
    %v8347 = vadd.f32 %v8341, %v8345
    %v8348 = vpack.c.bf16 %v8347, %v8346
    %s8349 = scalar_lea.vmem [#allocation20], 256
    %v8350 = vld [vmem:[%s8349] sm:$0xff]
    %v8351 = vld [vmem:[%s8349 + $0x8] sm:$0xff]
    %v8352 = vld [vmem:[%s8349 + $0x10] sm:$0xff]
    %v8353 = vld [vmem:[%s8349 + $0x18] sm:$0xff]
    %v8354 = vld [vmem:[%s8349 + $0x20] sm:$0xff]
    %v8355 = vld [vmem:[%s8349 + $0x28] sm:$0xff]
    %v8356 = vld [vmem:[%s8349 + $0x30] sm:$0xff]
    %v8357 = vld [vmem:[%s8349 + $0x38] sm:$0xff]
    %v8358 = vld [vmem:[%s8349 + $0x40] sm:$0xff]
    %v8359 = vld [vmem:[%s8349 + $0x48] sm:$0xff]
    %v8360 = vld [vmem:[%s8349 + $0x50] sm:$0xff]
    %v8361 = vld [vmem:[%s8349 + $0x58] sm:$0xff]
    %v8362 = vld [vmem:[%s8349 + $0x60] sm:$0xff]
    %v8363 = vld [vmem:[%s8349 + $0x68] sm:$0xff]
    %v8364 = vld [vmem:[%s8349 + $0x70] sm:$0xff]
    %v8365 = vld [vmem:[%s8349 + $0x78] sm:$0xff]
    %s8366 = scalar_lea.vmem [#allocation22], 2
    %v8367 = vld [vmem:[%s8366] ss:$4 sm:$0x3]
    %v8369 = vlaneseq
    %v8370 = vshrl.u32 %v8369, 7
    %v8371 = vsub.s32 0, %v8370
    %v8372 = vrot.slane %v8367, %v8371
    %v8373 = vlaneseq
    %v8374 = vshrl.u32 %v8373, 7
    %v8375 = vsub.s32 1, %v8374
    %v8376 = vrot.slane %v8367, %v8375
    %v8395 = vunpack.c.l.b16 %v8350
    %v8396 = vunpack.c.h.b16 %v8350
    %v8397 = vunpack.c.l.b16 %v8351
    %v8398 = vunpack.c.h.b16 %v8351
    %v8399 = vunpack.c.l.b16 %v8352
    %v8400 = vunpack.c.h.b16 %v8352
    %v8401 = vunpack.c.l.b16 %v8353
    %v8402 = vunpack.c.h.b16 %v8353
    %v8403 = vunpack.c.l.b16 %v8354
    %v8404 = vunpack.c.h.b16 %v8354
    %v8405 = vunpack.c.l.b16 %v8355
    %v8406 = vunpack.c.h.b16 %v8355
    %v8407 = vunpack.c.l.b16 %v8356
    %v8408 = vunpack.c.h.b16 %v8356
    %v8409 = vunpack.c.l.b16 %v8357
    %v8410 = vunpack.c.h.b16 %v8357
    %v8411 = vunpack.c.l.b16 %v8358
    %v8412 = vunpack.c.h.b16 %v8358
    %v8413 = vunpack.c.l.b16 %v8359
    %v8414 = vunpack.c.h.b16 %v8359
    %v8415 = vunpack.c.l.b16 %v8360
    %v8416 = vunpack.c.h.b16 %v8360
    %v8417 = vunpack.c.l.b16 %v8361
    %v8418 = vunpack.c.h.b16 %v8361
    %v8419 = vunpack.c.l.b16 %v8362
    %v8420 = vunpack.c.h.b16 %v8362
    %v8421 = vunpack.c.l.b16 %v8363
    %v8422 = vunpack.c.h.b16 %v8363
    %v8423 = vunpack.c.l.b16 %v8364
    %v8424 = vunpack.c.h.b16 %v8364
    %v8425 = vunpack.c.l.b16 %v8365
    %v8426 = vunpack.c.h.b16 %v8365
    %v8427 = vpack.c.b16 %v8397, %v8395
    %v8428 = vpack.c.b16 %v8398, %v8396
    %v8429 = vpack.c.b16 %v8401, %v8399
    %v8430 = vpack.c.b16 %v8402, %v8400
    %v8431 = vpack.c.b16 %v8405, %v8403
    %v8432 = vpack.c.b16 %v8406, %v8404
    %v8433 = vpack.c.b16 %v8409, %v8407
    %v8434 = vpack.c.b16 %v8410, %v8408
    %v8435 = vpack.c.b16 %v8413, %v8411
    %v8436 = vpack.c.b16 %v8414, %v8412
    %v8437 = vpack.c.b16 %v8417, %v8415
    %v8438 = vpack.c.b16 %v8418, %v8416
    %v8439 = vpack.c.b16 %v8421, %v8419
    %v8440 = vpack.c.b16 %v8422, %v8420
    %v8441 = vpack.c.b16 %v8425, %v8423
    %v8442 = vpack.c.b16 %v8426, %v8424
    %8459 = vmatprep.subr.bf16.mxu0 %v8428
    %8460 = vmatpush1.bf16.msra.mxu0 %v8427
    %8461 = vmatprep.subr.bf16.mxu0 %v8430
    %8462 = vmatpush1.bf16.msra.mxu0 %v8429
    %8463 = vmatprep.subr.bf16.mxu0 %v8432
    %8464 = vmatpush1.bf16.msra.mxu0 %v8431
    %8465 = vmatprep.subr.bf16.mxu0 %v8434
    %8466 = vmatpush1.bf16.msra.mxu0 %v8433
    %8467 = vmatprep.subr.bf16.mxu0 %v8436
    %8468 = vmatpush1.bf16.msra.mxu0 %v8435
    %8469 = vmatprep.subr.bf16.mxu0 %v8438
    %8470 = vmatpush1.bf16.msra.mxu0 %v8437
    %8471 = vmatprep.subr.bf16.mxu0 %v8440
    %8472 = vmatpush1.bf16.msra.mxu0 %v8439
    %8473 = vmatprep.subr.bf16.mxu0 %v8442
    %8474 = vmatpush1.bf16.msra.mxu0 %v8441
    %8475 = vmatprep.subr.bf16.mxu0 0
    %8476 = vmatpush1.bf16.msra.mxu0 0
    %8477 = vmatprep.subr.bf16.mxu0 0
    %8478 = vmatpush1.bf16.msra.mxu0 0
    %8479 = vmatprep.subr.bf16.mxu0 0
    %8480 = vmatpush1.bf16.msra.mxu0 0
    %8481 = vmatprep.subr.bf16.mxu0 0
    %8482 = vmatpush1.bf16.msra.mxu0 0
    %8483 = vmatprep.subr.bf16.mxu0 0
    %8484 = vmatpush1.bf16.msra.mxu0 0
    %8485 = vmatprep.subr.bf16.mxu0 0
    %8486 = vmatpush1.bf16.msra.mxu0 0
    %8487 = vmatprep.subr.bf16.mxu0 0
    %8488 = vmatpush1.bf16.msra.mxu0 0
    %8489 = vmatprep.subr.bf16.mxu0 0
    %8490 = vmatpush1.bf16.msra.mxu0 0
    %8491 = vmatprep.mubr.bf16.mxu0 0
    %8492 = vmatmul.mubr.bf16.gmra.mrb[0].mxu0 %v8348
    %v8493 = vpop.f32.mrb[0].mxu0
    %v8494 = vadd.f32 %v8372, %v8493
    %v8495 = vpop.f32.mrb[0].mxu0
    %v8496 = vadd.f32 %v8376, %v8495
    %v8497 = vpop.f32.mrb[0].mxu0
    %v8498 = vadd.f32 %v8372, %v8497
    %v8499 = vpop.f32.mrb[0].mxu0
    %v8500 = vadd.f32 %v8376, %v8499
    %8501 = vdwg.mxu0
    %v8502 = vmax.f32 %v8494, 0.0
    %v8503 = vmax.f32 %v8496, 0.0
    %v8504 = vmax.f32 %v8498, 0.0
    %v8505 = vmax.f32 %v8500, 0.0
    %v8506 = vpack.c.bf16 %v8504, %v8502
    %v8507 = vpack.c.bf16 %v8505, %v8503
    %s8508 = scalar_lea.vmem [#allocation23], 256
    %v8509 = vld [vmem:[%s8508] sm:$0xf]
    %v8510 = vld [vmem:[%s8508 + $0x4] sm:$0xf]
    %v8511 = vld [vmem:[%s8508 + $0x8] sm:$0xf]
    %v8512 = vld [vmem:[%s8508 + $0xc] sm:$0xf]
    %v8513 = vld [vmem:[%s8508 + $0x10] sm:$0xf]
    %v8514 = vld [vmem:[%s8508 + $0x14] sm:$0xf]
    %v8515 = vld [vmem:[%s8508 + $0x18] sm:$0xf]
    %v8516 = vld [vmem:[%s8508 + $0x1c] sm:$0xf]
    %v8517 = vld [vmem:[%s8508 + $0x20] sm:$0xf]
    %v8518 = vld [vmem:[%s8508 + $0x24] sm:$0xf]
    %v8519 = vld [vmem:[%s8508 + $0x28] sm:$0xf]
    %v8520 = vld [vmem:[%s8508 + $0x2c] sm:$0xf]
    %v8521 = vld [vmem:[%s8508 + $0x30] sm:$0xf]
    %v8522 = vld [vmem:[%s8508 + $0x34] sm:$0xf]
    %v8523 = vld [vmem:[%s8508 + $0x38] sm:$0xf]
    %v8524 = vld [vmem:[%s8508 + $0x3c] sm:$0xf]
    %v8525 = vld [vmem:[%s8508 + $0x40] sm:$0xf]
    %v8526 = vld [vmem:[%s8508 + $0x44] sm:$0xf]
    %v8527 = vld [vmem:[%s8508 + $0x48] sm:$0xf]
    %v8528 = vld [vmem:[%s8508 + $0x4c] sm:$0xf]
    %v8529 = vld [vmem:[%s8508 + $0x50] sm:$0xf]
    %v8530 = vld [vmem:[%s8508 + $0x54] sm:$0xf]
    %v8531 = vld [vmem:[%s8508 + $0x58] sm:$0xf]
    %v8532 = vld [vmem:[%s8508 + $0x5c] sm:$0xf]
    %v8533 = vld [vmem:[%s8508 + $0x60] sm:$0xf]
    %v8534 = vld [vmem:[%s8508 + $0x64] sm:$0xf]
    %v8535 = vld [vmem:[%s8508 + $0x68] sm:$0xf]
    %v8536 = vld [vmem:[%s8508 + $0x6c] sm:$0xf]
    %v8537 = vld [vmem:[%s8508 + $0x70] sm:$0xf]
    %v8538 = vld [vmem:[%s8508 + $0x74] sm:$0xf]
    %v8539 = vld [vmem:[%s8508 + $0x78] sm:$0xf]
    %v8540 = vld [vmem:[%s8508 + $0x7c] sm:$0xf]
    %v8541 = vld [vmem:[#allocation25 + $0x2] sm:$0x1]
    %v8542 = vlaneseq
    %v8543 = vshrl.u32 %v8542, 7
    %v8544 = vsub.s32 0, %v8543
    %v8545 = vrot.slane %v8541, %v8544
    %v8578 = vunpack.c.l.b16 %v8509
    %v8579 = vunpack.c.l.b16 %v8510
    %v8580 = vunpack.c.l.b16 %v8511
    %v8581 = vunpack.c.l.b16 %v8512
    %v8582 = vunpack.c.l.b16 %v8513
    %v8583 = vunpack.c.l.b16 %v8514
    %v8584 = vunpack.c.l.b16 %v8515
    %v8585 = vunpack.c.l.b16 %v8516
    %v8586 = vunpack.c.l.b16 %v8517
    %v8587 = vunpack.c.l.b16 %v8518
    %v8588 = vunpack.c.l.b16 %v8519
    %v8589 = vunpack.c.l.b16 %v8520
    %v8590 = vunpack.c.l.b16 %v8521
    %v8591 = vunpack.c.l.b16 %v8522
    %v8592 = vunpack.c.l.b16 %v8523
    %v8593 = vunpack.c.l.b16 %v8524
    %v8594 = vunpack.c.l.b16 %v8525
    %v8595 = vunpack.c.l.b16 %v8526
    %v8596 = vunpack.c.l.b16 %v8527
    %v8597 = vunpack.c.l.b16 %v8528
    %v8598 = vunpack.c.l.b16 %v8529
    %v8599 = vunpack.c.l.b16 %v8530
    %v8600 = vunpack.c.l.b16 %v8531
    %v8601 = vunpack.c.l.b16 %v8532
    %v8602 = vunpack.c.l.b16 %v8533
    %v8603 = vunpack.c.l.b16 %v8534
    %v8604 = vunpack.c.l.b16 %v8535
    %v8605 = vunpack.c.l.b16 %v8536
    %v8606 = vunpack.c.l.b16 %v8537
    %v8607 = vunpack.c.l.b16 %v8538
    %v8608 = vunpack.c.l.b16 %v8539
    %v8609 = vunpack.c.l.b16 %v8540
    %v8610 = vpack.c.b16 %v8579, %v8578
    %v8611 = vpack.c.b16 %v8581, %v8580
    %v8612 = vpack.c.b16 %v8583, %v8582
    %v8613 = vpack.c.b16 %v8585, %v8584
    %v8614 = vpack.c.b16 %v8587, %v8586
    %v8615 = vpack.c.b16 %v8589, %v8588
    %v8616 = vpack.c.b16 %v8591, %v8590
    %v8617 = vpack.c.b16 %v8593, %v8592
    %v8618 = vpack.c.b16 %v8595, %v8594
    %v8619 = vpack.c.b16 %v8597, %v8596
    %v8620 = vpack.c.b16 %v8599, %v8598
    %v8621 = vpack.c.b16 %v8601, %v8600
    %v8622 = vpack.c.b16 %v8603, %v8602
    %v8623 = vpack.c.b16 %v8605, %v8604
    %v8624 = vpack.c.b16 %v8607, %v8606
    %v8625 = vpack.c.b16 %v8609, %v8608
    %8642 = vmatprep.subr.bf16.mxu0 0
    %8643 = vmatpush1.bf16.msra.mxu0 %v8610
    %8644 = vmatprep.subr.bf16.mxu0 0
    %8645 = vmatpush1.bf16.msra.mxu0 %v8611
    %8646 = vmatprep.subr.bf16.mxu0 0
    %8647 = vmatpush1.bf16.msra.mxu0 %v8612
    %8648 = vmatprep.subr.bf16.mxu0 0
    %8649 = vmatpush1.bf16.msra.mxu0 %v8613
    %8650 = vmatprep.subr.bf16.mxu0 0
    %8651 = vmatpush1.bf16.msra.mxu0 %v8614
    %8652 = vmatprep.subr.bf16.mxu0 0
    %8653 = vmatpush1.bf16.msra.mxu0 %v8615
    %8654 = vmatprep.subr.bf16.mxu0 0
    %8655 = vmatpush1.bf16.msra.mxu0 %v8616
    %8656 = vmatprep.subr.bf16.mxu0 0
    %8657 = vmatpush1.bf16.msra.mxu0 %v8617
    %8658 = vmatprep.subr.bf16.mxu0 0
    %8659 = vmatpush1.bf16.msra.mxu0 %v8618
    %8660 = vmatprep.subr.bf16.mxu0 0
    %8661 = vmatpush1.bf16.msra.mxu0 %v8619
    %8662 = vmatprep.subr.bf16.mxu0 0
    %8663 = vmatpush1.bf16.msra.mxu0 %v8620
    %8664 = vmatprep.subr.bf16.mxu0 0
    %8665 = vmatpush1.bf16.msra.mxu0 %v8621
    %8666 = vmatprep.subr.bf16.mxu0 0
    %8667 = vmatpush1.bf16.msra.mxu0 %v8622
    %8668 = vmatprep.subr.bf16.mxu0 0
    %8669 = vmatpush1.bf16.msra.mxu0 %v8623
    %8670 = vmatprep.subr.bf16.mxu0 0
    %8671 = vmatpush1.bf16.msra.mxu0 %v8624
    %8672 = vmatprep.subr.bf16.mxu0 0
    %8673 = vmatpush1.bf16.msra.mxu0 %v8625
    %8674 = vmatprep.mubr.bf16.mxu0 %v8507
    %8675 = vmatmul.mubr.bf16.gmra.mrb[0].mxu0 %v8506
    %v8676 = vpop.f32.mrb[0].mxu0
    %v8677 = vadd.f32 %v8545, %v8676
    %v8678 = vpop.f32.mrb[0].mxu0
    %v8679 = vpop.f32.mrb[0].mxu0
    %v8680 = vadd.f32 %v8545, %v8679
    %v8681 = vpop.f32.mrb[0].mxu0
    %8682 = vdwg.mxu0
    %v8683 = vadd.f32 %v8346, %v8677
    %v8684 = vadd.f32 %v8347, %v8680
    %v8685 = vld [vmem:[#allocation26 + $0x2] sm:$0x1]
    %v8686 = vld [vmem:[#allocation28 + $0x2] sm:$0x1]
    %8687 = vadd.xlane.f32.xlu0 %v8683
    %v8688 = vpop.xlane.xlu0 %8687
    %8689 = vadd.xlane.f32.xlu0 %v8684
    %v8690 = vpop.xlane.xlu0 %8689
    %v8691 = vmul.f32 %v8688, %v2758
    %v8692 = vmul.f32 %v8690, %v2758
    %v8693 = vmul.f32 %v8683, %v8683
    %v8694 = vmul.f32 %v8684, %v8684
    %8695 = vadd.xlane.f32.xlu0 %v8693
    %v8696 = vpop.xlane.xlu0 %8695
    %8697 = vadd.xlane.f32.xlu0 %v8694
    %v8698 = vpop.xlane.xlu0 %8697
    %v8699 = vmul.f32 %v8696, %v2758
    %v8700 = vmul.f32 %v8698, %v2758
    %v8701 = vmul.f32 %v8691, %v8691
    %v8702 = vmul.f32 %v8692, %v8692
    %v8703 = vsub.f32 %v8699, %v8701
    %v8704 = vsub.f32 %v8700, %v8702
    %v8705 = vsub.f32 %v8683, %v8691
    %v8706 = vsub.f32 %v8684, %v8692
    %v8707 = vadd.f32 %v8703, 1e-05
    %v8708 = vadd.f32 %v8704, 1e-05
    %v8709 = vrsqrt.pop %v8707
    %v8710 = vrsqrt.pop %v8708
    %v8711 = vmul.f32 %v8705, %v8709
    %v8712 = vmul.f32 %v8706, %v8710
    %v8713 = vlaneseq
    %v8714 = vshrl.u32 %v8713, 7
    %v8715 = vsub.s32 0, %v8714
    %v8716 = vrot.slane %v8685, %v8715
    %v8717 = vmul.f32 %v8711, %v8716
    %v8718 = vmul.f32 %v8712, %v8716
    %v8719 = vlaneseq
    %v8720 = vshrl.u32 %v8719, 7
    %v8721 = vsub.s32 0, %v8720
    %v8722 = vrot.slane %v8686, %v8721
    %v8723 = vadd.f32 %v8717, %v8722
    %v8724 = vadd.f32 %v8718, %v8722
    %v8725 = vrot.slane %v8723, 4
    %v8726 = vmax.f32 %v8723, %v8725
    %v8727 = vrot.slane %v8726, 2
    %v8728 = vmax.f32 %v8726, %v8727
    %v8729 = vrot.slane %v8728, 1
    %v8730 = vmax.f32 %v8728, %v8729
    %v8731 = vrot.slane %v8724, 4
    %v8732 = vmax.f32 %v8724, %v8731
    %v8733 = vrot.slane %v8732, 2
    %v8734 = vmax.f32 %v8732, %v8733
    %v8735 = vrot.slane %v8734, 1
    %v8736 = vmax.f32 %v8734, %v8735
    %v8737 = vpack.c.bf16 %v8730, %v8730
    %v8738 = vpack.c.bf16 %v8736, %v8736
    %v8739 = vld [vmem:[%s18] sm:$0xf]
    %v8740 = vld [vmem:[%s18 + $0x4] sm:$0xf]
    %v8741 = vld [vmem:[%s18 + $0x8] sm:$0xf]
    %v8742 = vld [vmem:[%s18 + $0xc] sm:$0xf]
    %v8743 = vld [vmem:[%s18 + $0x10] sm:$0xf]
    %v8744 = vld [vmem:[%s18 + $0x14] sm:$0xf]
    %v8745 = vld [vmem:[%s18 + $0x18] sm:$0xf]
    %v8746 = vld [vmem:[%s18 + $0x1c] sm:$0xf]
    %v8747 = vld [vmem:[%s18 + $0x20] sm:$0xf]
    %v8748 = vld [vmem:[%s18 + $0x24] sm:$0xf]
    %v8749 = vld [vmem:[%s18 + $0x28] sm:$0xf]
    %v8750 = vld [vmem:[%s18 + $0x2c] sm:$0xf]
    %v8751 = vld [vmem:[%s18 + $0x30] sm:$0xf]
    %v8752 = vld [vmem:[%s18 + $0x34] sm:$0xf]
    %v8753 = vld [vmem:[%s18 + $0x38] sm:$0xf]
    %v8754 = vld [vmem:[%s18 + $0x3c] sm:$0xf]
    %v8755 = vld [vmem:[%s19] sm:$0x1]
    %v8757 = vlaneseq
    %v8758 = vshrl.u32 %v8757, 7
    %v8759 = vsub.s32 0, %v8758
    %v8760 = vrot.slane %v8755, %v8759
    %v8764 = vunpack.c.l.b16 %v8737
    %v8765 = vunpack.c.l.b16 %v8738
    %vm8766 = vcmask 1041409
    %v8767 = vsel %vm8766, %v8765, %v8764
    %v8768 = vpack.c.b16 %v8767, %v8767
    %v8786 = vunpack.c.l.b16 %v8739
    %v8787 = vunpack.c.l.b16 %v8740
    %v8788 = vunpack.c.l.b16 %v8741
    %v8789 = vunpack.c.l.b16 %v8742
    %v8790 = vunpack.c.l.b16 %v8743
    %v8791 = vunpack.c.l.b16 %v8744
    %v8792 = vunpack.c.l.b16 %v8745
    %v8793 = vunpack.c.l.b16 %v8746
    %v8794 = vunpack.c.l.b16 %v8747
    %v8795 = vunpack.c.l.b16 %v8748
    %v8796 = vunpack.c.l.b16 %v8749
    %v8797 = vunpack.c.l.b16 %v8750
    %v8798 = vunpack.c.l.b16 %v8751
    %v8799 = vunpack.c.l.b16 %v8752
    %v8800 = vunpack.c.l.b16 %v8753
    %v8801 = vunpack.c.l.b16 %v8754
    %v8802 = vpack.c.b16 %v8787, %v8786
    %v8803 = vpack.c.b16 %v8789, %v8788
    %v8804 = vpack.c.b16 %v8791, %v8790
    %v8805 = vpack.c.b16 %v8793, %v8792
    %v8806 = vpack.c.b16 %v8795, %v8794
    %v8807 = vpack.c.b16 %v8797, %v8796
    %v8808 = vpack.c.b16 %v8799, %v8798
    %v8809 = vpack.c.b16 %v8801, %v8800
    %8818 = vmatprep.subr.bf16.mxu0 0
    %8819 = vmatpush1.bf16.msra.mxu0 %v8802
    %8820 = vmatprep.subr.bf16.mxu0 0
    %8821 = vmatpush1.bf16.msra.mxu0 %v8803
    %8822 = vmatprep.subr.bf16.mxu0 0
    %8823 = vmatpush1.bf16.msra.mxu0 %v8804
    %8824 = vmatprep.subr.bf16.mxu0 0
    %8825 = vmatpush1.bf16.msra.mxu0 %v8805
    %8826 = vmatprep.subr.bf16.mxu0 0
    %8827 = vmatpush1.bf16.msra.mxu0 %v8806
    %8828 = vmatprep.subr.bf16.mxu0 0
    %8829 = vmatpush1.bf16.msra.mxu0 %v8807
    %8830 = vmatprep.subr.bf16.mxu0 0
    %8831 = vmatpush1.bf16.msra.mxu0 %v8808
    %8832 = vmatprep.subr.bf16.mxu0 0
    %8833 = vmatpush1.bf16.msra.mxu0 %v8809
    %8834 = vmatprep.subr.bf16.mxu0 0
    %8835 = vmatpush1.bf16.msra.mxu0 0
    %8836 = vmatprep.subr.bf16.mxu0 0
    %8837 = vmatpush1.bf16.msra.mxu0 0
    %8838 = vmatprep.subr.bf16.mxu0 0
    %8839 = vmatpush1.bf16.msra.mxu0 0
    %8840 = vmatprep.subr.bf16.mxu0 0
    %8841 = vmatpush1.bf16.msra.mxu0 0
    %8842 = vmatprep.subr.bf16.mxu0 0
    %8843 = vmatpush1.bf16.msra.mxu0 0
    %8844 = vmatprep.subr.bf16.mxu0 0
    %8845 = vmatpush1.bf16.msra.mxu0 0
    %8846 = vmatprep.subr.bf16.mxu0 0
    %8847 = vmatpush1.bf16.msra.mxu0 0
    %8848 = vmatprep.subr.bf16.mxu0 0
    %8849 = vmatpush1.bf16.msra.mxu0 0
    %8850 = vmatprep.mubr.bf16.mxu0 0
    %8851 = vmatmul.mubr.bf16.gmra.mrb[0].mxu0 %v8768
    %v8852 = vpop.f32.mrb[0].mxu0
    %v8853 = vadd.f32 %v8760, %v8852
    %v8854 = vpop.f32.mrb[0].mxu0
    %v8855 = vpop.f32.mrb[0].mxu0
    %v8856 = vpop.f32.mrb[0].mxu0
    %8857 = vdwg.mxu0
    %8858 = vst [vmem:[#allocation29] sm:$0x3] %v8853
    // Predicated region
    $region150: #{tpu_custom_call.1} parent=1 // pred_check
      _
    $region151: #{tpu_custom_call.1} parent=1 // pred_check_branch
      %8860 = sbr.rel (0) target = $region153
    $region152: #{tpu_custom_call.1} parent=1 // pred_region
      %s8862 = ssub.s32 32, 32
      %8863 = vsyncadd [#allocation4], %s8862
      %s8865 = sshll.u32 [#allocation29], 4
      %s8866 = int_to_ptr.vmem [resolvable:$true] %s8865
      %8868 = dma.vmem_to_hbm [thread:$0]  %s8866, 32, %s20, [#allocation4]
    $region153: #{tpu_custom_call.1} parent=1 // pred_fallthru
      _
    // Predicated region
    $region154: #{tpu_custom_call.1} parent=1 // pred_check
      _
    $region155: #{tpu_custom_call.1} parent=1 // pred_check_branch
      %8870 = sbr.rel (0) target = $region157
    $region156: #{tpu_custom_call.1} parent=1 // pred_region
      %8871 = dma.done [#allocation4], 32
    $region157: #{tpu_custom_call.1} parent=1 // pred_fallthru
      _
    %8872 = vsyncpa [#allocation3], 1
    %8873 = vsyncpa [#allocation6], 1
    %8874 = vsyncpa [#allocation9], 1
    %8875 = vsyncpa [#allocation12], 1
    %8876 = vsyncpa [#allocation15], 1
    %8877 = vsyncpa [#allocation18], 1
    %8878 = vsyncpa [#allocation21], 1
    %8879 = vsyncpa [#allocation24], 1
    %8880 = vsyncpa [#allocation27], 1
    %8881 = vsyncpa [#allocation4], 1

</llo_original>
